<compile_context>
chip_gen: v6e
topology: v6e:2x2x1
jax: 0.10.0
libtpu: 0.0.40
codegen_flags: <defaults>
</compile_context>

<pallas_src>
import math
from functools import partial, lru_cache

import numpy as np
import jax
import jax.numpy as jnp
from jax import lax
from jax.experimental import pallas as pl
from jax.experimental.pallas import tpu as pltpu


# ----------------------------------------------------------------------------
# Small helpers
# ----------------------------------------------------------------------------

def _recip(x):
    if hasattr(pl, "reciprocal"):
        return pl.reciprocal(x, approx=True)      # EUP slot, nearly free
    return 1.0 / x


def _tpu_params():
    cls = getattr(pltpu, "CompilerParams", None)
    if cls is None:
        return None
    try:
        return cls(dimension_semantics=("arbitrary",))   # layer axis is sequential
    except TypeError:
        return None


def _round_up(n, m):
    return ((n + m - 1) // m) * m


def _const_spec_shape(shape):
    nd = len(shape)
    return pl.BlockSpec(tuple(shape), lambda l, _nd=nd: (0,) * _nd)


def _const_spec(a):
    return _const_spec_shape(a.shape)


def _layer_spec(a):
    nd = a.ndim
    return pl.BlockSpec((None,) + tuple(a.shape[1:]),
                        lambda l, _nd=nd: (l,) + (0,) * (_nd - 1))


# ----------------------------------------------------------------------------
# In-kernel math (pure functions on loaded values)
# ----------------------------------------------------------------------------

def _mm(x, w):
    """x: (M, K) f32 activation, w: (K, N) bf16 pre-transposed weight."""
    return jnp.dot(x.astype(jnp.bfloat16), w, preferred_element_type=jnp.float32)


def _ln(x, g, b, eps=1e-5):
    # one-pass statistics: var = E[x^2] - mean^2
    mean = jnp.mean(x, axis=-1, keepdims=True)
    msq = jnp.mean(x * x, axis=-1, keepdims=True)
    var = msq - mean * mean
    return (x - mean) * lax.rsqrt(var + eps) * g + b


def _mha(q2, k2, v2, wo_ref, nhead, B, Lq, Lk):
    """q2: (B*Lq, D), k2/v2: (B*Lk, D).  Returns multi-head attention already
    multiplied by the output projection:  sum_h attn_h @ Wo[h*Dh:(h+1)*Dh, :]
    (no per-head concat).  Batch axis handled as an einsum batch dim."""
    D = q2.shape[-1]
    Dh = D // nhead
    scale = 1.0 / math.sqrt(Dh)
    q3 = q2.reshape(B, Lq, D).astype(jnp.bfloat16)
    k3 = k2.reshape(B, Lk, D).astype(jnp.bfloat16)
    v3 = v2.reshape(B, Lk, D).astype(jnp.bfloat16)
    out = jnp.zeros((B * Lq, D), jnp.float32)
    for h in range(nhead):
        sl = slice(h * Dh, (h + 1) * Dh)
        s = jnp.einsum("bqd,bkd->bqk", q3[:, :, sl], k3[:, :, sl],
                       preferred_element_type=jnp.float32) * scale
        m = jnp.max(s, axis=-1, keepdims=True)
        p = jnp.exp(s - m)
        p = p * _recip(jnp.sum(p, axis=-1, keepdims=True))
        oh = jnp.einsum("bqk,bkd->bqd", p.astype(jnp.bfloat16), v3[:, :, sl],
                        preferred_element_type=jnp.float32)          # (B, Lq, Dh)
        out = out + jnp.dot(oh.reshape(B * Lq, Dh).astype(jnp.bfloat16),
                            wo_ref[sl, :],                            # (Dh, D) bf16
                            preferred_element_type=jnp.float32)
    return out


def _encoder_layer_body(x, wqkv_ref, wo_ref, w1_ref, w2_ref, c, nhead, B, L, D, F):
    """One nn.TransformerEncoderLayer (post-norm, ReLU, dropout=identity)."""
    bqkv = c[0:1, :3 * D]
    bo = c[1:2, :D]
    g1 = c[2:3, :D]
    be1 = c[3:4, :D]
    bf1 = c[4:5, :F]
    bf2 = c[5:6, :D]
    g2 = c[6:7, :D]
    be2 = c[7:8, :D]

    qkv = _mm(x, wqkv_ref[...]) + bqkv                              # (B*L, 3D)
    a = _mha(qkv[:, :D], qkv[:, D:2 * D], qkv[:, 2 * D:],
             wo_ref, nhead, B, L, L) + bo
    x = _ln(x + a, g1, be1)
    h = jnp.maximum(_mm(x, w1_ref[...]) + bf1, 0.0)
    f = _mm(h, w2_ref[...]) + bf2
    return _ln(x + f, g2, be2)


# ----------------------------------------------------------------------------
# Fused stack kernels (grid over the layer axis)
# ----------------------------------------------------------------------------

def _csi_encoder_kernel(xin_ref, w_in_ref, peb_ref,
                        wqkv_ref, wo_ref, w1_ref, w2_ref, c_ref,
                        o_ref, x_scr, *, nhead, B, L, D, F):
    l = pl.program_id(0)

    @pl.when(l == 0)
    def _():
        # fused: input projection + bias + positional encoding
        x_scr[...] = _mm(xin_ref[...], w_in_ref[...]) + peb_ref[...]

    x = _encoder_layer_body(x_scr[...], wqkv_ref, wo_ref, w1_ref, w2_ref,
                            c_ref[...], nhead, B, L, D, F)
    x_scr[...] = x

    @pl.when(l == pl.num_programs(0) - 1)
    def _():
        o_ref[...] = x


def _csi_decoder_kernel(tgt_ref, qpe_ref, mem_in_ref, wmem_ref, mpeb_ref,
                        s_wqkv_ref, s_wo_ref, c_wq_ref, c_wkv_ref, c_wo_ref,
                        w1_ref, w2_ref, c_ref, wout_ref, bout_ref,
                        o_ref, x_scr, mem_scr, *, nhead, B, Lq, Lk, D, F):
    l = pl.program_id(0)

    @pl.when(l == 0)
    def _():
        # fused: query positional encoding + memory projection + memory PE
        x_scr[...] = tgt_ref[...] + qpe_ref[...]
        mem_scr[...] = _mm(mem_in_ref[...], wmem_ref[...]) + mpeb_ref[...]

    x = x_scr[...]                                                   # (B*Lq, D)
    mem = mem_scr[...]                                               # (B*Lk, D)
    c = c_ref[...]
    s_bqkv = c[0:1, :3 * D]
    s_bo = c[1:2, :D]
    g1 = c[2:3, :D]
    be1 = c[3:4, :D]
    c_bq = c[4:5, :D]
    c_bkv = c[5:6, :2 * D]
    c_bo = c[6:7, :D]
    g2 = c[7:8, :D]
    be2 = c[8:9, :D]
    bf1 = c[9:10, :F]
    bf2 = c[10:11, :D]
    g3 = c[11:12, :D]
    be3 = c[12:13, :D]

    # self-attention on tgt
    qkv = _mm(x, s_wqkv_ref[...]) + s_bqkv
    a = _mha(qkv[:, :D], qkv[:, D:2 * D], qkv[:, 2 * D:],
             s_wo_ref, nhead, B, Lq, Lq) + s_bo
    x = _ln(x + a, g1, be1)

    # cross-attention (query from tgt, key/value from memory)
    q = _mm(x, c_wq_ref[...]) + c_bq
    kv = _mm(mem, c_wkv_ref[...]) + c_bkv
    cr = _mha(q, kv[:, :D], kv[:, D:], c_wo_ref, nhead, B, Lq, Lk) + c_bo
    x = _ln(x + cr, g2, be2)

    # feed-forward
    h = jnp.maximum(_mm(x, w1_ref[...]) + bf1, 0.0)
    f = _mm(h, w2_ref[...]) + bf2
    x = _ln(x + f, g3, be3)
    x_scr[...] = x

    @pl.when(l == pl.num_programs(0) - 1)
    def _():
        # fused output projection (lane-dense padded to 128 columns)
        o_ref[...] = _mm(x, wout_ref[...]) + bout_ref[...]


def _equalizer_kernel(rx_ref, csi_ref, wrx_ref, wcsi_ref, peb_ref,
                      wqkv_ref, wo_ref, w1_ref, w2_ref, c_ref,
                      wout_ref, bout_ref,
                      o_ref, x_scr, *, nhead, B, L, D, F):
    l = pl.program_id(0)

    @pl.when(l == 0)
    def _():
        # fused: concat([rx, csi]) @ W  ==  rx @ W_rx + csi @ W_csi   (+ bias + PE)
        x_scr[...] = (_mm(rx_ref[...], wrx_ref[...]) +
                      _mm(csi_ref[...], wcsi_ref[...]) + peb_ref[...])

    x = _encoder_layer_body(x_scr[...], wqkv_ref, wo_ref, w1_ref, w2_ref,
                            c_ref[...], nhead, B, L, D, F)
    x_scr[...] = x

    @pl.when(l == pl.num_programs(0) - 1)
    def _():
        o_ref[...] = _mm(x, wout_ref[...]) + bout_ref[...]


# ----------------------------------------------------------------------------
# pallas_call wrappers (one call per stack)
# ----------------------------------------------------------------------------

def csi_encoder_fwd(p, csi_flat, B, L, d_model, nhead):
    n_layers = p["wqkv"].shape[0]
    F = p["w1"].shape[-1]
    peb = jnp.tile(_pos_encoding(L, d_model) + p["b_in"][None], (B, 1))    # (B*L, D)
    args = [csi_flat, p["w_in"], peb,
            p["wqkv"], p["wo"], p["w1"], p["w2"], p["consts"]]
    in_specs = [_const_spec(csi_flat), _const_spec(p["w_in"]), _const_spec(peb),
                _layer_spec(p["wqkv"]), _layer_spec(p["wo"]),
                _layer_spec(p["w1"]), _layer_spec(p["w2"]), _layer_spec(p["consts"])]
    return pl.pallas_call(
        partial(_csi_encoder_kernel, nhead=nhead, B=B, L=L, D=d_model, F=F),
        grid=(n_layers,),
        in_specs=in_specs,
        out_specs=_const_spec_shape((B * L, d_model)),
        out_shape=jax.ShapeDtypeStruct((B * L, d_model), jnp.float32),
        scratch_shapes=[pltpu.VMEM((B * L, d_model), jnp.float32)],
        compiler_params=_tpu_params(),
    )(*args)


def csi_decoder_fwd(p, enc_feat, prev_flat, B, Lq, Lk, d_model, nhead):
    n_layers = p["s_wqkv"].shape[0]
    F = p["w1"].shape[-1]
    qpe = jnp.tile(_pos_encoding(Lq, d_model), (B, 1))                       # (B*Lq, D)
    mpeb = jnp.tile(_pos_encoding(Lk, d_model) + p["b_mem"][None], (B, 1))   # (B*Lk, D)
    n_pad = p["w_out"].shape[-1]
    args = [enc_feat, qpe, prev_flat, p["w_mem"], mpeb,
            p["s_wqkv"], p["s_wo"], p["c_wq"], p["c_wkv"], p["c_wo"],
            p["w1"], p["w2"], p["consts"], p["w_out"], p["b_out"]]
    in_specs = [_const_spec(enc_feat), _const_spec(qpe), _const_spec(prev_flat),
                _const_spec(p["w_mem"]), _const_spec(mpeb),
                _layer_spec(p["s_wqkv"]), _layer_spec(p["s_wo"]),
                _layer_spec(p["c_wq"]), _layer_spec(p["c_wkv"]), _layer_spec(p["c_wo"]),
                _layer_spec(p["w1"]), _layer_spec(p["w2"]), _layer_spec(p["consts"]),
                _const_spec(p["w_out"]), _const_spec(p["b_out"])]
    return pl.pallas_call(
        partial(_csi_decoder_kernel, nhead=nhead, B=B, Lq=Lq, Lk=Lk, D=d_model, F=F),
        grid=(n_layers,),
        in_specs=in_specs,
        out_specs=_const_spec_shape((B * Lq, n_pad)),
        out_shape=jax.ShapeDtypeStruct((B * Lq, n_pad), jnp.float32),
        scratch_shapes=[pltpu.VMEM((B * Lq, d_model), jnp.float32),
                        pltpu.VMEM((B * Lk, d_model), jnp.float32)],
        compiler_params=_tpu_params(),
    )(*args)


def equalizer_fwd(p, rx_flat, csi_flat, B, L, d_model, nhead):
    n_layers = p["wqkv"].shape[0]
    F = p["w1"].shape[-1]
    peb = jnp.tile(_pos_encoding(L, d_model) + p["b_in"][None], (B, 1))      # (B*L, D)
    n_pad = p["w_out"].shape[-1]
    args = [rx_flat, csi_flat, p["w_rx"], p["w_csi"], peb,
            p["wqkv"], p["wo"], p["w1"], p["w2"], p["consts"],
            p["w_out"], p["b_out"]]
    in_specs = [_const_spec(rx_flat), _const_spec(csi_flat),
                _const_spec(p["w_rx"]), _const_spec(p["w_csi"]), _const_spec(peb),
                _layer_spec(p["wqkv"]), _layer_spec(p["wo"]),
                _layer_spec(p["w1"]), _layer_spec(p["w2"]), _layer_spec(p["consts"]),
                _const_spec(p["w_out"]), _const_spec(p["b_out"])]
    return pl.pallas_call(
        partial(_equalizer_kernel, nhead=nhead, B=B, L=L, D=d_model, F=F),
        grid=(n_layers,),
        in_specs=in_specs,
        out_specs=_const_spec_shape((B * L, n_pad)),
        out_shape=jax.ShapeDtypeStruct((B * L, n_pad), jnp.float32),
        scratch_shapes=[pltpu.VMEM((B * L, d_model), jnp.float32)],
        compiler_params=_tpu_params(),
    )(*args)


# ----------------------------------------------------------------------------
# Positional encoding (precomputed once, constant-folded)
# ----------------------------------------------------------------------------

@lru_cache(maxsize=None)
def _pos_encoding(seq_len, d_model):
    position = np.arange(seq_len, dtype=np.float32)[:, None]
    div_term = np.exp(np.arange(0, d_model, 2, dtype=np.float32)
                      * (-math.log(10000.0) / d_model))
    pe = np.zeros((seq_len, d_model), np.float32)
    pe[:, 0::2] = np.sin(position * div_term)
    pe[:, 1::2] = np.cos(position * div_term)
    return jnp.asarray(pe)


# ----------------------------------------------------------------------------
# JointCEEQ forward
# ----------------------------------------------------------------------------

def joint_ceeq_fwd(params, csi_ls, previous_csi, rx_signal, *, d_model, nhead, n_tx, n_rx):
    B, n_subc, n_sym = csi_ls.shape[:3]
    n_frame = previous_csi.shape[1]
    L = n_subc * n_sym
    Lk = n_frame * L

    # --- CSIEncoder ---
    csi_flat = csi_ls.reshape(B * L, n_tx * n_rx * 2)
    enc_feat = csi_encoder_fwd(params["encoder"], csi_flat, B, L, d_model, nhead)

    # --- EnhancedCSIDecoder ---
    prev_flat = previous_csi.reshape(B * Lk, n_tx * n_rx * 2)
    dec_pad = csi_decoder_fwd(params["decoder"], enc_feat, prev_flat,
                              B, L, Lk, d_model, nhead)
    n_dec = n_tx * n_rx * 2
    csi_dec_flat = dec_pad[:, :n_dec]
    csi_dec = csi_dec_flat.reshape(B, n_subc, n_sym, n_tx, n_rx, 2)

    # --- EqaulizerFormer ---
    rx_flat = rx_signal.reshape(B * L, n_rx * 2)
    eq_pad = equalizer_fwd(params["equalizer"], rx_flat, csi_dec_flat,
                           B, L, d_model, nhead)
    eq = eq_pad[:, :n_tx * 2].reshape(B, n_subc, n_sym, n_tx, 2)
    return csi_dec, eq


# ----------------------------------------------------------------------------
# Parameter init (PyTorch layout)
# ----------------------------------------------------------------------------

def _init_linear(key, out_dim, in_dim):
    k1, k2 = jax.random.split(key)
    bound = 1.0 / math.sqrt(in_dim)
    return {
        "w": jax.random.uniform(k1, (out_dim, in_dim), jnp.float32, -bound, bound),
        "b": jax.random.uniform(k2, (out_dim,), jnp.float32, -bound, bound),
    }


def _init_mha(key, d_model):
    k1, k2 = jax.random.split(key)
    bound = math.sqrt(6.0 / (4 * d_model))  # xavier_uniform on in_proj_weight
    outp = _init_linear(k2, d_model, d_model)
    return {
        "in_w": jax.random.uniform(k1, (3 * d_model, d_model), jnp.float32, -bound, bound),
        "in_b": jnp.zeros((3 * d_model,), jnp.float32),
        "out_w": outp["w"],
        "out_b": jnp.zeros((d_model,), jnp.float32),
    }


def _init_ln(d_model):
    return {"g": jnp.ones((d_model,), jnp.float32), "b": jnp.zeros((d_model,), jnp.float32)}


def _init_ff(key, d_model, dim_ff):
    k1, k2 = jax.random.split(key)
    l1, l2 = _init_linear(k1, dim_ff, d_model), _init_linear(k2, d_model, dim_ff)
    return {"w1": l1["w"], "b1": l1["b"], "w2": l2["w"], "b2": l2["b"]}


def _init_encoder_layer(key, d_model, dim_ff):
    k1, k2 = jax.random.split(key)
    return {"self_attn": _init_mha(k1, d_model), "ff": _init_ff(k2, d_model, dim_ff),
            "norm1": _init_ln(d_model), "norm2": _init_ln(d_model)}


def _init_decoder_layer(key, d_model, dim_ff):
    k1, k2, k3 = jax.random.split(key, 3)
    return {"self_attn": _init_mha(k1, d_model), "cross_attn": _init_mha(k2, d_model),
            "ff": _init_ff(k3, d_model, dim_ff),
            "norm1": _init_ln(d_model), "norm2": _init_ln(d_model), "norm3": _init_ln(d_model)}


def init_joint_ceeq(key, d_model, nhead, n_layers, n_tx, n_rx, dim_ff):
    keys = jax.random.split(key, 8)
    # Faithful to the reference, CSIEncoder is built with (n_rx, n_rx):
    enc_in = n_rx * n_rx * 2
    encoder = {"input_proj": _init_linear(keys[0], d_model, enc_in),
               "layers": [_init_encoder_layer(k, d_model, dim_ff)
                          for k in jax.random.split(keys[1], n_layers)]}
    decoder = {"memory_proj": _init_linear(keys[2], d_model, n_tx * n_rx * 2),
               "output_proj": _init_linear(keys[3], n_tx * n_rx * 2, d_model),
               "layers": [_init_decoder_layer(k, d_model, dim_ff)
                          for k in jax.random.split(keys[4], n_layers)]}
    equalizer = {"input_proj": _init_linear(keys[5], d_model, n_rx * 2 + n_tx * n_rx * 2),
                 "output_proj": _init_linear(keys[6], n_tx * 2, d_model),
                 "layers": [_init_encoder_layer(k, d_model, dim_ff)
                            for k in jax.random.split(keys[7], n_layers)]}
    return {"encoder": encoder, "decoder": decoder, "equalizer": equalizer}


# ----------------------------------------------------------------------------
# Kernel-layout preparation (pre-transpose, stack per-layer, pack constants)
# ----------------------------------------------------------------------------

def _bf16_T(w):
    return jnp.asarray(w).T.astype(jnp.bfloat16)


def _pad_row(v, width):
    v = jnp.asarray(v, jnp.float32)
    return jnp.pad(v, (0, width - v.shape[0]))


def _prep_in_proj(p):
    return _bf16_T(p["w"]), jnp.asarray(p["b"], jnp.float32)


def _prep_out_proj(p, d_model):
    n_out = p["w"].shape[0]
    n_pad = _round_up(max(n_out, 1), 128)          # lane-dense output store
    w = jnp.zeros((d_model, n_pad), jnp.float32).at[:, :n_out].set(p["w"].T)
    b = jnp.zeros((1, n_pad), jnp.float32).at[0, :n_out].set(p["b"])
    return w.astype(jnp.bfloat16), b


def _prep_encoder_stack(layers, d_model, dim_ff):
    wc = _round_up(max(3 * d_model, dim_ff, d_model), 128)
    consts = jnp.stack([
        jnp.stack([_pad_row(lp["self_attn"]["in_b"], wc),    # 0: bqkv
                   _pad_row(lp["self_attn"]["out_b"], wc),   # 1: bo
                   _pad_row(lp["norm1"]["g"], wc),           # 2: g1
                   _pad_row(lp["norm1"]["b"], wc),           # 3: be1
                   _pad_row(lp["ff"]["b1"], wc),             # 4: bf1
                   _pad_row(lp["ff"]["b2"], wc),             # 5: bf2
                   _pad_row(lp["norm2"]["g"], wc),           # 6: g2
                   _pad_row(lp["norm2"]["b"], wc)])          # 7: be2
        for lp in layers])
    return {
        "wqkv": jnp.stack([_bf16_T(lp["self_attn"]["in_w"]) for lp in layers]),
        "wo": jnp.stack([_bf16_T(lp["self_attn"]["out_w"]) for lp in layers]),
        "w1": jnp.stack([_bf16_T(lp["ff"]["w1"]) for lp in layers]),
        "w2": jnp.stack([_bf16_T(lp["ff"]["w2"]) for lp in layers]),
        "consts": consts,
    }


def _prep_decoder_stack(layers, d_model, dim_ff):
    wc = _round_up(max(3 * d_model, dim_ff, d_model), 128)
    n_rows = 16                                    # 13 used, padded to multiple of 8

    def rows(lp):
        sa, ca = lp["self_attn"], lp["cross_attn"]
        r = [sa["in_b"],                 # 0:  s_bqkv
             sa["out_b"],                # 1:  s_bo
             lp["norm1"]["g"],           # 2:  g1
             lp["norm1"]["b"],           # 3:  be1
             ca["in_b"][:d_model],       # 4:  c_bq
             ca["in_b"][d_model:],       # 5:  c_bkv
             ca["out_b"],                # 6:  c_bo
             lp["norm2"]["g"],           # 7:  g2
             lp["norm2"]["b"],           # 8:  be2
             lp["ff"]["b1"],             # 9:  bf1
             lp["ff"]["b2"],             # 10: bf2
             lp["norm3"]["g"],           # 11: g3
             lp["norm3"]["b"]]           # 12: be3
        padded = [_pad_row(v, wc) for v in r]
        padded += [jnp.zeros((wc,), jnp.float32)] * (n_rows - len(padded))
        return jnp.stack(padded)

    return {
        "s_wqkv": jnp.stack([_bf16_T(lp["self_attn"]["in_w"]) for lp in layers]),
        "s_wo": jnp.stack([_bf16_T(lp["self_attn"]["out_w"]) for lp in layers]),
        "c_wq": jnp.stack([_bf16_T(lp["cross_attn"]["in_w"][:d_model]) for lp in layers]),
        "c_wkv": jnp.stack([_bf16_T(lp["cross_attn"]["in_w"][d_model:]) for lp in layers]),
        "c_wo": jnp.stack([_bf16_T(lp["cross_attn"]["out_w"]) for lp in layers]),
        "w1": jnp.stack([_bf16_T(lp["ff"]["w1"]) for lp in layers]),
        "w2": jnp.stack([_bf16_T(lp["ff"]["w2"]) for lp in layers]),
        "consts": jnp.stack([rows(lp) for lp in layers]),
    }


def prepare_joint_ceeq(params, d_model, dim_ff, n_rx):
    enc, dec, eq = params["encoder"], params["decoder"], params["equalizer"]

    enc_w_in, enc_b_in = _prep_in_proj(enc["input_proj"])
    enc_p = {"w_in": enc_w_in, "b_in": enc_b_in}
    enc_p.update(_prep_encoder_stack(enc["layers"], d_model, dim_ff))

    dec_w_mem, dec_b_mem = _prep_in_proj(dec["memory_proj"])
    dec_w_out, dec_b_out = _prep_out_proj(dec["output_proj"], d_model)
    dec_p = {"w_mem": dec_w_mem, "b_mem": dec_b_mem,
             "w_out": dec_w_out, "b_out": dec_b_out}
    dec_p.update(_prep_decoder_stack(dec["layers"], d_model, dim_ff))

    eq_w_in, eq_b_in = _prep_in_proj(eq["input_proj"])
    crx = n_rx * 2                                 # concat([rx, csi]) split point
    eq_w_out, eq_b_out = _prep_out_proj(eq["output_proj"], d_model)
    eq_p = {"w_rx": eq_w_in[:crx], "w_csi": eq_w_in[crx:], "b_in": eq_b_in,
            "w_out": eq_w_out, "b_out": eq_b_out}
    eq_p.update(_prep_encoder_stack(eq["layers"], d_model, dim_ff))

    return {"encoder": enc_p, "decoder": dec_p, "equalizer": eq_p}


# ----------------------------------------------------------------------------
# Main
# ----------------------------------------------------------------------------

if __name__ == "__main__":
    # Small-but-consistent hyperparameters (module defaults 256/8/6/2048 scaled down).
    d_model, nhead, n_layers, dim_ff = 32, 4, 2, 64
    B, n_frame, n_subc, n_sym, n_tx, n_rx = 2, 2, 4, 2, 2, 2

    key = jax.random.PRNGKey(0)
    kp, k1, k2, k3 = jax.random.split(key, 4)
    raw_params = init_joint_ceeq(kp, d_model, nhead, n_layers, n_tx, n_rx, dim_ff)
    params = prepare_joint_ceeq(raw_params, d_model, dim_ff, n_rx=n_rx)

    csi_ls = jax.random.normal(k1, (B, n_subc, n_sym, n_tx, n_rx, 2), jnp.float32)
    previous_csi = jax.random.normal(k2, (B, n_frame, n_subc, n_sym, n_tx, n_rx, 2), jnp.float32)
    rx_signal = jax.random.normal(k3, (B, n_subc, n_sym, n_rx, 2), jnp.float32)

    fwd = jax.jit(partial(joint_ceeq_fwd, d_model=d_model, nhead=nhead,
                          n_tx=n_tx, n_rx=n_rx))
    csi_dec, equalized = fwd(params, csi_ls, previous_csi, rx_signal)
    jax.block_until_ready((csi_dec, equalized))

    assert csi_dec.shape == (B, n_subc, n_sym, n_tx, n_rx, 2)
    assert equalized.shape == (B, n_subc, n_sym, n_tx, 2)
    assert bool(jnp.all(jnp.isfinite(csi_dec))) and bool(jnp.all(jnp.isfinite(equalized)))
    print("KERNEL_OK")
</pallas_src>

<mosaic_0001>
module attributes {stable_mosaic.version = 11 : i64} {
  func.func @_csi_encoder_kernel(%arg0: i32, %arg1: memref<16x8xf32, #tpu.memory_space<vmem>>, %arg2: memref<8x32xbf16, #tpu.memory_space<vmem>>, %arg3: memref<16x32xf32, #tpu.memory_space<vmem>>, %arg4: memref<1x32x96xbf16, #tpu.memory_space<vmem>>, %arg5: memref<1x32x32xbf16, #tpu.memory_space<vmem>>, %arg6: memref<1x32x64xbf16, #tpu.memory_space<vmem>>, %arg7: memref<1x64x32xbf16, #tpu.memory_space<vmem>>, %arg8: memref<1x8x128xf32, #tpu.memory_space<vmem>>, %arg9: memref<16x32xf32, #tpu.memory_space<vmem>>, %arg10: memref<16x32xf32, #tpu.memory_space<vmem>>) attributes {dimension_semantics = [#tpu.dimension_semantics<arbitrary>], iteration_bounds = array<i64: 2>, scalar_prefetch = 0 : i64, scratch_operands = 1 : i64, tpu.core_type = #tpu.core_type<tc>, window_params = [{pipeline_mode = #tpu.pipeline_mode<synchronous>, transform_indices = @transform_0, window_bounds = array<i64: 16, 8>}, {pipeline_mode = #tpu.pipeline_mode<synchronous>, transform_indices = @transform_1, window_bounds = array<i64: 8, 32>}, {pipeline_mode = #tpu.pipeline_mode<synchronous>, transform_indices = @transform_2, window_bounds = array<i64: 16, 32>}, {transform_indices = @transform_3, window_bounds = array<i64: 1, 32, 96>}, {transform_indices = @transform_4, window_bounds = array<i64: 1, 32, 32>}, {transform_indices = @transform_5, window_bounds = array<i64: 1, 32, 64>}, {transform_indices = @transform_6, window_bounds = array<i64: 1, 64, 32>}, {transform_indices = @transform_7, window_bounds = array<i64: 1, 8, 128>}, {pipeline_mode = #tpu.pipeline_mode<synchronous>, transform_indices = @transform_8, window_bounds = array<i64: 16, 32>}]} {
    %c0_i32 = arith.constant 0 : i32
    %0 = arith.cmpi eq, %arg0, %c0_i32 : i32
    %1 = arith.extui %0 : i1 to i32
    %c0_i32_0 = arith.constant 0 : i32
    %2 = arith.cmpi ne, %1, %c0_i32_0 : i32
    scf.if %2 {
      %c0_64 = arith.constant 0 : index
      %c0_65 = arith.constant 0 : index
      %192 = vector.load %arg1[%c0_64, %c0_65] : memref<16x8xf32, #tpu.memory_space<vmem>>, vector<16x8xf32>
      %c0_66 = arith.constant 0 : index
      %c0_67 = arith.constant 0 : index
      %193 = vector.load %arg2[%c0_66, %c0_67] : memref<8x32xbf16, #tpu.memory_space<vmem>>, vector<8x32xbf16>
      %194 = arith.truncf %192 : vector<16x8xf32> to vector<16x8xbf16>
      %cst_68 = arith.constant dense<0.000000e+00> : vector<16x32xf32>
      %195 = tpu.matmul %194, %193, %cst_68 {dimension_numbers = #tpu.dot_dimension_numbers<[1], [0], [0], [1], [0, 0, 1, 1], [], []>} : vector<16x8xbf16>, vector<8x32xbf16>, vector<16x32xf32> -> vector<16x32xf32>
      %c0_69 = arith.constant 0 : index
      %c0_70 = arith.constant 0 : index
      %196 = vector.load %arg3[%c0_69, %c0_70] : memref<16x32xf32, #tpu.memory_space<vmem>>, vector<16x32xf32>
      %197 = arith.addf %195, %196 : vector<16x32xf32>
      %c0_71 = arith.constant 0 : index
      %c0_72 = arith.constant 0 : index
      %198 = vector.load %arg10[%c0_71, %c0_72] : memref<16x32xf32, #tpu.memory_space<vmem>>, vector<16x32xf32>
      tpu.vector_store %arg10[%c0_71, %c0_72], %197 {strides = array<i32>} : memref<16x32xf32, #tpu.memory_space<vmem>>, vector<16x32xf32>,
    } else {
    }
    %c0 = arith.constant 0 : index
    %c0_1 = arith.constant 0 : index
    %3 = vector.load %arg10[%c0, %c0_1] : memref<16x32xf32, #tpu.memory_space<vmem>>, vector<16x32xf32>
    %c0_2 = arith.constant 0 : index
    %c0_3 = arith.constant 0 : index
    %c0_4 = arith.constant 0 : index
    %4 = vector.load %arg8[%c0_2, %c0_3, %c0_4] : memref<1x8x128xf32, #tpu.memory_space<vmem>>, vector<1x8x128xf32>
    %5 = vector.shape_cast %4 : vector<1x8x128xf32> to vector<8x128xf32>
    %6 = vector.extract_strided_slice %5 {offsets = [0, 0], sizes = [1, 96], strides = [1, 1]} : vector<8x128xf32> to vector<1x96xf32>
    %7 = vector.extract_strided_slice %5 {offsets = [1, 0], sizes = [1, 32], strides = [1, 1]} : vector<8x128xf32> to vector<1x32xf32>
    %8 = vector.extract_strided_slice %5 {offsets = [2, 0], sizes = [1, 32], strides = [1, 1]} : vector<8x128xf32> to vector<1x32xf32>
    %9 = vector.extract_strided_slice %5 {offsets = [3, 0], sizes = [1, 32], strides = [1, 1]} : vector<8x128xf32> to vector<1x32xf32>
    %10 = vector.extract_strided_slice %5 {offsets = [4, 0], sizes = [1, 64], strides = [1, 1]} : vector<8x128xf32> to vector<1x64xf32>
    %11 = vector.extract_strided_slice %5 {offsets = [5, 0], sizes = [1, 32], strides = [1, 1]} : vector<8x128xf32> to vector<1x32xf32>
    %12 = vector.extract_strided_slice %5 {offsets = [6, 0], sizes = [1, 32], strides = [1, 1]} : vector<8x128xf32> to vector<1x32xf32>
    %13 = vector.extract_strided_slice %5 {offsets = [7, 0], sizes = [1, 32], strides = [1, 1]} : vector<8x128xf32> to vector<1x32xf32>
    %c0_5 = arith.constant 0 : index
    %c0_6 = arith.constant 0 : index
    %c0_7 = arith.constant 0 : index
    %14 = vector.load %arg4[%c0_5, %c0_6, %c0_7] : memref<1x32x96xbf16, #tpu.memory_space<vmem>>, vector<1x32x96xbf16>
    %15 = vector.shape_cast %14 : vector<1x32x96xbf16> to vector<32x96xbf16>
    %16 = arith.truncf %3 : vector<16x32xf32> to vector<16x32xbf16>
    %cst = arith.constant dense<0.000000e+00> : vector<16x96xf32>
    %17 = tpu.matmul %16, %15, %cst {dimension_numbers = #tpu.dot_dimension_numbers<[1], [0], [0], [1], [0, 0, 1, 1], [], []>} : vector<16x32xbf16>, vector<32x96xbf16>, vector<16x96xf32> -> vector<16x96xf32>
    %18 = vector.broadcast %6 : vector<1x96xf32> to vector<16x96xf32>
    %19 = arith.addf %17, %18 : vector<16x96xf32>
    %20 = vector.extract_strided_slice %19 {offsets = [0, 0], sizes = [16, 32], strides = [1, 1]} : vector<16x96xf32> to vector<16x32xf32>
    %21 = vector.extract_strided_slice %19 {offsets = [0, 32], sizes = [16, 32], strides = [1, 1]} : vector<16x96xf32> to vector<16x32xf32>
    %22 = vector.extract_strided_slice %19 {offsets = [0, 64], sizes = [16, 32], strides = [1, 1]} : vector<16x96xf32> to vector<16x32xf32>
    %23 = vector.shape_cast %20 : vector<16x32xf32> to vector<2x8x32xf32>
    %24 = arith.truncf %23 : vector<2x8x32xf32> to vector<2x8x32xbf16>
    %25 = vector.shape_cast %21 : vector<16x32xf32> to vector<2x8x32xf32>
    %26 = arith.truncf %25 : vector<2x8x32xf32> to vector<2x8x32xbf16>
    %27 = vector.shape_cast %22 : vector<16x32xf32> to vector<2x8x32xf32>
    %28 = arith.truncf %27 : vector<2x8x32xf32> to vector<2x8x32xbf16>
    %cst_8 = arith.constant 0.000000e+00 : f32
    %29 = vector.broadcast %cst_8 : f32 to vector<16x32xf32>
    %30 = vector.extract_strided_slice %24 {offsets = [0, 0, 0], sizes = [2, 8, 8], strides = [1, 1, 1]} : vector<2x8x32xbf16> to vector<2x8x8xbf16>
    %31 = vector.extract_strided_slice %26 {offsets = [0, 0, 0], sizes = [2, 8, 8], strides = [1, 1, 1]} : vector<2x8x32xbf16> to vector<2x8x8xbf16>
    "tpu.trace_start"() <{level = 10 : i32, message = "bqd,bkd->bqk"}> : () -> ()
    %cst_9 = arith.constant dense<0.000000e+00> : vector<2x8x8xf32>
    %32 = tpu.matmul %30, %31, %cst_9 {dimension_numbers = #tpu.dot_dimension_numbers<[2], [2], [1], [1], [0, 0, 0, 1, 1, 1], [0], [0]>} : vector<2x8x8xbf16>, vector<2x8x8xbf16>, vector<2x8x8xf32> -> vector<2x8x8xf32>
    "tpu.trace_stop"() : () -> ()
    %cst_10 = arith.constant 0.353553385 : f32
    %33 = vector.broadcast %cst_10 : f32 to vector<2x8x8xf32>
    %34 = arith.mulf %32, %33 : vector<2x8x8xf32>
    %cst_11 = arith.constant dense<0xFF800000> : vector<2x8xf32>
    %35 = vector.multi_reduction <maximumf>, %34, %cst_11 [2] : vector<2x8x8xf32> to vector<2x8xf32>
    %36 = vector.shape_cast %35 : vector<2x8xf32> to vector<2x8x1xf32>
    %37 = vector.broadcast %36 : vector<2x8x1xf32> to vector<2x8x8xf32>
    %38 = arith.subf %34, %37 : vector<2x8x8xf32>
    %39 = math.exp %38 : vector<2x8x8xf32>
    %cst_12 = arith.constant dense<0.000000e+00> : vector<2x8xf32>
    %40 = vector.multi_reduction <add>, %39, %cst_12 [2] : vector<2x8x8xf32> to vector<2x8xf32>
    %41 = vector.shape_cast %40 : vector<2x8xf32> to vector<2x8x1xf32>
    %42 = tpu.reciprocal %41 {approx = true} : vector<2x8x1xf32> -> vector<2x8x1xf32>
    %43 = vector.broadcast %42 : vector<2x8x1xf32> to vector<2x8x8xf32>
    %44 = arith.mulf %39, %43 : vector<2x8x8xf32>
    %45 = arith.truncf %44 : vector<2x8x8xf32> to vector<2x8x8xbf16>
    %46 = vector.extract_strided_slice %28 {offsets = [0, 0, 0], sizes = [2, 8, 8], strides = [1, 1, 1]} : vector<2x8x32xbf16> to vector<2x8x8xbf16>
    "tpu.trace_start"() <{level = 10 : i32, message = "bqk,bkd->bqd"}> : () -> ()
    %cst_13 = arith.constant dense<0.000000e+00> : vector<2x8x8xf32>
    %47 = tpu.matmul %45, %46, %cst_13 {dimension_numbers = #tpu.dot_dimension_numbers<[2], [1], [1], [2], [0, 0, 0, 1, 1, 2], [0], [0]>} : vector<2x8x8xbf16>, vector<2x8x8xbf16>, vector<2x8x8xf32> -> vector<2x8x8xf32>
    "tpu.trace_stop"() : () -> ()
    %48 = vector.shape_cast %47 : vector<2x8x8xf32> to vector<16x8xf32>
    %49 = arith.truncf %48 : vector<16x8xf32> to vector<16x8xbf16>
    %c0_14 = arith.constant 0 : index
    %c0_15 = arith.constant 0 : index
    %c0_16 = arith.constant 0 : index
    %50 = vector.load %arg5[%c0_14, %c0_15, %c0_16] : memref<1x32x32xbf16, #tpu.memory_space<vmem>>, vector<1x8x32xbf16>
    %51 = vector.shape_cast %50 : vector<1x8x32xbf16> to vector<8x32xbf16>
    %cst_17 = arith.constant dense<0.000000e+00> : vector<16x32xf32>
    %52 = tpu.matmul %49, %51, %cst_17 {dimension_numbers = #tpu.dot_dimension_numbers<[1], [0], [0], [1], [0, 0, 1, 1], [], []>} : vector<16x8xbf16>, vector<8x32xbf16>, vector<16x32xf32> -> vector<16x32xf32>
    %53 = arith.addf %29, %52 : vector<16x32xf32>
    %54 = vector.extract_strided_slice %24 {offsets = [0, 0, 8], sizes = [2, 8, 8], strides = [1, 1, 1]} : vector<2x8x32xbf16> to vector<2x8x8xbf16>
    %55 = vector.extract_strided_slice %26 {offsets = [0, 0, 8], sizes = [2, 8, 8], strides = [1, 1, 1]} : vector<2x8x32xbf16> to vector<2x8x8xbf16>
    "tpu.trace_start"() <{level = 10 : i32, message = "bqd,bkd->bqk"}> : () -> ()
    %cst_18 = arith.constant dense<0.000000e+00> : vector<2x8x8xf32>
    %56 = tpu.matmul %54, %55, %cst_18 {dimension_numbers = #tpu.dot_dimension_numbers<[2], [2], [1], [1], [0, 0, 0, 1, 1, 1], [0], [0]>} : vector<2x8x8xbf16>, vector<2x8x8xbf16>, vector<2x8x8xf32> -> vector<2x8x8xf32>
    "tpu.trace_stop"() : () -> ()
    %cst_19 = arith.constant 0.353553385 : f32
    %57 = vector.broadcast %cst_19 : f32 to vector<2x8x8xf32>
    %58 = arith.mulf %56, %57 : vector<2x8x8xf32>
    %cst_20 = arith.constant dense<0xFF800000> : vector<2x8xf32>
    %59 = vector.multi_reduction <maximumf>, %58, %cst_20 [2] : vector<2x8x8xf32> to vector<2x8xf32>
    %60 = vector.shape_cast %59 : vector<2x8xf32> to vector<2x8x1xf32>
    %61 = vector.broadcast %60 : vector<2x8x1xf32> to vector<2x8x8xf32>
    %62 = arith.subf %58, %61 : vector<2x8x8xf32>
    %63 = math.exp %62 : vector<2x8x8xf32>
    %cst_21 = arith.constant dense<0.000000e+00> : vector<2x8xf32>
    %64 = vector.multi_reduction <add>, %63, %cst_21 [2] : vector<2x8x8xf32> to vector<2x8xf32>
    %65 = vector.shape_cast %64 : vector<2x8xf32> to vector<2x8x1xf32>
    %66 = tpu.reciprocal %65 {approx = true} : vector<2x8x1xf32> -> vector<2x8x1xf32>
    %67 = vector.broadcast %66 : vector<2x8x1xf32> to vector<2x8x8xf32>
    %68 = arith.mulf %63, %67 : vector<2x8x8xf32>
    %69 = arith.truncf %68 : vector<2x8x8xf32> to vector<2x8x8xbf16>
    %70 = vector.extract_strided_slice %28 {offsets = [0, 0, 8], sizes = [2, 8, 8], strides = [1, 1, 1]} : vector<2x8x32xbf16> to vector<2x8x8xbf16>
    "tpu.trace_start"() <{level = 10 : i32, message = "bqk,bkd->bqd"}> : () -> ()
    %cst_22 = arith.constant dense<0.000000e+00> : vector<2x8x8xf32>
    %71 = tpu.matmul %69, %70, %cst_22 {dimension_numbers = #tpu.dot_dimension_numbers<[2], [1], [1], [2], [0, 0, 0, 1, 1, 2], [0], [0]>} : vector<2x8x8xbf16>, vector<2x8x8xbf16>, vector<2x8x8xf32> -> vector<2x8x8xf32>
    "tpu.trace_stop"() : () -> ()
    %72 = vector.shape_cast %71 : vector<2x8x8xf32> to vector<16x8xf32>
    %73 = arith.truncf %72 : vector<16x8xf32> to vector<16x8xbf16>
    %c0_23 = arith.constant 0 : index
    %c8 = arith.constant 8 : index
    %c0_24 = arith.constant 0 : index
    %74 = vector.load %arg5[%c0_23, %c8, %c0_24] : memref<1x32x32xbf16, #tpu.memory_space<vmem>>, vector<1x8x32xbf16>
    %75 = vector.shape_cast %74 : vector<1x8x32xbf16> to vector<8x32xbf16>
    %cst_25 = arith.constant dense<0.000000e+00> : vector<16x32xf32>
    %76 = tpu.matmul %73, %75, %cst_25 {dimension_numbers = #tpu.dot_dimension_numbers<[1], [0], [0], [1], [0, 0, 1, 1], [], []>} : vector<16x8xbf16>, vector<8x32xbf16>, vector<16x32xf32> -> vector<16x32xf32>
    %77 = arith.addf %53, %76 : vector<16x32xf32>
    %78 = vector.extract_strided_slice %24 {offsets = [0, 0, 16], sizes = [2, 8, 8], strides = [1, 1, 1]} : vector<2x8x32xbf16> to vector<2x8x8xbf16>
    %79 = vector.extract_strided_slice %26 {offsets = [0, 0, 16], sizes = [2, 8, 8], strides = [1, 1, 1]} : vector<2x8x32xbf16> to vector<2x8x8xbf16>
    "tpu.trace_start"() <{level = 10 : i32, message = "bqd,bkd->bqk"}> : () -> ()
    %cst_26 = arith.constant dense<0.000000e+00> : vector<2x8x8xf32>
    %80 = tpu.matmul %78, %79, %cst_26 {dimension_numbers = #tpu.dot_dimension_numbers<[2], [2], [1], [1], [0, 0, 0, 1, 1, 1], [0], [0]>} : vector<2x8x8xbf16>, vector<2x8x8xbf16>, vector<2x8x8xf32> -> vector<2x8x8xf32>
    "tpu.trace_stop"() : () -> ()
    %cst_27 = arith.constant 0.353553385 : f32
    %81 = vector.broadcast %cst_27 : f32 to vector<2x8x8xf32>
    %82 = arith.mulf %80, %81 : vector<2x8x8xf32>
    %cst_28 = arith.constant dense<0xFF800000> : vector<2x8xf32>
    %83 = vector.multi_reduction <maximumf>, %82, %cst_28 [2] : vector<2x8x8xf32> to vector<2x8xf32>
    %84 = vector.shape_cast %83 : vector<2x8xf32> to vector<2x8x1xf32>
    %85 = vector.broadcast %84 : vector<2x8x1xf32> to vector<2x8x8xf32>
    %86 = arith.subf %82, %85 : vector<2x8x8xf32>
    %87 = math.exp %86 : vector<2x8x8xf32>
    %cst_29 = arith.constant dense<0.000000e+00> : vector<2x8xf32>
    %88 = vector.multi_reduction <add>, %87, %cst_29 [2] : vector<2x8x8xf32> to vector<2x8xf32>
    %89 = vector.shape_cast %88 : vector<2x8xf32> to vector<2x8x1xf32>
    %90 = tpu.reciprocal %89 {approx = true} : vector<2x8x1xf32> -> vector<2x8x1xf32>
    %91 = vector.broadcast %90 : vector<2x8x1xf32> to vector<2x8x8xf32>
    %92 = arith.mulf %87, %91 : vector<2x8x8xf32>
    %93 = arith.truncf %92 : vector<2x8x8xf32> to vector<2x8x8xbf16>
    %94 = vector.extract_strided_slice %28 {offsets = [0, 0, 16], sizes = [2, 8, 8], strides = [1, 1, 1]} : vector<2x8x32xbf16> to vector<2x8x8xbf16>
    "tpu.trace_start"() <{level = 10 : i32, message = "bqk,bkd->bqd"}> : () -> ()
    %cst_30 = arith.constant dense<0.000000e+00> : vector<2x8x8xf32>
    %95 = tpu.matmul %93, %94, %cst_30 {dimension_numbers = #tpu.dot_dimension_numbers<[2], [1], [1], [2], [0, 0, 0, 1, 1, 2], [0], [0]>} : vector<2x8x8xbf16>, vector<2x8x8xbf16>, vector<2x8x8xf32> -> vector<2x8x8xf32>
    "tpu.trace_stop"() : () -> ()
    %96 = vector.shape_cast %95 : vector<2x8x8xf32> to vector<16x8xf32>
    %97 = arith.truncf %96 : vector<16x8xf32> to vector<16x8xbf16>
    %c0_31 = arith.constant 0 : index
    %c16 = arith.constant 16 : index
    %c0_32 = arith.constant 0 : index
    %98 = vector.load %arg5[%c0_31, %c16, %c0_32] : memref<1x32x32xbf16, #tpu.memory_space<vmem>>, vector<1x8x32xbf16>
    %99 = vector.shape_cast %98 : vector<1x8x32xbf16> to vector<8x32xbf16>
    %cst_33 = arith.constant dense<0.000000e+00> : vector<16x32xf32>
    %100 = tpu.matmul %97, %99, %cst_33 {dimension_numbers = #tpu.dot_dimension_numbers<[1], [0], [0], [1], [0, 0, 1, 1], [], []>} : vector<16x8xbf16>, vector<8x32xbf16>, vector<16x32xf32> -> vector<16x32xf32>
    %101 = arith.addf %77, %100 : vector<16x32xf32>
    %102 = vector.extract_strided_slice %24 {offsets = [0, 0, 24], sizes = [2, 8, 8], strides = [1, 1, 1]} : vector<2x8x32xbf16> to vector<2x8x8xbf16>
    %103 = vector.extract_strided_slice %26 {offsets = [0, 0, 24], sizes = [2, 8, 8], strides = [1, 1, 1]} : vector<2x8x32xbf16> to vector<2x8x8xbf16>
    "tpu.trace_start"() <{level = 10 : i32, message = "bqd,bkd->bqk"}> : () -> ()
    %cst_34 = arith.constant dense<0.000000e+00> : vector<2x8x8xf32>
    %104 = tpu.matmul %102, %103, %cst_34 {dimension_numbers = #tpu.dot_dimension_numbers<[2], [2], [1], [1], [0, 0, 0, 1, 1, 1], [0], [0]>} : vector<2x8x8xbf16>, vector<2x8x8xbf16>, vector<2x8x8xf32> -> vector<2x8x8xf32>
    "tpu.trace_stop"() : () -> ()
    %cst_35 = arith.constant 0.353553385 : f32
    %105 = vector.broadcast %cst_35 : f32 to vector<2x8x8xf32>
    %106 = arith.mulf %104, %105 : vector<2x8x8xf32>
    %cst_36 = arith.constant dense<0xFF800000> : vector<2x8xf32>
    %107 = vector.multi_reduction <maximumf>, %106, %cst_36 [2] : vector<2x8x8xf32> to vector<2x8xf32>
    %108 = vector.shape_cast %107 : vector<2x8xf32> to vector<2x8x1xf32>
    %109 = vector.broadcast %108 : vector<2x8x1xf32> to vector<2x8x8xf32>
    %110 = arith.subf %106, %109 : vector<2x8x8xf32>
    %111 = math.exp %110 : vector<2x8x8xf32>
    %cst_37 = arith.constant dense<0.000000e+00> : vector<2x8xf32>
    %112 = vector.multi_reduction <add>, %111, %cst_37 [2] : vector<2x8x8xf32> to vector<2x8xf32>
    %113 = vector.shape_cast %112 : vector<2x8xf32> to vector<2x8x1xf32>
    %114 = tpu.reciprocal %113 {approx = true} : vector<2x8x1xf32> -> vector<2x8x1xf32>
    %115 = vector.broadcast %114 : vector<2x8x1xf32> to vector<2x8x8xf32>
    %116 = arith.mulf %111, %115 : vector<2x8x8xf32>
    %117 = arith.truncf %116 : vector<2x8x8xf32> to vector<2x8x8xbf16>
    %118 = vector.extract_strided_slice %28 {offsets = [0, 0, 24], sizes = [2, 8, 8], strides = [1, 1, 1]} : vector<2x8x32xbf16> to vector<2x8x8xbf16>
    "tpu.trace_start"() <{level = 10 : i32, message = "bqk,bkd->bqd"}> : () -> ()
    %cst_38 = arith.constant dense<0.000000e+00> : vector<2x8x8xf32>
    %119 = tpu.matmul %117, %118, %cst_38 {dimension_numbers = #tpu.dot_dimension_numbers<[2], [1], [1], [2], [0, 0, 0, 1, 1, 2], [0], [0]>} : vector<2x8x8xbf16>, vector<2x8x8xbf16>, vector<2x8x8xf32> -> vector<2x8x8xf32>
    "tpu.trace_stop"() : () -> ()
    %120 = vector.shape_cast %119 : vector<2x8x8xf32> to vector<16x8xf32>
    %121 = arith.truncf %120 : vector<16x8xf32> to vector<16x8xbf16>
    %c0_39 = arith.constant 0 : index
    %c24 = arith.constant 24 : index
    %c0_40 = arith.constant 0 : index
    %122 = vector.load %arg5[%c0_39, %c24, %c0_40] : memref<1x32x32xbf16, #tpu.memory_space<vmem>>, vector<1x8x32xbf16>
    %123 = vector.shape_cast %122 : vector<1x8x32xbf16> to vector<8x32xbf16>
    %cst_41 = arith.constant dense<0.000000e+00> : vector<16x32xf32>
    %124 = tpu.matmul %121, %123, %cst_41 {dimension_numbers = #tpu.dot_dimension_numbers<[1], [0], [0], [1], [0, 0, 1, 1], [], []>} : vector<16x8xbf16>, vector<8x32xbf16>, vector<16x32xf32> -> vector<16x32xf32>
    %125 = arith.addf %101, %124 : vector<16x32xf32>
    %126 = vector.broadcast %7 : vector<1x32xf32> to vector<16x32xf32>
    %127 = arith.addf %125, %126 : vector<16x32xf32>
    %128 = arith.addf %3, %127 : vector<16x32xf32>
    %cst_42 = arith.constant dense<0.000000e+00> : vector<16xf32>
    %129 = vector.multi_reduction <add>, %128, %cst_42 [1] : vector<16x32xf32> to vector<16xf32>
    %130 = vector.shape_cast %129 : vector<16xf32> to vector<16x1xf32>
    %cst_43 = arith.constant 3.200000e+01 : f32
    %131 = vector.broadcast %cst_43 : f32 to vector<16x1xf32>
    %132 = arith.divf %130, %131 : vector<16x1xf32>
    %133 = arith.mulf %128, %128 : vector<16x32xf32>
    %cst_44 = arith.constant dense<0.000000e+00> : vector<16xf32>
    %134 = vector.multi_reduction <add>, %133, %cst_44 [1] : vector<16x32xf32> to vector<16xf32>
    %135 = vector.shape_cast %134 : vector<16xf32> to vector<16x1xf32>
    %cst_45 = arith.constant 3.200000e+01 : f32
    %136 = vector.broadcast %cst_45 : f32 to vector<16x1xf32>
    %137 = arith.divf %135, %136 : vector<16x1xf32>
    %138 = arith.mulf %132, %132 : vector<16x1xf32>
    %139 = arith.subf %137, %138 : vector<16x1xf32>
    %140 = vector.broadcast %132 : vector<16x1xf32> to vector<16x32xf32>
    %141 = arith.subf %128, %140 : vector<16x32xf32>
    %cst_46 = arith.constant 9.99999974E-6 : f32
    %142 = vector.broadcast %cst_46 : f32 to vector<16x1xf32>
    %143 = arith.addf %139, %142 : vector<16x1xf32>
    %144 = math.rsqrt %143 : vector<16x1xf32>
    %145 = vector.broadcast %144 : vector<16x1xf32> to vector<16x32xf32>
    %146 = arith.mulf %141, %145 : vector<16x32xf32>
    %147 = vector.broadcast %8 : vector<1x32xf32> to vector<16x32xf32>
    %148 = arith.mulf %146, %147 : vector<16x32xf32>
    %149 = vector.broadcast %9 : vector<1x32xf32> to vector<16x32xf32>
    %150 = arith.addf %148, %149 : vector<16x32xf32>
    %c0_47 = arith.constant 0 : index
    %c0_48 = arith.constant 0 : index
    %c0_49 = arith.constant 0 : index
    %151 = vector.load %arg6[%c0_47, %c0_48, %c0_49] : memref<1x32x64xbf16, #tpu.memory_space<vmem>>, vector<1x32x64xbf16>
    %152 = vector.shape_cast %151 : vector<1x32x64xbf16> to vector<32x64xbf16>
    %153 = arith.truncf %150 : vector<16x32xf32> to vector<16x32xbf16>
    %cst_50 = arith.constant dense<0.000000e+00> : vector<16x64xf32>
    %154 = tpu.matmul %153, %152, %cst_50 {dimension_numbers = #tpu.dot_dimension_numbers<[1], [0], [0], [1], [0, 0, 1, 1], [], []>} : vector<16x32xbf16>, vector<32x64xbf16>, vector<16x64xf32> -> vector<16x64xf32>
    %155 = vector.broadcast %10 : vector<1x64xf32> to vector<16x64xf32>
    %156 = arith.addf %154, %155 : vector<16x64xf32>
    %cst_51 = arith.constant 0.000000e+00 : f32
    %157 = vector.broadcast %cst_51 : f32 to vector<16x64xf32>
    %158 = arith.maximumf %156, %157 : vector<16x64xf32>
    %c0_52 = arith.constant 0 : index
    %c0_53 = arith.constant 0 : index
    %c0_54 = arith.constant 0 : index
    %159 = vector.load %arg7[%c0_52, %c0_53, %c0_54] : memref<1x64x32xbf16, #tpu.memory_space<vmem>>, vector<1x64x32xbf16>
    %160 = vector.shape_cast %159 : vector<1x64x32xbf16> to vector<64x32xbf16>
    %161 = arith.truncf %158 : vector<16x64xf32> to vector<16x64xbf16>
    %cst_55 = arith.constant dense<0.000000e+00> : vector<16x32xf32>
    %162 = tpu.matmul %161, %160, %cst_55 {dimension_numbers = #tpu.dot_dimension_numbers<[1], [0], [0], [1], [0, 0, 1, 1], [], []>} : vector<16x64xbf16>, vector<64x32xbf16>, vector<16x32xf32> -> vector<16x32xf32>
    %163 = vector.broadcast %11 : vector<1x32xf32> to vector<16x32xf32>
    %164 = arith.addf %162, %163 : vector<16x32xf32>
    %165 = arith.addf %150, %164 : vector<16x32xf32>
    %cst_56 = arith.constant dense<0.000000e+00> : vector<16xf32>
    %166 = vector.multi_reduction <add>, %165, %cst_56 [1] : vector<16x32xf32> to vector<16xf32>
    %167 = vector.shape_cast %166 : vector<16xf32> to vector<16x1xf32>
    %cst_57 = arith.constant 3.200000e+01 : f32
    %168 = vector.broadcast %cst_57 : f32 to vector<16x1xf32>
    %169 = arith.divf %167, %168 : vector<16x1xf32>
    %170 = arith.mulf %165, %165 : vector<16x32xf32>
    %cst_58 = arith.constant dense<0.000000e+00> : vector<16xf32>
    %171 = vector.multi_reduction <add>, %170, %cst_58 [1] : vector<16x32xf32> to vector<16xf32>
    %172 = vector.shape_cast %171 : vector<16xf32> to vector<16x1xf32>
    %cst_59 = arith.constant 3.200000e+01 : f32
    %173 = vector.broadcast %cst_59 : f32 to vector<16x1xf32>
    %174 = arith.divf %172, %173 : vector<16x1xf32>
    %175 = arith.mulf %169, %169 : vector<16x1xf32>
    %176 = arith.subf %174, %175 : vector<16x1xf32>
    %177 = vector.broadcast %169 : vector<16x1xf32> to vector<16x32xf32>
    %178 = arith.subf %165, %177 : vector<16x32xf32>
    %cst_60 = arith.constant 9.99999974E-6 : f32
    %179 = vector.broadcast %cst_60 : f32 to vector<16x1xf32>
    %180 = arith.addf %176, %179 : vector<16x1xf32>
    %181 = math.rsqrt %180 : vector<16x1xf32>
    %182 = vector.broadcast %181 : vector<16x1xf32> to vector<16x32xf32>
    %183 = arith.mulf %178, %182 : vector<16x32xf32>
    %184 = vector.broadcast %12 : vector<1x32xf32> to vector<16x32xf32>
    %185 = arith.mulf %183, %184 : vector<16x32xf32>
    %186 = vector.broadcast %13 : vector<1x32xf32> to vector<16x32xf32>
    %187 = arith.addf %185, %186 : vector<16x32xf32>
    %c0_61 = arith.constant 0 : index
    %c0_62 = arith.constant 0 : index
    %188 = vector.load %arg10[%c0_61, %c0_62] : memref<16x32xf32, #tpu.memory_space<vmem>>, vector<16x32xf32>
    tpu.vector_store %arg10[%c0_61, %c0_62], %187 {strides = array<i32>} : memref<16x32xf32, #tpu.memory_space<vmem>>, vector<16x32xf32>,
    %c1_i32 = arith.constant 1 : i32
    %189 = arith.cmpi eq, %arg0, %c1_i32 : i32
    %190 = arith.extui %189 : i1 to i32
    %c0_i32_63 = arith.constant 0 : i32
    %191 = arith.cmpi ne, %190, %c0_i32_63 : i32
    scf.if %191 {
      %c0_64 = arith.constant 0 : index
      %c0_65 = arith.constant 0 : index
      %192 = vector.load %arg9[%c0_64, %c0_65] : memref<16x32xf32, #tpu.memory_space<vmem>>, vector<16x32xf32>
      tpu.vector_store %arg9[%c0_64, %c0_65], %187 {strides = array<i32>} : memref<16x32xf32, #tpu.memory_space<vmem>>, vector<16x32xf32>,
    } else {
    }
    return
  }
  func.func @transform_0(%arg0: i32) -> (i32, i32) {
    %c0_i32 = arith.constant 0 : i32
    %c0_i32_0 = arith.constant 0 : i32
    %c0_i32_1 = arith.constant 0 : i32
    return %c0_i32, %c0_i32_0 : i32, i32
  }
  func.func @transform_1(%arg0: i32) -> (i32, i32) {
    %c0_i32 = arith.constant 0 : i32
    %c0_i32_0 = arith.constant 0 : i32
    %c0_i32_1 = arith.constant 0 : i32
    return %c0_i32, %c0_i32_0 : i32, i32
  }
  func.func @transform_2(%arg0: i32) -> (i32, i32) {
    %c0_i32 = arith.constant 0 : i32
    %c0_i32_0 = arith.constant 0 : i32
    %c0_i32_1 = arith.constant 0 : i32
    return %c0_i32, %c0_i32_0 : i32, i32
  }
  func.func @transform_3(%arg0: i32) -> (i32, i32, i32) {
    %c0_i32 = arith.constant 0 : i32
    %c0_i32_0 = arith.constant 0 : i32
    %c0_i32_1 = arith.constant 0 : i32
    return %arg0, %c0_i32, %c0_i32_0 : i32, i32, i32
  }
  func.func @transform_4(%arg0: i32) -> (i32, i32, i32) {
    %c0_i32 = arith.constant 0 : i32
    %c0_i32_0 = arith.constant 0 : i32
    %c0_i32_1 = arith.constant 0 : i32
    return %arg0, %c0_i32, %c0_i32_0 : i32, i32, i32
  }
  func.func @transform_5(%arg0: i32) -> (i32, i32, i32) {
    %c0_i32 = arith.constant 0 : i32
    %c0_i32_0 = arith.constant 0 : i32
    %c0_i32_1 = arith.constant 0 : i32
    return %arg0, %c0_i32, %c0_i32_0 : i32, i32, i32
  }
  func.func @transform_6(%arg0: i32) -> (i32, i32, i32) {
    %c0_i32 = arith.constant 0 : i32
    %c0_i32_0 = arith.constant 0 : i32
    %c0_i32_1 = arith.constant 0 : i32
    return %arg0, %c0_i32, %c0_i32_0 : i32, i32, i32
  }
  func.func @transform_7(%arg0: i32) -> (i32, i32, i32) {
    %c0_i32 = arith.constant 0 : i32
    %c0_i32_0 = arith.constant 0 : i32
    %c0_i32_1 = arith.constant 0 : i32
    return %arg0, %c0_i32, %c0_i32_0 : i32, i32, i32
  }
  func.func @transform_8(%arg0: i32) -> (i32, i32) {
    %c0_i32 = arith.constant 0 : i32
    %c0_i32_0 = arith.constant 0 : i32
    %c0_i32_1 = arith.constant 0 : i32
    return %c0_i32, %c0_i32_0 : i32, i32
  }
}

module attributes {stable_mosaic.version = 11 : i64} {
  func.func @_equalizer_kernel(%arg0: i32, %arg1: memref<16x4xf32, #tpu.memory_space<vmem>>, %arg2: memref<16x8xf32, #tpu.memory_space<vmem>>, %arg3: memref<4x32xbf16, #tpu.memory_space<vmem>>, %arg4: memref<8x32xbf16, #tpu.memory_space<vmem>>, %arg5: memref<16x32xf32, #tpu.memory_space<vmem>>, %arg6: memref<1x32x96xbf16, #tpu.memory_space<vmem>>, %arg7: memref<1x32x32xbf16, #tpu.memory_space<vmem>>, %arg8: memref<1x32x64xbf16, #tpu.memory_space<vmem>>, %arg9: memref<1x64x32xbf16, #tpu.memory_space<vmem>>, %arg10: memref<1x8x128xf32, #tpu.memory_space<vmem>>, %arg11: memref<32x128xbf16, #tpu.memory_space<vmem>>, %arg12: memref<1x128xf32, #tpu.memory_space<vmem>>, %arg13: memref<16x128xf32, #tpu.memory_space<vmem>>, %arg14: memref<16x32xf32, #tpu.memory_space<vmem>>) attributes {dimension_semantics = [#tpu.dimension_semantics<arbitrary>], iteration_bounds = array<i64: 2>, scalar_prefetch = 0 : i64, scratch_operands = 1 : i64, tpu.core_type = #tpu.core_type<tc>, window_params = [{pipeline_mode = #tpu.pipeline_mode<synchronous>, transform_indices = @transform_0, window_bounds = array<i64: 16, 4>}, {pipeline_mode = #tpu.pipeline_mode<synchronous>, transform_indices = @transform_1, window_bounds = array<i64: 16, 8>}, {pipeline_mode = #tpu.pipeline_mode<synchronous>, transform_indices = @transform_2, window_bounds = array<i64: 4, 32>}, {pipeline_mode = #tpu.pipeline_mode<synchronous>, transform_indices = @transform_3, window_bounds = array<i64: 8, 32>}, {pipeline_mode = #tpu.pipeline_mode<synchronous>, transform_indices = @transform_4, window_bounds = array<i64: 16, 32>}, {transform_indices = @transform_5, window_bounds = array<i64: 1, 32, 96>}, {transform_indices = @transform_6, window_bounds = array<i64: 1, 32, 32>}, {transform_indices = @transform_7, window_bounds = array<i64: 1, 32, 64>}, {transform_indices = @transform_8, window_bounds = array<i64: 1, 64, 32>}, {transform_indices = @transform_9, window_bounds = array<i64: 1, 8, 128>}, {pipeline_mode = #tpu.pipeline_mode<synchronous>, transform_indices = @transform_10, window_bounds = array<i64: 32, 128>}, {pipeline_mode = #tpu.pipeline_mode<synchronous>, transform_indices = @transform_11, window_bounds = array<i64: 1, 128>}, {pipeline_mode = #tpu.pipeline_mode<synchronous>, transform_indices = @transform_12, window_bounds = array<i64: 16, 128>}]} {
    %c0_i32 = arith.constant 0 : i32
    %0 = arith.cmpi eq, %arg0, %c0_i32 : i32
    %1 = arith.extui %0 : i1 to i32
    %c0_i32_0 = arith.constant 0 : i32
    %2 = arith.cmpi ne, %1, %c0_i32_0 : i32
    scf.if %2 {
      %c0_64 = arith.constant 0 : index
      %c0_65 = arith.constant 0 : index
      %192 = vector.load %arg1[%c0_64, %c0_65] : memref<16x4xf32, #tpu.memory_space<vmem>>, vector<16x4xf32>
      %c0_66 = arith.constant 0 : index
      %c0_67 = arith.constant 0 : index
      %193 = vector.load %arg3[%c0_66, %c0_67] : memref<4x32xbf16, #tpu.memory_space<vmem>>, vector<4x32xbf16>
      %194 = arith.truncf %192 : vector<16x4xf32> to vector<16x4xbf16>
      %cst_68 = arith.constant dense<0.000000e+00> : vector<16x32xf32>
      %195 = tpu.matmul %194, %193, %cst_68 {dimension_numbers = #tpu.dot_dimension_numbers<[1], [0], [0], [1], [0, 0, 1, 1], [], []>} : vector<16x4xbf16>, vector<4x32xbf16>, vector<16x32xf32> -> vector<16x32xf32>
      %c0_69 = arith.constant 0 : index
      %c0_70 = arith.constant 0 : index
      %196 = vector.load %arg2[%c0_69, %c0_70] : memref<16x8xf32, #tpu.memory_space<vmem>>, vector<16x8xf32>
      %c0_71 = arith.constant 0 : index
      %c0_72 = arith.constant 0 : index
      %197 = vector.load %arg4[%c0_71, %c0_72] : memref<8x32xbf16, #tpu.memory_space<vmem>>, vector<8x32xbf16>
      %198 = arith.truncf %196 : vector<16x8xf32> to vector<16x8xbf16>
      %cst_73 = arith.constant dense<0.000000e+00> : vector<16x32xf32>
      %199 = tpu.matmul %198, %197, %cst_73 {dimension_numbers = #tpu.dot_dimension_numbers<[1], [0], [0], [1], [0, 0, 1, 1], [], []>} : vector<16x8xbf16>, vector<8x32xbf16>, vector<16x32xf32> -> vector<16x32xf32>
      %200 = arith.addf %195, %199 : vector<16x32xf32>
      %c0_74 = arith.constant 0 : index
      %c0_75 = arith.constant 0 : index
      %201 = vector.load %arg5[%c0_74, %c0_75] : memref<16x32xf32, #tpu.memory_space<vmem>>, vector<16x32xf32>
      %202 = arith.addf %200, %201 : vector<16x32xf32>
      %c0_76 = arith.constant 0 : index
      %c0_77 = arith.constant 0 : index
      %203 = vector.load %arg14[%c0_76, %c0_77] : memref<16x32xf32, #tpu.memory_space<vmem>>, vector<16x32xf32>
      tpu.vector_store %arg14[%c0_76, %c0_77], %202 {strides = array<i32>} : memref<16x32xf32, #tpu.memory_space<vmem>>, vector<16x32xf32>,
    } else {
    }
    %c0 = arith.constant 0 : index
    %c0_1 = arith.constant 0 : index
    %3 = vector.load %arg14[%c0, %c0_1] : memref<16x32xf32, #tpu.memory_space<vmem>>, vector<16x32xf32>
    %c0_2 = arith.constant 0 : index
    %c0_3 = arith.constant 0 : index
    %c0_4 = arith.constant 0 : index
    %4 = vector.load %arg10[%c0_2, %c0_3, %c0_4] : memref<1x8x128xf32, #tpu.memory_space<vmem>>, vector<1x8x128xf32>
    %5 = vector.shape_cast %4 : vector<1x8x128xf32> to vector<8x128xf32>
    %6 = vector.extract_strided_slice %5 {offsets = [0, 0], sizes = [1, 96], strides = [1, 1]} : vector<8x128xf32> to vector<1x96xf32>
    %7 = vector.extract_strided_slice %5 {offsets = [1, 0], sizes = [1, 32], strides = [1, 1]} : vector<8x128xf32> to vector<1x32xf32>
    %8 = vector.extract_strided_slice %5 {offsets = [2, 0], sizes = [1, 32], strides = [1, 1]} : vector<8x128xf32> to vector<1x32xf32>
    %9 = vector.extract_strided_slice %5 {offsets = [3, 0], sizes = [1, 32], strides = [1, 1]} : vector<8x128xf32> to vector<1x32xf32>
    %10 = vector.extract_strided_slice %5 {offsets = [4, 0], sizes = [1, 64], strides = [1, 1]} : vector<8x128xf32> to vector<1x64xf32>
    %11 = vector.extract_strided_slice %5 {offsets = [5, 0], sizes = [1, 32], strides = [1, 1]} : vector<8x128xf32> to vector<1x32xf32>
    %12 = vector.extract_strided_slice %5 {offsets = [6, 0], sizes = [1, 32], strides = [1, 1]} : vector<8x128xf32> to vector<1x32xf32>
    %13 = vector.extract_strided_slice %5 {offsets = [7, 0], sizes = [1, 32], strides = [1, 1]} : vector<8x128xf32> to vector<1x32xf32>
    %c0_5 = arith.constant 0 : index
    %c0_6 = arith.constant 0 : index
    %c0_7 = arith.constant 0 : index
    %14 = vector.load %arg6[%c0_5, %c0_6, %c0_7] : memref<1x32x96xbf16, #tpu.memory_space<vmem>>, vector<1x32x96xbf16>
    %15 = vector.shape_cast %14 : vector<1x32x96xbf16> to vector<32x96xbf16>
    %16 = arith.truncf %3 : vector<16x32xf32> to vector<16x32xbf16>
    %cst = arith.constant dense<0.000000e+00> : vector<16x96xf32>
    %17 = tpu.matmul %16, %15, %cst {dimension_numbers = #tpu.dot_dimension_numbers<[1], [0], [0], [1], [0, 0, 1, 1], [], []>} : vector<16x32xbf16>, vector<32x96xbf16>, vector<16x96xf32> -> vector<16x96xf32>
    %18 = vector.broadcast %6 : vector<1x96xf32> to vector<16x96xf32>
    %19 = arith.addf %17, %18 : vector<16x96xf32>
    %20 = vector.extract_strided_slice %19 {offsets = [0, 0], sizes = [16, 32], strides = [1, 1]} : vector<16x96xf32> to vector<16x32xf32>
    %21 = vector.extract_strided_slice %19 {offsets = [0, 32], sizes = [16, 32], strides = [1, 1]} : vector<16x96xf32> to vector<16x32xf32>
    %22 = vector.extract_strided_slice %19 {offsets = [0, 64], sizes = [16, 32], strides = [1, 1]} : vector<16x96xf32> to vector<16x32xf32>
    %23 = vector.shape_cast %20 : vector<16x32xf32> to vector<2x8x32xf32>
    %24 = arith.truncf %23 : vector<2x8x32xf32> to vector<2x8x32xbf16>
    %25 = vector.shape_cast %21 : vector<16x32xf32> to vector<2x8x32xf32>
    %26 = arith.truncf %25 : vector<2x8x32xf32> to vector<2x8x32xbf16>
    %27 = vector.shape_cast %22 : vector<16x32xf32> to vector<2x8x32xf32>
    %28 = arith.truncf %27 : vector<2x8x32xf32> to vector<2x8x32xbf16>
    %cst_8 = arith.constant 0.000000e+00 : f32
    %29 = vector.broadcast %cst_8 : f32 to vector<16x32xf32>
    %30 = vector.extract_strided_slice %24 {offsets = [0, 0, 0], sizes = [2, 8, 8], strides = [1, 1, 1]} : vector<2x8x32xbf16> to vector<2x8x8xbf16>
    %31 = vector.extract_strided_slice %26 {offsets = [0, 0, 0], sizes = [2, 8, 8], strides = [1, 1, 1]} : vector<2x8x32xbf16> to vector<2x8x8xbf16>
    "tpu.trace_start"() <{level = 10 : i32, message = "bqd,bkd->bqk"}> : () -> ()
    %cst_9 = arith.constant dense<0.000000e+00> : vector<2x8x8xf32>
    %32 = tpu.matmul %30, %31, %cst_9 {dimension_numbers = #tpu.dot_dimension_numbers<[2], [2], [1], [1], [0, 0, 0, 1, 1, 1], [0], [0]>} : vector<2x8x8xbf16>, vector<2x8x8xbf16>, vector<2x8x8xf32> -> vector<2x8x8xf32>
    "tpu.trace_stop"() : () -> ()
    %cst_10 = arith.constant 0.353553385 : f32
    %33 = vector.broadcast %cst_10 : f32 to vector<2x8x8xf32>
    %34 = arith.mulf %32, %33 : vector<2x8x8xf32>
    %cst_11 = arith.constant dense<0xFF800000> : vector<2x8xf32>
    %35 = vector.multi_reduction <maximumf>, %34, %cst_11 [2] : vector<2x8x8xf32> to vector<2x8xf32>
    %36 = vector.shape_cast %35 : vector<2x8xf32> to vector<2x8x1xf32>
    %37 = vector.broadcast %36 : vector<2x8x1xf32> to vector<2x8x8xf32>
    %38 = arith.subf %34, %37 : vector<2x8x8xf32>
    %39 = math.exp %38 : vector<2x8x8xf32>
    %cst_12 = arith.constant dense<0.000000e+00> : vector<2x8xf32>
    %40 = vector.multi_reduction <add>, %39, %cst_12 [2] : vector<2x8x8xf32> to vector<2x8xf32>
    %41 = vector.shape_cast %40 : vector<2x8xf32> to vector<2x8x1xf32>
    %42 = tpu.reciprocal %41 {approx = true} : vector<2x8x1xf32> -> vector<2x8x1xf32>
    %43 = vector.broadcast %42 : vector<2x8x1xf32> to vector<2x8x8xf32>
    %44 = arith.mulf %39, %43 : vector<2x8x8xf32>
    %45 = arith.truncf %44 : vector<2x8x8xf32> to vector<2x8x8xbf16>
    %46 = vector.extract_strided_slice %28 {offsets = [0, 0, 0], sizes = [2, 8, 8], strides = [1, 1, 1]} : vector<2x8x32xbf16> to vector<2x8x8xbf16>
    "tpu.trace_start"() <{level = 10 : i32, message = "bqk,bkd->bqd"}> : () -> ()
    %cst_13 = arith.constant dense<0.000000e+00> : vector<2x8x8xf32>
    %47 = tpu.matmul %45, %46, %cst_13 {dimension_numbers = #tpu.dot_dimension_numbers<[2], [1], [1], [2], [0, 0, 0, 1, 1, 2], [0], [0]>} : vector<2x8x8xbf16>, vector<2x8x8xbf16>, vector<2x8x8xf32> -> vector<2x8x8xf32>
    "tpu.trace_stop"() : () -> ()
    %48 = vector.shape_cast %47 : vector<2x8x8xf32> to vector<16x8xf32>
    %49 = arith.truncf %48 : vector<16x8xf32> to vector<16x8xbf16>
    %c0_14 = arith.constant 0 : index
    %c0_15 = arith.constant 0 : index
    %c0_16 = arith.constant 0 : index
    %50 = vector.load %arg7[%c0_14, %c0_15, %c0_16] : memref<1x32x32xbf16, #tpu.memory_space<vmem>>, vector<1x8x32xbf16>
    %51 = vector.shape_cast %50 : vector<1x8x32xbf16> to vector<8x32xbf16>
    %cst_17 = arith.constant dense<0.000000e+00> : vector<16x32xf32>
    %52 = tpu.matmul %49, %51, %cst_17 {dimension_numbers = #tpu.dot_dimension_numbers<[1], [0], [0], [1], [0, 0, 1, 1], [], []>} : vector<16x8xbf16>, vector<8x32xbf16>, vector<16x32xf32> -> vector<16x32xf32>
    %53 = arith.addf %29, %52 : vector<16x32xf32>
    %54 = vector.extract_strided_slice %24 {offsets = [0, 0, 8], sizes = [2, 8, 8], strides = [1, 1, 1]} : vector<2x8x32xbf16> to vector<2x8x8xbf16>
    %55 = vector.extract_strided_slice %26 {offsets = [0, 0, 8], sizes = [2, 8, 8], strides = [1, 1, 1]} : vector<2x8x32xbf16> to vector<2x8x8xbf16>
    "tpu.trace_start"() <{level = 10 : i32, message = "bqd,bkd->bqk"}> : () -> ()
    %cst_18 = arith.constant dense<0.000000e+00> : vector<2x8x8xf32>
    %56 = tpu.matmul %54, %55, %cst_18 {dimension_numbers = #tpu.dot_dimension_numbers<[2], [2], [1], [1], [0, 0, 0, 1, 1, 1], [0], [0]>} : vector<2x8x8xbf16>, vector<2x8x8xbf16>, vector<2x8x8xf32> -> vector<2x8x8xf32>
    "tpu.trace_stop"() : () -> ()
    %cst_19 = arith.constant 0.353553385 : f32
    %57 = vector.broadcast %cst_19 : f32 to vector<2x8x8xf32>
    %58 = arith.mulf %56, %57 : vector<2x8x8xf32>
    %cst_20 = arith.constant dense<0xFF800000> : vector<2x8xf32>
    %59 = vector.multi_reduction <maximumf>, %58, %cst_20 [2] : vector<2x8x8xf32> to vector<2x8xf32>
    %60 = vector.shape_cast %59 : vector<2x8xf32> to vector<2x8x1xf32>
    %61 = vector.broadcast %60 : vector<2x8x1xf32> to vector<2x8x8xf32>
    %62 = arith.subf %58, %61 : vector<2x8x8xf32>
    %63 = math.exp %62 : vector<2x8x8xf32>
    %cst_21 = arith.constant dense<0.000000e+00> : vector<2x8xf32>
    %64 = vector.multi_reduction <add>, %63, %cst_21 [2] : vector<2x8x8xf32> to vector<2x8xf32>
    %65 = vector.shape_cast %64 : vector<2x8xf32> to vector<2x8x1xf32>
    %66 = tpu.reciprocal %65 {approx = true} : vector<2x8x1xf32> -> vector<2x8x1xf32>
    %67 = vector.broadcast %66 : vector<2x8x1xf32> to vector<2x8x8xf32>
    %68 = arith.mulf %63, %67 : vector<2x8x8xf32>
    %69 = arith.truncf %68 : vector<2x8x8xf32> to vector<2x8x8xbf16>
    %70 = vector.extract_strided_slice %28 {offsets = [0, 0, 8], sizes = [2, 8, 8], strides = [1, 1, 1]} : vector<2x8x32xbf16> to vector<2x8x8xbf16>
    "tpu.trace_start"() <{level = 10 : i32, message = "bqk,bkd->bqd"}> : () -> ()
    %cst_22 = arith.constant dense<0.000000e+00> : vector<2x8x8xf32>
    %71 = tpu.matmul %69, %70, %cst_22 {dimension_numbers = #tpu.dot_dimension_numbers<[2], [1], [1], [2], [0, 0, 0, 1, 1, 2], [0], [0]>} : vector<2x8x8xbf16>, vector<2x8x8xbf16>, vector<2x8x8xf32> -> vector<2x8x8xf32>
    "tpu.trace_stop"() : () -> ()
    %72 = vector.shape_cast %71 : vector<2x8x8xf32> to vector<16x8xf32>
    %73 = arith.truncf %72 : vector<16x8xf32> to vector<16x8xbf16>
    %c0_23 = arith.constant 0 : index
    %c8 = arith.constant 8 : index
    %c0_24 = arith.constant 0 : index
    %74 = vector.load %arg7[%c0_23, %c8, %c0_24] : memref<1x32x32xbf16, #tpu.memory_space<vmem>>, vector<1x8x32xbf16>
    %75 = vector.shape_cast %74 : vector<1x8x32xbf16> to vector<8x32xbf16>
    %cst_25 = arith.constant dense<0.000000e+00> : vector<16x32xf32>
    %76 = tpu.matmul %73, %75, %cst_25 {dimension_numbers = #tpu.dot_dimension_numbers<[1], [0], [0], [1], [0, 0, 1, 1], [], []>} : vector<16x8xbf16>, vector<8x32xbf16>, vector<16x32xf32> -> vector<16x32xf32>
    %77 = arith.addf %53, %76 : vector<16x32xf32>
    %78 = vector.extract_strided_slice %24 {offsets = [0, 0, 16], sizes = [2, 8, 8], strides = [1, 1, 1]} : vector<2x8x32xbf16> to vector<2x8x8xbf16>
    %79 = vector.extract_strided_slice %26 {offsets = [0, 0, 16], sizes = [2, 8, 8], strides = [1, 1, 1]} : vector<2x8x32xbf16> to vector<2x8x8xbf16>
    "tpu.trace_start"() <{level = 10 : i32, message = "bqd,bkd->bqk"}> : () -> ()
    %cst_26 = arith.constant dense<0.000000e+00> : vector<2x8x8xf32>
    %80 = tpu.matmul %78, %79, %cst_26 {dimension_numbers = #tpu.dot_dimension_numbers<[2], [2], [1], [1], [0, 0, 0, 1, 1, 1], [0], [0]>} : vector<2x8x8xbf16>, vector<2x8x8xbf16>, vector<2x8x8xf32> -> vector<2x8x8xf32>
    "tpu.trace_stop"() : () -> ()
    %cst_27 = arith.constant 0.353553385 : f32
    %81 = vector.broadcast %cst_27 : f32 to vector<2x8x8xf32>
    %82 = arith.mulf %80, %81 : vector<2x8x8xf32>
    %cst_28 = arith.constant dense<0xFF800000> : vector<2x8xf32>
    %83 = vector.multi_reduction <maximumf>, %82, %cst_28 [2] : vector<2x8x8xf32> to vector<2x8xf32>
    %84 = vector.shape_cast %83 : vector<2x8xf32> to vector<2x8x1xf32>
    %85 = vector.broadcast %84 : vector<2x8x1xf32> to vector<2x8x8xf32>
    %86 = arith.subf %82, %85 : vector<2x8x8xf32>
    %87 = math.exp %86 : vector<2x8x8xf32>
    %cst_29 = arith.constant dense<0.000000e+00> : vector<2x8xf32>
    %88 = vector.multi_reduction <add>, %87, %cst_29 [2] : vector<2x8x8xf32> to vector<2x8xf32>
    %89 = vector.shape_cast %88 : vector<2x8xf32> to vector<2x8x1xf32>
    %90 = tpu.reciprocal %89 {approx = true} : vector<2x8x1xf32> -> vector<2x8x1xf32>
    %91 = vector.broadcast %90 : vector<2x8x1xf32> to vector<2x8x8xf32>
    %92 = arith.mulf %87, %91 : vector<2x8x8xf32>
    %93 = arith.truncf %92 : vector<2x8x8xf32> to vector<2x8x8xbf16>
    %94 = vector.extract_strided_slice %28 {offsets = [0, 0, 16], sizes = [2, 8, 8], strides = [1, 1, 1]} : vector<2x8x32xbf16> to vector<2x8x8xbf16>
    "tpu.trace_start"() <{level = 10 : i32, message = "bqk,bkd->bqd"}> : () -> ()
    %cst_30 = arith.constant dense<0.000000e+00> : vector<2x8x8xf32>
    %95 = tpu.matmul %93, %94, %cst_30 {dimension_numbers = #tpu.dot_dimension_numbers<[2], [1], [1], [2], [0, 0, 0, 1, 1, 2], [0], [0]>} : vector<2x8x8xbf16>, vector<2x8x8xbf16>, vector<2x8x8xf32> -> vector<2x8x8xf32>
    "tpu.trace_stop"() : () -> ()
    %96 = vector.shape_cast %95 : vector<2x8x8xf32> to vector<16x8xf32>
    %97 = arith.truncf %96 : vector<16x8xf32> to vector<16x8xbf16>
    %c0_31 = arith.constant 0 : index
    %c16 = arith.constant 16 : index
    %c0_32 = arith.constant 0 : index
    %98 = vector.load %arg7[%c0_31, %c16, %c0_32] : memref<1x32x32xbf16, #tpu.memory_space<vmem>>, vector<1x8x32xbf16>
    %99 = vector.shape_cast %98 : vector<1x8x32xbf16> to vector<8x32xbf16>
    %cst_33 = arith.constant dense<0.000000e+00> : vector<16x32xf32>
    %100 = tpu.matmul %97, %99, %cst_33 {dimension_numbers = #tpu.dot_dimension_numbers<[1], [0], [0], [1], [0, 0, 1, 1], [], []>} : vector<16x8xbf16>, vector<8x32xbf16>, vector<16x32xf32> -> vector<16x32xf32>
    %101 = arith.addf %77, %100 : vector<16x32xf32>
    %102 = vector.extract_strided_slice %24 {offsets = [0, 0, 24], sizes = [2, 8, 8], strides = [1, 1, 1]} : vector<2x8x32xbf16> to vector<2x8x8xbf16>
    %103 = vector.extract_strided_slice %26 {offsets = [0, 0, 24], sizes = [2, 8, 8], strides = [1, 1, 1]} : vector<2x8x32xbf16> to vector<2x8x8xbf16>
    "tpu.trace_start"() <{level = 10 : i32, message = "bqd,bkd->bqk"}> : () -> ()
    %cst_34 = arith.constant dense<0.000000e+00> : vector<2x8x8xf32>
    %104 = tpu.matmul %102, %103, %cst_34 {dimension_numbers = #tpu.dot_dimension_numbers<[2], [2], [1], [1], [0, 0, 0, 1, 1, 1], [0], [0]>} : vector<2x8x8xbf16>, vector<2x8x8xbf16>, vector<2x8x8xf32> -> vector<2x8x8xf32>
    "tpu.trace_stop"() : () -> ()
    %cst_35 = arith.constant 0.353553385 : f32
    %105 = vector.broadcast %cst_35 : f32 to vector<2x8x8xf32>
    %106 = arith.mulf %104, %105 : vector<2x8x8xf32>
    %cst_36 = arith.constant dense<0xFF800000> : vector<2x8xf32>
    %107 = vector.multi_reduction <maximumf>, %106, %cst_36 [2] : vector<2x8x8xf32> to vector<2x8xf32>
    %108 = vector.shape_cast %107 : vector<2x8xf32> to vector<2x8x1xf32>
    %109 = vector.broadcast %108 : vector<2x8x1xf32> to vector<2x8x8xf32>
    %110 = arith.subf %106, %109 : vector<2x8x8xf32>
    %111 = math.exp %110 : vector<2x8x8xf32>
    %cst_37 = arith.constant dense<0.000000e+00> : vector<2x8xf32>
    %112 = vector.multi_reduction <add>, %111, %cst_37 [2] : vector<2x8x8xf32> to vector<2x8xf32>
    %113 = vector.shape_cast %112 : vector<2x8xf32> to vector<2x8x1xf32>
    %114 = tpu.reciprocal %113 {approx = true} : vector<2x8x1xf32> -> vector<2x8x1xf32>
    %115 = vector.broadcast %114 : vector<2x8x1xf32> to vector<2x8x8xf32>
    %116 = arith.mulf %111, %115 : vector<2x8x8xf32>
    %117 = arith.truncf %116 : vector<2x8x8xf32> to vector<2x8x8xbf16>
    %118 = vector.extract_strided_slice %28 {offsets = [0, 0, 24], sizes = [2, 8, 8], strides = [1, 1, 1]} : vector<2x8x32xbf16> to vector<2x8x8xbf16>
    "tpu.trace_start"() <{level = 10 : i32, message = "bqk,bkd->bqd"}> : () -> ()
    %cst_38 = arith.constant dense<0.000000e+00> : vector<2x8x8xf32>
    %119 = tpu.matmul %117, %118, %cst_38 {dimension_numbers = #tpu.dot_dimension_numbers<[2], [1], [1], [2], [0, 0, 0, 1, 1, 2], [0], [0]>} : vector<2x8x8xbf16>, vector<2x8x8xbf16>, vector<2x8x8xf32> -> vector<2x8x8xf32>
    "tpu.trace_stop"() : () -> ()
    %120 = vector.shape_cast %119 : vector<2x8x8xf32> to vector<16x8xf32>
    %121 = arith.truncf %120 : vector<16x8xf32> to vector<16x8xbf16>
    %c0_39 = arith.constant 0 : index
    %c24 = arith.constant 24 : index
    %c0_40 = arith.constant 0 : index
    %122 = vector.load %arg7[%c0_39, %c24, %c0_40] : memref<1x32x32xbf16, #tpu.memory_space<vmem>>, vector<1x8x32xbf16>
    %123 = vector.shape_cast %122 : vector<1x8x32xbf16> to vector<8x32xbf16>
    %cst_41 = arith.constant dense<0.000000e+00> : vector<16x32xf32>
    %124 = tpu.matmul %121, %123, %cst_41 {dimension_numbers = #tpu.dot_dimension_numbers<[1], [0], [0], [1], [0, 0, 1, 1], [], []>} : vector<16x8xbf16>, vector<8x32xbf16>, vector<16x32xf32> -> vector<16x32xf32>
    %125 = arith.addf %101, %124 : vector<16x32xf32>
    %126 = vector.broadcast %7 : vector<1x32xf32> to vector<16x32xf32>
    %127 = arith.addf %125, %126 : vector<16x32xf32>
    %128 = arith.addf %3, %127 : vector<16x32xf32>
    %cst_42 = arith.constant dense<0.000000e+00> : vector<16xf32>
    %129 = vector.multi_reduction <add>, %128, %cst_42 [1] : vector<16x32xf32> to vector<16xf32>
    %130 = vector.shape_cast %129 : vector<16xf32> to vector<16x1xf32>
    %cst_43 = arith.constant 3.200000e+01 : f32
    %131 = vector.broadcast %cst_43 : f32 to vector<16x1xf32>
    %132 = arith.divf %130, %131 : vector<16x1xf32>
    %133 = arith.mulf %128, %128 : vector<16x32xf32>
    %cst_44 = arith.constant dense<0.000000e+00> : vector<16xf32>
    %134 = vector.multi_reduction <add>, %133, %cst_44 [1] : vector<16x32xf32> to vector<16xf32>
    %135 = vector.shape_cast %134 : vector<16xf32> to vector<16x1xf32>
    %cst_45 = arith.constant 3.200000e+01 : f32
    %136 = vector.broadcast %cst_45 : f32 to vector<16x1xf32>
    %137 = arith.divf %135, %136 : vector<16x1xf32>
    %138 = arith.mulf %132, %132 : vector<16x1xf32>
    %139 = arith.subf %137, %138 : vector<16x1xf32>
    %140 = vector.broadcast %132 : vector<16x1xf32> to vector<16x32xf32>
    %141 = arith.subf %128, %140 : vector<16x32xf32>
    %cst_46 = arith.constant 9.99999974E-6 : f32
    %142 = vector.broadcast %cst_46 : f32 to vector<16x1xf32>
    %143 = arith.addf %139, %142 : vector<16x1xf32>
    %144 = math.rsqrt %143 : vector<16x1xf32>
    %145 = vector.broadcast %144 : vector<16x1xf32> to vector<16x32xf32>
    %146 = arith.mulf %141, %145 : vector<16x32xf32>
    %147 = vector.broadcast %8 : vector<1x32xf32> to vector<16x32xf32>
    %148 = arith.mulf %146, %147 : vector<16x32xf32>
    %149 = vector.broadcast %9 : vector<1x32xf32> to vector<16x32xf32>
    %150 = arith.addf %148, %149 : vector<16x32xf32>
    %c0_47 = arith.constant 0 : index
    %c0_48 = arith.constant 0 : index
    %c0_49 = arith.constant 0 : index
    %151 = vector.load %arg8[%c0_47, %c0_48, %c0_49] : memref<1x32x64xbf16, #tpu.memory_space<vmem>>, vector<1x32x64xbf16>
    %152 = vector.shape_cast %151 : vector<1x32x64xbf16> to vector<32x64xbf16>
    %153 = arith.truncf %150 : vector<16x32xf32> to vector<16x32xbf16>
    %cst_50 = arith.constant dense<0.000000e+00> : vector<16x64xf32>
    %154 = tpu.matmul %153, %152, %cst_50 {dimension_numbers = #tpu.dot_dimension_numbers<[1], [0], [0], [1], [0, 0, 1, 1], [], []>} : vector<16x32xbf16>, vector<32x64xbf16>, vector<16x64xf32> -> vector<16x64xf32>
    %155 = vector.broadcast %10 : vector<1x64xf32> to vector<16x64xf32>
    %156 = arith.addf %154, %155 : vector<16x64xf32>
    %cst_51 = arith.constant 0.000000e+00 : f32
    %157 = vector.broadcast %cst_51 : f32 to vector<16x64xf32>
    %158 = arith.maximumf %156, %157 : vector<16x64xf32>
    %c0_52 = arith.constant 0 : index
    %c0_53 = arith.constant 0 : index
    %c0_54 = arith.constant 0 : index
    %159 = vector.load %arg9[%c0_52, %c0_53, %c0_54] : memref<1x64x32xbf16, #tpu.memory_space<vmem>>, vector<1x64x32xbf16>
    %160 = vector.shape_cast %159 : vector<1x64x32xbf16> to vector<64x32xbf16>
    %161 = arith.truncf %158 : vector<16x64xf32> to vector<16x64xbf16>
    %cst_55 = arith.constant dense<0.000000e+00> : vector<16x32xf32>
    %162 = tpu.matmul %161, %160, %cst_55 {dimension_numbers = #tpu.dot_dimension_numbers<[1], [0], [0], [1], [0, 0, 1, 1], [], []>} : vector<16x64xbf16>, vector<64x32xbf16>, vector<16x32xf32> -> vector<16x32xf32>
    %163 = vector.broadcast %11 : vector<1x32xf32> to vector<16x32xf32>
    %164 = arith.addf %162, %163 : vector<16x32xf32>
    %165 = arith.addf %150, %164 : vector<16x32xf32>
    %cst_56 = arith.constant dense<0.000000e+00> : vector<16xf32>
    %166 = vector.multi_reduction <add>, %165, %cst_56 [1] : vector<16x32xf32> to vector<16xf32>
    %167 = vector.shape_cast %166 : vector<16xf32> to vector<16x1xf32>
    %cst_57 = arith.constant 3.200000e+01 : f32
    %168 = vector.broadcast %cst_57 : f32 to vector<16x1xf32>
    %169 = arith.divf %167, %168 : vector<16x1xf32>
    %170 = arith.mulf %165, %165 : vector<16x32xf32>
    %cst_58 = arith.constant dense<0.000000e+00> : vector<16xf32>
    %171 = vector.multi_reduction <add>, %170, %cst_58 [1] : vector<16x32xf32> to vector<16xf32>
    %172 = vector.shape_cast %171 : vector<16xf32> to vector<16x1xf32>
    %cst_59 = arith.constant 3.200000e+01 : f32
    %173 = vector.broadcast %cst_59 : f32 to vector<16x1xf32>
    %174 = arith.divf %172, %173 : vector<16x1xf32>
    %175 = arith.mulf %169, %169 : vector<16x1xf32>
    %176 = arith.subf %174, %175 : vector<16x1xf32>
    %177 = vector.broadcast %169 : vector<16x1xf32> to vector<16x32xf32>
    %178 = arith.subf %165, %177 : vector<16x32xf32>
    %cst_60 = arith.constant 9.99999974E-6 : f32
    %179 = vector.broadcast %cst_60 : f32 to vector<16x1xf32>
    %180 = arith.addf %176, %179 : vector<16x1xf32>
    %181 = math.rsqrt %180 : vector<16x1xf32>
    %182 = vector.broadcast %181 : vector<16x1xf32> to vector<16x32xf32>
    %183 = arith.mulf %178, %182 : vector<16x32xf32>
    %184 = vector.broadcast %12 : vector<1x32xf32> to vector<16x32xf32>
    %185 = arith.mulf %183, %184 : vector<16x32xf32>
    %186 = vector.broadcast %13 : vector<1x32xf32> to vector<16x32xf32>
    %187 = arith.addf %185, %186 : vector<16x32xf32>
    %c0_61 = arith.constant 0 : index
    %c0_62 = arith.constant 0 : index
    %188 = vector.load %arg14[%c0_61, %c0_62] : memref<16x32xf32, #tpu.memory_space<vmem>>, vector<16x32xf32>
    tpu.vector_store %arg14[%c0_61, %c0_62], %187 {strides = array<i32>} : memref<16x32xf32, #tpu.memory_space<vmem>>, vector<16x32xf32>,
    %c1_i32 = arith.constant 1 : i32
    %189 = arith.cmpi eq, %arg0, %c1_i32 : i32
    %190 = arith.extui %189 : i1 to i32
    %c0_i32_63 = arith.constant 0 : i32
    %191 = arith.cmpi ne, %190, %c0_i32_63 : i32
    scf.if %191 {
      %c0_64 = arith.constant 0 : index
      %c0_65 = arith.constant 0 : index
      %192 = vector.load %arg11[%c0_64, %c0_65] : memref<32x128xbf16, #tpu.memory_space<vmem>>, vector<32x128xbf16>
      %193 = arith.truncf %187 : vector<16x32xf32> to vector<16x32xbf16>
      %cst_66 = arith.constant dense<0.000000e+00> : vector<16x128xf32>
      %194 = tpu.matmul %193, %192, %cst_66 {dimension_numbers = #tpu.dot_dimension_numbers<[1], [0], [0], [1], [0, 0, 1, 1], [], []>} : vector<16x32xbf16>, vector<32x128xbf16>, vector<16x128xf32> -> vector<16x128xf32>
      %c0_67 = arith.constant 0 : index
      %c0_68 = arith.constant 0 : index
      %195 = vector.load %arg12[%c0_67, %c0_68] : memref<1x128xf32, #tpu.memory_space<vmem>>, vector<1x128xf32>
      %196 = vector.broadcast %195 : vector<1x128xf32> to vector<16x128xf32>
      %197 = arith.addf %194, %196 : vector<16x128xf32>
      %c0_69 = arith.constant 0 : index
      %c0_70 = arith.constant 0 : index
      %198 = vector.load %arg13[%c0_69, %c0_70] : memref<16x128xf32, #tpu.memory_space<vmem>>, vector<16x128xf32>
      tpu.vector_store %arg13[%c0_69, %c0_70], %197 {strides = array<i32>} : memref<16x128xf32, #tpu.memory_space<vmem>>, vector<16x128xf32>,
    } else {
    }
    return
  }
  func.func @transform_0(%arg0: i32) -> (i32, i32) {
    %c0_i32 = arith.constant 0 : i32
    %c0_i32_0 = arith.constant 0 : i32
    %c0_i32_1 = arith.constant 0 : i32
    return %c0_i32, %c0_i32_0 : i32, i32
  }
  func.func @transform_1(%arg0: i32) -> (i32, i32) {
    %c0_i32 = arith.constant 0 : i32
    %c0_i32_0 = arith.constant 0 : i32
    %c0_i32_1 = arith.constant 0 : i32
    return %c0_i32, %c0_i32_0 : i32, i32
  }
  func.func @transform_2(%arg0: i32) -> (i32, i32) {
    %c0_i32 = arith.constant 0 : i32
    %c0_i32_0 = arith.constant 0 : i32
    %c0_i32_1 = arith.constant 0 : i32
    return %c0_i32, %c0_i32_0 : i32, i32
  }
  func.func @transform_3(%arg0: i32) -> (i32, i32) {
    %c0_i32 = arith.constant 0 : i32
    %c0_i32_0 = arith.constant 0 : i32
    %c0_i32_1 = arith.constant 0 : i32
    return %c0_i32, %c0_i32_0 : i32, i32
  }
  func.func @transform_4(%arg0: i32) -> (i32, i32) {
    %c0_i32 = arith.constant 0 : i32
    %c0_i32_0 = arith.constant 0 : i32
    %c0_i32_1 = arith.constant 0 : i32
    return %c0_i32, %c0_i32_0 : i32, i32
  }
  func.func @transform_5(%arg0: i32) -> (i32, i32, i32) {
    %c0_i32 = arith.constant 0 : i32
    %c0_i32_0 = arith.constant 0 : i32
    %c0_i32_1 = arith.constant 0 : i32
    return %arg0, %c0_i32, %c0_i32_0 : i32, i32, i32
  }
  func.func @transform_6(%arg0: i32) -> (i32, i32, i32) {
    %c0_i32 = arith.constant 0 : i32
    %c0_i32_0 = arith.constant 0 : i32
    %c0_i32_1 = arith.constant 0 : i32
    return %arg0, %c0_i32, %c0_i32_0 : i32, i32, i32
  }
  func.func @transform_7(%arg0: i32) -> (i32, i32, i32) {
    %c0_i32 = arith.constant 0 : i32
    %c0_i32_0 = arith.constant 0 : i32
    %c0_i32_1 = arith.constant 0 : i32
    return %arg0, %c0_i32, %c0_i32_0 : i32, i32, i32
  }
  func.func @transform_8(%arg0: i32) -> (i32, i32, i32) {
    %c0_i32 = arith.constant 0 : i32
    %c0_i32_0 = arith.constant 0 : i32
    %c0_i32_1 = arith.constant 0 : i32
    return %arg0, %c0_i32, %c0_i32_0 : i32, i32, i32
  }
  func.func @transform_9(%arg0: i32) -> (i32, i32, i32) {
    %c0_i32 = arith.constant 0 : i32
    %c0_i32_0 = arith.constant 0 : i32
    %c0_i32_1 = arith.constant 0 : i32
    return %arg0, %c0_i32, %c0_i32_0 : i32, i32, i32
  }
  func.func @transform_10(%arg0: i32) -> (i32, i32) {
    %c0_i32 = arith.constant 0 : i32
    %c0_i32_0 = arith.constant 0 : i32
    %c0_i32_1 = arith.constant 0 : i32
    return %c0_i32, %c0_i32_0 : i32, i32
  }
  func.func @transform_11(%arg0: i32) -> (i32, i32) {
    %c0_i32 = arith.constant 0 : i32
    %c0_i32_0 = arith.constant 0 : i32
    %c0_i32_1 = arith.constant 0 : i32
    return %c0_i32, %c0_i32_0 : i32, i32
  }
  func.func @transform_12(%arg0: i32) -> (i32, i32) {
    %c0_i32 = arith.constant 0 : i32
    %c0_i32_0 = arith.constant 0 : i32
    %c0_i32_1 = arith.constant 0 : i32
    return %c0_i32, %c0_i32_0 : i32, i32
  }
}

module attributes {stable_mosaic.version = 11 : i64} {
  func.func @_csi_decoder_kernel(%arg0: i32, %arg1: memref<16x32xf32, #tpu.memory_space<vmem>>, %arg2: memref<16x32xf32, #tpu.memory_space<vmem>>, %arg3: memref<32x8xf32, #tpu.memory_space<vmem>>, %arg4: memref<8x32xbf16, #tpu.memory_space<vmem>>, %arg5: memref<32x32xf32, #tpu.memory_space<vmem>>, %arg6: memref<1x32x96xbf16, #tpu.memory_space<vmem>>, %arg7: memref<1x32x32xbf16, #tpu.memory_space<vmem>>, %arg8: memref<1x32x32xbf16, #tpu.memory_space<vmem>>, %arg9: memref<1x32x64xbf16, #tpu.memory_space<vmem>>, %arg10: memref<1x32x32xbf16, #tpu.memory_space<vmem>>, %arg11: memref<1x32x64xbf16, #tpu.memory_space<vmem>>, %arg12: memref<1x64x32xbf16, #tpu.memory_space<vmem>>, %arg13: memref<1x16x128xf32, #tpu.memory_space<vmem>>, %arg14: memref<32x128xbf16, #tpu.memory_space<vmem>>, %arg15: memref<1x128xf32, #tpu.memory_space<vmem>>, %arg16: memref<16x128xf32, #tpu.memory_space<vmem>>, %arg17: memref<16x32xf32, #tpu.memory_space<vmem>>, %arg18: memref<32x32xf32, #tpu.memory_space<vmem>>) attributes {dimension_semantics = [#tpu.dimension_semantics<arbitrary>], iteration_bounds = array<i64: 2>, scalar_prefetch = 0 : i64, scratch_operands = 2 : i64, tpu.core_type = #tpu.core_type<tc>, window_params = [{pipeline_mode = #tpu.pipeline_mode<synchronous>, transform_indices = @transform_0, window_bounds = array<i64: 16, 32>}, {pipeline_mode = #tpu.pipeline_mode<synchronous>, transform_indices = @transform_1, window_bounds = array<i64: 16, 32>}, {pipeline_mode = #tpu.pipeline_mode<synchronous>, transform_indices = @transform_2, window_bounds = array<i64: 32, 8>}, {pipeline_mode = #tpu.pipeline_mode<synchronous>, transform_indices = @transform_3, window_bounds = array<i64: 8, 32>}, {pipeline_mode = #tpu.pipeline_mode<synchronous>, transform_indices = @transform_4, window_bounds = array<i64: 32, 32>}, {transform_indices = @transform_5, window_bounds = array<i64: 1, 32, 96>}, {transform_indices = @transform_6, window_bounds = array<i64: 1, 32, 32>}, {transform_indices = @transform_7, window_bounds = array<i64: 1, 32, 32>}, {transform_indices = @transform_8, window_bounds = array<i64: 1, 32, 64>}, {transform_indices = @transform_9, window_bounds = array<i64: 1, 32, 32>}, {transform_indices = @transform_10, window_bounds = array<i64: 1, 32, 64>}, {transform_indices = @transform_11, window_bounds = array<i64: 1, 64, 32>}, {transform_indices = @transform_12, window_bounds = array<i64: 1, 16, 128>}, {pipeline_mode = #tpu.pipeline_mode<synchronous>, transform_indices = @transform_13, window_bounds = array<i64: 32, 128>}, {pipeline_mode = #tpu.pipeline_mode<synchronous>, transform_indices = @transform_14, window_bounds = array<i64: 1, 128>}, {pipeline_mode = #tpu.pipeline_mode<synchronous>, transform_indices = @transform_15, window_bounds = array<i64: 16, 128>}]} {
    %c0_i32 = arith.constant 0 : i32
    %0 = arith.cmpi eq, %arg0, %c0_i32 : i32
    %1 = arith.extui %0 : i1 to i32
    %c0_i32_0 = arith.constant 0 : i32
    %2 = arith.cmpi ne, %1, %c0_i32_0 : i32
    scf.if %2 {
      %c0_116 = arith.constant 0 : index
      %c0_117 = arith.constant 0 : index
      %340 = vector.load %arg1[%c0_116, %c0_117] : memref<16x32xf32, #tpu.memory_space<vmem>>, vector<16x32xf32>
      %c0_118 = arith.constant 0 : index
      %c0_119 = arith.constant 0 : index
      %341 = vector.load %arg2[%c0_118, %c0_119] : memref<16x32xf32, #tpu.memory_space<vmem>>, vector<16x32xf32>
      %342 = arith.addf %340, %341 : vector<16x32xf32>
      %c0_120 = arith.constant 0 : index
      %c0_121 = arith.constant 0 : index
      %343 = vector.load %arg17[%c0_120, %c0_121] : memref<16x32xf32, #tpu.memory_space<vmem>>, vector<16x32xf32>
      tpu.vector_store %arg17[%c0_120, %c0_121], %342 {strides = array<i32>} : memref<16x32xf32, #tpu.memory_space<vmem>>, vector<16x32xf32>,
      %c0_122 = arith.constant 0 : index
      %c0_123 = arith.constant 0 : index
      %344 = vector.load %arg3[%c0_122, %c0_123] : memref<32x8xf32, #tpu.memory_space<vmem>>, vector<32x8xf32>
      %c0_124 = arith.constant 0 : index
      %c0_125 = arith.constant 0 : index
      %345 = vector.load %arg4[%c0_124, %c0_125] : memref<8x32xbf16, #tpu.memory_space<vmem>>, vector<8x32xbf16>
      %346 = arith.truncf %344 : vector<32x8xf32> to vector<32x8xbf16>
      %cst_126 = arith.constant dense<0.000000e+00> : vector<32x32xf32>
      %347 = tpu.matmul %346, %345, %cst_126 {dimension_numbers = #tpu.dot_dimension_numbers<[1], [0], [0], [1], [0, 0, 1, 1], [], []>} : vector<32x8xbf16>, vector<8x32xbf16>, vector<32x32xf32> -> vector<32x32xf32>
      %c0_127 = arith.constant 0 : index
      %c0_128 = arith.constant 0 : index
      %348 = vector.load %arg5[%c0_127, %c0_128] : memref<32x32xf32, #tpu.memory_space<vmem>>, vector<32x32xf32>
      %349 = arith.addf %347, %348 : vector<32x32xf32>
      %c0_129 = arith.constant 0 : index
      %c0_130 = arith.constant 0 : index
      %350 = vector.load %arg18[%c0_129, %c0_130] : memref<32x32xf32, #tpu.memory_space<vmem>>, vector<32x32xf32>
      tpu.vector_store %arg18[%c0_129, %c0_130], %349 {strides = array<i32>} : memref<32x32xf32, #tpu.memory_space<vmem>>, vector<32x32xf32>,
    } else {
    }
    %c0 = arith.constant 0 : index
    %c0_1 = arith.constant 0 : index
    %3 = vector.load %arg17[%c0, %c0_1] : memref<16x32xf32, #tpu.memory_space<vmem>>, vector<16x32xf32>
    %c0_2 = arith.constant 0 : index
    %c0_3 = arith.constant 0 : index
    %4 = vector.load %arg18[%c0_2, %c0_3] : memref<32x32xf32, #tpu.memory_space<vmem>>, vector<32x32xf32>
    %c0_4 = arith.constant 0 : index
    %c0_5 = arith.constant 0 : index
    %c0_6 = arith.constant 0 : index
    %5 = vector.load %arg13[%c0_4, %c0_5, %c0_6] : memref<1x16x128xf32, #tpu.memory_space<vmem>>, vector<1x16x128xf32>
    %6 = vector.shape_cast %5 : vector<1x16x128xf32> to vector<16x128xf32>
    %7 = vector.extract_strided_slice %6 {offsets = [0, 0], sizes = [1, 96], strides = [1, 1]} : vector<16x128xf32> to vector<1x96xf32>
    %8 = vector.extract_strided_slice %6 {offsets = [1, 0], sizes = [1, 32], strides = [1, 1]} : vector<16x128xf32> to vector<1x32xf32>
    %9 = vector.extract_strided_slice %6 {offsets = [2, 0], sizes = [1, 32], strides = [1, 1]} : vector<16x128xf32> to vector<1x32xf32>
    %10 = vector.extract_strided_slice %6 {offsets = [3, 0], sizes = [1, 32], strides = [1, 1]} : vector<16x128xf32> to vector<1x32xf32>
    %11 = vector.extract_strided_slice %6 {offsets = [4, 0], sizes = [1, 32], strides = [1, 1]} : vector<16x128xf32> to vector<1x32xf32>
    %12 = vector.extract_strided_slice %6 {offsets = [5, 0], sizes = [1, 64], strides = [1, 1]} : vector<16x128xf32> to vector<1x64xf32>
    %13 = vector.extract_strided_slice %6 {offsets = [6, 0], sizes = [1, 32], strides = [1, 1]} : vector<16x128xf32> to vector<1x32xf32>
    %14 = vector.extract_strided_slice %6 {offsets = [7, 0], sizes = [1, 32], strides = [1, 1]} : vector<16x128xf32> to vector<1x32xf32>
    %15 = vector.extract_strided_slice %6 {offsets = [8, 0], sizes = [1, 32], strides = [1, 1]} : vector<16x128xf32> to vector<1x32xf32>
    %16 = vector.extract_strided_slice %6 {offsets = [9, 0], sizes = [1, 64], strides = [1, 1]} : vector<16x128xf32> to vector<1x64xf32>
    %17 = vector.extract_strided_slice %6 {offsets = [10, 0], sizes = [1, 32], strides = [1, 1]} : vector<16x128xf32> to vector<1x32xf32>
    %18 = vector.extract_strided_slice %6 {offsets = [11, 0], sizes = [1, 32], strides = [1, 1]} : vector<16x128xf32> to vector<1x32xf32>
    %19 = vector.extract_strided_slice %6 {offsets = [12, 0], sizes = [1, 32], strides = [1, 1]} : vector<16x128xf32> to vector<1x32xf32>
    %c0_7 = arith.constant 0 : index
    %c0_8 = arith.constant 0 : index
    %c0_9 = arith.constant 0 : index
    %20 = vector.load %arg6[%c0_7, %c0_8, %c0_9] : memref<1x32x96xbf16, #tpu.memory_space<vmem>>, vector<1x32x96xbf16>
    %21 = vector.shape_cast %20 : vector<1x32x96xbf16> to vector<32x96xbf16>
    %22 = arith.truncf %3 : vector<16x32xf32> to vector<16x32xbf16>
    %cst = arith.constant dense<0.000000e+00> : vector<16x96xf32>
    %23 = tpu.matmul %22, %21, %cst {dimension_numbers = #tpu.dot_dimension_numbers<[1], [0], [0], [1], [0, 0, 1, 1], [], []>} : vector<16x32xbf16>, vector<32x96xbf16>, vector<16x96xf32> -> vector<16x96xf32>
    %24 = vector.broadcast %7 : vector<1x96xf32> to vector<16x96xf32>
    %25 = arith.addf %23, %24 : vector<16x96xf32>
    %26 = vector.extract_strided_slice %25 {offsets = [0, 0], sizes = [16, 32], strides = [1, 1]} : vector<16x96xf32> to vector<16x32xf32>
    %27 = vector.extract_strided_slice %25 {offsets = [0, 32], sizes = [16, 32], strides = [1, 1]} : vector<16x96xf32> to vector<16x32xf32>
    %28 = vector.extract_strided_slice %25 {offsets = [0, 64], sizes = [16, 32], strides = [1, 1]} : vector<16x96xf32> to vector<16x32xf32>
    %29 = vector.shape_cast %26 : vector<16x32xf32> to vector<2x8x32xf32>
    %30 = arith.truncf %29 : vector<2x8x32xf32> to vector<2x8x32xbf16>
    %31 = vector.shape_cast %27 : vector<16x32xf32> to vector<2x8x32xf32>
    %32 = arith.truncf %31 : vector<2x8x32xf32> to vector<2x8x32xbf16>
    %33 = vector.shape_cast %28 : vector<16x32xf32> to vector<2x8x32xf32>
    %34 = arith.truncf %33 : vector<2x8x32xf32> to vector<2x8x32xbf16>
    %cst_10 = arith.constant 0.000000e+00 : f32
    %35 = vector.broadcast %cst_10 : f32 to vector<16x32xf32>
    %36 = vector.extract_strided_slice %30 {offsets = [0, 0, 0], sizes = [2, 8, 8], strides = [1, 1, 1]} : vector<2x8x32xbf16> to vector<2x8x8xbf16>
    %37 = vector.extract_strided_slice %32 {offsets = [0, 0, 0], sizes = [2, 8, 8], strides = [1, 1, 1]} : vector<2x8x32xbf16> to vector<2x8x8xbf16>
    "tpu.trace_start"() <{level = 10 : i32, message = "bqd,bkd->bqk"}> : () -> ()
    %cst_11 = arith.constant dense<0.000000e+00> : vector<2x8x8xf32>
    %38 = tpu.matmul %36, %37, %cst_11 {dimension_numbers = #tpu.dot_dimension_numbers<[2], [2], [1], [1], [0, 0, 0, 1, 1, 1], [0], [0]>} : vector<2x8x8xbf16>, vector<2x8x8xbf16>, vector<2x8x8xf32> -> vector<2x8x8xf32>
    "tpu.trace_stop"() : () -> ()
    %cst_12 = arith.constant 0.353553385 : f32
    %39 = vector.broadcast %cst_12 : f32 to vector<2x8x8xf32>
    %40 = arith.mulf %38, %39 : vector<2x8x8xf32>
    %cst_13 = arith.constant dense<0xFF800000> : vector<2x8xf32>
    %41 = vector.multi_reduction <maximumf>, %40, %cst_13 [2] : vector<2x8x8xf32> to vector<2x8xf32>
    %42 = vector.shape_cast %41 : vector<2x8xf32> to vector<2x8x1xf32>
    %43 = vector.broadcast %42 : vector<2x8x1xf32> to vector<2x8x8xf32>
    %44 = arith.subf %40, %43 : vector<2x8x8xf32>
    %45 = math.exp %44 : vector<2x8x8xf32>
    %cst_14 = arith.constant dense<0.000000e+00> : vector<2x8xf32>
    %46 = vector.multi_reduction <add>, %45, %cst_14 [2] : vector<2x8x8xf32> to vector<2x8xf32>
    %47 = vector.shape_cast %46 : vector<2x8xf32> to vector<2x8x1xf32>
    %48 = tpu.reciprocal %47 {approx = true} : vector<2x8x1xf32> -> vector<2x8x1xf32>
    %49 = vector.broadcast %48 : vector<2x8x1xf32> to vector<2x8x8xf32>
    %50 = arith.mulf %45, %49 : vector<2x8x8xf32>
    %51 = arith.truncf %50 : vector<2x8x8xf32> to vector<2x8x8xbf16>
    %52 = vector.extract_strided_slice %34 {offsets = [0, 0, 0], sizes = [2, 8, 8], strides = [1, 1, 1]} : vector<2x8x32xbf16> to vector<2x8x8xbf16>
    "tpu.trace_start"() <{level = 10 : i32, message = "bqk,bkd->bqd"}> : () -> ()
    %cst_15 = arith.constant dense<0.000000e+00> : vector<2x8x8xf32>
    %53 = tpu.matmul %51, %52, %cst_15 {dimension_numbers = #tpu.dot_dimension_numbers<[2], [1], [1], [2], [0, 0, 0, 1, 1, 2], [0], [0]>} : vector<2x8x8xbf16>, vector<2x8x8xbf16>, vector<2x8x8xf32> -> vector<2x8x8xf32>
    "tpu.trace_stop"() : () -> ()
    %54 = vector.shape_cast %53 : vector<2x8x8xf32> to vector<16x8xf32>
    %55 = arith.truncf %54 : vector<16x8xf32> to vector<16x8xbf16>
    %c0_16 = arith.constant 0 : index
    %c0_17 = arith.constant 0 : index
    %c0_18 = arith.constant 0 : index
    %56 = vector.load %arg7[%c0_16, %c0_17, %c0_18] : memref<1x32x32xbf16, #tpu.memory_space<vmem>>, vector<1x8x32xbf16>
    %57 = vector.shape_cast %56 : vector<1x8x32xbf16> to vector<8x32xbf16>
    %cst_19 = arith.constant dense<0.000000e+00> : vector<16x32xf32>
    %58 = tpu.matmul %55, %57, %cst_19 {dimension_numbers = #tpu.dot_dimension_numbers<[1], [0], [0], [1], [0, 0, 1, 1], [], []>} : vector<16x8xbf16>, vector<8x32xbf16>, vector<16x32xf32> -> vector<16x32xf32>
    %59 = arith.addf %35, %58 : vector<16x32xf32>
    %60 = vector.extract_strided_slice %30 {offsets = [0, 0, 8], sizes = [2, 8, 8], strides = [1, 1, 1]} : vector<2x8x32xbf16> to vector<2x8x8xbf16>
    %61 = vector.extract_strided_slice %32 {offsets = [0, 0, 8], sizes = [2, 8, 8], strides = [1, 1, 1]} : vector<2x8x32xbf16> to vector<2x8x8xbf16>
    "tpu.trace_start"() <{level = 10 : i32, message = "bqd,bkd->bqk"}> : () -> ()
    %cst_20 = arith.constant dense<0.000000e+00> : vector<2x8x8xf32>
    %62 = tpu.matmul %60, %61, %cst_20 {dimension_numbers = #tpu.dot_dimension_numbers<[2], [2], [1], [1], [0, 0, 0, 1, 1, 1], [0], [0]>} : vector<2x8x8xbf16>, vector<2x8x8xbf16>, vector<2x8x8xf32> -> vector<2x8x8xf32>
    "tpu.trace_stop"() : () -> ()
    %cst_21 = arith.constant 0.353553385 : f32
    %63 = vector.broadcast %cst_21 : f32 to vector<2x8x8xf32>
    %64 = arith.mulf %62, %63 : vector<2x8x8xf32>
    %cst_22 = arith.constant dense<0xFF800000> : vector<2x8xf32>
    %65 = vector.multi_reduction <maximumf>, %64, %cst_22 [2] : vector<2x8x8xf32> to vector<2x8xf32>
    %66 = vector.shape_cast %65 : vector<2x8xf32> to vector<2x8x1xf32>
    %67 = vector.broadcast %66 : vector<2x8x1xf32> to vector<2x8x8xf32>
    %68 = arith.subf %64, %67 : vector<2x8x8xf32>
    %69 = math.exp %68 : vector<2x8x8xf32>
    %cst_23 = arith.constant dense<0.000000e+00> : vector<2x8xf32>
    %70 = vector.multi_reduction <add>, %69, %cst_23 [2] : vector<2x8x8xf32> to vector<2x8xf32>
    %71 = vector.shape_cast %70 : vector<2x8xf32> to vector<2x8x1xf32>
    %72 = tpu.reciprocal %71 {approx = true} : vector<2x8x1xf32> -> vector<2x8x1xf32>
    %73 = vector.broadcast %72 : vector<2x8x1xf32> to vector<2x8x8xf32>
    %74 = arith.mulf %69, %73 : vector<2x8x8xf32>
    %75 = arith.truncf %74 : vector<2x8x8xf32> to vector<2x8x8xbf16>
    %76 = vector.extract_strided_slice %34 {offsets = [0, 0, 8], sizes = [2, 8, 8], strides = [1, 1, 1]} : vector<2x8x32xbf16> to vector<2x8x8xbf16>
    "tpu.trace_start"() <{level = 10 : i32, message = "bqk,bkd->bqd"}> : () -> ()
    %cst_24 = arith.constant dense<0.000000e+00> : vector<2x8x8xf32>
    %77 = tpu.matmul %75, %76, %cst_24 {dimension_numbers = #tpu.dot_dimension_numbers<[2], [1], [1], [2], [0, 0, 0, 1, 1, 2], [0], [0]>} : vector<2x8x8xbf16>, vector<2x8x8xbf16>, vector<2x8x8xf32> -> vector<2x8x8xf32>
    "tpu.trace_stop"() : () -> ()
    %78 = vector.shape_cast %77 : vector<2x8x8xf32> to vector<16x8xf32>
    %79 = arith.truncf %78 : vector<16x8xf32> to vector<16x8xbf16>
    %c0_25 = arith.constant 0 : index
    %c8 = arith.constant 8 : index
    %c0_26 = arith.constant 0 : index
    %80 = vector.load %arg7[%c0_25, %c8, %c0_26] : memref<1x32x32xbf16, #tpu.memory_space<vmem>>, vector<1x8x32xbf16>
    %81 = vector.shape_cast %80 : vector<1x8x32xbf16> to vector<8x32xbf16>
    %cst_27 = arith.constant dense<0.000000e+00> : vector<16x32xf32>
    %82 = tpu.matmul %79, %81, %cst_27 {dimension_numbers = #tpu.dot_dimension_numbers<[1], [0], [0], [1], [0, 0, 1, 1], [], []>} : vector<16x8xbf16>, vector<8x32xbf16>, vector<16x32xf32> -> vector<16x32xf32>
    %83 = arith.addf %59, %82 : vector<16x32xf32>
    %84 = vector.extract_strided_slice %30 {offsets = [0, 0, 16], sizes = [2, 8, 8], strides = [1, 1, 1]} : vector<2x8x32xbf16> to vector<2x8x8xbf16>
    %85 = vector.extract_strided_slice %32 {offsets = [0, 0, 16], sizes = [2, 8, 8], strides = [1, 1, 1]} : vector<2x8x32xbf16> to vector<2x8x8xbf16>
    "tpu.trace_start"() <{level = 10 : i32, message = "bqd,bkd->bqk"}> : () -> ()
    %cst_28 = arith.constant dense<0.000000e+00> : vector<2x8x8xf32>
    %86 = tpu.matmul %84, %85, %cst_28 {dimension_numbers = #tpu.dot_dimension_numbers<[2], [2], [1], [1], [0, 0, 0, 1, 1, 1], [0], [0]>} : vector<2x8x8xbf16>, vector<2x8x8xbf16>, vector<2x8x8xf32> -> vector<2x8x8xf32>
    "tpu.trace_stop"() : () -> ()
    %cst_29 = arith.constant 0.353553385 : f32
    %87 = vector.broadcast %cst_29 : f32 to vector<2x8x8xf32>
    %88 = arith.mulf %86, %87 : vector<2x8x8xf32>
    %cst_30 = arith.constant dense<0xFF800000> : vector<2x8xf32>
    %89 = vector.multi_reduction <maximumf>, %88, %cst_30 [2] : vector<2x8x8xf32> to vector<2x8xf32>
    %90 = vector.shape_cast %89 : vector<2x8xf32> to vector<2x8x1xf32>
    %91 = vector.broadcast %90 : vector<2x8x1xf32> to vector<2x8x8xf32>
    %92 = arith.subf %88, %91 : vector<2x8x8xf32>
    %93 = math.exp %92 : vector<2x8x8xf32>
    %cst_31 = arith.constant dense<0.000000e+00> : vector<2x8xf32>
    %94 = vector.multi_reduction <add>, %93, %cst_31 [2] : vector<2x8x8xf32> to vector<2x8xf32>
    %95 = vector.shape_cast %94 : vector<2x8xf32> to vector<2x8x1xf32>
    %96 = tpu.reciprocal %95 {approx = true} : vector<2x8x1xf32> -> vector<2x8x1xf32>
    %97 = vector.broadcast %96 : vector<2x8x1xf32> to vector<2x8x8xf32>
    %98 = arith.mulf %93, %97 : vector<2x8x8xf32>
    %99 = arith.truncf %98 : vector<2x8x8xf32> to vector<2x8x8xbf16>
    %100 = vector.extract_strided_slice %34 {offsets = [0, 0, 16], sizes = [2, 8, 8], strides = [1, 1, 1]} : vector<2x8x32xbf16> to vector<2x8x8xbf16>
    "tpu.trace_start"() <{level = 10 : i32, message = "bqk,bkd->bqd"}> : () -> ()
    %cst_32 = arith.constant dense<0.000000e+00> : vector<2x8x8xf32>
    %101 = tpu.matmul %99, %100, %cst_32 {dimension_numbers = #tpu.dot_dimension_numbers<[2], [1], [1], [2], [0, 0, 0, 1, 1, 2], [0], [0]>} : vector<2x8x8xbf16>, vector<2x8x8xbf16>, vector<2x8x8xf32> -> vector<2x8x8xf32>
    "tpu.trace_stop"() : () -> ()
    %102 = vector.shape_cast %101 : vector<2x8x8xf32> to vector<16x8xf32>
    %103 = arith.truncf %102 : vector<16x8xf32> to vector<16x8xbf16>
    %c0_33 = arith.constant 0 : index
    %c16 = arith.constant 16 : index
    %c0_34 = arith.constant 0 : index
    %104 = vector.load %arg7[%c0_33, %c16, %c0_34] : memref<1x32x32xbf16, #tpu.memory_space<vmem>>, vector<1x8x32xbf16>
    %105 = vector.shape_cast %104 : vector<1x8x32xbf16> to vector<8x32xbf16>
    %cst_35 = arith.constant dense<0.000000e+00> : vector<16x32xf32>
    %106 = tpu.matmul %103, %105, %cst_35 {dimension_numbers = #tpu.dot_dimension_numbers<[1], [0], [0], [1], [0, 0, 1, 1], [], []>} : vector<16x8xbf16>, vector<8x32xbf16>, vector<16x32xf32> -> vector<16x32xf32>
    %107 = arith.addf %83, %106 : vector<16x32xf32>
    %108 = vector.extract_strided_slice %30 {offsets = [0, 0, 24], sizes = [2, 8, 8], strides = [1, 1, 1]} : vector<2x8x32xbf16> to vector<2x8x8xbf16>
    %109 = vector.extract_strided_slice %32 {offsets = [0, 0, 24], sizes = [2, 8, 8], strides = [1, 1, 1]} : vector<2x8x32xbf16> to vector<2x8x8xbf16>
    "tpu.trace_start"() <{level = 10 : i32, message = "bqd,bkd->bqk"}> : () -> ()
    %cst_36 = arith.constant dense<0.000000e+00> : vector<2x8x8xf32>
    %110 = tpu.matmul %108, %109, %cst_36 {dimension_numbers = #tpu.dot_dimension_numbers<[2], [2], [1], [1], [0, 0, 0, 1, 1, 1], [0], [0]>} : vector<2x8x8xbf16>, vector<2x8x8xbf16>, vector<2x8x8xf32> -> vector<2x8x8xf32>
    "tpu.trace_stop"() : () -> ()
    %cst_37 = arith.constant 0.353553385 : f32
    %111 = vector.broadcast %cst_37 : f32 to vector<2x8x8xf32>
    %112 = arith.mulf %110, %111 : vector<2x8x8xf32>
    %cst_38 = arith.constant dense<0xFF800000> : vector<2x8xf32>
    %113 = vector.multi_reduction <maximumf>, %112, %cst_38 [2] : vector<2x8x8xf32> to vector<2x8xf32>
    %114 = vector.shape_cast %113 : vector<2x8xf32> to vector<2x8x1xf32>
    %115 = vector.broadcast %114 : vector<2x8x1xf32> to vector<2x8x8xf32>
    %116 = arith.subf %112, %115 : vector<2x8x8xf32>
    %117 = math.exp %116 : vector<2x8x8xf32>
    %cst_39 = arith.constant dense<0.000000e+00> : vector<2x8xf32>
    %118 = vector.multi_reduction <add>, %117, %cst_39 [2] : vector<2x8x8xf32> to vector<2x8xf32>
    %119 = vector.shape_cast %118 : vector<2x8xf32> to vector<2x8x1xf32>
    %120 = tpu.reciprocal %119 {approx = true} : vector<2x8x1xf32> -> vector<2x8x1xf32>
    %121 = vector.broadcast %120 : vector<2x8x1xf32> to vector<2x8x8xf32>
    %122 = arith.mulf %117, %121 : vector<2x8x8xf32>
    %123 = arith.truncf %122 : vector<2x8x8xf32> to vector<2x8x8xbf16>
    %124 = vector.extract_strided_slice %34 {offsets = [0, 0, 24], sizes = [2, 8, 8], strides = [1, 1, 1]} : vector<2x8x32xbf16> to vector<2x8x8xbf16>
    "tpu.trace_start"() <{level = 10 : i32, message = "bqk,bkd->bqd"}> : () -> ()
    %cst_40 = arith.constant dense<0.000000e+00> : vector<2x8x8xf32>
    %125 = tpu.matmul %123, %124, %cst_40 {dimension_numbers = #tpu.dot_dimension_numbers<[2], [1], [1], [2], [0, 0, 0, 1, 1, 2], [0], [0]>} : vector<2x8x8xbf16>, vector<2x8x8xbf16>, vector<2x8x8xf32> -> vector<2x8x8xf32>
    "tpu.trace_stop"() : () -> ()
    %126 = vector.shape_cast %125 : vector<2x8x8xf32> to vector<16x8xf32>
    %127 = arith.truncf %126 : vector<16x8xf32> to vector<16x8xbf16>
    %c0_41 = arith.constant 0 : index
    %c24 = arith.constant 24 : index
    %c0_42 = arith.constant 0 : index
    %128 = vector.load %arg7[%c0_41, %c24, %c0_42] : memref<1x32x32xbf16, #tpu.memory_space<vmem>>, vector<1x8x32xbf16>
    %129 = vector.shape_cast %128 : vector<1x8x32xbf16> to vector<8x32xbf16>
    %cst_43 = arith.constant dense<0.000000e+00> : vector<16x32xf32>
    %130 = tpu.matmul %127, %129, %cst_43 {dimension_numbers = #tpu.dot_dimension_numbers<[1], [0], [0], [1], [0, 0, 1, 1], [], []>} : vector<16x8xbf16>, vector<8x32xbf16>, vector<16x32xf32> -> vector<16x32xf32>
    %131 = arith.addf %107, %130 : vector<16x32xf32>
    %132 = vector.broadcast %8 : vector<1x32xf32> to vector<16x32xf32>
    %133 = arith.addf %131, %132 : vector<16x32xf32>
    %134 = arith.addf %3, %133 : vector<16x32xf32>
    %cst_44 = arith.constant dense<0.000000e+00> : vector<16xf32>
    %135 = vector.multi_reduction <add>, %134, %cst_44 [1] : vector<16x32xf32> to vector<16xf32>
    %136 = vector.shape_cast %135 : vector<16xf32> to vector<16x1xf32>
    %cst_45 = arith.constant 3.200000e+01 : f32
    %137 = vector.broadcast %cst_45 : f32 to vector<16x1xf32>
    %138 = arith.divf %136, %137 : vector<16x1xf32>
    %139 = arith.mulf %134, %134 : vector<16x32xf32>
    %cst_46 = arith.constant dense<0.000000e+00> : vector<16xf32>
    %140 = vector.multi_reduction <add>, %139, %cst_46 [1] : vector<16x32xf32> to vector<16xf32>
    %141 = vector.shape_cast %140 : vector<16xf32> to vector<16x1xf32>
    %cst_47 = arith.constant 3.200000e+01 : f32
    %142 = vector.broadcast %cst_47 : f32 to vector<16x1xf32>
    %143 = arith.divf %141, %142 : vector<16x1xf32>
    %144 = arith.mulf %138, %138 : vector<16x1xf32>
    %145 = arith.subf %143, %144 : vector<16x1xf32>
    %146 = vector.broadcast %138 : vector<16x1xf32> to vector<16x32xf32>
    %147 = arith.subf %134, %146 : vector<16x32xf32>
    %cst_48 = arith.constant 9.99999974E-6 : f32
    %148 = vector.broadcast %cst_48 : f32 to vector<16x1xf32>
    %149 = arith.addf %145, %148 : vector<16x1xf32>
    %150 = math.rsqrt %149 : vector<16x1xf32>
    %151 = vector.broadcast %150 : vector<16x1xf32> to vector<16x32xf32>
    %152 = arith.mulf %147, %151 : vector<16x32xf32>
    %153 = vector.broadcast %9 : vector<1x32xf32> to vector<16x32xf32>
    %154 = arith.mulf %152, %153 : vector<16x32xf32>
    %155 = vector.broadcast %10 : vector<1x32xf32> to vector<16x32xf32>
    %156 = arith.addf %154, %155 : vector<16x32xf32>
    %c0_49 = arith.constant 0 : index
    %c0_50 = arith.constant 0 : index
    %c0_51 = arith.constant 0 : index
    %157 = vector.load %arg8[%c0_49, %c0_50, %c0_51] : memref<1x32x32xbf16, #tpu.memory_space<vmem>>, vector<1x32x32xbf16>
    %158 = vector.shape_cast %157 : vector<1x32x32xbf16> to vector<32x32xbf16>
    %159 = arith.truncf %156 : vector<16x32xf32> to vector<16x32xbf16>
    %cst_52 = arith.constant dense<0.000000e+00> : vector<16x32xf32>
    %160 = tpu.matmul %159, %158, %cst_52 {dimension_numbers = #tpu.dot_dimension_numbers<[1], [0], [0], [1], [0, 0, 1, 1], [], []>} : vector<16x32xbf16>, vector<32x32xbf16>, vector<16x32xf32> -> vector<16x32xf32>
    %161 = vector.broadcast %11 : vector<1x32xf32> to vector<16x32xf32>
    %162 = arith.addf %160, %161 : vector<16x32xf32>
    %c0_53 = arith.constant 0 : index
    %c0_54 = arith.constant 0 : index
    %c0_55 = arith.constant 0 : index
    %163 = vector.load %arg9[%c0_53, %c0_54, %c0_55] : memref<1x32x64xbf16, #tpu.memory_space<vmem>>, vector<1x32x64xbf16>
    %164 = vector.shape_cast %163 : vector<1x32x64xbf16> to vector<32x64xbf16>
    %165 = arith.truncf %4 : vector<32x32xf32> to vector<32x32xbf16>
    %cst_56 = arith.constant dense<0.000000e+00> : vector<32x64xf32>
    %166 = tpu.matmul %165, %164, %cst_56 {dimension_numbers = #tpu.dot_dimension_numbers<[1], [0], [0], [1], [0, 0, 1, 1], [], []>} : vector<32x32xbf16>, vector<32x64xbf16>, vector<32x64xf32> -> vector<32x64xf32>
    %167 = vector.broadcast %12 : vector<1x64xf32> to vector<32x64xf32>
    %168 = arith.addf %166, %167 : vector<32x64xf32>
    %169 = vector.extract_strided_slice %168 {offsets = [0, 0], sizes = [32, 32], strides = [1, 1]} : vector<32x64xf32> to vector<32x32xf32>
    %170 = vector.extract_strided_slice %168 {offsets = [0, 32], sizes = [32, 32], strides = [1, 1]} : vector<32x64xf32> to vector<32x32xf32>
    %171 = vector.shape_cast %162 : vector<16x32xf32> to vector<2x8x32xf32>
    %172 = arith.truncf %171 : vector<2x8x32xf32> to vector<2x8x32xbf16>
    %173 = vector.shape_cast %169 : vector<32x32xf32> to vector<2x16x32xf32>
    %174 = arith.truncf %173 : vector<2x16x32xf32> to vector<2x16x32xbf16>
    %175 = vector.shape_cast %170 : vector<32x32xf32> to vector<2x16x32xf32>
    %176 = arith.truncf %175 : vector<2x16x32xf32> to vector<2x16x32xbf16>
    %cst_57 = arith.constant 0.000000e+00 : f32
    %177 = vector.broadcast %cst_57 : f32 to vector<16x32xf32>
    %178 = vector.extract_strided_slice %172 {offsets = [0, 0, 0], sizes = [2, 8, 8], strides = [1, 1, 1]} : vector<2x8x32xbf16> to vector<2x8x8xbf16>
    %179 = vector.extract_strided_slice %174 {offsets = [0, 0, 0], sizes = [2, 16, 8], strides = [1, 1, 1]} : vector<2x16x32xbf16> to vector<2x16x8xbf16>
    "tpu.trace_start"() <{level = 10 : i32, message = "bqd,bkd->bqk"}> : () -> ()
    %cst_58 = arith.constant dense<0.000000e+00> : vector<2x8x16xf32>
    %180 = tpu.matmul %178, %179, %cst_58 {dimension_numbers = #tpu.dot_dimension_numbers<[2], [2], [1], [1], [0, 0, 0, 1, 1, 1], [0], [0]>} : vector<2x8x8xbf16>, vector<2x16x8xbf16>, vector<2x8x16xf32> -> vector<2x8x16xf32>
    "tpu.trace_stop"() : () -> ()
    %cst_59 = arith.constant 0.353553385 : f32
    %181 = vector.broadcast %cst_59 : f32 to vector<2x8x16xf32>
    %182 = arith.mulf %180, %181 : vector<2x8x16xf32>
    %cst_60 = arith.constant dense<0xFF800000> : vector<2x8xf32>
    %183 = vector.multi_reduction <maximumf>, %182, %cst_60 [2] : vector<2x8x16xf32> to vector<2x8xf32>
    %184 = vector.shape_cast %183 : vector<2x8xf32> to vector<2x8x1xf32>
    %185 = vector.broadcast %184 : vector<2x8x1xf32> to vector<2x8x16xf32>
    %186 = arith.subf %182, %185 : vector<2x8x16xf32>
    %187 = math.exp %186 : vector<2x8x16xf32>
    %cst_61 = arith.constant dense<0.000000e+00> : vector<2x8xf32>
    %188 = vector.multi_reduction <add>, %187, %cst_61 [2] : vector<2x8x16xf32> to vector<2x8xf32>
    %189 = vector.shape_cast %188 : vector<2x8xf32> to vector<2x8x1xf32>
    %190 = tpu.reciprocal %189 {approx = true} : vector<2x8x1xf32> -> vector<2x8x1xf32>
    %191 = vector.broadcast %190 : vector<2x8x1xf32> to vector<2x8x16xf32>
    %192 = arith.mulf %187, %191 : vector<2x8x16xf32>
    %193 = arith.truncf %192 : vector<2x8x16xf32> to vector<2x8x16xbf16>
    %194 = vector.extract_strided_slice %176 {offsets = [0, 0, 0], sizes = [2, 16, 8], strides = [1, 1, 1]} : vector<2x16x32xbf16> to vector<2x16x8xbf16>
    "tpu.trace_start"() <{level = 10 : i32, message = "bqk,bkd->bqd"}> : () -> ()
    %cst_62 = arith.constant dense<0.000000e+00> : vector<2x8x8xf32>
    %195 = tpu.matmul %193, %194, %cst_62 {dimension_numbers = #tpu.dot_dimension_numbers<[2], [1], [1], [2], [0, 0, 0, 1, 1, 2], [0], [0]>} : vector<2x8x16xbf16>, vector<2x16x8xbf16>, vector<2x8x8xf32> -> vector<2x8x8xf32>
    "tpu.trace_stop"() : () -> ()
    %196 = vector.shape_cast %195 : vector<2x8x8xf32> to vector<16x8xf32>
    %197 = arith.truncf %196 : vector<16x8xf32> to vector<16x8xbf16>
    %c0_63 = arith.constant 0 : index
    %c0_64 = arith.constant 0 : index
    %c0_65 = arith.constant 0 : index
    %198 = vector.load %arg10[%c0_63, %c0_64, %c0_65] : memref<1x32x32xbf16, #tpu.memory_space<vmem>>, vector<1x8x32xbf16>
    %199 = vector.shape_cast %198 : vector<1x8x32xbf16> to vector<8x32xbf16>
    %cst_66 = arith.constant dense<0.000000e+00> : vector<16x32xf32>
    %200 = tpu.matmul %197, %199, %cst_66 {dimension_numbers = #tpu.dot_dimension_numbers<[1], [0], [0], [1], [0, 0, 1, 1], [], []>} : vector<16x8xbf16>, vector<8x32xbf16>, vector<16x32xf32> -> vector<16x32xf32>
    %201 = arith.addf %177, %200 : vector<16x32xf32>
    %202 = vector.extract_strided_slice %172 {offsets = [0, 0, 8], sizes = [2, 8, 8], strides = [1, 1, 1]} : vector<2x8x32xbf16> to vector<2x8x8xbf16>
    %203 = vector.extract_strided_slice %174 {offsets = [0, 0, 8], sizes = [2, 16, 8], strides = [1, 1, 1]} : vector<2x16x32xbf16> to vector<2x16x8xbf16>
    "tpu.trace_start"() <{level = 10 : i32, message = "bqd,bkd->bqk"}> : () -> ()
    %cst_67 = arith.constant dense<0.000000e+00> : vector<2x8x16xf32>
    %204 = tpu.matmul %202, %203, %cst_67 {dimension_numbers = #tpu.dot_dimension_numbers<[2], [2], [1], [1], [0, 0, 0, 1, 1, 1], [0], [0]>} : vector<2x8x8xbf16>, vector<2x16x8xbf16>, vector<2x8x16xf32> -> vector<2x8x16xf32>
    "tpu.trace_stop"() : () -> ()
    %cst_68 = arith.constant 0.353553385 : f32
    %205 = vector.broadcast %cst_68 : f32 to vector<2x8x16xf32>
    %206 = arith.mulf %204, %205 : vector<2x8x16xf32>
    %cst_69 = arith.constant dense<0xFF800000> : vector<2x8xf32>
    %207 = vector.multi_reduction <maximumf>, %206, %cst_69 [2] : vector<2x8x16xf32> to vector<2x8xf32>
    %208 = vector.shape_cast %207 : vector<2x8xf32> to vector<2x8x1xf32>
    %209 = vector.broadcast %208 : vector<2x8x1xf32> to vector<2x8x16xf32>
    %210 = arith.subf %206, %209 : vector<2x8x16xf32>
    %211 = math.exp %210 : vector<2x8x16xf32>
    %cst_70 = arith.constant dense<0.000000e+00> : vector<2x8xf32>
    %212 = vector.multi_reduction <add>, %211, %cst_70 [2] : vector<2x8x16xf32> to vector<2x8xf32>
    %213 = vector.shape_cast %212 : vector<2x8xf32> to vector<2x8x1xf32>
    %214 = tpu.reciprocal %213 {approx = true} : vector<2x8x1xf32> -> vector<2x8x1xf32>
    %215 = vector.broadcast %214 : vector<2x8x1xf32> to vector<2x8x16xf32>
    %216 = arith.mulf %211, %215 : vector<2x8x16xf32>
    %217 = arith.truncf %216 : vector<2x8x16xf32> to vector<2x8x16xbf16>
    %218 = vector.extract_strided_slice %176 {offsets = [0, 0, 8], sizes = [2, 16, 8], strides = [1, 1, 1]} : vector<2x16x32xbf16> to vector<2x16x8xbf16>
    "tpu.trace_start"() <{level = 10 : i32, message = "bqk,bkd->bqd"}> : () -> ()
    %cst_71 = arith.constant dense<0.000000e+00> : vector<2x8x8xf32>
    %219 = tpu.matmul %217, %218, %cst_71 {dimension_numbers = #tpu.dot_dimension_numbers<[2], [1], [1], [2], [0, 0, 0, 1, 1, 2], [0], [0]>} : vector<2x8x16xbf16>, vector<2x16x8xbf16>, vector<2x8x8xf32> -> vector<2x8x8xf32>
    "tpu.trace_stop"() : () -> ()
    %220 = vector.shape_cast %219 : vector<2x8x8xf32> to vector<16x8xf32>
    %221 = arith.truncf %220 : vector<16x8xf32> to vector<16x8xbf16>
    %c0_72 = arith.constant 0 : index
    %c8_73 = arith.constant 8 : index
    %c0_74 = arith.constant 0 : index
    %222 = vector.load %arg10[%c0_72, %c8_73, %c0_74] : memref<1x32x32xbf16, #tpu.memory_space<vmem>>, vector<1x8x32xbf16>
    %223 = vector.shape_cast %222 : vector<1x8x32xbf16> to vector<8x32xbf16>
    %cst_75 = arith.constant dense<0.000000e+00> : vector<16x32xf32>
    %224 = tpu.matmul %221, %223, %cst_75 {dimension_numbers = #tpu.dot_dimension_numbers<[1], [0], [0], [1], [0, 0, 1, 1], [], []>} : vector<16x8xbf16>, vector<8x32xbf16>, vector<16x32xf32> -> vector<16x32xf32>
    %225 = arith.addf %201, %224 : vector<16x32xf32>
    %226 = vector.extract_strided_slice %172 {offsets = [0, 0, 16], sizes = [2, 8, 8], strides = [1, 1, 1]} : vector<2x8x32xbf16> to vector<2x8x8xbf16>
    %227 = vector.extract_strided_slice %174 {offsets = [0, 0, 16], sizes = [2, 16, 8], strides = [1, 1, 1]} : vector<2x16x32xbf16> to vector<2x16x8xbf16>
    "tpu.trace_start"() <{level = 10 : i32, message = "bqd,bkd->bqk"}> : () -> ()
    %cst_76 = arith.constant dense<0.000000e+00> : vector<2x8x16xf32>
    %228 = tpu.matmul %226, %227, %cst_76 {dimension_numbers = #tpu.dot_dimension_numbers<[2], [2], [1], [1], [0, 0, 0, 1, 1, 1], [0], [0]>} : vector<2x8x8xbf16>, vector<2x16x8xbf16>, vector<2x8x16xf32> -> vector<2x8x16xf32>
    "tpu.trace_stop"() : () -> ()
    %cst_77 = arith.constant 0.353553385 : f32
    %229 = vector.broadcast %cst_77 : f32 to vector<2x8x16xf32>
    %230 = arith.mulf %228, %229 : vector<2x8x16xf32>
    %cst_78 = arith.constant dense<0xFF800000> : vector<2x8xf32>
    %231 = vector.multi_reduction <maximumf>, %230, %cst_78 [2] : vector<2x8x16xf32> to vector<2x8xf32>
    %232 = vector.shape_cast %231 : vector<2x8xf32> to vector<2x8x1xf32>
    %233 = vector.broadcast %232 : vector<2x8x1xf32> to vector<2x8x16xf32>
    %234 = arith.subf %230, %233 : vector<2x8x16xf32>
    %235 = math.exp %234 : vector<2x8x16xf32>
    %cst_79 = arith.constant dense<0.000000e+00> : vector<2x8xf32>
    %236 = vector.multi_reduction <add>, %235, %cst_79 [2] : vector<2x8x16xf32> to vector<2x8xf32>
    %237 = vector.shape_cast %236 : vector<2x8xf32> to vector<2x8x1xf32>
    %238 = tpu.reciprocal %237 {approx = true} : vector<2x8x1xf32> -> vector<2x8x1xf32>
    %239 = vector.broadcast %238 : vector<2x8x1xf32> to vector<2x8x16xf32>
    %240 = arith.mulf %235, %239 : vector<2x8x16xf32>
    %241 = arith.truncf %240 : vector<2x8x16xf32> to vector<2x8x16xbf16>
    %242 = vector.extract_strided_slice %176 {offsets = [0, 0, 16], sizes = [2, 16, 8], strides = [1, 1, 1]} : vector<2x16x32xbf16> to vector<2x16x8xbf16>
    "tpu.trace_start"() <{level = 10 : i32, message = "bqk,bkd->bqd"}> : () -> ()
    %cst_80 = arith.constant dense<0.000000e+00> : vector<2x8x8xf32>
    %243 = tpu.matmul %241, %242, %cst_80 {dimension_numbers = #tpu.dot_dimension_numbers<[2], [1], [1], [2], [0, 0, 0, 1, 1, 2], [0], [0]>} : vector<2x8x16xbf16>, vector<2x16x8xbf16>, vector<2x8x8xf32> -> vector<2x8x8xf32>
    "tpu.trace_stop"() : () -> ()
    %244 = vector.shape_cast %243 : vector<2x8x8xf32> to vector<16x8xf32>
    %245 = arith.truncf %244 : vector<16x8xf32> to vector<16x8xbf16>
    %c0_81 = arith.constant 0 : index
    %c16_82 = arith.constant 16 : index
    %c0_83 = arith.constant 0 : index
    %246 = vector.load %arg10[%c0_81, %c16_82, %c0_83] : memref<1x32x32xbf16, #tpu.memory_space<vmem>>, vector<1x8x32xbf16>
    %247 = vector.shape_cast %246 : vector<1x8x32xbf16> to vector<8x32xbf16>
    %cst_84 = arith.constant dense<0.000000e+00> : vector<16x32xf32>
    %248 = tpu.matmul %245, %247, %cst_84 {dimension_numbers = #tpu.dot_dimension_numbers<[1], [0], [0], [1], [0, 0, 1, 1], [], []>} : vector<16x8xbf16>, vector<8x32xbf16>, vector<16x32xf32> -> vector<16x32xf32>
    %249 = arith.addf %225, %248 : vector<16x32xf32>
    %250 = vector.extract_strided_slice %172 {offsets = [0, 0, 24], sizes = [2, 8, 8], strides = [1, 1, 1]} : vector<2x8x32xbf16> to vector<2x8x8xbf16>
    %251 = vector.extract_strided_slice %174 {offsets = [0, 0, 24], sizes = [2, 16, 8], strides = [1, 1, 1]} : vector<2x16x32xbf16> to vector<2x16x8xbf16>
    "tpu.trace_start"() <{level = 10 : i32, message = "bqd,bkd->bqk"}> : () -> ()
    %cst_85 = arith.constant dense<0.000000e+00> : vector<2x8x16xf32>
    %252 = tpu.matmul %250, %251, %cst_85 {dimension_numbers = #tpu.dot_dimension_numbers<[2], [2], [1], [1], [0, 0, 0, 1, 1, 1], [0], [0]>} : vector<2x8x8xbf16>, vector<2x16x8xbf16>, vector<2x8x16xf32> -> vector<2x8x16xf32>
    "tpu.trace_stop"() : () -> ()
    %cst_86 = arith.constant 0.353553385 : f32
    %253 = vector.broadcast %cst_86 : f32 to vector<2x8x16xf32>
    %254 = arith.mulf %252, %253 : vector<2x8x16xf32>
    %cst_87 = arith.constant dense<0xFF800000> : vector<2x8xf32>
    %255 = vector.multi_reduction <maximumf>, %254, %cst_87 [2] : vector<2x8x16xf32> to vector<2x8xf32>
    %256 = vector.shape_cast %255 : vector<2x8xf32> to vector<2x8x1xf32>
    %257 = vector.broadcast %256 : vector<2x8x1xf32> to vector<2x8x16xf32>
    %258 = arith.subf %254, %257 : vector<2x8x16xf32>
    %259 = math.exp %258 : vector<2x8x16xf32>
    %cst_88 = arith.constant dense<0.000000e+00> : vector<2x8xf32>
    %260 = vector.multi_reduction <add>, %259, %cst_88 [2] : vector<2x8x16xf32> to vector<2x8xf32>
    %261 = vector.shape_cast %260 : vector<2x8xf32> to vector<2x8x1xf32>
    %262 = tpu.reciprocal %261 {approx = true} : vector<2x8x1xf32> -> vector<2x8x1xf32>
    %263 = vector.broadcast %262 : vector<2x8x1xf32> to vector<2x8x16xf32>
    %264 = arith.mulf %259, %263 : vector<2x8x16xf32>
    %265 = arith.truncf %264 : vector<2x8x16xf32> to vector<2x8x16xbf16>
    %266 = vector.extract_strided_slice %176 {offsets = [0, 0, 24], sizes = [2, 16, 8], strides = [1, 1, 1]} : vector<2x16x32xbf16> to vector<2x16x8xbf16>
    "tpu.trace_start"() <{level = 10 : i32, message = "bqk,bkd->bqd"}> : () -> ()
    %cst_89 = arith.constant dense<0.000000e+00> : vector<2x8x8xf32>
    %267 = tpu.matmul %265, %266, %cst_89 {dimension_numbers = #tpu.dot_dimension_numbers<[2], [1], [1], [2], [0, 0, 0, 1, 1, 2], [0], [0]>} : vector<2x8x16xbf16>, vector<2x16x8xbf16>, vector<2x8x8xf32> -> vector<2x8x8xf32>
    "tpu.trace_stop"() : () -> ()
    %268 = vector.shape_cast %267 : vector<2x8x8xf32> to vector<16x8xf32>
    %269 = arith.truncf %268 : vector<16x8xf32> to vector<16x8xbf16>
    %c0_90 = arith.constant 0 : index
    %c24_91 = arith.constant 24 : index
    %c0_92 = arith.constant 0 : index
    %270 = vector.load %arg10[%c0_90, %c24_91, %c0_92] : memref<1x32x32xbf16, #tpu.memory_space<vmem>>, vector<1x8x32xbf16>
    %271 = vector.shape_cast %270 : vector<1x8x32xbf16> to vector<8x32xbf16>
    %cst_93 = arith.constant dense<0.000000e+00> : vector<16x32xf32>
    %272 = tpu.matmul %269, %271, %cst_93 {dimension_numbers = #tpu.dot_dimension_numbers<[1], [0], [0], [1], [0, 0, 1, 1], [], []>} : vector<16x8xbf16>, vector<8x32xbf16>, vector<16x32xf32> -> vector<16x32xf32>
    %273 = arith.addf %249, %272 : vector<16x32xf32>
    %274 = vector.broadcast %13 : vector<1x32xf32> to vector<16x32xf32>
    %275 = arith.addf %273, %274 : vector<16x32xf32>
    %276 = arith.addf %156, %275 : vector<16x32xf32>
    %cst_94 = arith.constant dense<0.000000e+00> : vector<16xf32>
    %277 = vector.multi_reduction <add>, %276, %cst_94 [1] : vector<16x32xf32> to vector<16xf32>
    %278 = vector.shape_cast %277 : vector<16xf32> to vector<16x1xf32>
    %cst_95 = arith.constant 3.200000e+01 : f32
    %279 = vector.broadcast %cst_95 : f32 to vector<16x1xf32>
    %280 = arith.divf %278, %279 : vector<16x1xf32>
    %281 = arith.mulf %276, %276 : vector<16x32xf32>
    %cst_96 = arith.constant dense<0.000000e+00> : vector<16xf32>
    %282 = vector.multi_reduction <add>, %281, %cst_96 [1] : vector<16x32xf32> to vector<16xf32>
    %283 = vector.shape_cast %282 : vector<16xf32> to vector<16x1xf32>
    %cst_97 = arith.constant 3.200000e+01 : f32
    %284 = vector.broadcast %cst_97 : f32 to vector<16x1xf32>
    %285 = arith.divf %283, %284 : vector<16x1xf32>
    %286 = arith.mulf %280, %280 : vector<16x1xf32>
    %287 = arith.subf %285, %286 : vector<16x1xf32>
    %288 = vector.broadcast %280 : vector<16x1xf32> to vector<16x32xf32>
    %289 = arith.subf %276, %288 : vector<16x32xf32>
    %cst_98 = arith.constant 9.99999974E-6 : f32
    %290 = vector.broadcast %cst_98 : f32 to vector<16x1xf32>
    %291 = arith.addf %287, %290 : vector<16x1xf32>
    %292 = math.rsqrt %291 : vector<16x1xf32>
    %293 = vector.broadcast %292 : vector<16x1xf32> to vector<16x32xf32>
    %294 = arith.mulf %289, %293 : vector<16x32xf32>
    %295 = vector.broadcast %14 : vector<1x32xf32> to vector<16x32xf32>
    %296 = arith.mulf %294, %295 : vector<16x32xf32>
    %297 = vector.broadcast %15 : vector<1x32xf32> to vector<16x32xf32>
    %298 = arith.addf %296, %297 : vector<16x32xf32>
    %c0_99 = arith.constant 0 : index
    %c0_100 = arith.constant 0 : index
    %c0_101 = arith.constant 0 : index
    %299 = vector.load %arg11[%c0_99, %c0_100, %c0_101] : memref<1x32x64xbf16, #tpu.memory_space<vmem>>, vector<1x32x64xbf16>
    %300 = vector.shape_cast %299 : vector<1x32x64xbf16> to vector<32x64xbf16>
    %301 = arith.truncf %298 : vector<16x32xf32> to vector<16x32xbf16>
    %cst_102 = arith.constant dense<0.000000e+00> : vector<16x64xf32>
    %302 = tpu.matmul %301, %300, %cst_102 {dimension_numbers = #tpu.dot_dimension_numbers<[1], [0], [0], [1], [0, 0, 1, 1], [], []>} : vector<16x32xbf16>, vector<32x64xbf16>, vector<16x64xf32> -> vector<16x64xf32>
    %303 = vector.broadcast %16 : vector<1x64xf32> to vector<16x64xf32>
    %304 = arith.addf %302, %303 : vector<16x64xf32>
    %cst_103 = arith.constant 0.000000e+00 : f32
    %305 = vector.broadcast %cst_103 : f32 to vector<16x64xf32>
    %306 = arith.maximumf %304, %305 : vector<16x64xf32>
    %c0_104 = arith.constant 0 : index
    %c0_105 = arith.constant 0 : index
    %c0_106 = arith.constant 0 : index
    %307 = vector.load %arg12[%c0_104, %c0_105, %c0_106] : memref<1x64x32xbf16, #tpu.memory_space<vmem>>, vector<1x64x32xbf16>
    %308 = vector.shape_cast %307 : vector<1x64x32xbf16> to vector<64x32xbf16>
    %309 = arith.truncf %306 : vector<16x64xf32> to vector<16x64xbf16>
    %cst_107 = arith.constant dense<0.000000e+00> : vector<16x32xf32>
    %310 = tpu.matmul %309, %308, %cst_107 {dimension_numbers = #tpu.dot_dimension_numbers<[1], [0], [0], [1], [0, 0, 1, 1], [], []>} : vector<16x64xbf16>, vector<64x32xbf16>, vector<16x32xf32> -> vector<16x32xf32>
    %311 = vector.broadcast %17 : vector<1x32xf32> to vector<16x32xf32>
    %312 = arith.addf %310, %311 : vector<16x32xf32>
    %313 = arith.addf %298, %312 : vector<16x32xf32>
    %cst_108 = arith.constant dense<0.000000e+00> : vector<16xf32>
    %314 = vector.multi_reduction <add>, %313, %cst_108 [1] : vector<16x32xf32> to vector<16xf32>
    %315 = vector.shape_cast %314 : vector<16xf32> to vector<16x1xf32>
    %cst_109 = arith.constant 3.200000e+01 : f32
    %316 = vector.broadcast %cst_109 : f32 to vector<16x1xf32>
    %317 = arith.divf %315, %316 : vector<16x1xf32>
    %318 = arith.mulf %313, %313 : vector<16x32xf32>
    %cst_110 = arith.constant dense<0.000000e+00> : vector<16xf32>
    %319 = vector.multi_reduction <add>, %318, %cst_110 [1] : vector<16x32xf32> to vector<16xf32>
    %320 = vector.shape_cast %319 : vector<16xf32> to vector<16x1xf32>
    %cst_111 = arith.constant 3.200000e+01 : f32
    %321 = vector.broadcast %cst_111 : f32 to vector<16x1xf32>
    %322 = arith.divf %320, %321 : vector<16x1xf32>
    %323 = arith.mulf %317, %317 : vector<16x1xf32>
    %324 = arith.subf %322, %323 : vector<16x1xf32>
    %325 = vector.broadcast %317 : vector<16x1xf32> to vector<16x32xf32>
    %326 = arith.subf %313, %325 : vector<16x32xf32>
    %cst_112 = arith.constant 9.99999974E-6 : f32
    %327 = vector.broadcast %cst_112 : f32 to vector<16x1xf32>
    %328 = arith.addf %324, %327 : vector<16x1xf32>
    %329 = math.rsqrt %328 : vector<16x1xf32>
    %330 = vector.broadcast %329 : vector<16x1xf32> to vector<16x32xf32>
    %331 = arith.mulf %326, %330 : vector<16x32xf32>
    %332 = vector.broadcast %18 : vector<1x32xf32> to vector<16x32xf32>
    %333 = arith.mulf %331, %332 : vector<16x32xf32>
    %334 = vector.broadcast %19 : vector<1x32xf32> to vector<16x32xf32>
    %335 = arith.addf %333, %334 : vector<16x32xf32>
    %c0_113 = arith.constant 0 : index
    %c0_114 = arith.constant 0 : index
    %336 = vector.load %arg17[%c0_113, %c0_114] : memref<16x32xf32, #tpu.memory_space<vmem>>, vector<16x32xf32>
    tpu.vector_store %arg17[%c0_113, %c0_114], %335 {strides = array<i32>} : memref<16x32xf32, #tpu.memory_space<vmem>>, vector<16x32xf32>,
    %c1_i32 = arith.constant 1 : i32
    %337 = arith.cmpi eq, %arg0, %c1_i32 : i32
    %338 = arith.extui %337 : i1 to i32
    %c0_i32_115 = arith.constant 0 : i32
    %339 = arith.cmpi ne, %338, %c0_i32_115 : i32
    scf.if %339 {
      %c0_116 = arith.constant 0 : index
      %c0_117 = arith.constant 0 : index
      %340 = vector.load %arg14[%c0_116, %c0_117] : memref<32x128xbf16, #tpu.memory_space<vmem>>, vector<32x128xbf16>
      %341 = arith.truncf %335 : vector<16x32xf32> to vector<16x32xbf16>
      %cst_118 = arith.constant dense<0.000000e+00> : vector<16x128xf32>
      %342 = tpu.matmul %341, %340, %cst_118 {dimension_numbers = #tpu.dot_dimension_numbers<[1], [0], [0], [1], [0, 0, 1, 1], [], []>} : vector<16x32xbf16>, vector<32x128xbf16>, vector<16x128xf32> -> vector<16x128xf32>
      %c0_119 = arith.constant 0 : index
      %c0_120 = arith.constant 0 : index
      %343 = vector.load %arg15[%c0_119, %c0_120] : memref<1x128xf32, #tpu.memory_space<vmem>>, vector<1x128xf32>
      %344 = vector.broadcast %343 : vector<1x128xf32> to vector<16x128xf32>
      %345 = arith.addf %342, %344 : vector<16x128xf32>
      %c0_121 = arith.constant 0 : index
      %c0_122 = arith.constant 0 : index
      %346 = vector.load %arg16[%c0_121, %c0_122] : memref<16x128xf32, #tpu.memory_space<vmem>>, vector<16x128xf32>
      tpu.vector_store %arg16[%c0_121, %c0_122], %345 {strides = array<i32>} : memref<16x128xf32, #tpu.memory_space<vmem>>, vector<16x128xf32>,
    } else {
    }
    return
  }
  func.func @transform_0(%arg0: i32) -> (i32, i32) {
    %c0_i32 = arith.constant 0 : i32
    %c0_i32_0 = arith.constant 0 : i32
    %c0_i32_1 = arith.constant 0 : i32
    return %c0_i32, %c0_i32_0 : i32, i32
  }
  func.func @transform_1(%arg0: i32) -> (i32, i32) {
    %c0_i32 = arith.constant 0 : i32
    %c0_i32_0 = arith.constant 0 : i32
    %c0_i32_1 = arith.constant 0 : i32
    return %c0_i32, %c0_i32_0 : i32, i32
  }
  func.func @transform_2(%arg0: i32) -> (i32, i32) {
    %c0_i32 = arith.constant 0 : i32
    %c0_i32_0 = arith.constant 0 : i32
    %c0_i32_1 = arith.constant 0 : i32
    return %c0_i32, %c0_i32_0 : i32, i32
  }
  func.func @transform_3(%arg0: i32) -> (i32, i32) {
    %c0_i32 = arith.constant 0 : i32
    %c0_i32_0 = arith.constant 0 : i32
    %c0_i32_1 = arith.constant 0 : i32
    return %c0_i32, %c0_i32_0 : i32, i32
  }
  func.func @transform_4(%arg0: i32) -> (i32, i32) {
    %c0_i32 = arith.constant 0 : i32
    %c0_i32_0 = arith.constant 0 : i32
    %c0_i32_1 = arith.constant 0 : i32
    return %c0_i32, %c0_i32_0 : i32, i32
  }
  func.func @transform_5(%arg0: i32) -> (i32, i32, i32) {
    %c0_i32 = arith.constant 0 : i32
    %c0_i32_0 = arith.constant 0 : i32
    %c0_i32_1 = arith.constant 0 : i32
    return %arg0, %c0_i32, %c0_i32_0 : i32, i32, i32
  }
  func.func @transform_6(%arg0: i32) -> (i32, i32, i32) {
    %c0_i32 = arith.constant 0 : i32
    %c0_i32_0 = arith.constant 0 : i32
    %c0_i32_1 = arith.constant 0 : i32
    return %arg0, %c0_i32, %c0_i32_0 : i32, i32, i32
  }
  func.func @transform_7(%arg0: i32) -> (i32, i32, i32) {
    %c0_i32 = arith.constant 0 : i32
    %c0_i32_0 = arith.constant 0 : i32
    %c0_i32_1 = arith.constant 0 : i32
    return %arg0, %c0_i32, %c0_i32_0 : i32, i32, i32
  }
  func.func @transform_8(%arg0: i32) -> (i32, i32, i32) {
    %c0_i32 = arith.constant 0 : i32
    %c0_i32_0 = arith.constant 0 : i32
    %c0_i32_1 = arith.constant 0 : i32
    return %arg0, %c0_i32, %c0_i32_0 : i32, i32, i32
  }
  func.func @transform_9(%arg0: i32) -> (i32, i32, i32) {
    %c0_i32 = arith.constant 0 : i32
    %c0_i32_0 = arith.constant 0 : i32
    %c0_i32_1 = arith.constant 0 : i32
    return %arg0, %c0_i32, %c0_i32_0 : i32, i32, i32
  }
  func.func @transform_10(%arg0: i32) -> (i32, i32, i32) {
    %c0_i32 = arith.constant 0 : i32
    %c0_i32_0 = arith.constant 0 : i32
    %c0_i32_1 = arith.constant 0 : i32
    return %arg0, %c0_i32, %c0_i32_0 : i32, i32, i32
  }
  func.func @transform_11(%arg0: i32) -> (i32, i32, i32) {
    %c0_i32 = arith.constant 0 : i32
    %c0_i32_0 = arith.constant 0 : i32
    %c0_i32_1 = arith.constant 0 : i32
    return %arg0, %c0_i32, %c0_i32_0 : i32, i32, i32
  }
  func.func @transform_12(%arg0: i32) -> (i32, i32, i32) {
    %c0_i32 = arith.constant 0 : i32
    %c0_i32_0 = arith.constant 0 : i32
    %c0_i32_1 = arith.constant 0 : i32
    return %arg0, %c0_i32, %c0_i32_0 : i32, i32, i32
  }
  func.func @transform_13(%arg0: i32) -> (i32, i32) {
    %c0_i32 = arith.constant 0 : i32
    %c0_i32_0 = arith.constant 0 : i32
    %c0_i32_1 = arith.constant 0 : i32
    return %c0_i32, %c0_i32_0 : i32, i32
  }
  func.func @transform_14(%arg0: i32) -> (i32, i32) {
    %c0_i32 = arith.constant 0 : i32
    %c0_i32_0 = arith.constant 0 : i32
    %c0_i32_1 = arith.constant 0 : i32
    return %c0_i32, %c0_i32_0 : i32, i32
  }
  func.func @transform_15(%arg0: i32) -> (i32, i32) {
    %c0_i32 = arith.constant 0 : i32
    %c0_i32_0 = arith.constant 0 : i32
    %c0_i32_1 = arith.constant 0 : i32
    return %c0_i32, %c0_i32_0 : i32, i32
  }
}

</mosaic_0001>

<llo_original>
// kernel: joint_ceeq_fwd.5
$region0: #{joint_ceeq_fwd.5}
  #allocation0 [shape = 'u32[]', space=smem, size = 0x4, offset = 0x4, fixed_abs, tag = 'smem constant byte address 0x4 - core index']
  #allocation1 [shape = 'u32[144,128]{1,0:T(1,128)}', space=vmem, size = 0x12000, scoped, tag = 'internal scratch']
  #allocation2 [shape = 'f32[16,32]{1,0:T(8,128)}', space=vmem, size = 0x2000, scoped, tag = 'scratch operand']
  %s0 = inlined_call_operand.vmem [shape: f32[16,4], index: 0, kind: input, shape index: {}]
  %s1 = inlined_call_operand.vmem [shape: f32[16,8], index: 1, kind: input, shape index: {}]
  %s2 = inlined_call_operand.vmem [shape: bf16[4,32], index: 2, kind: input, shape index: {}]
  %s3 = inlined_call_operand.vmem [shape: bf16[8,32], index: 3, kind: input, shape index: {}]
  %s4 = inlined_call_operand.vmem [shape: f32[16,32], index: 4, kind: input, shape index: {}]
  %s5 = inlined_call_operand.vmem [shape: bf16[2,32,96], index: 5, kind: input, shape index: {}]
  %s6 = inlined_call_operand.vmem [shape: bf16[2,32,32], index: 6, kind: input, shape index: {}]
  %s7 = inlined_call_operand.vmem [shape: bf16[2,32,64], index: 7, kind: input, shape index: {}]
  %s8 = inlined_call_operand.vmem [shape: bf16[2,64,32], index: 8, kind: input, shape index: {}]
  %s9 = inlined_call_operand.vmem [shape: f32[2,8,128], index: 9, kind: input, shape index: {}]
  %s10 = inlined_call_operand.vmem [shape: bf16[32,128], index: 10, kind: input, shape index: {}]
  %s11 = inlined_call_operand.vmem [shape: f32[1,128], index: 11, kind: input, shape index: {}]
  %s12 = inlined_call_operand.vmem [shape: f32[16,128], index: 12, kind: output, shape index: {}]
  %s13 = sld [smem:[#allocation0]]
  $region89: #{joint_ceeq_fwd.5} parent=0
    _
  %s15 = ssub.s32 1, %s13
  %s16 = scalar_select 0, %s15, %s13
  loop: start=0, step=1, limit=4
  $region2: #{joint_ceeq_fwd.5} parent=0 // loop_pre_header
    _
  $region3: #{joint_ceeq_fwd.5} parent=0 // loop_header
    %s18 = sphi 0, %s22
    %p19 = scmp.ge.s32.totalorder %s18, 4
    %s26 = sphi 0, %s26
    %s28 = sphi 0, %s26
    %s29 = sphi 0, %s28
    %s43 = sphi 0, %s29
    %s47 = sphi 0, %s47
    %s49 = sphi 0, %s47
    %s50 = sphi 0, %s49
    %s64 = sphi 0, %s50
    %s68 = sphi 0, %s68
    %s70 = sphi 0, %s68
    %s71 = sphi 0, %s70
    %s85 = sphi 0, %s71
    %s89 = sphi 0, %s89
    %s91 = sphi 0, %s89
    %s92 = sphi 0, %s91
    %s106 = sphi 0, %s92
    %s110 = sphi 0, %s110
    %s112 = sphi 0, %s110
    %s113 = sphi 0, %s112
    %s127 = sphi 0, %s113
    %s133 = sphi 0, %s135
    %s136 = sphi 0, %s133
    %s137 = sphi 0, %s136
    %s153 = sphi 0, %s137
    %s159 = sphi 0, %s161
    %s162 = sphi 0, %s159
    %s163 = sphi 0, %s162
    %s179 = sphi 0, %s163
    %s185 = sphi 0, %s187
    %s188 = sphi 0, %s185
    %s189 = sphi 0, %s188
    %s205 = sphi 0, %s189
    %s211 = sphi 0, %s213
    %s214 = sphi 0, %s211
    %s215 = sphi 0, %s214
    %s231 = sphi 0, %s215
    %s237 = sphi 0, %s239
    %s240 = sphi 0, %s237
    %s241 = sphi 0, %s240
    %s257 = sphi 0, %s241
    %s261 = sphi 0, %s261
    %s263 = sphi 0, %s261
    %s264 = sphi 0, %s263
    %s278 = sphi 0, %s264
    %s282 = sphi 0, %s282
    %s284 = sphi 0, %s282
    %s285 = sphi 0, %s284
    %s299 = sphi 0, %s285
    %s303 = sphi 0, %s303
    %s305 = sphi 0, %s303
    %s306 = sphi 0, %s305
    %s320 = sphi 0, %s306
  $region4: #{joint_ceeq_fwd.5} parent=0 // loop_header_branch
    %21 = sbr.rel (%p19) target = $region8
  $region5: #{joint_ceeq_fwd.5} parent=0 // loop_body
    %s23 = ssub.s32 %s18, 1
    %s24 = ssub.s32 %s18, 2
    %s25 = sadd.s32 %s18, 1
    %s27 = sadd.s32 %s26, 1
    %p30 = scmp.eq.s32.totalorder %s18, 1
    %p31 = scmp.ne.s32.totalorder %s26, %s28
    %p32 = scmp.eq.s32.totalorder %s18, 0
    %p33 = por %p31, %p32
    %p34 = scmp.ne.s32.totalorder %s26, %s28
    %p35 = scmp.eq.s32.totalorder %s23, 1
    %p36 = por %p34, %p35
    %p37 = scmp.ne.s32.totalorder %s28, %s29
    %p38 = scmp.eq.s32.totalorder %s23, 0
    %p39 = por %p37, %p38
    %p40 = scmp.ne.s32.totalorder %s28, %s29
    %p41 = scmp.eq.s32.totalorder %s24, 1
    %p42 = por %p40, %p41
    %p44 = scmp.ne.s32.totalorder %s29, %s43
    %p45 = scmp.eq.s32.totalorder %s24, 0
    %p46 = por %p44, %p45
    %s48 = sadd.s32 %s47, 1
    %p51 = scmp.eq.s32.totalorder %s18, 1
    %p52 = scmp.ne.s32.totalorder %s47, %s49
    %p53 = scmp.eq.s32.totalorder %s18, 0
    %p54 = por %p52, %p53
    %p55 = scmp.ne.s32.totalorder %s47, %s49
    %p56 = scmp.eq.s32.totalorder %s23, 1
    %p57 = por %p55, %p56
    %p58 = scmp.ne.s32.totalorder %s49, %s50
    %p59 = scmp.eq.s32.totalorder %s23, 0
    %p60 = por %p58, %p59
    %p61 = scmp.ne.s32.totalorder %s49, %s50
    %p62 = scmp.eq.s32.totalorder %s24, 1
    %p63 = por %p61, %p62
    %p65 = scmp.ne.s32.totalorder %s50, %s64
    %p66 = scmp.eq.s32.totalorder %s24, 0
    %p67 = por %p65, %p66
    %s69 = sadd.s32 %s68, 1
    %p72 = scmp.eq.s32.totalorder %s18, 1
    %p73 = scmp.ne.s32.totalorder %s68, %s70
    %p74 = scmp.eq.s32.totalorder %s18, 0
    %p75 = por %p73, %p74
    %p76 = scmp.ne.s32.totalorder %s68, %s70
    %p77 = scmp.eq.s32.totalorder %s23, 1
    %p78 = por %p76, %p77
    %p79 = scmp.ne.s32.totalorder %s70, %s71
    %p80 = scmp.eq.s32.totalorder %s23, 0
    %p81 = por %p79, %p80
    %p82 = scmp.ne.s32.totalorder %s70, %s71
    %p83 = scmp.eq.s32.totalorder %s24, 1
    %p84 = por %p82, %p83
    %p86 = scmp.ne.s32.totalorder %s71, %s85
    %p87 = scmp.eq.s32.totalorder %s24, 0
    %p88 = por %p86, %p87
    %s90 = sadd.s32 %s89, 1
    %p93 = scmp.eq.s32.totalorder %s18, 1
    %p94 = scmp.ne.s32.totalorder %s89, %s91
    %p95 = scmp.eq.s32.totalorder %s18, 0
    %p96 = por %p94, %p95
    %p97 = scmp.ne.s32.totalorder %s89, %s91
    %p98 = scmp.eq.s32.totalorder %s23, 1
    %p99 = por %p97, %p98
    %p100 = scmp.ne.s32.totalorder %s91, %s92
    %p101 = scmp.eq.s32.totalorder %s23, 0
    %p102 = por %p100, %p101
    %p103 = scmp.ne.s32.totalorder %s91, %s92
    %p104 = scmp.eq.s32.totalorder %s24, 1
    %p105 = por %p103, %p104
    %p107 = scmp.ne.s32.totalorder %s92, %s106
    %p108 = scmp.eq.s32.totalorder %s24, 0
    %p109 = por %p107, %p108
    %s111 = sadd.s32 %s110, 1
    %p114 = scmp.eq.s32.totalorder %s18, 1
    %p115 = scmp.ne.s32.totalorder %s110, %s112
    %p116 = scmp.eq.s32.totalorder %s18, 0
    %p117 = por %p115, %p116
    %p118 = scmp.ne.s32.totalorder %s110, %s112
    %p119 = scmp.eq.s32.totalorder %s23, 1
    %p120 = por %p118, %p119
    %p121 = scmp.ne.s32.totalorder %s112, %s113
    %p122 = scmp.eq.s32.totalorder %s23, 0
    %p123 = por %p121, %p122
    %p124 = scmp.ne.s32.totalorder %s112, %s113
    %p125 = scmp.eq.s32.totalorder %s24, 1
    %p126 = por %p124, %p125
    %p128 = scmp.ne.s32.totalorder %s113, %s127
    %p129 = scmp.eq.s32.totalorder %s24, 0
    %p130 = por %p128, %p129
    %s131 = ssub.s32 %s18, %s25
    %p132 = scmp.eq.s32.totalorder %s131, 0
    %s134 = sadd.s32 %s133, 1
    %s135 = scalar_select %p132, %s133, %s134
    %p138 = pneg %p132
    %p139 = scmp.eq.s32.totalorder %s18, 1
    %p140 = por %p138, %p139
    %p141 = scmp.ne.s32.totalorder %s133, %s136
    %p142 = scmp.eq.s32.totalorder %s18, 0
    %p143 = por %p141, %p142
    %p144 = scmp.ne.s32.totalorder %s133, %s136
    %p145 = scmp.eq.s32.totalorder %s23, 1
    %p146 = por %p144, %p145
    %p147 = scmp.ne.s32.totalorder %s136, %s137
    %p148 = scmp.eq.s32.totalorder %s23, 0
    %p149 = por %p147, %p148
    %p150 = scmp.ne.s32.totalorder %s136, %s137
    %p151 = scmp.eq.s32.totalorder %s24, 1
    %p152 = por %p150, %p151
    %p154 = scmp.ne.s32.totalorder %s137, %s153
    %p155 = scmp.eq.s32.totalorder %s24, 0
    %p156 = por %p154, %p155
    %s157 = ssub.s32 %s18, %s25
    %p158 = scmp.eq.s32.totalorder %s157, 0
    %s160 = sadd.s32 %s159, 1
    %s161 = scalar_select %p158, %s159, %s160
    %p164 = pneg %p158
    %p165 = scmp.eq.s32.totalorder %s18, 1
    %p166 = por %p164, %p165
    %p167 = scmp.ne.s32.totalorder %s159, %s162
    %p168 = scmp.eq.s32.totalorder %s18, 0
    %p169 = por %p167, %p168
    %p170 = scmp.ne.s32.totalorder %s159, %s162
    %p171 = scmp.eq.s32.totalorder %s23, 1
    %p172 = por %p170, %p171
    %p173 = scmp.ne.s32.totalorder %s162, %s163
    %p174 = scmp.eq.s32.totalorder %s23, 0
    %p175 = por %p173, %p174
    %p176 = scmp.ne.s32.totalorder %s162, %s163
    %p177 = scmp.eq.s32.totalorder %s24, 1
    %p178 = por %p176, %p177
    %p180 = scmp.ne.s32.totalorder %s163, %s179
    %p181 = scmp.eq.s32.totalorder %s24, 0
    %p182 = por %p180, %p181
    %s183 = ssub.s32 %s18, %s25
    %p184 = scmp.eq.s32.totalorder %s183, 0
    %s186 = sadd.s32 %s185, 1
    %s187 = scalar_select %p184, %s185, %s186
    %p190 = pneg %p184
    %p191 = scmp.eq.s32.totalorder %s18, 1
    %p192 = por %p190, %p191
    %p193 = scmp.ne.s32.totalorder %s185, %s188
    %p194 = scmp.eq.s32.totalorder %s18, 0
    %p195 = por %p193, %p194
    %p196 = scmp.ne.s32.totalorder %s185, %s188
    %p197 = scmp.eq.s32.totalorder %s23, 1
    %p198 = por %p196, %p197
    %p199 = scmp.ne.s32.totalorder %s188, %s189
    %p200 = scmp.eq.s32.totalorder %s23, 0
    %p201 = por %p199, %p200
    %p202 = scmp.ne.s32.totalorder %s188, %s189
    %p203 = scmp.eq.s32.totalorder %s24, 1
    %p204 = por %p202, %p203
    %p206 = scmp.ne.s32.totalorder %s189, %s205
    %p207 = scmp.eq.s32.totalorder %s24, 0
    %p208 = por %p206, %p207
    %s209 = ssub.s32 %s18, %s25
    %p210 = scmp.eq.s32.totalorder %s209, 0
    %s212 = sadd.s32 %s211, 1
    %s213 = scalar_select %p210, %s211, %s212
    %p216 = pneg %p210
    %p217 = scmp.eq.s32.totalorder %s18, 1
    %p218 = por %p216, %p217
    %p219 = scmp.ne.s32.totalorder %s211, %s214
    %p220 = scmp.eq.s32.totalorder %s18, 0
    %p221 = por %p219, %p220
    %p222 = scmp.ne.s32.totalorder %s211, %s214
    %p223 = scmp.eq.s32.totalorder %s23, 1
    %p224 = por %p222, %p223
    %p225 = scmp.ne.s32.totalorder %s214, %s215
    %p226 = scmp.eq.s32.totalorder %s23, 0
    %p227 = por %p225, %p226
    %p228 = scmp.ne.s32.totalorder %s214, %s215
    %p229 = scmp.eq.s32.totalorder %s24, 1
    %p230 = por %p228, %p229
    %p232 = scmp.ne.s32.totalorder %s215, %s231
    %p233 = scmp.eq.s32.totalorder %s24, 0
    %p234 = por %p232, %p233
    %s235 = ssub.s32 %s18, %s25
    %p236 = scmp.eq.s32.totalorder %s235, 0
    %s238 = sadd.s32 %s237, 1
    %s239 = scalar_select %p236, %s237, %s238
    %p242 = pneg %p236
    %p243 = scmp.eq.s32.totalorder %s18, 1
    %p244 = por %p242, %p243
    %p245 = scmp.ne.s32.totalorder %s237, %s240
    %p246 = scmp.eq.s32.totalorder %s18, 0
    %p247 = por %p245, %p246
    %p248 = scmp.ne.s32.totalorder %s237, %s240
    %p249 = scmp.eq.s32.totalorder %s23, 1
    %p250 = por %p248, %p249
    %p251 = scmp.ne.s32.totalorder %s240, %s241
    %p252 = scmp.eq.s32.totalorder %s23, 0
    %p253 = por %p251, %p252
    %p254 = scmp.ne.s32.totalorder %s240, %s241
    %p255 = scmp.eq.s32.totalorder %s24, 1
    %p256 = por %p254, %p255
    %p258 = scmp.ne.s32.totalorder %s241, %s257
    %p259 = scmp.eq.s32.totalorder %s24, 0
    %p260 = por %p258, %p259
    %s262 = sadd.s32 %s261, 1
    %p265 = scmp.eq.s32.totalorder %s18, 1
    %p266 = scmp.ne.s32.totalorder %s261, %s263
    %p267 = scmp.eq.s32.totalorder %s18, 0
    %p268 = por %p266, %p267
    %p269 = scmp.ne.s32.totalorder %s261, %s263
    %p270 = scmp.eq.s32.totalorder %s23, 1
    %p271 = por %p269, %p270
    %p272 = scmp.ne.s32.totalorder %s263, %s264
    %p273 = scmp.eq.s32.totalorder %s23, 0
    %p274 = por %p272, %p273
    %p275 = scmp.ne.s32.totalorder %s263, %s264
    %p276 = scmp.eq.s32.totalorder %s24, 1
    %p277 = por %p275, %p276
    %p279 = scmp.ne.s32.totalorder %s264, %s278
    %p280 = scmp.eq.s32.totalorder %s24, 0
    %p281 = por %p279, %p280
    %s283 = sadd.s32 %s282, 1
    %p286 = scmp.eq.s32.totalorder %s18, 1
    %p287 = scmp.ne.s32.totalorder %s282, %s284
    %p288 = scmp.eq.s32.totalorder %s18, 0
    %p289 = por %p287, %p288
    %p290 = scmp.ne.s32.totalorder %s282, %s284
    %p291 = scmp.eq.s32.totalorder %s23, 1
    %p292 = por %p290, %p291
    %p293 = scmp.ne.s32.totalorder %s284, %s285
    %p294 = scmp.eq.s32.totalorder %s23, 0
    %p295 = por %p293, %p294
    %p296 = scmp.ne.s32.totalorder %s284, %s285
    %p297 = scmp.eq.s32.totalorder %s24, 1
    %p298 = por %p296, %p297
    %p300 = scmp.ne.s32.totalorder %s285, %s299
    %p301 = scmp.eq.s32.totalorder %s24, 0
    %p302 = por %p300, %p301
    %s304 = sadd.s32 %s303, 1
    %p307 = scmp.eq.s32.totalorder %s18, 1
    %p308 = scmp.ne.s32.totalorder %s303, %s305
    %p309 = scmp.eq.s32.totalorder %s18, 0
    %p310 = por %p308, %p309
    %p311 = scmp.ne.s32.totalorder %s303, %s305
    %p312 = scmp.eq.s32.totalorder %s23, 1
    %p313 = por %p311, %p312
    %p314 = scmp.ne.s32.totalorder %s305, %s306
    %p315 = scmp.eq.s32.totalorder %s23, 0
    %p316 = por %p314, %p315
    %p317 = scmp.ne.s32.totalorder %s305, %s306
    %p318 = scmp.eq.s32.totalorder %s24, 1
    %p319 = por %p317, %p318
    %p321 = scmp.ne.s32.totalorder %s306, %s320
    %p322 = scmp.eq.s32.totalorder %s24, 0
    %p323 = por %p321, %p322
    %p324 = scmp.le.s32.totalorder 1, %s18
    %p325 = scmp.lt.s32.totalorder %s18, 3
    %p326 = pnand %p324, %p325
    %p327 = pneg %p326
    // Predicated region
    $region9: #{joint_ceeq_fwd.5} parent=5 // pred_check
      _
    $region10: #{joint_ceeq_fwd.5} parent=5 // pred_check_branch
      %329 = sbr.rel (%p326) target = $region12
    $region11: #{joint_ceeq_fwd.5} parent=5 // pred_region
      %s330 = ssub.s32 %s18, 1
      // Predicated region
      $region13: #{joint_ceeq_fwd.5} parent=11 // pred_check
        %p331 = pneg %p39
      $region14: #{joint_ceeq_fwd.5} parent=11 // pred_check_branch
        %333 = sbr.rel (%p331) target = $region16
      $region15: #{joint_ceeq_fwd.5} parent=11 // pred_region
        _
      $region16: #{joint_ceeq_fwd.5} parent=11 // pred_fallthru
        _
      // Predicated region
      $region17: #{joint_ceeq_fwd.5} parent=11 // pred_check
        %p334 = pneg %p60
      $region18: #{joint_ceeq_fwd.5} parent=11 // pred_check_branch
        %336 = sbr.rel (%p334) target = $region20
      $region19: #{joint_ceeq_fwd.5} parent=11 // pred_region
        _
      $region20: #{joint_ceeq_fwd.5} parent=11 // pred_fallthru
        _
      // Predicated region
      $region21: #{joint_ceeq_fwd.5} parent=11 // pred_check
        %p337 = pneg %p81
      $region22: #{joint_ceeq_fwd.5} parent=11 // pred_check_branch
        %339 = sbr.rel (%p337) target = $region24
      $region23: #{joint_ceeq_fwd.5} parent=11 // pred_region
        _
      $region24: #{joint_ceeq_fwd.5} parent=11 // pred_fallthru
        _
      // Predicated region
      $region25: #{joint_ceeq_fwd.5} parent=11 // pred_check
        %p340 = pneg %p102
      $region26: #{joint_ceeq_fwd.5} parent=11 // pred_check_branch
        %342 = sbr.rel (%p340) target = $region28
      $region27: #{joint_ceeq_fwd.5} parent=11 // pred_region
        _
      $region28: #{joint_ceeq_fwd.5} parent=11 // pred_fallthru
        _
      // Predicated region
      $region29: #{joint_ceeq_fwd.5} parent=11 // pred_check
        %p343 = pneg %p123
      $region30: #{joint_ceeq_fwd.5} parent=11 // pred_check_branch
        %345 = sbr.rel (%p343) target = $region32
      $region31: #{joint_ceeq_fwd.5} parent=11 // pred_region
        _
      $region32: #{joint_ceeq_fwd.5} parent=11 // pred_fallthru
        _
      // Predicated region
      $region33: #{joint_ceeq_fwd.5} parent=11 // pred_check
        %p346 = pneg %p274
      $region34: #{joint_ceeq_fwd.5} parent=11 // pred_check_branch
        %348 = sbr.rel (%p346) target = $region36
      $region35: #{joint_ceeq_fwd.5} parent=11 // pred_region
        _
      $region36: #{joint_ceeq_fwd.5} parent=11 // pred_fallthru
        _
      // Predicated region
      $region37: #{joint_ceeq_fwd.5} parent=11 // pred_check
        %p349 = pneg %p295
      $region38: #{joint_ceeq_fwd.5} parent=11 // pred_check_branch
        %351 = sbr.rel (%p349) target = $region40
      $region39: #{joint_ceeq_fwd.5} parent=11 // pred_region
        _
      $region40: #{joint_ceeq_fwd.5} parent=11 // pred_fallthru
        _
    $region12: #{joint_ceeq_fwd.5} parent=5 // pred_fallthru
      _
    %p352 = scmp.lt.s32.totalorder %s18, 2
    // Predicated region
    $region41: #{joint_ceeq_fwd.5} parent=5 // pred_check
      %p353 = pneg %p352
    $region42: #{joint_ceeq_fwd.5} parent=5 // pred_check_branch
      %355 = sbr.rel (%p353) target = $region44
    $region43: #{joint_ceeq_fwd.5} parent=5 // pred_region
      // Predicated region
      $region45: #{joint_ceeq_fwd.5} parent=43 // pred_check
        %p356 = pneg %p143
      $region46: #{joint_ceeq_fwd.5} parent=43 // pred_check_branch
        %358 = sbr.rel (%p356) target = $region48
      $region47: #{joint_ceeq_fwd.5} parent=43 // pred_region
        %p359 = scmp.lt.s32.totalorder %s18, 1
        %s360 = scalar_select %p359, %s18, 1
        %s361 = smul.addr %s360, 4
        %s362 = smul.addr %s361, 4
        %s363 = scalar_lea.vmem %s5, %s362
      $region48: #{joint_ceeq_fwd.5} parent=43 // pred_fallthru
        _
      // Predicated region
      $region49: #{joint_ceeq_fwd.5} parent=43 // pred_check
        %p364 = pneg %p169
      $region50: #{joint_ceeq_fwd.5} parent=43 // pred_check_branch
        %366 = sbr.rel (%p364) target = $region52
      $region51: #{joint_ceeq_fwd.5} parent=43 // pred_region
        %p367 = scmp.lt.s32.totalorder %s18, 1
        %s368 = scalar_select %p367, %s18, 1
        %s369 = smul.addr %s368, 4
        %s370 = smul.addr %s369, 4
        %s371 = scalar_lea.vmem %s6, %s370
      $region52: #{joint_ceeq_fwd.5} parent=43 // pred_fallthru
        _
      // Predicated region
      $region53: #{joint_ceeq_fwd.5} parent=43 // pred_check
        %p372 = pneg %p195
      $region54: #{joint_ceeq_fwd.5} parent=43 // pred_check_branch
        %374 = sbr.rel (%p372) target = $region56
      $region55: #{joint_ceeq_fwd.5} parent=43 // pred_region
        %p375 = scmp.lt.s32.totalorder %s18, 1
        %s376 = scalar_select %p375, %s18, 1
        %s377 = smul.addr %s376, 4
        %s378 = smul.addr %s377, 4
        %s379 = scalar_lea.vmem %s7, %s378
      $region56: #{joint_ceeq_fwd.5} parent=43 // pred_fallthru
        _
      // Predicated region
      $region57: #{joint_ceeq_fwd.5} parent=43 // pred_check
        %p380 = pneg %p221
      $region58: #{joint_ceeq_fwd.5} parent=43 // pred_check_branch
        %382 = sbr.rel (%p380) target = $region60
      $region59: #{joint_ceeq_fwd.5} parent=43 // pred_region
        %p383 = scmp.lt.s32.totalorder %s18, 1
        %s384 = scalar_select %p383, %s18, 1
        %s385 = smul.addr %s384, 8
        %s386 = smul.addr %s385, 4
        %s387 = scalar_lea.vmem %s8, %s386
      $region60: #{joint_ceeq_fwd.5} parent=43 // pred_fallthru
        _
      // Predicated region
      $region61: #{joint_ceeq_fwd.5} parent=43 // pred_check
        %p388 = pneg %p247
      $region62: #{joint_ceeq_fwd.5} parent=43 // pred_check_branch
        %390 = sbr.rel (%p388) target = $region64
      $region63: #{joint_ceeq_fwd.5} parent=43 // pred_region
        %p391 = scmp.lt.s32.totalorder %s18, 1
        %s392 = scalar_select %p391, %s18, 1
        %s393 = smul.addr %s392, 8
        %s394 = scalar_lea.vmem %s9, %s393
      $region64: #{joint_ceeq_fwd.5} parent=43 // pred_fallthru
        _
    $region44: #{joint_ceeq_fwd.5} parent=5 // pred_fallthru
      _
    %p395 = scmp.le.s32.totalorder 1, %s18
    %p396 = scmp.lt.s32.totalorder %s18, 3
    %p397 = pnand %p395, %p396
    %p398 = pneg %p397
    // Predicated region
    $region65: #{joint_ceeq_fwd.5} parent=5 // pred_check
      _
    $region66: #{joint_ceeq_fwd.5} parent=5 // pred_check_branch
      %400 = sbr.rel (%p397) target = $region68
    $region67: #{joint_ceeq_fwd.5} parent=5 // pred_region
      %s401 = ssub.s32 %s18, 1
      %p402 = pneg %p39
      %p403 = pneg %p36
      %p404 = pneg %p60
      %p405 = pneg %p57
      %p406 = pneg %p81
      %p407 = pneg %p78
      %p408 = pneg %p102
      %p409 = pneg %p99
      %p410 = pneg %p123
      %p411 = pneg %p120
      %p412 = scmp.lt.s32.totalorder %s23, 1
      %s413 = scalar_select %p412, %s23, 1
      %s414 = smul.addr %s413, 4
      %s415 = smul.addr %s414, 4
      %s416 = scalar_lea.vmem %s5, %s415
      %p417 = pneg %p149
      %p418 = pneg %p146
      %p419 = scmp.lt.s32.totalorder %s23, 1
      %s420 = scalar_select %p419, %s23, 1
      %s421 = smul.addr %s420, 4
      %s422 = smul.addr %s421, 4
      %s423 = scalar_lea.vmem %s6, %s422
      %p424 = pneg %p175
      %p425 = pneg %p172
      %p426 = scmp.lt.s32.totalorder %s23, 1
      %s427 = scalar_select %p426, %s23, 1
      %s428 = smul.addr %s427, 4
      %s429 = smul.addr %s428, 4
      %s430 = scalar_lea.vmem %s7, %s429
      %p431 = pneg %p201
      %p432 = pneg %p198
      %p433 = scmp.lt.s32.totalorder %s23, 1
      %s434 = scalar_select %p433, %s23, 1
      %s435 = smul.addr %s434, 8
      %s436 = smul.addr %s435, 4
      %s437 = scalar_lea.vmem %s8, %s436
      %p438 = pneg %p227
      %p439 = pneg %p224
      %p440 = scmp.lt.s32.totalorder %s23, 1
      %s441 = scalar_select %p440, %s23, 1
      %s442 = smul.addr %s441, 8
      %s443 = scalar_lea.vmem %s9, %s442
      %p444 = pneg %p253
      %p445 = pneg %p250
      %p446 = pneg %p274
      %p447 = pneg %p271
      %p448 = pneg %p295
      %p449 = pneg %p292
      %p450 = pneg %p316
      %p451 = pneg %p313
      %p452 = scmp.lt.s32.totalorder %s23, 1
      %s453 = scalar_select %p452, %s23, 1
      %s454 = smul.addr %s453, 4
      %s455 = smul.addr %s454, 4
      %s456 = scalar_lea.vmem %s5, %s455
      %p457 = scmp.lt.s32.totalorder %s23, 1
      %s458 = scalar_select %p457, %s23, 1
      %s459 = smul.addr %s458, 4
      %s460 = smul.addr %s459, 4
      %s461 = scalar_lea.vmem %s6, %s460
      %p462 = scmp.lt.s32.totalorder %s23, 1
      %s463 = scalar_select %p462, %s23, 1
      %s464 = smul.addr %s463, 4
      %s465 = smul.addr %s464, 4
      %s466 = scalar_lea.vmem %s7, %s465
      %p467 = scmp.lt.s32.totalorder %s23, 1
      %s468 = scalar_select %p467, %s23, 1
      %s469 = smul.addr %s468, 8
      %s470 = smul.addr %s469, 4
      %s471 = scalar_lea.vmem %s8, %s470
      %p472 = scmp.lt.s32.totalorder %s23, 1
      %s473 = scalar_select %p472, %s23, 1
      %s474 = smul.addr %s473, 8
      %s475 = scalar_lea.vmem %s9, %s474
      %p477 = scmp.eq.s32.totalorder %s23, 0
      // Predicated region
      $region69: #{joint_ceeq_fwd.5} parent=67 // pred_check
        %p478 = pneg %p477
      $region70: #{joint_ceeq_fwd.5} parent=67 // pred_check_branch
        %480 = sbr.rel (%p478) target = $region72
      $region71: #{joint_ceeq_fwd.5} parent=67 // pred_region
        %v481 = vld [vmem:[%s0] sm:$0xff]
        %v482 = vld [vmem:[%s0 + $0x8] sm:$0xff]
        %v483 = vld [vmem:[%s2] sm:$0x3]
        %v484 = vpack.c.bf16 %v482, %v481
        %v485 = vld [vmem:[%s1] sm:$0xff]
        %v486 = vld [vmem:[%s1 + $0x8] sm:$0xff]
        %v487 = vld [vmem:[%s3] sm:$0xf]
        %v488 = vpack.c.bf16 %v486, %v485
        %vm489 = vcmask 64512
        %v491 = vsel %vm489, %v488, 0
        %vm493 = vcmask 1043456
        %v495 = vsel %vm493, %v487, 0
        %497 = vmatprep.subr.bf16.mxu0 0
        %498 = vmatpush1.bf16.msra.mxu0 0
        %499 = vmatprep.subr.bf16.mxu0 0
        %500 = vmatpush1.bf16.msra.mxu0 0
        %501 = vmatprep.subr.bf16.mxu0 0
        %502 = vmatpush1.bf16.msra.mxu0 0
        %503 = vmatprep.subr.bf16.mxu0 0
        %504 = vmatpush1.bf16.msra.mxu0 0
        %505 = vmatprep.subr.bf16.mxu0 0
        %506 = vmatpush1.bf16.msra.mxu0 0
        %507 = vmatprep.subr.bf16.mxu0 0
        %508 = vmatpush1.bf16.msra.mxu0 0
        %509 = vmatprep.subr.bf16.mxu0 0
        %510 = vmatpush1.bf16.msra.mxu0 0
        %511 = vmatprep.subr.bf16.mxu0 0
        %512 = vmatpush1.bf16.msra.mxu0 %v495
        %513 = vmatprep.subr.bf16.mxu0 0
        %514 = vmatpush2.bf16.msra.mxu0 0
        %515 = vmatprep.subr.bf16.mxu0 0
        %516 = vmatpush2.bf16.msra.mxu0 0
        %517 = vmatprep.subr.bf16.mxu0 0
        %518 = vmatpush2.bf16.msra.mxu0 0
        %519 = vmatprep.subr.bf16.mxu0 0
        %520 = vmatpush2.bf16.msra.mxu0 0
        %521 = vmatprep.subr.bf16.mxu0 0
        %522 = vmatpush2.bf16.msra.mxu0 0
        %523 = vmatprep.subr.bf16.mxu0 0
        %524 = vmatpush2.bf16.msra.mxu0 0
        %525 = vmatprep.subr.bf16.mxu0 0
        %526 = vmatpush2.bf16.msra.mxu0 0
        %527 = vmatprep.subr.bf16.mxu0 0
        %528 = vmatpush2.bf16.msra.mxu0 0
        %529 = vmatprep.mubr.bf16.mxu0 0
        %530 = vmatmul.mubr.bf16.gmra.mxu0 %v491
        %v531 = vpop.f32.mrf.mxu0
        %v532 = vadd.f32 0.0, %v531
        %v533 = vpop.f32.mrf.mxu0
        %v534 = vpop.f32.mrf.mxu0
        %v535 = vadd.f32 0.0, %v534
        %v536 = vpop.f32.mrf.mxu0
        %537 = vdwg.mxu0
        %vm538 = vcmask 31744
        %v540 = vsel %vm538, %v484, 0
        %vm542 = vcmask 1041408
        %v544 = vsel %vm542, %v483, 0
        %546 = vmatprep.subr.bf16.mxu0 0
        %547 = vmatpush1.bf16.msra.mxu0 0
        %548 = vmatprep.subr.bf16.mxu0 0
        %549 = vmatpush1.bf16.msra.mxu0 0
        %550 = vmatprep.subr.bf16.mxu0 0
        %551 = vmatpush1.bf16.msra.mxu0 0
        %552 = vmatprep.subr.bf16.mxu0 0
        %553 = vmatpush1.bf16.msra.mxu0 0
        %554 = vmatprep.subr.bf16.mxu0 0
        %555 = vmatpush1.bf16.msra.mxu0 0
        %556 = vmatprep.subr.bf16.mxu0 0
        %557 = vmatpush1.bf16.msra.mxu0 0
        %558 = vmatprep.subr.bf16.mxu0 0
        %559 = vmatpush1.bf16.msra.mxu0 0
        %560 = vmatprep.subr.bf16.mxu0 0
        %561 = vmatpush1.bf16.msra.mxu0 %v544
        %562 = vmatprep.subr.bf16.mxu0 0
        %563 = vmatpush2.bf16.msra.mxu0 0
        %564 = vmatprep.subr.bf16.mxu0 0
        %565 = vmatpush2.bf16.msra.mxu0 0
        %566 = vmatprep.subr.bf16.mxu0 0
        %567 = vmatpush2.bf16.msra.mxu0 0
        %568 = vmatprep.subr.bf16.mxu0 0
        %569 = vmatpush2.bf16.msra.mxu0 0
        %570 = vmatprep.subr.bf16.mxu0 0
        %571 = vmatpush2.bf16.msra.mxu0 0
        %572 = vmatprep.subr.bf16.mxu0 0
        %573 = vmatpush2.bf16.msra.mxu0 0
        %574 = vmatprep.subr.bf16.mxu0 0
        %575 = vmatpush2.bf16.msra.mxu0 0
        %576 = vmatprep.subr.bf16.mxu0 0
        %577 = vmatpush2.bf16.msra.mxu0 0
        %578 = vmatprep.mubr.bf16.mxu0 0
        %579 = vmatmul.mubr.bf16.gmra.mxu0 %v540
        %v580 = vpop.f32.mrf.mxu0
        %v581 = vadd.f32 %v532, %v580
        %v582 = vpop.f32.mrf.mxu0
        %v583 = vpop.f32.mrf.mxu0
        %v584 = vadd.f32 %v535, %v583
        %v585 = vpop.f32.mrf.mxu0
        %586 = vdwg.mxu0
        %v587 = vld [vmem:[%s4] sm:$0xff]
        %v588 = vld [vmem:[%s4 + $0x8] sm:$0xff]
        %v589 = vadd.f32 %v581, %v587
        %v590 = vadd.f32 %v584, %v588
        %vm591 = vcmask 261120
        %592 = vst.msk [vmem:[#allocation2] sm:$0xff] %vm591, %v589
        %593 = vst.msk [vmem:[#allocation2 + $0x8] sm:$0xff] %vm591, %v590
      $region72: #{joint_ceeq_fwd.5} parent=67 // pred_fallthru
        _
      %v594 = vld [vmem:[#allocation2] sm:$0xff]
      %v595 = vld [vmem:[#allocation2 + $0x8] sm:$0xff]
      %v596 = vld [vmem:[%s475] sm:$0xff]
      %v597 = vld [vmem:[%s456] sm:$0xf]
      %v598 = vld [vmem:[%s456 + $0x4] sm:$0xf]
      %v599 = vld [vmem:[%s456 + $0x8] sm:$0xf]
      %v600 = vld [vmem:[%s456 + $0xc] sm:$0xf]
      %v601 = vpack.c.bf16 %v595, %v594
      %v602 = vlaneseq
      %v603 = vshrl.u32 %v602, 7
      %v604 = vsub.s32 0, %v603
      %v605 = vrot.slane %v596, %v604
      %v610 = vunpack.c.l.b16 %v597
      %v611 = vunpack.c.l.b16 %v598
      %v612 = vunpack.c.l.b16 %v599
      %v613 = vunpack.c.l.b16 %v600
      %v614 = vpack.c.b16 %v611, %v610
      %v615 = vpack.c.b16 %v613, %v612
      %vm618 = vcmask 261120
      %v620 = vsel %vm618, %v601, 0
      %622 = vmatprep.subr.bf16.mxu0 0
      %623 = vmatpush1.bf16.msra.mxu0 0
      %624 = vmatprep.subr.bf16.mxu0 0
      %625 = vmatpush1.bf16.msra.mxu0 0
      %626 = vmatprep.subr.bf16.mxu0 0
      %627 = vmatpush1.bf16.msra.mxu0 0
      %628 = vmatprep.subr.bf16.mxu0 0
      %629 = vmatpush1.bf16.msra.mxu0 0
      %630 = vmatprep.subr.bf16.mxu0 0
      %631 = vmatpush1.bf16.msra.mxu0 0
      %632 = vmatprep.subr.bf16.mxu0 0
      %633 = vmatpush1.bf16.msra.mxu0 0
      %634 = vmatprep.subr.bf16.mxu0 0
      %635 = vmatpush1.bf16.msra.mxu0 %v615
      %636 = vmatprep.subr.bf16.mxu0 0
      %637 = vmatpush1.bf16.msra.mxu0 %v614
      %638 = vmatprep.subr.bf16.mxu0 0
      %639 = vmatpush2.bf16.msra.mxu0 0
      %640 = vmatprep.subr.bf16.mxu0 0
      %641 = vmatpush2.bf16.msra.mxu0 0
      %642 = vmatprep.subr.bf16.mxu0 0
      %643 = vmatpush2.bf16.msra.mxu0 0
      %644 = vmatprep.subr.bf16.mxu0 0
      %645 = vmatpush2.bf16.msra.mxu0 0
      %646 = vmatprep.subr.bf16.mxu0 0
      %647 = vmatpush2.bf16.msra.mxu0 0
      %648 = vmatprep.subr.bf16.mxu0 0
      %649 = vmatpush2.bf16.msra.mxu0 0
      %650 = vmatprep.subr.bf16.mxu0 0
      %651 = vmatpush2.bf16.msra.mxu0 0
      %652 = vmatprep.subr.bf16.mxu0 0
      %653 = vmatpush2.bf16.msra.mxu0 0
      %654 = vmatprep.mubr.bf16.mxu0 0
      %655 = vmatmul.mubr.bf16.gmra.mxu0 %v620
      %v656 = vpop.f32.mrf.mxu0
      %v657 = vadd.f32 %v605, %v656
      %v658 = vpop.f32.mrf.mxu0
      %v659 = vpop.f32.mrf.mxu0
      %v660 = vadd.f32 %v605, %v659
      %v661 = vpop.f32.mrf.mxu0
      %662 = vdwg.mxu0
      %v663 = vpack.c.bf16 %v657, %v657
      %v664 = vpack.c.bf16 %v660, %v660
      %666 = vrot.lane.b32.xlu0 %v663, 96
      %v667 = vpop.permute.xlu0 %666
      %vm668 = vcmask 64512
      %v670 = vsel %vm668, %v663, 0
      %v673 = vsel %vm668, %v667, 0
      %675 = vmatprep.subr.bf16.mxu0 0
      %676 = vmatpush1.bf16.xpose.msra.mxu0 0
      %677 = vmatprep.subr.bf16.mxu0 0
      %678 = vmatpush1.bf16.xpose.msra.mxu0 0
      %679 = vmatprep.subr.bf16.mxu0 0
      %680 = vmatpush1.bf16.xpose.msra.mxu0 0
      %681 = vmatprep.subr.bf16.mxu0 0
      %682 = vmatpush1.bf16.xpose.msra.mxu0 0
      %683 = vmatprep.subr.bf16.mxu0 0
      %684 = vmatpush1.bf16.xpose.msra.mxu0 0
      %685 = vmatprep.subr.bf16.mxu0 0
      %686 = vmatpush1.bf16.xpose.msra.mxu0 0
      %687 = vmatprep.subr.bf16.mxu0 0
      %688 = vmatpush1.bf16.xpose.msra.mxu0 0
      %689 = vmatprep.subr.bf16.mxu0 0
      %690 = vmatpush1.bf16.xpose.msra.mxu0 %v673
      %691 = vmatprep.subr.bf16.mxu0 0
      %692 = vmatpush2.bf16.xpose.msra.mxu0 0
      %693 = vmatprep.subr.bf16.mxu0 0
      %694 = vmatpush2.bf16.xpose.msra.mxu0 0
      %695 = vmatprep.subr.bf16.mxu0 0
      %696 = vmatpush2.bf16.xpose.msra.mxu0 0
      %697 = vmatprep.subr.bf16.mxu0 0
      %698 = vmatpush2.bf16.xpose.msra.mxu0 0
      %699 = vmatprep.subr.bf16.mxu0 0
      %700 = vmatpush2.bf16.xpose.msra.mxu0 0
      %701 = vmatprep.subr.bf16.mxu0 0
      %702 = vmatpush2.bf16.xpose.msra.mxu0 0
      %703 = vmatprep.subr.bf16.mxu0 0
      %704 = vmatpush2.bf16.xpose.msra.mxu0 0
      %705 = vmatprep.subr.bf16.mxu0 0
      %706 = vmatpush2.bf16.xpose.msra.mxu0 0
      %707 = vmatprep.mubr.bf16.mxu0 0
      %708 = vmatmul.mubr.bf16.gmra.mxu0 %v670
      %v709 = vpop.f32.mrf.mxu0
      %v710 = vadd.f32 0.0, %v709
      %v711 = vpop.f32.mrf.mxu0
      %v712 = vpop.f32.mrf.mxu0
      %v713 = vpop.f32.mrf.mxu0
      %714 = vdwg.mxu0
      %716 = vrot.lane.b32.xlu0 %v664, 96
      %v717 = vpop.permute.xlu0 %716
      %v719 = vsel %vm668, %v664, 0
      %v722 = vsel %vm668, %v717, 0
      %724 = vmatprep.subr.bf16.mxu0 0
      %725 = vmatpush1.bf16.xpose.msra.mxu0 0
      %726 = vmatprep.subr.bf16.mxu0 0
      %727 = vmatpush1.bf16.xpose.msra.mxu0 0
      %728 = vmatprep.subr.bf16.mxu0 0
      %729 = vmatpush1.bf16.xpose.msra.mxu0 0
      %730 = vmatprep.subr.bf16.mxu0 0
      %731 = vmatpush1.bf16.xpose.msra.mxu0 0
      %732 = vmatprep.subr.bf16.mxu0 0
      %733 = vmatpush1.bf16.xpose.msra.mxu0 0
      %734 = vmatprep.subr.bf16.mxu0 0
      %735 = vmatpush1.bf16.xpose.msra.mxu0 0
      %736 = vmatprep.subr.bf16.mxu0 0
      %737 = vmatpush1.bf16.xpose.msra.mxu0 0
      %738 = vmatprep.subr.bf16.mxu0 0
      %739 = vmatpush1.bf16.xpose.msra.mxu0 %v722
      %740 = vmatprep.subr.bf16.mxu0 0
      %741 = vmatpush2.bf16.xpose.msra.mxu0 0
      %742 = vmatprep.subr.bf16.mxu0 0
      %743 = vmatpush2.bf16.xpose.msra.mxu0 0
      %744 = vmatprep.subr.bf16.mxu0 0
      %745 = vmatpush2.bf16.xpose.msra.mxu0 0
      %746 = vmatprep.subr.bf16.mxu0 0
      %747 = vmatpush2.bf16.xpose.msra.mxu0 0
      %748 = vmatprep.subr.bf16.mxu0 0
      %749 = vmatpush2.bf16.xpose.msra.mxu0 0
      %750 = vmatprep.subr.bf16.mxu0 0
      %751 = vmatpush2.bf16.xpose.msra.mxu0 0
      %752 = vmatprep.subr.bf16.mxu0 0
      %753 = vmatpush2.bf16.xpose.msra.mxu0 0
      %754 = vmatprep.subr.bf16.mxu0 0
      %755 = vmatpush2.bf16.xpose.msra.mxu0 0
      %756 = vmatprep.mubr.bf16.mxu0 0
      %757 = vmatmul.mubr.bf16.gmra.mxu0 %v719
      %v758 = vpop.f32.mrf.mxu0
      %v759 = vadd.f32 0.0, %v758
      %v760 = vpop.f32.mrf.mxu0
      %v761 = vpop.f32.mrf.mxu0
      %v762 = vpop.f32.mrf.mxu0
      %763 = vdwg.mxu0
      %v764 = vmul.f32 %v710, 0.35355338
      %v765 = vmul.f32 %v759, 0.35355338
      %v766 = vsel %vm668, %v764, -inf
      %767 = vmax.xlane.f32.xlu0 %v766
      %v768 = vpop.xlane.xlu0 %767
      %v769 = vsel %vm668, %v765, -inf
      %770 = vmax.xlane.f32.xlu0 %v769
      %v771 = vpop.xlane.xlu0 %770
      %v772 = vsub.f32 %v764, %v768
      %v773 = vsub.f32 %v765, %v771
      %v774 = vmul.f32 %v772, 1.442695
      %v775 = vpow.pop %v774
      %v776 = vmul.f32 %v773, 1.442695
      %v777 = vpow.pop %v776
      %v778 = vsel %vm668, %v775, 0.0
      %779 = vadd.xlane.f32.xlu0 %v778
      %v780 = vpop.xlane.xlu0 %779
      %v781 = vsel %vm668, %v777, 0.0
      %782 = vadd.xlane.f32.xlu0 %v781
      %v783 = vpop.xlane.xlu0 %782
      %v784 = vrcp.pop %v780
      %v785 = vrcp.pop %v783
      %v786 = vmul.f32 %v775, %v784
      %v787 = vmul.f32 %v777, %v785
      %v788 = vpack.c.bf16 %v786, %v786
      %v789 = vpack.c.bf16 %v787, %v787
      %790 = vrot.lane.b32.xlu0 %v663, 64
      %v791 = vpop.permute.xlu0 %790
      %v793 = vsel %vm668, %v788, 0
      %vm795 = vcmask 1043456
      %v797 = vsel %vm795, %v791, 0
      %799 = vmatprep.subr.bf16.mxu0 0
      %800 = vmatpush1.bf16.msra.mxu0 0
      %801 = vmatprep.subr.bf16.mxu0 0
      %802 = vmatpush1.bf16.msra.mxu0 0
      %803 = vmatprep.subr.bf16.mxu0 0
      %804 = vmatpush1.bf16.msra.mxu0 0
      %805 = vmatprep.subr.bf16.mxu0 0
      %806 = vmatpush1.bf16.msra.mxu0 0
      %807 = vmatprep.subr.bf16.mxu0 0
      %808 = vmatpush1.bf16.msra.mxu0 0
      %809 = vmatprep.subr.bf16.mxu0 0
      %810 = vmatpush1.bf16.msra.mxu0 0
      %811 = vmatprep.subr.bf16.mxu0 0
      %812 = vmatpush1.bf16.msra.mxu0 0
      %813 = vmatprep.subr.bf16.mxu0 0
      %814 = vmatpush1.bf16.msra.mxu0 %v797
      %815 = vmatprep.subr.bf16.mxu0 0
      %816 = vmatpush2.bf16.msra.mxu0 0
      %817 = vmatprep.subr.bf16.mxu0 0
      %818 = vmatpush2.bf16.msra.mxu0 0
      %819 = vmatprep.subr.bf16.mxu0 0
      %820 = vmatpush2.bf16.msra.mxu0 0
      %821 = vmatprep.subr.bf16.mxu0 0
      %822 = vmatpush2.bf16.msra.mxu0 0
      %823 = vmatprep.subr.bf16.mxu0 0
      %824 = vmatpush2.bf16.msra.mxu0 0
      %825 = vmatprep.subr.bf16.mxu0 0
      %826 = vmatpush2.bf16.msra.mxu0 0
      %827 = vmatprep.subr.bf16.mxu0 0
      %828 = vmatpush2.bf16.msra.mxu0 0
      %829 = vmatprep.subr.bf16.mxu0 0
      %830 = vmatpush2.bf16.msra.mxu0 0
      %831 = vmatprep.mubr.bf16.mxu0 0
      %832 = vmatmul.mubr.bf16.gmra.mxu0 %v793
      %v833 = vpop.f32.mrf.mxu0
      %v834 = vadd.f32 0.0, %v833
      %v835 = vpop.f32.mrf.mxu0
      %v836 = vpop.f32.mrf.mxu0
      %v837 = vpop.f32.mrf.mxu0
      %838 = vdwg.mxu0
      %839 = vrot.lane.b32.xlu0 %v664, 64
      %v840 = vpop.permute.xlu0 %839
      %v842 = vsel %vm668, %v789, 0
      %v845 = vsel %vm795, %v840, 0
      %847 = vmatprep.subr.bf16.mxu0 0
      %848 = vmatpush1.bf16.msra.mxu0 0
      %849 = vmatprep.subr.bf16.mxu0 0
      %850 = vmatpush1.bf16.msra.mxu0 0
      %851 = vmatprep.subr.bf16.mxu0 0
      %852 = vmatpush1.bf16.msra.mxu0 0
      %853 = vmatprep.subr.bf16.mxu0 0
      %854 = vmatpush1.bf16.msra.mxu0 0
      %855 = vmatprep.subr.bf16.mxu0 0
      %856 = vmatpush1.bf16.msra.mxu0 0
      %857 = vmatprep.subr.bf16.mxu0 0
      %858 = vmatpush1.bf16.msra.mxu0 0
      %859 = vmatprep.subr.bf16.mxu0 0
      %860 = vmatpush1.bf16.msra.mxu0 0
      %861 = vmatprep.subr.bf16.mxu0 0
      %862 = vmatpush1.bf16.msra.mxu0 %v845
      %863 = vmatprep.subr.bf16.mxu0 0
      %864 = vmatpush2.bf16.msra.mxu0 0
      %865 = vmatprep.subr.bf16.mxu0 0
      %866 = vmatpush2.bf16.msra.mxu0 0
      %867 = vmatprep.subr.bf16.mxu0 0
      %868 = vmatpush2.bf16.msra.mxu0 0
      %869 = vmatprep.subr.bf16.mxu0 0
      %870 = vmatpush2.bf16.msra.mxu0 0
      %871 = vmatprep.subr.bf16.mxu0 0
      %872 = vmatpush2.bf16.msra.mxu0 0
      %873 = vmatprep.subr.bf16.mxu0 0
      %874 = vmatpush2.bf16.msra.mxu0 0
      %875 = vmatprep.subr.bf16.mxu0 0
      %876 = vmatpush2.bf16.msra.mxu0 0
      %877 = vmatprep.subr.bf16.mxu0 0
      %878 = vmatpush2.bf16.msra.mxu0 0
      %879 = vmatprep.mubr.bf16.mxu0 0
      %880 = vmatmul.mubr.bf16.gmra.mxu0 %v842
      %v881 = vpop.f32.mrf.mxu0
      %v882 = vadd.f32 0.0, %v881
      %v883 = vpop.f32.mrf.mxu0
      %v884 = vpop.f32.mrf.mxu0
      %v885 = vpop.f32.mrf.mxu0
      %886 = vdwg.mxu0
      %v887 = vpack.c.bf16 %v882, %v834
      %v888 = vld [vmem:[%s461] sm:$0xf]
      %889 = vrot.lane.b32.xlu0 %v663, 120
      %v890 = vpop.permute.xlu0 %889
      %891 = vrot.lane.b32.xlu0 %v663, 88
      %v892 = vpop.permute.xlu0 %891
      %v894 = vsel %vm668, %v890, 0
      %v897 = vsel %vm668, %v892, 0
      %899 = vmatprep.subr.bf16.mxu0 0
      %900 = vmatpush1.bf16.xpose.msra.mxu0 0
      %901 = vmatprep.subr.bf16.mxu0 0
      %902 = vmatpush1.bf16.xpose.msra.mxu0 0
      %903 = vmatprep.subr.bf16.mxu0 0
      %904 = vmatpush1.bf16.xpose.msra.mxu0 0
      %905 = vmatprep.subr.bf16.mxu0 0
      %906 = vmatpush1.bf16.xpose.msra.mxu0 0
      %907 = vmatprep.subr.bf16.mxu0 0
      %908 = vmatpush1.bf16.xpose.msra.mxu0 0
      %909 = vmatprep.subr.bf16.mxu0 0
      %910 = vmatpush1.bf16.xpose.msra.mxu0 0
      %911 = vmatprep.subr.bf16.mxu0 0
      %912 = vmatpush1.bf16.xpose.msra.mxu0 0
      %913 = vmatprep.subr.bf16.mxu0 0
      %914 = vmatpush1.bf16.xpose.msra.mxu0 %v897
      %915 = vmatprep.subr.bf16.mxu0 0
      %916 = vmatpush2.bf16.xpose.msra.mxu0 0
      %917 = vmatprep.subr.bf16.mxu0 0
      %918 = vmatpush2.bf16.xpose.msra.mxu0 0
      %919 = vmatprep.subr.bf16.mxu0 0
      %920 = vmatpush2.bf16.xpose.msra.mxu0 0
      %921 = vmatprep.subr.bf16.mxu0 0
      %922 = vmatpush2.bf16.xpose.msra.mxu0 0
      %923 = vmatprep.subr.bf16.mxu0 0
      %924 = vmatpush2.bf16.xpose.msra.mxu0 0
      %925 = vmatprep.subr.bf16.mxu0 0
      %926 = vmatpush2.bf16.xpose.msra.mxu0 0
      %927 = vmatprep.subr.bf16.mxu0 0
      %928 = vmatpush2.bf16.xpose.msra.mxu0 0
      %929 = vmatprep.subr.bf16.mxu0 0
      %930 = vmatpush2.bf16.xpose.msra.mxu0 0
      %931 = vmatprep.mubr.bf16.mxu0 0
      %932 = vmatmul.mubr.bf16.gmra.mxu0 %v894
      %v933 = vpop.f32.mrf.mxu0
      %v934 = vadd.f32 0.0, %v933
      %v935 = vpop.f32.mrf.mxu0
      %v936 = vpop.f32.mrf.mxu0
      %v937 = vpop.f32.mrf.mxu0
      %938 = vdwg.mxu0
      %939 = vrot.lane.b32.xlu0 %v664, 120
      %v940 = vpop.permute.xlu0 %939
      %941 = vrot.lane.b32.xlu0 %v664, 88
      %v942 = vpop.permute.xlu0 %941
      %v944 = vsel %vm668, %v940, 0
      %v947 = vsel %vm668, %v942, 0
      %949 = vmatprep.subr.bf16.mxu0 0
      %950 = vmatpush1.bf16.xpose.msra.mxu0 0
      %951 = vmatprep.subr.bf16.mxu0 0
      %952 = vmatpush1.bf16.xpose.msra.mxu0 0
      %953 = vmatprep.subr.bf16.mxu0 0
      %954 = vmatpush1.bf16.xpose.msra.mxu0 0
      %955 = vmatprep.subr.bf16.mxu0 0
      %956 = vmatpush1.bf16.xpose.msra.mxu0 0
      %957 = vmatprep.subr.bf16.mxu0 0
      %958 = vmatpush1.bf16.xpose.msra.mxu0 0
      %959 = vmatprep.subr.bf16.mxu0 0
      %960 = vmatpush1.bf16.xpose.msra.mxu0 0
      %961 = vmatprep.subr.bf16.mxu0 0
      %962 = vmatpush1.bf16.xpose.msra.mxu0 0
      %963 = vmatprep.subr.bf16.mxu0 0
      %964 = vmatpush1.bf16.xpose.msra.mxu0 %v947
      %965 = vmatprep.subr.bf16.mxu0 0
      %966 = vmatpush2.bf16.xpose.msra.mxu0 0
      %967 = vmatprep.subr.bf16.mxu0 0
      %968 = vmatpush2.bf16.xpose.msra.mxu0 0
      %969 = vmatprep.subr.bf16.mxu0 0
      %970 = vmatpush2.bf16.xpose.msra.mxu0 0
      %971 = vmatprep.subr.bf16.mxu0 0
      %972 = vmatpush2.bf16.xpose.msra.mxu0 0
      %973 = vmatprep.subr.bf16.mxu0 0
      %974 = vmatpush2.bf16.xpose.msra.mxu0 0
      %975 = vmatprep.subr.bf16.mxu0 0
      %976 = vmatpush2.bf16.xpose.msra.mxu0 0
      %977 = vmatprep.subr.bf16.mxu0 0
      %978 = vmatpush2.bf16.xpose.msra.mxu0 0
      %979 = vmatprep.subr.bf16.mxu0 0
      %980 = vmatpush2.bf16.xpose.msra.mxu0 0
      %981 = vmatprep.mubr.bf16.mxu0 0
      %982 = vmatmul.mubr.bf16.gmra.mxu0 %v944
      %v983 = vpop.f32.mrf.mxu0
      %v984 = vadd.f32 0.0, %v983
      %v985 = vpop.f32.mrf.mxu0
      %v986 = vpop.f32.mrf.mxu0
      %v987 = vpop.f32.mrf.mxu0
      %988 = vdwg.mxu0
      %v989 = vmul.f32 %v934, 0.35355338
      %v990 = vmul.f32 %v984, 0.35355338
      %v991 = vsel %vm668, %v989, -inf
      %992 = vmax.xlane.f32.xlu0 %v991
      %v993 = vpop.xlane.xlu0 %992
      %v994 = vsel %vm668, %v990, -inf
      %995 = vmax.xlane.f32.xlu0 %v994
      %v996 = vpop.xlane.xlu0 %995
      %v997 = vsub.f32 %v989, %v993
      %v998 = vsub.f32 %v990, %v996
      %v999 = vmul.f32 %v997, 1.442695
      %v1000 = vpow.pop %v999
      %v1001 = vmul.f32 %v998, 1.442695
      %v1002 = vpow.pop %v1001
      %v1003 = vsel %vm668, %v1000, 0.0
      %1004 = vadd.xlane.f32.xlu0 %v1003
      %v1005 = vpop.xlane.xlu0 %1004
      %v1006 = vsel %vm668, %v1002, 0.0
      %1007 = vadd.xlane.f32.xlu0 %v1006
      %v1008 = vpop.xlane.xlu0 %1007
      %v1009 = vrcp.pop %v1005
      %v1010 = vrcp.pop %v1008
      %v1011 = vmul.f32 %v1000, %v1009
      %v1012 = vmul.f32 %v1002, %v1010
      %v1013 = vpack.c.bf16 %v1011, %v1011
      %v1014 = vpack.c.bf16 %v1012, %v1012
      %1015 = vrot.lane.b32.xlu0 %v663, 56
      %v1016 = vpop.permute.xlu0 %1015
      %v1018 = vsel %vm668, %v1013, 0
      %v1021 = vsel %vm795, %v1016, 0
      %1023 = vmatprep.subr.bf16.mxu0 0
      %1024 = vmatpush1.bf16.msra.mxu0 0
      %1025 = vmatprep.subr.bf16.mxu0 0
      %1026 = vmatpush1.bf16.msra.mxu0 0
      %1027 = vmatprep.subr.bf16.mxu0 0
      %1028 = vmatpush1.bf16.msra.mxu0 0
      %1029 = vmatprep.subr.bf16.mxu0 0
      %1030 = vmatpush1.bf16.msra.mxu0 0
      %1031 = vmatprep.subr.bf16.mxu0 0
      %1032 = vmatpush1.bf16.msra.mxu0 0
      %1033 = vmatprep.subr.bf16.mxu0 0
      %1034 = vmatpush1.bf16.msra.mxu0 0
      %1035 = vmatprep.subr.bf16.mxu0 0
      %1036 = vmatpush1.bf16.msra.mxu0 0
      %1037 = vmatprep.subr.bf16.mxu0 0
      %1038 = vmatpush1.bf16.msra.mxu0 %v1021
      %1039 = vmatprep.subr.bf16.mxu0 0
      %1040 = vmatpush2.bf16.msra.mxu0 0
      %1041 = vmatprep.subr.bf16.mxu0 0
      %1042 = vmatpush2.bf16.msra.mxu0 0
      %1043 = vmatprep.subr.bf16.mxu0 0
      %1044 = vmatpush2.bf16.msra.mxu0 0
      %1045 = vmatprep.subr.bf16.mxu0 0
      %1046 = vmatpush2.bf16.msra.mxu0 0
      %1047 = vmatprep.subr.bf16.mxu0 0
      %1048 = vmatpush2.bf16.msra.mxu0 0
      %1049 = vmatprep.subr.bf16.mxu0 0
      %1050 = vmatpush2.bf16.msra.mxu0 0
      %1051 = vmatprep.subr.bf16.mxu0 0
      %1052 = vmatpush2.bf16.msra.mxu0 0
      %1053 = vmatprep.subr.bf16.mxu0 0
      %1054 = vmatpush2.bf16.msra.mxu0 0
      %1055 = vmatprep.mubr.bf16.mxu0 0
      %1056 = vmatmul.mubr.bf16.gmra.mxu0 %v1018
      %v1057 = vpop.f32.mrf.mxu0
      %v1058 = vadd.f32 0.0, %v1057
      %v1059 = vpop.f32.mrf.mxu0
      %v1060 = vpop.f32.mrf.mxu0
      %v1061 = vpop.f32.mrf.mxu0
      %1062 = vdwg.mxu0
      %1063 = vrot.lane.b32.xlu0 %v664, 56
      %v1064 = vpop.permute.xlu0 %1063
      %v1066 = vsel %vm668, %v1014, 0
      %v1069 = vsel %vm795, %v1064, 0
      %1071 = vmatprep.subr.bf16.mxu0 0
      %1072 = vmatpush1.bf16.msra.mxu0 0
      %1073 = vmatprep.subr.bf16.mxu0 0
      %1074 = vmatpush1.bf16.msra.mxu0 0
      %1075 = vmatprep.subr.bf16.mxu0 0
      %1076 = vmatpush1.bf16.msra.mxu0 0
      %1077 = vmatprep.subr.bf16.mxu0 0
      %1078 = vmatpush1.bf16.msra.mxu0 0
      %1079 = vmatprep.subr.bf16.mxu0 0
      %1080 = vmatpush1.bf16.msra.mxu0 0
      %1081 = vmatprep.subr.bf16.mxu0 0
      %1082 = vmatpush1.bf16.msra.mxu0 0
      %1083 = vmatprep.subr.bf16.mxu0 0
      %1084 = vmatpush1.bf16.msra.mxu0 0
      %1085 = vmatprep.subr.bf16.mxu0 0
      %1086 = vmatpush1.bf16.msra.mxu0 %v1069
      %1087 = vmatprep.subr.bf16.mxu0 0
      %1088 = vmatpush2.bf16.msra.mxu0 0
      %1089 = vmatprep.subr.bf16.mxu0 0
      %1090 = vmatpush2.bf16.msra.mxu0 0
      %1091 = vmatprep.subr.bf16.mxu0 0
      %1092 = vmatpush2.bf16.msra.mxu0 0
      %1093 = vmatprep.subr.bf16.mxu0 0
      %1094 = vmatpush2.bf16.msra.mxu0 0
      %1095 = vmatprep.subr.bf16.mxu0 0
      %1096 = vmatpush2.bf16.msra.mxu0 0
      %1097 = vmatprep.subr.bf16.mxu0 0
      %1098 = vmatpush2.bf16.msra.mxu0 0
      %1099 = vmatprep.subr.bf16.mxu0 0
      %1100 = vmatpush2.bf16.msra.mxu0 0
      %1101 = vmatprep.subr.bf16.mxu0 0
      %1102 = vmatpush2.bf16.msra.mxu0 0
      %1103 = vmatprep.mubr.bf16.mxu0 0
      %1104 = vmatmul.mubr.bf16.gmra.mxu0 %v1066
      %v1105 = vpop.f32.mrf.mxu0
      %v1106 = vadd.f32 0.0, %v1105
      %v1107 = vpop.f32.mrf.mxu0
      %v1108 = vpop.f32.mrf.mxu0
      %v1109 = vpop.f32.mrf.mxu0
      %1110 = vdwg.mxu0
      %v1111 = vpack.c.bf16 %v1106, %v1058
      %v1112 = vld [vmem:[%s461 + $0x4] sm:$0xf]
      %v1114 = vsel %vm668, %v1111, 0
      %v1117 = vsel %vm795, %v1112, 0
      %1119 = vmatprep.subr.bf16.mxu0 0
      %1120 = vmatpush1.bf16.msra.mxu0 0
      %1121 = vmatprep.subr.bf16.mxu0 0
      %1122 = vmatpush1.bf16.msra.mxu0 0
      %1123 = vmatprep.subr.bf16.mxu0 0
      %1124 = vmatpush1.bf16.msra.mxu0 0
      %1125 = vmatprep.subr.bf16.mxu0 0
      %1126 = vmatpush1.bf16.msra.mxu0 0
      %1127 = vmatprep.subr.bf16.mxu0 0
      %1128 = vmatpush1.bf16.msra.mxu0 0
      %1129 = vmatprep.subr.bf16.mxu0 0
      %1130 = vmatpush1.bf16.msra.mxu0 0
      %1131 = vmatprep.subr.bf16.mxu0 0
      %1132 = vmatpush1.bf16.msra.mxu0 0
      %1133 = vmatprep.subr.bf16.mxu0 0
      %1134 = vmatpush1.bf16.msra.mxu0 %v1117
      %1135 = vmatprep.subr.bf16.mxu0 0
      %1136 = vmatpush2.bf16.msra.mxu0 0
      %1137 = vmatprep.subr.bf16.mxu0 0
      %1138 = vmatpush2.bf16.msra.mxu0 0
      %1139 = vmatprep.subr.bf16.mxu0 0
      %1140 = vmatpush2.bf16.msra.mxu0 0
      %1141 = vmatprep.subr.bf16.mxu0 0
      %1142 = vmatpush2.bf16.msra.mxu0 0
      %1143 = vmatprep.subr.bf16.mxu0 0
      %1144 = vmatpush2.bf16.msra.mxu0 0
      %1145 = vmatprep.subr.bf16.mxu0 0
      %1146 = vmatpush2.bf16.msra.mxu0 0
      %1147 = vmatprep.subr.bf16.mxu0 0
      %1148 = vmatpush2.bf16.msra.mxu0 0
      %1149 = vmatprep.subr.bf16.mxu0 0
      %1150 = vmatpush2.bf16.msra.mxu0 0
      %1151 = vmatprep.mubr.bf16.mxu0 0
      %1152 = vmatmul.mubr.bf16.gmra.mxu0 %v1114
      %v1153 = vpop.f32.mrf.mxu0
      %v1154 = vadd.f32 0.0, %v1153
      %v1155 = vpop.f32.mrf.mxu0
      %v1156 = vpop.f32.mrf.mxu0
      %v1157 = vadd.f32 0.0, %v1156
      %v1158 = vpop.f32.mrf.mxu0
      %1159 = vdwg.mxu0
      %v1161 = vsel %vm668, %v887, 0
      %v1164 = vsel %vm795, %v888, 0
      %1166 = vmatprep.subr.bf16.mxu0 0
      %1167 = vmatpush1.bf16.msra.mxu0 0
      %1168 = vmatprep.subr.bf16.mxu0 0
      %1169 = vmatpush1.bf16.msra.mxu0 0
      %1170 = vmatprep.subr.bf16.mxu0 0
      %1171 = vmatpush1.bf16.msra.mxu0 0
      %1172 = vmatprep.subr.bf16.mxu0 0
      %1173 = vmatpush1.bf16.msra.mxu0 0
      %1174 = vmatprep.subr.bf16.mxu0 0
      %1175 = vmatpush1.bf16.msra.mxu0 0
      %1176 = vmatprep.subr.bf16.mxu0 0
      %1177 = vmatpush1.bf16.msra.mxu0 0
      %1178 = vmatprep.subr.bf16.mxu0 0
      %1179 = vmatpush1.bf16.msra.mxu0 0
      %1180 = vmatprep.subr.bf16.mxu0 0
      %1181 = vmatpush1.bf16.msra.mxu0 %v1164
      %1182 = vmatprep.subr.bf16.mxu0 0
      %1183 = vmatpush2.bf16.msra.mxu0 0
      %1184 = vmatprep.subr.bf16.mxu0 0
      %1185 = vmatpush2.bf16.msra.mxu0 0
      %1186 = vmatprep.subr.bf16.mxu0 0
      %1187 = vmatpush2.bf16.msra.mxu0 0
      %1188 = vmatprep.subr.bf16.mxu0 0
      %1189 = vmatpush2.bf16.msra.mxu0 0
      %1190 = vmatprep.subr.bf16.mxu0 0
      %1191 = vmatpush2.bf16.msra.mxu0 0
      %1192 = vmatprep.subr.bf16.mxu0 0
      %1193 = vmatpush2.bf16.msra.mxu0 0
      %1194 = vmatprep.subr.bf16.mxu0 0
      %1195 = vmatpush2.bf16.msra.mxu0 0
      %1196 = vmatprep.subr.bf16.mxu0 0
      %1197 = vmatpush2.bf16.msra.mxu0 0
      %1198 = vmatprep.mubr.bf16.mxu0 0
      %1199 = vmatmul.mubr.bf16.gmra.mxu0 %v1161
      %v1200 = vpop.f32.mrf.mxu0
      %v1201 = vadd.f32 %v1154, %v1200
      %v1202 = vpop.f32.mrf.mxu0
      %v1203 = vpop.f32.mrf.mxu0
      %v1204 = vadd.f32 %v1157, %v1203
      %v1205 = vpop.f32.mrf.mxu0
      %1206 = vdwg.mxu0
      %1207 = vrot.lane.b32.xlu0 %v663, 112
      %v1208 = vpop.permute.xlu0 %1207
      %1209 = vrot.lane.b32.xlu0 %v663, 80
      %v1210 = vpop.permute.xlu0 %1209
      %v1212 = vsel %vm668, %v1208, 0
      %v1215 = vsel %vm668, %v1210, 0
      %1217 = vmatprep.subr.bf16.mxu0 0
      %1218 = vmatpush1.bf16.xpose.msra.mxu0 0
      %1219 = vmatprep.subr.bf16.mxu0 0
      %1220 = vmatpush1.bf16.xpose.msra.mxu0 0
      %1221 = vmatprep.subr.bf16.mxu0 0
      %1222 = vmatpush1.bf16.xpose.msra.mxu0 0
      %1223 = vmatprep.subr.bf16.mxu0 0
      %1224 = vmatpush1.bf16.xpose.msra.mxu0 0
      %1225 = vmatprep.subr.bf16.mxu0 0
      %1226 = vmatpush1.bf16.xpose.msra.mxu0 0
      %1227 = vmatprep.subr.bf16.mxu0 0
      %1228 = vmatpush1.bf16.xpose.msra.mxu0 0
      %1229 = vmatprep.subr.bf16.mxu0 0
      %1230 = vmatpush1.bf16.xpose.msra.mxu0 0
      %1231 = vmatprep.subr.bf16.mxu0 0
      %1232 = vmatpush1.bf16.xpose.msra.mxu0 %v1215
      %1233 = vmatprep.subr.bf16.mxu0 0
      %1234 = vmatpush2.bf16.xpose.msra.mxu0 0
      %1235 = vmatprep.subr.bf16.mxu0 0
      %1236 = vmatpush2.bf16.xpose.msra.mxu0 0
      %1237 = vmatprep.subr.bf16.mxu0 0
      %1238 = vmatpush2.bf16.xpose.msra.mxu0 0
      %1239 = vmatprep.subr.bf16.mxu0 0
      %1240 = vmatpush2.bf16.xpose.msra.mxu0 0
      %1241 = vmatprep.subr.bf16.mxu0 0
      %1242 = vmatpush2.bf16.xpose.msra.mxu0 0
      %1243 = vmatprep.subr.bf16.mxu0 0
      %1244 = vmatpush2.bf16.xpose.msra.mxu0 0
      %1245 = vmatprep.subr.bf16.mxu0 0
      %1246 = vmatpush2.bf16.xpose.msra.mxu0 0
      %1247 = vmatprep.subr.bf16.mxu0 0
      %1248 = vmatpush2.bf16.xpose.msra.mxu0 0
      %1249 = vmatprep.mubr.bf16.mxu0 0
      %1250 = vmatmul.mubr.bf16.gmra.mxu0 %v1212
      %v1251 = vpop.f32.mrf.mxu0
      %v1252 = vadd.f32 0.0, %v1251
      %v1253 = vpop.f32.mrf.mxu0
      %v1254 = vpop.f32.mrf.mxu0
      %v1255 = vpop.f32.mrf.mxu0
      %1256 = vdwg.mxu0
      %1257 = vrot.lane.b32.xlu0 %v664, 112
      %v1258 = vpop.permute.xlu0 %1257
      %1259 = vrot.lane.b32.xlu0 %v664, 80
      %v1260 = vpop.permute.xlu0 %1259
      %v1262 = vsel %vm668, %v1258, 0
      %v1265 = vsel %vm668, %v1260, 0
      %1267 = vmatprep.subr.bf16.mxu0 0
      %1268 = vmatpush1.bf16.xpose.msra.mxu0 0
      %1269 = vmatprep.subr.bf16.mxu0 0
      %1270 = vmatpush1.bf16.xpose.msra.mxu0 0
      %1271 = vmatprep.subr.bf16.mxu0 0
      %1272 = vmatpush1.bf16.xpose.msra.mxu0 0
      %1273 = vmatprep.subr.bf16.mxu0 0
      %1274 = vmatpush1.bf16.xpose.msra.mxu0 0
      %1275 = vmatprep.subr.bf16.mxu0 0
      %1276 = vmatpush1.bf16.xpose.msra.mxu0 0
      %1277 = vmatprep.subr.bf16.mxu0 0
      %1278 = vmatpush1.bf16.xpose.msra.mxu0 0
      %1279 = vmatprep.subr.bf16.mxu0 0
      %1280 = vmatpush1.bf16.xpose.msra.mxu0 0
      %1281 = vmatprep.subr.bf16.mxu0 0
      %1282 = vmatpush1.bf16.xpose.msra.mxu0 %v1265
      %1283 = vmatprep.subr.bf16.mxu0 0
      %1284 = vmatpush2.bf16.xpose.msra.mxu0 0
      %1285 = vmatprep.subr.bf16.mxu0 0
      %1286 = vmatpush2.bf16.xpose.msra.mxu0 0
      %1287 = vmatprep.subr.bf16.mxu0 0
      %1288 = vmatpush2.bf16.xpose.msra.mxu0 0
      %1289 = vmatprep.subr.bf16.mxu0 0
      %1290 = vmatpush2.bf16.xpose.msra.mxu0 0
      %1291 = vmatprep.subr.bf16.mxu0 0
      %1292 = vmatpush2.bf16.xpose.msra.mxu0 0
      %1293 = vmatprep.subr.bf16.mxu0 0
      %1294 = vmatpush2.bf16.xpose.msra.mxu0 0
      %1295 = vmatprep.subr.bf16.mxu0 0
      %1296 = vmatpush2.bf16.xpose.msra.mxu0 0
      %1297 = vmatprep.subr.bf16.mxu0 0
      %1298 = vmatpush2.bf16.xpose.msra.mxu0 0
      %1299 = vmatprep.mubr.bf16.mxu0 0
      %1300 = vmatmul.mubr.bf16.gmra.mxu0 %v1262
      %v1301 = vpop.f32.mrf.mxu0
      %v1302 = vadd.f32 0.0, %v1301
      %v1303 = vpop.f32.mrf.mxu0
      %v1304 = vpop.f32.mrf.mxu0
      %v1305 = vpop.f32.mrf.mxu0
      %1306 = vdwg.mxu0
      %v1307 = vmul.f32 %v1252, 0.35355338
      %v1308 = vmul.f32 %v1302, 0.35355338
      %v1309 = vsel %vm668, %v1307, -inf
      %1310 = vmax.xlane.f32.xlu0 %v1309
      %v1311 = vpop.xlane.xlu0 %1310
      %v1312 = vsel %vm668, %v1308, -inf
      %1313 = vmax.xlane.f32.xlu0 %v1312
      %v1314 = vpop.xlane.xlu0 %1313
      %v1315 = vsub.f32 %v1307, %v1311
      %v1316 = vsub.f32 %v1308, %v1314
      %v1317 = vmul.f32 %v1315, 1.442695
      %v1318 = vpow.pop %v1317
      %v1319 = vmul.f32 %v1316, 1.442695
      %v1320 = vpow.pop %v1319
      %v1321 = vsel %vm668, %v1318, 0.0
      %1322 = vadd.xlane.f32.xlu0 %v1321
      %v1323 = vpop.xlane.xlu0 %1322
      %v1324 = vsel %vm668, %v1320, 0.0
      %1325 = vadd.xlane.f32.xlu0 %v1324
      %v1326 = vpop.xlane.xlu0 %1325
      %v1327 = vrcp.pop %v1323
      %v1328 = vrcp.pop %v1326
      %v1329 = vmul.f32 %v1318, %v1327
      %v1330 = vmul.f32 %v1320, %v1328
      %v1331 = vpack.c.bf16 %v1329, %v1329
      %v1332 = vpack.c.bf16 %v1330, %v1330
      %1333 = vrot.lane.b32.xlu0 %v663, 48
      %v1334 = vpop.permute.xlu0 %1333
      %v1336 = vsel %vm668, %v1331, 0
      %v1339 = vsel %vm795, %v1334, 0
      %1341 = vmatprep.subr.bf16.mxu0 0
      %1342 = vmatpush1.bf16.msra.mxu0 0
      %1343 = vmatprep.subr.bf16.mxu0 0
      %1344 = vmatpush1.bf16.msra.mxu0 0
      %1345 = vmatprep.subr.bf16.mxu0 0
      %1346 = vmatpush1.bf16.msra.mxu0 0
      %1347 = vmatprep.subr.bf16.mxu0 0
      %1348 = vmatpush1.bf16.msra.mxu0 0
      %1349 = vmatprep.subr.bf16.mxu0 0
      %1350 = vmatpush1.bf16.msra.mxu0 0
      %1351 = vmatprep.subr.bf16.mxu0 0
      %1352 = vmatpush1.bf16.msra.mxu0 0
      %1353 = vmatprep.subr.bf16.mxu0 0
      %1354 = vmatpush1.bf16.msra.mxu0 0
      %1355 = vmatprep.subr.bf16.mxu0 0
      %1356 = vmatpush1.bf16.msra.mxu0 %v1339
      %1357 = vmatprep.subr.bf16.mxu0 0
      %1358 = vmatpush2.bf16.msra.mxu0 0
      %1359 = vmatprep.subr.bf16.mxu0 0
      %1360 = vmatpush2.bf16.msra.mxu0 0
      %1361 = vmatprep.subr.bf16.mxu0 0
      %1362 = vmatpush2.bf16.msra.mxu0 0
      %1363 = vmatprep.subr.bf16.mxu0 0
      %1364 = vmatpush2.bf16.msra.mxu0 0
      %1365 = vmatprep.subr.bf16.mxu0 0
      %1366 = vmatpush2.bf16.msra.mxu0 0
      %1367 = vmatprep.subr.bf16.mxu0 0
      %1368 = vmatpush2.bf16.msra.mxu0 0
      %1369 = vmatprep.subr.bf16.mxu0 0
      %1370 = vmatpush2.bf16.msra.mxu0 0
      %1371 = vmatprep.subr.bf16.mxu0 0
      %1372 = vmatpush2.bf16.msra.mxu0 0
      %1373 = vmatprep.mubr.bf16.mxu0 0
      %1374 = vmatmul.mubr.bf16.gmra.mxu0 %v1336
      %v1375 = vpop.f32.mrf.mxu0
      %v1376 = vadd.f32 0.0, %v1375
      %v1377 = vpop.f32.mrf.mxu0
      %v1378 = vpop.f32.mrf.mxu0
      %v1379 = vpop.f32.mrf.mxu0
      %1380 = vdwg.mxu0
      %1381 = vrot.lane.b32.xlu0 %v664, 48
      %v1382 = vpop.permute.xlu0 %1381
      %v1384 = vsel %vm668, %v1332, 0
      %v1387 = vsel %vm795, %v1382, 0
      %1389 = vmatprep.subr.bf16.mxu0 0
      %1390 = vmatpush1.bf16.msra.mxu0 0
      %1391 = vmatprep.subr.bf16.mxu0 0
      %1392 = vmatpush1.bf16.msra.mxu0 0
      %1393 = vmatprep.subr.bf16.mxu0 0
      %1394 = vmatpush1.bf16.msra.mxu0 0
      %1395 = vmatprep.subr.bf16.mxu0 0
      %1396 = vmatpush1.bf16.msra.mxu0 0
      %1397 = vmatprep.subr.bf16.mxu0 0
      %1398 = vmatpush1.bf16.msra.mxu0 0
      %1399 = vmatprep.subr.bf16.mxu0 0
      %1400 = vmatpush1.bf16.msra.mxu0 0
      %1401 = vmatprep.subr.bf16.mxu0 0
      %1402 = vmatpush1.bf16.msra.mxu0 0
      %1403 = vmatprep.subr.bf16.mxu0 0
      %1404 = vmatpush1.bf16.msra.mxu0 %v1387
      %1405 = vmatprep.subr.bf16.mxu0 0
      %1406 = vmatpush2.bf16.msra.mxu0 0
      %1407 = vmatprep.subr.bf16.mxu0 0
      %1408 = vmatpush2.bf16.msra.mxu0 0
      %1409 = vmatprep.subr.bf16.mxu0 0
      %1410 = vmatpush2.bf16.msra.mxu0 0
      %1411 = vmatprep.subr.bf16.mxu0 0
      %1412 = vmatpush2.bf16.msra.mxu0 0
      %1413 = vmatprep.subr.bf16.mxu0 0
      %1414 = vmatpush2.bf16.msra.mxu0 0
      %1415 = vmatprep.subr.bf16.mxu0 0
      %1416 = vmatpush2.bf16.msra.mxu0 0
      %1417 = vmatprep.subr.bf16.mxu0 0
      %1418 = vmatpush2.bf16.msra.mxu0 0
      %1419 = vmatprep.subr.bf16.mxu0 0
      %1420 = vmatpush2.bf16.msra.mxu0 0
      %1421 = vmatprep.mubr.bf16.mxu0 0
      %1422 = vmatmul.mubr.bf16.gmra.mxu0 %v1384
      %v1423 = vpop.f32.mrf.mxu0
      %v1424 = vadd.f32 0.0, %v1423
      %v1425 = vpop.f32.mrf.mxu0
      %v1426 = vpop.f32.mrf.mxu0
      %v1427 = vpop.f32.mrf.mxu0
      %1428 = vdwg.mxu0
      %v1429 = vpack.c.bf16 %v1424, %v1376
      %v1430 = vld [vmem:[%s461 + $0x8] sm:$0xf]
      %v1432 = vsel %vm668, %v1429, 0
      %v1435 = vsel %vm795, %v1430, 0
      %1437 = vmatprep.subr.bf16.mxu0 0
      %1438 = vmatpush1.bf16.msra.mxu0 0
      %1439 = vmatprep.subr.bf16.mxu0 0
      %1440 = vmatpush1.bf16.msra.mxu0 0
      %1441 = vmatprep.subr.bf16.mxu0 0
      %1442 = vmatpush1.bf16.msra.mxu0 0
      %1443 = vmatprep.subr.bf16.mxu0 0
      %1444 = vmatpush1.bf16.msra.mxu0 0
      %1445 = vmatprep.subr.bf16.mxu0 0
      %1446 = vmatpush1.bf16.msra.mxu0 0
      %1447 = vmatprep.subr.bf16.mxu0 0
      %1448 = vmatpush1.bf16.msra.mxu0 0
      %1449 = vmatprep.subr.bf16.mxu0 0
      %1450 = vmatpush1.bf16.msra.mxu0 0
      %1451 = vmatprep.subr.bf16.mxu0 0
      %1452 = vmatpush1.bf16.msra.mxu0 %v1435
      %1453 = vmatprep.subr.bf16.mxu0 0
      %1454 = vmatpush2.bf16.msra.mxu0 0
      %1455 = vmatprep.subr.bf16.mxu0 0
      %1456 = vmatpush2.bf16.msra.mxu0 0
      %1457 = vmatprep.subr.bf16.mxu0 0
      %1458 = vmatpush2.bf16.msra.mxu0 0
      %1459 = vmatprep.subr.bf16.mxu0 0
      %1460 = vmatpush2.bf16.msra.mxu0 0
      %1461 = vmatprep.subr.bf16.mxu0 0
      %1462 = vmatpush2.bf16.msra.mxu0 0
      %1463 = vmatprep.subr.bf16.mxu0 0
      %1464 = vmatpush2.bf16.msra.mxu0 0
      %1465 = vmatprep.subr.bf16.mxu0 0
      %1466 = vmatpush2.bf16.msra.mxu0 0
      %1467 = vmatprep.subr.bf16.mxu0 0
      %1468 = vmatpush2.bf16.msra.mxu0 0
      %1469 = vmatprep.mubr.bf16.mxu0 0
      %1470 = vmatmul.mubr.bf16.gmra.mxu0 %v1432
      %v1471 = vpop.f32.mrf.mxu0
      %v1472 = vadd.f32 0.0, %v1471
      %v1473 = vpop.f32.mrf.mxu0
      %v1474 = vpop.f32.mrf.mxu0
      %v1475 = vadd.f32 0.0, %v1474
      %v1476 = vpop.f32.mrf.mxu0
      %1477 = vdwg.mxu0
      %v1478 = vadd.f32 %v1201, %v1472
      %v1479 = vadd.f32 %v1204, %v1475
      %1480 = vrot.lane.b32.xlu0 %v663, 104
      %v1481 = vpop.permute.xlu0 %1480
      %1482 = vrot.lane.b32.xlu0 %v663, 72
      %v1483 = vpop.permute.xlu0 %1482
      %v1485 = vsel %vm668, %v1481, 0
      %v1488 = vsel %vm668, %v1483, 0
      %1490 = vmatprep.subr.bf16.mxu0 0
      %1491 = vmatpush1.bf16.xpose.msra.mxu0 0
      %1492 = vmatprep.subr.bf16.mxu0 0
      %1493 = vmatpush1.bf16.xpose.msra.mxu0 0
      %1494 = vmatprep.subr.bf16.mxu0 0
      %1495 = vmatpush1.bf16.xpose.msra.mxu0 0
      %1496 = vmatprep.subr.bf16.mxu0 0
      %1497 = vmatpush1.bf16.xpose.msra.mxu0 0
      %1498 = vmatprep.subr.bf16.mxu0 0
      %1499 = vmatpush1.bf16.xpose.msra.mxu0 0
      %1500 = vmatprep.subr.bf16.mxu0 0
      %1501 = vmatpush1.bf16.xpose.msra.mxu0 0
      %1502 = vmatprep.subr.bf16.mxu0 0
      %1503 = vmatpush1.bf16.xpose.msra.mxu0 0
      %1504 = vmatprep.subr.bf16.mxu0 0
      %1505 = vmatpush1.bf16.xpose.msra.mxu0 %v1488
      %1506 = vmatprep.subr.bf16.mxu0 0
      %1507 = vmatpush2.bf16.xpose.msra.mxu0 0
      %1508 = vmatprep.subr.bf16.mxu0 0
      %1509 = vmatpush2.bf16.xpose.msra.mxu0 0
      %1510 = vmatprep.subr.bf16.mxu0 0
      %1511 = vmatpush2.bf16.xpose.msra.mxu0 0
      %1512 = vmatprep.subr.bf16.mxu0 0
      %1513 = vmatpush2.bf16.xpose.msra.mxu0 0
      %1514 = vmatprep.subr.bf16.mxu0 0
      %1515 = vmatpush2.bf16.xpose.msra.mxu0 0
      %1516 = vmatprep.subr.bf16.mxu0 0
      %1517 = vmatpush2.bf16.xpose.msra.mxu0 0
      %1518 = vmatprep.subr.bf16.mxu0 0
      %1519 = vmatpush2.bf16.xpose.msra.mxu0 0
      %1520 = vmatprep.subr.bf16.mxu0 0
      %1521 = vmatpush2.bf16.xpose.msra.mxu0 0
      %1522 = vmatprep.mubr.bf16.mxu0 0
      %1523 = vmatmul.mubr.bf16.gmra.mxu0 %v1485
      %v1524 = vpop.f32.mrf.mxu0
      %v1525 = vadd.f32 0.0, %v1524
      %v1526 = vpop.f32.mrf.mxu0
      %v1527 = vpop.f32.mrf.mxu0
      %v1528 = vpop.f32.mrf.mxu0
      %1529 = vdwg.mxu0
      %1530 = vrot.lane.b32.xlu0 %v664, 104
      %v1531 = vpop.permute.xlu0 %1530
      %1532 = vrot.lane.b32.xlu0 %v664, 72
      %v1533 = vpop.permute.xlu0 %1532
      %v1535 = vsel %vm668, %v1531, 0
      %v1538 = vsel %vm668, %v1533, 0
      %1540 = vmatprep.subr.bf16.mxu0 0
      %1541 = vmatpush1.bf16.xpose.msra.mxu0 0
      %1542 = vmatprep.subr.bf16.mxu0 0
      %1543 = vmatpush1.bf16.xpose.msra.mxu0 0
      %1544 = vmatprep.subr.bf16.mxu0 0
      %1545 = vmatpush1.bf16.xpose.msra.mxu0 0
      %1546 = vmatprep.subr.bf16.mxu0 0
      %1547 = vmatpush1.bf16.xpose.msra.mxu0 0
      %1548 = vmatprep.subr.bf16.mxu0 0
      %1549 = vmatpush1.bf16.xpose.msra.mxu0 0
      %1550 = vmatprep.subr.bf16.mxu0 0
      %1551 = vmatpush1.bf16.xpose.msra.mxu0 0
      %1552 = vmatprep.subr.bf16.mxu0 0
      %1553 = vmatpush1.bf16.xpose.msra.mxu0 0
      %1554 = vmatprep.subr.bf16.mxu0 0
      %1555 = vmatpush1.bf16.xpose.msra.mxu0 %v1538
      %1556 = vmatprep.subr.bf16.mxu0 0
      %1557 = vmatpush2.bf16.xpose.msra.mxu0 0
      %1558 = vmatprep.subr.bf16.mxu0 0
      %1559 = vmatpush2.bf16.xpose.msra.mxu0 0
      %1560 = vmatprep.subr.bf16.mxu0 0
      %1561 = vmatpush2.bf16.xpose.msra.mxu0 0
      %1562 = vmatprep.subr.bf16.mxu0 0
      %1563 = vmatpush2.bf16.xpose.msra.mxu0 0
      %1564 = vmatprep.subr.bf16.mxu0 0
      %1565 = vmatpush2.bf16.xpose.msra.mxu0 0
      %1566 = vmatprep.subr.bf16.mxu0 0
      %1567 = vmatpush2.bf16.xpose.msra.mxu0 0
      %1568 = vmatprep.subr.bf16.mxu0 0
      %1569 = vmatpush2.bf16.xpose.msra.mxu0 0
      %1570 = vmatprep.subr.bf16.mxu0 0
      %1571 = vmatpush2.bf16.xpose.msra.mxu0 0
      %1572 = vmatprep.mubr.bf16.mxu0 0
      %1573 = vmatmul.mubr.bf16.gmra.mxu0 %v1535
      %v1574 = vpop.f32.mrf.mxu0
      %v1575 = vadd.f32 0.0, %v1574
      %v1576 = vpop.f32.mrf.mxu0
      %v1577 = vpop.f32.mrf.mxu0
      %v1578 = vpop.f32.mrf.mxu0
      %1579 = vdwg.mxu0
      %v1580 = vmul.f32 %v1525, 0.35355338
      %v1581 = vmul.f32 %v1575, 0.35355338
      %v1582 = vsel %vm668, %v1580, -inf
      %1583 = vmax.xlane.f32.xlu0 %v1582
      %v1584 = vpop.xlane.xlu0 %1583
      %v1585 = vsel %vm668, %v1581, -inf
      %1586 = vmax.xlane.f32.xlu0 %v1585
      %v1587 = vpop.xlane.xlu0 %1586
      %v1588 = vsub.f32 %v1580, %v1584
      %v1589 = vsub.f32 %v1581, %v1587
      %v1590 = vmul.f32 %v1588, 1.442695
      %v1591 = vpow.pop %v1590
      %v1592 = vmul.f32 %v1589, 1.442695
      %v1593 = vpow.pop %v1592
      %v1594 = vsel %vm668, %v1591, 0.0
      %1595 = vadd.xlane.f32.xlu0 %v1594
      %v1596 = vpop.xlane.xlu0 %1595
      %v1597 = vsel %vm668, %v1593, 0.0
      %1598 = vadd.xlane.f32.xlu0 %v1597
      %v1599 = vpop.xlane.xlu0 %1598
      %v1600 = vrcp.pop %v1596
      %v1601 = vrcp.pop %v1599
      %v1602 = vmul.f32 %v1591, %v1600
      %v1603 = vmul.f32 %v1593, %v1601
      %v1604 = vpack.c.bf16 %v1602, %v1602
      %v1605 = vpack.c.bf16 %v1603, %v1603
      %1606 = vrot.lane.b32.xlu0 %v663, 40
      %v1607 = vpop.permute.xlu0 %1606
      %v1609 = vsel %vm668, %v1604, 0
      %v1612 = vsel %vm795, %v1607, 0
      %1614 = vmatprep.subr.bf16.mxu0 0
      %1615 = vmatpush1.bf16.msra.mxu0 0
      %1616 = vmatprep.subr.bf16.mxu0 0
      %1617 = vmatpush1.bf16.msra.mxu0 0
      %1618 = vmatprep.subr.bf16.mxu0 0
      %1619 = vmatpush1.bf16.msra.mxu0 0
      %1620 = vmatprep.subr.bf16.mxu0 0
      %1621 = vmatpush1.bf16.msra.mxu0 0
      %1622 = vmatprep.subr.bf16.mxu0 0
      %1623 = vmatpush1.bf16.msra.mxu0 0
      %1624 = vmatprep.subr.bf16.mxu0 0
      %1625 = vmatpush1.bf16.msra.mxu0 0
      %1626 = vmatprep.subr.bf16.mxu0 0
      %1627 = vmatpush1.bf16.msra.mxu0 0
      %1628 = vmatprep.subr.bf16.mxu0 0
      %1629 = vmatpush1.bf16.msra.mxu0 %v1612
      %1630 = vmatprep.subr.bf16.mxu0 0
      %1631 = vmatpush2.bf16.msra.mxu0 0
      %1632 = vmatprep.subr.bf16.mxu0 0
      %1633 = vmatpush2.bf16.msra.mxu0 0
      %1634 = vmatprep.subr.bf16.mxu0 0
      %1635 = vmatpush2.bf16.msra.mxu0 0
      %1636 = vmatprep.subr.bf16.mxu0 0
      %1637 = vmatpush2.bf16.msra.mxu0 0
      %1638 = vmatprep.subr.bf16.mxu0 0
      %1639 = vmatpush2.bf16.msra.mxu0 0
      %1640 = vmatprep.subr.bf16.mxu0 0
      %1641 = vmatpush2.bf16.msra.mxu0 0
      %1642 = vmatprep.subr.bf16.mxu0 0
      %1643 = vmatpush2.bf16.msra.mxu0 0
      %1644 = vmatprep.subr.bf16.mxu0 0
      %1645 = vmatpush2.bf16.msra.mxu0 0
      %1646 = vmatprep.mubr.bf16.mxu0 0
      %1647 = vmatmul.mubr.bf16.gmra.mxu0 %v1609
      %v1648 = vpop.f32.mrf.mxu0
      %v1649 = vadd.f32 0.0, %v1648
      %v1650 = vpop.f32.mrf.mxu0
      %v1651 = vpop.f32.mrf.mxu0
      %v1652 = vpop.f32.mrf.mxu0
      %1653 = vdwg.mxu0
      %1654 = vrot.lane.b32.xlu0 %v664, 40
      %v1655 = vpop.permute.xlu0 %1654
      %v1657 = vsel %vm668, %v1605, 0
      %v1660 = vsel %vm795, %v1655, 0
      %1662 = vmatprep.subr.bf16.mxu0 0
      %1663 = vmatpush1.bf16.msra.mxu0 0
      %1664 = vmatprep.subr.bf16.mxu0 0
      %1665 = vmatpush1.bf16.msra.mxu0 0
      %1666 = vmatprep.subr.bf16.mxu0 0
      %1667 = vmatpush1.bf16.msra.mxu0 0
      %1668 = vmatprep.subr.bf16.mxu0 0
      %1669 = vmatpush1.bf16.msra.mxu0 0
      %1670 = vmatprep.subr.bf16.mxu0 0
      %1671 = vmatpush1.bf16.msra.mxu0 0
      %1672 = vmatprep.subr.bf16.mxu0 0
      %1673 = vmatpush1.bf16.msra.mxu0 0
      %1674 = vmatprep.subr.bf16.mxu0 0
      %1675 = vmatpush1.bf16.msra.mxu0 0
      %1676 = vmatprep.subr.bf16.mxu0 0
      %1677 = vmatpush1.bf16.msra.mxu0 %v1660
      %1678 = vmatprep.subr.bf16.mxu0 0
      %1679 = vmatpush2.bf16.msra.mxu0 0
      %1680 = vmatprep.subr.bf16.mxu0 0
      %1681 = vmatpush2.bf16.msra.mxu0 0
      %1682 = vmatprep.subr.bf16.mxu0 0
      %1683 = vmatpush2.bf16.msra.mxu0 0
      %1684 = vmatprep.subr.bf16.mxu0 0
      %1685 = vmatpush2.bf16.msra.mxu0 0
      %1686 = vmatprep.subr.bf16.mxu0 0
      %1687 = vmatpush2.bf16.msra.mxu0 0
      %1688 = vmatprep.subr.bf16.mxu0 0
      %1689 = vmatpush2.bf16.msra.mxu0 0
      %1690 = vmatprep.subr.bf16.mxu0 0
      %1691 = vmatpush2.bf16.msra.mxu0 0
      %1692 = vmatprep.subr.bf16.mxu0 0
      %1693 = vmatpush2.bf16.msra.mxu0 0
      %1694 = vmatprep.mubr.bf16.mxu0 0
      %1695 = vmatmul.mubr.bf16.gmra.mxu0 %v1657
      %v1696 = vpop.f32.mrf.mxu0
      %v1697 = vadd.f32 0.0, %v1696
      %v1698 = vpop.f32.mrf.mxu0
      %v1699 = vpop.f32.mrf.mxu0
      %v1700 = vpop.f32.mrf.mxu0
      %1701 = vdwg.mxu0
      %v1702 = vpack.c.bf16 %v1697, %v1649
      %v1703 = vld [vmem:[%s461 + $0xc] sm:$0xf]
      %v1705 = vsel %vm668, %v1702, 0
      %v1708 = vsel %vm795, %v1703, 0
      %1710 = vmatprep.subr.bf16.mxu0 0
      %1711 = vmatpush1.bf16.msra.mxu0 0
      %1712 = vmatprep.subr.bf16.mxu0 0
      %1713 = vmatpush1.bf16.msra.mxu0 0
      %1714 = vmatprep.subr.bf16.mxu0 0
      %1715 = vmatpush1.bf16.msra.mxu0 0
      %1716 = vmatprep.subr.bf16.mxu0 0
      %1717 = vmatpush1.bf16.msra.mxu0 0
      %1718 = vmatprep.subr.bf16.mxu0 0
      %1719 = vmatpush1.bf16.msra.mxu0 0
      %1720 = vmatprep.subr.bf16.mxu0 0
      %1721 = vmatpush1.bf16.msra.mxu0 0
      %1722 = vmatprep.subr.bf16.mxu0 0
      %1723 = vmatpush1.bf16.msra.mxu0 0
      %1724 = vmatprep.subr.bf16.mxu0 0
      %1725 = vmatpush1.bf16.msra.mxu0 %v1708
      %1726 = vmatprep.subr.bf16.mxu0 0
      %1727 = vmatpush2.bf16.msra.mxu0 0
      %1728 = vmatprep.subr.bf16.mxu0 0
      %1729 = vmatpush2.bf16.msra.mxu0 0
      %1730 = vmatprep.subr.bf16.mxu0 0
      %1731 = vmatpush2.bf16.msra.mxu0 0
      %1732 = vmatprep.subr.bf16.mxu0 0
      %1733 = vmatpush2.bf16.msra.mxu0 0
      %1734 = vmatprep.subr.bf16.mxu0 0
      %1735 = vmatpush2.bf16.msra.mxu0 0
      %1736 = vmatprep.subr.bf16.mxu0 0
      %1737 = vmatpush2.bf16.msra.mxu0 0
      %1738 = vmatprep.subr.bf16.mxu0 0
      %1739 = vmatpush2.bf16.msra.mxu0 0
      %1740 = vmatprep.subr.bf16.mxu0 0
      %1741 = vmatpush2.bf16.msra.mxu0 0
      %1742 = vmatprep.mubr.bf16.mxu0 0
      %1743 = vmatmul.mubr.bf16.gmra.mxu0 %v1705
      %v1744 = vpop.f32.mrf.mxu0
      %v1745 = vadd.f32 0.0, %v1744
      %v1746 = vpop.f32.mrf.mxu0
      %v1747 = vpop.f32.mrf.mxu0
      %v1748 = vadd.f32 0.0, %v1747
      %v1749 = vpop.f32.mrf.mxu0
      %1750 = vdwg.mxu0
      %v1751 = vadd.f32 %v1478, %v1745
      %v1752 = vadd.f32 %v1479, %v1748
      %v1753 = vlaneseq
      %v1754 = vshrl.u32 %v1753, 7
      %v1755 = vsub.s32 1, %v1754
      %v1756 = vrot.slane %v596, %v1755
      %v1757 = vadd.f32 %v1751, %v1756
      %v1758 = vadd.f32 %v1752, %v1756
      %v1759 = vadd.f32 %v594, %v1757
      %v1760 = vadd.f32 %v595, %v1758
      %v1761 = vsel %vm618, %v1759, 0.0
      %1762 = vadd.xlane.f32.xlu0 %v1761
      %v1763 = vpop.xlane.xlu0 %1762
      %v1764 = vsel %vm618, %v1760, 0.0
      %1765 = vadd.xlane.f32.xlu0 %v1764
      %v1766 = vpop.xlane.xlu0 %1765
      %v1767 = vrcp.pop 32.0
      %v1768 = vmul.f32 %v1763, %v1767
      %v1769 = vmul.f32 %v1766, %v1767
      %v1770 = vmul.f32 %v1759, %v1759
      %v1771 = vmul.f32 %v1760, %v1760
      %v1772 = vsel %vm618, %v1770, 0.0
      %1773 = vadd.xlane.f32.xlu0 %v1772
      %v1774 = vpop.xlane.xlu0 %1773
      %v1775 = vsel %vm618, %v1771, 0.0
      %1776 = vadd.xlane.f32.xlu0 %v1775
      %v1777 = vpop.xlane.xlu0 %1776
      %v1778 = vmul.f32 %v1774, %v1767
      %v1779 = vmul.f32 %v1777, %v1767
      %v1780 = vmul.f32 %v1768, %v1768
      %v1781 = vmul.f32 %v1769, %v1769
      %v1782 = vsub.f32 %v1778, %v1780
      %v1783 = vsub.f32 %v1779, %v1781
      %v1784 = vsub.f32 %v1759, %v1768
      %v1785 = vsub.f32 %v1760, %v1769
      %v1786 = vadd.f32 %v1782, 1e-05
      %v1787 = vadd.f32 %v1783, 1e-05
      %v1788 = vrsqrt.pop %v1786
      %v1789 = vrsqrt.pop %v1787
      %v1790 = vmul.f32 %v1784, %v1788
      %v1791 = vmul.f32 %v1785, %v1789
      %v1792 = vlaneseq
      %v1793 = vshrl.u32 %v1792, 7
      %v1794 = vsub.s32 2, %v1793
      %v1795 = vrot.slane %v596, %v1794
      %v1796 = vmul.f32 %v1790, %v1795
      %v1797 = vmul.f32 %v1791, %v1795
      %v1798 = vlaneseq
      %v1799 = vshrl.u32 %v1798, 7
      %v1800 = vsub.s32 3, %v1799
      %v1801 = vrot.slane %v596, %v1800
      %v1802 = vadd.f32 %v1796, %v1801
      %v1803 = vadd.f32 %v1797, %v1801
      %v1804 = vld [vmem:[%s466] sm:$0xf]
      %v1805 = vld [vmem:[%s466 + $0x4] sm:$0xf]
      %v1806 = vld [vmem:[%s466 + $0x8] sm:$0xf]
      %v1807 = vld [vmem:[%s466 + $0xc] sm:$0xf]
      %v1808 = vpack.c.bf16 %v1803, %v1802
      %v1809 = vlaneseq
      %v1810 = vshrl.u32 %v1809, 7
      %v1811 = vsub.s32 4, %v1810
      %v1812 = vrot.slane %v596, %v1811
      %v1817 = vunpack.c.l.b16 %v1804
      %v1818 = vunpack.c.l.b16 %v1805
      %v1819 = vunpack.c.l.b16 %v1806
      %v1820 = vunpack.c.l.b16 %v1807
      %v1821 = vpack.c.b16 %v1818, %v1817
      %v1822 = vpack.c.b16 %v1820, %v1819
      %v1826 = vsel %vm618, %v1808, 0
      %1828 = vmatprep.subr.bf16.mxu0 0
      %1829 = vmatpush1.bf16.msra.mxu0 0
      %1830 = vmatprep.subr.bf16.mxu0 0
      %1831 = vmatpush1.bf16.msra.mxu0 0
      %1832 = vmatprep.subr.bf16.mxu0 0
      %1833 = vmatpush1.bf16.msra.mxu0 0
      %1834 = vmatprep.subr.bf16.mxu0 0
      %1835 = vmatpush1.bf16.msra.mxu0 0
      %1836 = vmatprep.subr.bf16.mxu0 0
      %1837 = vmatpush1.bf16.msra.mxu0 0
      %1838 = vmatprep.subr.bf16.mxu0 0
      %1839 = vmatpush1.bf16.msra.mxu0 0
      %1840 = vmatprep.subr.bf16.mxu0 0
      %1841 = vmatpush1.bf16.msra.mxu0 %v1822
      %1842 = vmatprep.subr.bf16.mxu0 0
      %1843 = vmatpush1.bf16.msra.mxu0 %v1821
      %1844 = vmatprep.subr.bf16.mxu0 0
      %1845 = vmatpush2.bf16.msra.mxu0 0
      %1846 = vmatprep.subr.bf16.mxu0 0
      %1847 = vmatpush2.bf16.msra.mxu0 0
      %1848 = vmatprep.subr.bf16.mxu0 0
      %1849 = vmatpush2.bf16.msra.mxu0 0
      %1850 = vmatprep.subr.bf16.mxu0 0
      %1851 = vmatpush2.bf16.msra.mxu0 0
      %1852 = vmatprep.subr.bf16.mxu0 0
      %1853 = vmatpush2.bf16.msra.mxu0 0
      %1854 = vmatprep.subr.bf16.mxu0 0
      %1855 = vmatpush2.bf16.msra.mxu0 0
      %1856 = vmatprep.subr.bf16.mxu0 0
      %1857 = vmatpush2.bf16.msra.mxu0 0
      %1858 = vmatprep.subr.bf16.mxu0 0
      %1859 = vmatpush2.bf16.msra.mxu0 0
      %1860 = vmatprep.mubr.bf16.mxu0 0
      %1861 = vmatmul.mubr.bf16.gmra.mxu0 %v1826
      %v1862 = vpop.f32.mrf.mxu0
      %v1863 = vadd.f32 %v1812, %v1862
      %v1864 = vpop.f32.mrf.mxu0
      %v1865 = vpop.f32.mrf.mxu0
      %v1866 = vadd.f32 %v1812, %v1865
      %v1867 = vpop.f32.mrf.mxu0
      %1868 = vdwg.mxu0
      %v1869 = vmax.f32 %v1863, 0.0
      %v1870 = vmax.f32 %v1866, 0.0
      %v1871 = vld [vmem:[%s471] sm:$0xf]
      %v1872 = vld [vmem:[%s471 + $0x4] sm:$0xf]
      %v1873 = vld [vmem:[%s471 + $0x8] sm:$0xf]
      %v1874 = vld [vmem:[%s471 + $0xc] sm:$0xf]
      %v1875 = vld [vmem:[%s471 + $0x10] sm:$0xf]
      %v1876 = vld [vmem:[%s471 + $0x14] sm:$0xf]
      %v1877 = vld [vmem:[%s471 + $0x18] sm:$0xf]
      %v1878 = vld [vmem:[%s471 + $0x1c] sm:$0xf]
      %v1879 = vpack.c.bf16 %v1870, %v1869
      %v1880 = vlaneseq
      %v1881 = vshrl.u32 %v1880, 7
      %v1882 = vsub.s32 5, %v1881
      %v1883 = vrot.slane %v596, %v1882
      %v1892 = vunpack.c.l.b16 %v1871
      %v1893 = vunpack.c.l.b16 %v1872
      %v1894 = vunpack.c.l.b16 %v1873
      %v1895 = vunpack.c.l.b16 %v1874
      %v1896 = vunpack.c.l.b16 %v1875
      %v1897 = vunpack.c.l.b16 %v1876
      %v1898 = vunpack.c.l.b16 %v1877
      %v1899 = vunpack.c.l.b16 %v1878
      %v1900 = vpack.c.b16 %v1893, %v1892
      %v1901 = vpack.c.b16 %v1895, %v1894
      %v1902 = vpack.c.b16 %v1897, %v1896
      %v1903 = vpack.c.b16 %v1899, %v1898
      %vm1908 = vcmask 523264
      %v1910 = vsel %vm1908, %v1879, 0
      %1912 = vmatprep.subr.bf16.mxu0 0
      %1913 = vmatpush1.bf16.msra.mxu0 0
      %1914 = vmatprep.subr.bf16.mxu0 0
      %1915 = vmatpush1.bf16.msra.mxu0 0
      %1916 = vmatprep.subr.bf16.mxu0 0
      %1917 = vmatpush1.bf16.msra.mxu0 0
      %1918 = vmatprep.subr.bf16.mxu0 0
      %1919 = vmatpush1.bf16.msra.mxu0 0
      %1920 = vmatprep.subr.bf16.mxu0 0
      %1921 = vmatpush1.bf16.msra.mxu0 %v1903
      %1922 = vmatprep.subr.bf16.mxu0 0
      %1923 = vmatpush1.bf16.msra.mxu0 %v1902
      %1924 = vmatprep.subr.bf16.mxu0 0
      %1925 = vmatpush1.bf16.msra.mxu0 %v1901
      %1926 = vmatprep.subr.bf16.mxu0 0
      %1927 = vmatpush1.bf16.msra.mxu0 %v1900
      %1928 = vmatprep.subr.bf16.mxu0 0
      %1929 = vmatpush2.bf16.msra.mxu0 0
      %1930 = vmatprep.subr.bf16.mxu0 0
      %1931 = vmatpush2.bf16.msra.mxu0 0
      %1932 = vmatprep.subr.bf16.mxu0 0
      %1933 = vmatpush2.bf16.msra.mxu0 0
      %1934 = vmatprep.subr.bf16.mxu0 0
      %1935 = vmatpush2.bf16.msra.mxu0 0
      %1936 = vmatprep.subr.bf16.mxu0 0
      %1937 = vmatpush2.bf16.msra.mxu0 0
      %1938 = vmatprep.subr.bf16.mxu0 0
      %1939 = vmatpush2.bf16.msra.mxu0 0
      %1940 = vmatprep.subr.bf16.mxu0 0
      %1941 = vmatpush2.bf16.msra.mxu0 0
      %1942 = vmatprep.subr.bf16.mxu0 0
      %1943 = vmatpush2.bf16.msra.mxu0 0
      %1944 = vmatprep.mubr.bf16.mxu0 0
      %1945 = vmatmul.mubr.bf16.gmra.mxu0 %v1910
      %v1946 = vpop.f32.mrf.mxu0
      %v1947 = vadd.f32 %v1883, %v1946
      %v1948 = vpop.f32.mrf.mxu0
      %v1949 = vpop.f32.mrf.mxu0
      %v1950 = vadd.f32 %v1883, %v1949
      %v1951 = vpop.f32.mrf.mxu0
      %1952 = vdwg.mxu0
      %v1953 = vadd.f32 %v1802, %v1947
      %v1954 = vadd.f32 %v1803, %v1950
      %v1955 = vsel %vm618, %v1953, 0.0
      %1956 = vadd.xlane.f32.xlu0 %v1955
      %v1957 = vpop.xlane.xlu0 %1956
      %v1958 = vsel %vm618, %v1954, 0.0
      %1959 = vadd.xlane.f32.xlu0 %v1958
      %v1960 = vpop.xlane.xlu0 %1959
      %v1961 = vmul.f32 %v1957, %v1767
      %v1962 = vmul.f32 %v1960, %v1767
      %v1963 = vmul.f32 %v1953, %v1953
      %v1964 = vmul.f32 %v1954, %v1954
      %v1965 = vsel %vm618, %v1963, 0.0
      %1966 = vadd.xlane.f32.xlu0 %v1965
      %v1967 = vpop.xlane.xlu0 %1966
      %v1968 = vsel %vm618, %v1964, 0.0
      %1969 = vadd.xlane.f32.xlu0 %v1968
      %v1970 = vpop.xlane.xlu0 %1969
      %v1971 = vmul.f32 %v1967, %v1767
      %v1972 = vmul.f32 %v1970, %v1767
      %v1973 = vmul.f32 %v1961, %v1961
      %v1974 = vmul.f32 %v1962, %v1962
      %v1975 = vsub.f32 %v1971, %v1973
      %v1976 = vsub.f32 %v1972, %v1974
      %v1977 = vsub.f32 %v1953, %v1961
      %v1978 = vsub.f32 %v1954, %v1962
      %v1979 = vadd.f32 %v1975, 1e-05
      %v1980 = vadd.f32 %v1976, 1e-05
      %v1981 = vrsqrt.pop %v1979
      %v1982 = vrsqrt.pop %v1980
      %v1983 = vmul.f32 %v1977, %v1981
      %v1984 = vmul.f32 %v1978, %v1982
      %v1985 = vlaneseq
      %v1986 = vshrl.u32 %v1985, 7
      %v1987 = vsub.s32 6, %v1986
      %v1988 = vrot.slane %v596, %v1987
      %v1989 = vmul.f32 %v1983, %v1988
      %v1990 = vmul.f32 %v1984, %v1988
      %v1991 = vlaneseq
      %v1992 = vshrl.u32 %v1991, 7
      %v1993 = vsub.s32 7, %v1992
      %v1994 = vrot.slane %v596, %v1993
      %v1995 = vadd.f32 %v1989, %v1994
      %v1996 = vadd.f32 %v1990, %v1994
      %1997 = vst.msk [vmem:[#allocation2] sm:$0xff] %vm618, %v1995
      %1998 = vst.msk [vmem:[#allocation2 + $0x8] sm:$0xff] %vm618, %v1996
      %p1999 = scmp.eq.s32.totalorder %s23, 1
      // Predicated region
      $region73: #{joint_ceeq_fwd.5} parent=67 // pred_check
        %p2000 = pneg %p1999
      $region74: #{joint_ceeq_fwd.5} parent=67 // pred_check_branch
        %2002 = sbr.rel (%p2000) target = $region76
      $region75: #{joint_ceeq_fwd.5} parent=67 // pred_region
        %v2003 = vld [vmem:[%s10] sm:$0xf]
        %v2004 = vld [vmem:[%s10 + $0x4] sm:$0xf]
        %v2005 = vld [vmem:[%s10 + $0x8] sm:$0xf]
        %v2006 = vld [vmem:[%s10 + $0xc] sm:$0xf]
        %v2007 = vpack.c.bf16 %v1996, %v1995
        %v2008 = vld [vmem:[%s11] sm:$0x1]
        %v2010 = vlaneseq
        %v2011 = vshrl.u32 %v2010, 7
        %v2012 = vsub.s32 0, %v2011
        %v2013 = vrot.slane %v2008, %v2012
        %v2019 = vunpack.c.l.b16 %v2003
        %v2020 = vunpack.c.l.b16 %v2004
        %v2021 = vunpack.c.l.b16 %v2005
        %v2022 = vunpack.c.l.b16 %v2006
        %v2023 = vpack.c.b16 %v2020, %v2019
        %v2024 = vpack.c.b16 %v2022, %v2021
        %v2028 = vsel %vm618, %v2007, 0
        %2030 = vmatprep.subr.bf16.mxu0 0
        %2031 = vmatpush1.bf16.msra.mxu0 0
        %2032 = vmatprep.subr.bf16.mxu0 0
        %2033 = vmatpush1.bf16.msra.mxu0 0
        %2034 = vmatprep.subr.bf16.mxu0 0
        %2035 = vmatpush1.bf16.msra.mxu0 0
        %2036 = vmatprep.subr.bf16.mxu0 0
        %2037 = vmatpush1.bf16.msra.mxu0 0
        %2038 = vmatprep.subr.bf16.mxu0 0
        %2039 = vmatpush1.bf16.msra.mxu0 0
        %2040 = vmatprep.subr.bf16.mxu0 0
        %2041 = vmatpush1.bf16.msra.mxu0 0
        %2042 = vmatprep.subr.bf16.mxu0 0
        %2043 = vmatpush1.bf16.msra.mxu0 %v2024
        %2044 = vmatprep.subr.bf16.mxu0 0
        %2045 = vmatpush1.bf16.msra.mxu0 %v2023
        %2046 = vmatprep.subr.bf16.mxu0 0
        %2047 = vmatpush2.bf16.msra.mxu0 0
        %2048 = vmatprep.subr.bf16.mxu0 0
        %2049 = vmatpush2.bf16.msra.mxu0 0
        %2050 = vmatprep.subr.bf16.mxu0 0
        %2051 = vmatpush2.bf16.msra.mxu0 0
        %2052 = vmatprep.subr.bf16.mxu0 0
        %2053 = vmatpush2.bf16.msra.mxu0 0
        %2054 = vmatprep.subr.bf16.mxu0 0
        %2055 = vmatpush2.bf16.msra.mxu0 0
        %2056 = vmatprep.subr.bf16.mxu0 0
        %2057 = vmatpush2.bf16.msra.mxu0 0
        %2058 = vmatprep.subr.bf16.mxu0 0
        %2059 = vmatpush2.bf16.msra.mxu0 0
        %2060 = vmatprep.subr.bf16.mxu0 0
        %2061 = vmatpush2.bf16.msra.mxu0 0
        %2062 = vmatprep.mubr.bf16.mxu0 0
        %2063 = vmatmul.mubr.bf16.gmra.mxu0 %v2028
        %v2064 = vpop.f32.mrf.mxu0
        %v2065 = vadd.f32 %v2013, %v2064
        %v2066 = vpop.f32.mrf.mxu0
        %v2067 = vpop.f32.mrf.mxu0
        %v2068 = vadd.f32 %v2013, %v2067
        %v2069 = vpop.f32.mrf.mxu0
        %2070 = vdwg.mxu0
        %2071 = vst [vmem:[%s12] sm:$0xff] %v2065
        %2072 = vst [vmem:[%s12 + $0x8] sm:$0xff] %v2068
      $region76: #{joint_ceeq_fwd.5} parent=67 // pred_fallthru
        _
      // Predicated region
      $region77: #{joint_ceeq_fwd.5} parent=67 // pred_check
        %p2073 = pneg %p313
      $region78: #{joint_ceeq_fwd.5} parent=67 // pred_check_branch
        %2075 = sbr.rel (%p2073) target = $region80
      $region79: #{joint_ceeq_fwd.5} parent=67 // pred_region
        _
      $region80: #{joint_ceeq_fwd.5} parent=67 // pred_fallthru
        _
      // Predicated region
      $region81: #{joint_ceeq_fwd.5} parent=67 // pred_check
        %p2076 = pneg %p313
      $region82: #{joint_ceeq_fwd.5} parent=67 // pred_check_branch
        %2078 = sbr.rel (%p2076) target = $region84
      $region83: #{joint_ceeq_fwd.5} parent=67 // pred_region
        _
      $region84: #{joint_ceeq_fwd.5} parent=67 // pred_fallthru
        _
    $region68: #{joint_ceeq_fwd.5} parent=5 // pred_fallthru
      _
    %p2079 = scmp.le.s32.totalorder 2, %s18
    // Predicated region
    $region85: #{joint_ceeq_fwd.5} parent=5 // pred_check
      %p2080 = pneg %p2079
    $region86: #{joint_ceeq_fwd.5} parent=5 // pred_check_branch
      %2082 = sbr.rel (%p2080) target = $region88
    $region87: #{joint_ceeq_fwd.5} parent=5 // pred_region
      %s2083 = ssub.s32 %s18, 2
    $region88: #{joint_ceeq_fwd.5} parent=5 // pred_fallthru
      _
  $region6: #{joint_ceeq_fwd.5} parent=0 // loop_footer
    %s22 = sadd.s32 1, %s18
  $region7: #{joint_ceeq_fwd.5} parent=0 // loop_footer_branch
    %17 = sbr.rel target = $region3
  $region8: #{joint_ceeq_fwd.5} parent=0 // loop_exit
    _

// kernel: joint_ceeq_fwd.3
$region0: #{joint_ceeq_fwd.3}
  #allocation0 [shape = 'u32[]', space=smem, size = 0x4, offset = 0x4, fixed_abs, tag = 'smem constant byte address 0x4 - core index']
  #allocation1 [shape = 'u32[144,128]{1,0:T(1,128)}', space=vmem, size = 0x12000, scoped, tag = 'internal scratch']
  #allocation2 [shape = 'f32[16,32]{1,0:T(8,128)}', space=vmem, size = 0x2000, scoped, tag = 'scratch operand']
  %s0 = inlined_call_operand.vmem [shape: f32[16,8], index: 0, kind: input, shape index: {}]
  %s1 = inlined_call_operand.vmem [shape: bf16[8,32], index: 1, kind: input, shape index: {}]
  %s2 = inlined_call_operand.vmem [shape: f32[16,32], index: 2, kind: input, shape index: {}]
  %s3 = inlined_call_operand.vmem [shape: bf16[2,32,96], index: 3, kind: input, shape index: {}]
  %s4 = inlined_call_operand.vmem [shape: bf16[2,32,32], index: 4, kind: input, shape index: {}]
  %s5 = inlined_call_operand.vmem [shape: bf16[2,32,64], index: 5, kind: input, shape index: {}]
  %s6 = inlined_call_operand.vmem [shape: bf16[2,64,32], index: 6, kind: input, shape index: {}]
  %s7 = inlined_call_operand.vmem [shape: f32[2,8,128], index: 7, kind: input, shape index: {}]
  %s8 = inlined_call_operand.vmem [shape: f32[16,32], index: 8, kind: output, shape index: {}]
  %s9 = sld [smem:[#allocation0]]
  $region73: #{joint_ceeq_fwd.3} parent=0
    _
  %s11 = ssub.s32 1, %s9
  %s12 = scalar_select 0, %s11, %s9
  loop: start=0, step=1, limit=4
  $region2: #{joint_ceeq_fwd.3} parent=0 // loop_pre_header
    _
  $region3: #{joint_ceeq_fwd.3} parent=0 // loop_header
    %s14 = sphi 0, %s18
    %p15 = scmp.ge.s32.totalorder %s14, 4
    %s22 = sphi 0, %s22
    %s24 = sphi 0, %s22
    %s25 = sphi 0, %s24
    %s39 = sphi 0, %s25
    %s43 = sphi 0, %s43
    %s45 = sphi 0, %s43
    %s46 = sphi 0, %s45
    %s60 = sphi 0, %s46
    %s64 = sphi 0, %s64
    %s66 = sphi 0, %s64
    %s67 = sphi 0, %s66
    %s81 = sphi 0, %s67
    %s87 = sphi 0, %s89
    %s90 = sphi 0, %s87
    %s91 = sphi 0, %s90
    %s107 = sphi 0, %s91
    %s113 = sphi 0, %s115
    %s116 = sphi 0, %s113
    %s117 = sphi 0, %s116
    %s133 = sphi 0, %s117
    %s139 = sphi 0, %s141
    %s142 = sphi 0, %s139
    %s143 = sphi 0, %s142
    %s159 = sphi 0, %s143
    %s165 = sphi 0, %s167
    %s168 = sphi 0, %s165
    %s169 = sphi 0, %s168
    %s185 = sphi 0, %s169
    %s191 = sphi 0, %s193
    %s194 = sphi 0, %s191
    %s195 = sphi 0, %s194
    %s211 = sphi 0, %s195
    %s215 = sphi 0, %s215
    %s217 = sphi 0, %s215
    %s218 = sphi 0, %s217
    %s232 = sphi 0, %s218
  $region4: #{joint_ceeq_fwd.3} parent=0 // loop_header_branch
    %17 = sbr.rel (%p15) target = $region8
  $region5: #{joint_ceeq_fwd.3} parent=0 // loop_body
    %s19 = ssub.s32 %s14, 1
    %s20 = ssub.s32 %s14, 2
    %s21 = sadd.s32 %s14, 1
    %s23 = sadd.s32 %s22, 1
    %p26 = scmp.eq.s32.totalorder %s14, 1
    %p27 = scmp.ne.s32.totalorder %s22, %s24
    %p28 = scmp.eq.s32.totalorder %s14, 0
    %p29 = por %p27, %p28
    %p30 = scmp.ne.s32.totalorder %s22, %s24
    %p31 = scmp.eq.s32.totalorder %s19, 1
    %p32 = por %p30, %p31
    %p33 = scmp.ne.s32.totalorder %s24, %s25
    %p34 = scmp.eq.s32.totalorder %s19, 0
    %p35 = por %p33, %p34
    %p36 = scmp.ne.s32.totalorder %s24, %s25
    %p37 = scmp.eq.s32.totalorder %s20, 1
    %p38 = por %p36, %p37
    %p40 = scmp.ne.s32.totalorder %s25, %s39
    %p41 = scmp.eq.s32.totalorder %s20, 0
    %p42 = por %p40, %p41
    %s44 = sadd.s32 %s43, 1
    %p47 = scmp.eq.s32.totalorder %s14, 1
    %p48 = scmp.ne.s32.totalorder %s43, %s45
    %p49 = scmp.eq.s32.totalorder %s14, 0
    %p50 = por %p48, %p49
    %p51 = scmp.ne.s32.totalorder %s43, %s45
    %p52 = scmp.eq.s32.totalorder %s19, 1
    %p53 = por %p51, %p52
    %p54 = scmp.ne.s32.totalorder %s45, %s46
    %p55 = scmp.eq.s32.totalorder %s19, 0
    %p56 = por %p54, %p55
    %p57 = scmp.ne.s32.totalorder %s45, %s46
    %p58 = scmp.eq.s32.totalorder %s20, 1
    %p59 = por %p57, %p58
    %p61 = scmp.ne.s32.totalorder %s46, %s60
    %p62 = scmp.eq.s32.totalorder %s20, 0
    %p63 = por %p61, %p62
    %s65 = sadd.s32 %s64, 1
    %p68 = scmp.eq.s32.totalorder %s14, 1
    %p69 = scmp.ne.s32.totalorder %s64, %s66
    %p70 = scmp.eq.s32.totalorder %s14, 0
    %p71 = por %p69, %p70
    %p72 = scmp.ne.s32.totalorder %s64, %s66
    %p73 = scmp.eq.s32.totalorder %s19, 1
    %p74 = por %p72, %p73
    %p75 = scmp.ne.s32.totalorder %s66, %s67
    %p76 = scmp.eq.s32.totalorder %s19, 0
    %p77 = por %p75, %p76
    %p78 = scmp.ne.s32.totalorder %s66, %s67
    %p79 = scmp.eq.s32.totalorder %s20, 1
    %p80 = por %p78, %p79
    %p82 = scmp.ne.s32.totalorder %s67, %s81
    %p83 = scmp.eq.s32.totalorder %s20, 0
    %p84 = por %p82, %p83
    %s85 = ssub.s32 %s14, %s21
    %p86 = scmp.eq.s32.totalorder %s85, 0
    %s88 = sadd.s32 %s87, 1
    %s89 = scalar_select %p86, %s87, %s88
    %p92 = pneg %p86
    %p93 = scmp.eq.s32.totalorder %s14, 1
    %p94 = por %p92, %p93
    %p95 = scmp.ne.s32.totalorder %s87, %s90
    %p96 = scmp.eq.s32.totalorder %s14, 0
    %p97 = por %p95, %p96
    %p98 = scmp.ne.s32.totalorder %s87, %s90
    %p99 = scmp.eq.s32.totalorder %s19, 1
    %p100 = por %p98, %p99
    %p101 = scmp.ne.s32.totalorder %s90, %s91
    %p102 = scmp.eq.s32.totalorder %s19, 0
    %p103 = por %p101, %p102
    %p104 = scmp.ne.s32.totalorder %s90, %s91
    %p105 = scmp.eq.s32.totalorder %s20, 1
    %p106 = por %p104, %p105
    %p108 = scmp.ne.s32.totalorder %s91, %s107
    %p109 = scmp.eq.s32.totalorder %s20, 0
    %p110 = por %p108, %p109
    %s111 = ssub.s32 %s14, %s21
    %p112 = scmp.eq.s32.totalorder %s111, 0
    %s114 = sadd.s32 %s113, 1
    %s115 = scalar_select %p112, %s113, %s114
    %p118 = pneg %p112
    %p119 = scmp.eq.s32.totalorder %s14, 1
    %p120 = por %p118, %p119
    %p121 = scmp.ne.s32.totalorder %s113, %s116
    %p122 = scmp.eq.s32.totalorder %s14, 0
    %p123 = por %p121, %p122
    %p124 = scmp.ne.s32.totalorder %s113, %s116
    %p125 = scmp.eq.s32.totalorder %s19, 1
    %p126 = por %p124, %p125
    %p127 = scmp.ne.s32.totalorder %s116, %s117
    %p128 = scmp.eq.s32.totalorder %s19, 0
    %p129 = por %p127, %p128
    %p130 = scmp.ne.s32.totalorder %s116, %s117
    %p131 = scmp.eq.s32.totalorder %s20, 1
    %p132 = por %p130, %p131
    %p134 = scmp.ne.s32.totalorder %s117, %s133
    %p135 = scmp.eq.s32.totalorder %s20, 0
    %p136 = por %p134, %p135
    %s137 = ssub.s32 %s14, %s21
    %p138 = scmp.eq.s32.totalorder %s137, 0
    %s140 = sadd.s32 %s139, 1
    %s141 = scalar_select %p138, %s139, %s140
    %p144 = pneg %p138
    %p145 = scmp.eq.s32.totalorder %s14, 1
    %p146 = por %p144, %p145
    %p147 = scmp.ne.s32.totalorder %s139, %s142
    %p148 = scmp.eq.s32.totalorder %s14, 0
    %p149 = por %p147, %p148
    %p150 = scmp.ne.s32.totalorder %s139, %s142
    %p151 = scmp.eq.s32.totalorder %s19, 1
    %p152 = por %p150, %p151
    %p153 = scmp.ne.s32.totalorder %s142, %s143
    %p154 = scmp.eq.s32.totalorder %s19, 0
    %p155 = por %p153, %p154
    %p156 = scmp.ne.s32.totalorder %s142, %s143
    %p157 = scmp.eq.s32.totalorder %s20, 1
    %p158 = por %p156, %p157
    %p160 = scmp.ne.s32.totalorder %s143, %s159
    %p161 = scmp.eq.s32.totalorder %s20, 0
    %p162 = por %p160, %p161
    %s163 = ssub.s32 %s14, %s21
    %p164 = scmp.eq.s32.totalorder %s163, 0
    %s166 = sadd.s32 %s165, 1
    %s167 = scalar_select %p164, %s165, %s166
    %p170 = pneg %p164
    %p171 = scmp.eq.s32.totalorder %s14, 1
    %p172 = por %p170, %p171
    %p173 = scmp.ne.s32.totalorder %s165, %s168
    %p174 = scmp.eq.s32.totalorder %s14, 0
    %p175 = por %p173, %p174
    %p176 = scmp.ne.s32.totalorder %s165, %s168
    %p177 = scmp.eq.s32.totalorder %s19, 1
    %p178 = por %p176, %p177
    %p179 = scmp.ne.s32.totalorder %s168, %s169
    %p180 = scmp.eq.s32.totalorder %s19, 0
    %p181 = por %p179, %p180
    %p182 = scmp.ne.s32.totalorder %s168, %s169
    %p183 = scmp.eq.s32.totalorder %s20, 1
    %p184 = por %p182, %p183
    %p186 = scmp.ne.s32.totalorder %s169, %s185
    %p187 = scmp.eq.s32.totalorder %s20, 0
    %p188 = por %p186, %p187
    %s189 = ssub.s32 %s14, %s21
    %p190 = scmp.eq.s32.totalorder %s189, 0
    %s192 = sadd.s32 %s191, 1
    %s193 = scalar_select %p190, %s191, %s192
    %p196 = pneg %p190
    %p197 = scmp.eq.s32.totalorder %s14, 1
    %p198 = por %p196, %p197
    %p199 = scmp.ne.s32.totalorder %s191, %s194
    %p200 = scmp.eq.s32.totalorder %s14, 0
    %p201 = por %p199, %p200
    %p202 = scmp.ne.s32.totalorder %s191, %s194
    %p203 = scmp.eq.s32.totalorder %s19, 1
    %p204 = por %p202, %p203
    %p205 = scmp.ne.s32.totalorder %s194, %s195
    %p206 = scmp.eq.s32.totalorder %s19, 0
    %p207 = por %p205, %p206
    %p208 = scmp.ne.s32.totalorder %s194, %s195
    %p209 = scmp.eq.s32.totalorder %s20, 1
    %p210 = por %p208, %p209
    %p212 = scmp.ne.s32.totalorder %s195, %s211
    %p213 = scmp.eq.s32.totalorder %s20, 0
    %p214 = por %p212, %p213
    %s216 = sadd.s32 %s215, 1
    %p219 = scmp.eq.s32.totalorder %s14, 1
    %p220 = scmp.ne.s32.totalorder %s215, %s217
    %p221 = scmp.eq.s32.totalorder %s14, 0
    %p222 = por %p220, %p221
    %p223 = scmp.ne.s32.totalorder %s215, %s217
    %p224 = scmp.eq.s32.totalorder %s19, 1
    %p225 = por %p223, %p224
    %p226 = scmp.ne.s32.totalorder %s217, %s218
    %p227 = scmp.eq.s32.totalorder %s19, 0
    %p228 = por %p226, %p227
    %p229 = scmp.ne.s32.totalorder %s217, %s218
    %p230 = scmp.eq.s32.totalorder %s20, 1
    %p231 = por %p229, %p230
    %p233 = scmp.ne.s32.totalorder %s218, %s232
    %p234 = scmp.eq.s32.totalorder %s20, 0
    %p235 = por %p233, %p234
    %p236 = scmp.le.s32.totalorder 1, %s14
    %p237 = scmp.lt.s32.totalorder %s14, 3
    %p238 = pnand %p236, %p237
    %p239 = pneg %p238
    // Predicated region
    $region9: #{joint_ceeq_fwd.3} parent=5 // pred_check
      _
    $region10: #{joint_ceeq_fwd.3} parent=5 // pred_check_branch
      %241 = sbr.rel (%p238) target = $region12
    $region11: #{joint_ceeq_fwd.3} parent=5 // pred_region
      %s242 = ssub.s32 %s14, 1
      // Predicated region
      $region13: #{joint_ceeq_fwd.3} parent=11 // pred_check
        %p243 = pneg %p35
      $region14: #{joint_ceeq_fwd.3} parent=11 // pred_check_branch
        %245 = sbr.rel (%p243) target = $region16
      $region15: #{joint_ceeq_fwd.3} parent=11 // pred_region
        _
      $region16: #{joint_ceeq_fwd.3} parent=11 // pred_fallthru
        _
      // Predicated region
      $region17: #{joint_ceeq_fwd.3} parent=11 // pred_check
        %p246 = pneg %p56
      $region18: #{joint_ceeq_fwd.3} parent=11 // pred_check_branch
        %248 = sbr.rel (%p246) target = $region20
      $region19: #{joint_ceeq_fwd.3} parent=11 // pred_region
        _
      $region20: #{joint_ceeq_fwd.3} parent=11 // pred_fallthru
        _
      // Predicated region
      $region21: #{joint_ceeq_fwd.3} parent=11 // pred_check
        %p249 = pneg %p77
      $region22: #{joint_ceeq_fwd.3} parent=11 // pred_check_branch
        %251 = sbr.rel (%p249) target = $region24
      $region23: #{joint_ceeq_fwd.3} parent=11 // pred_region
        _
      $region24: #{joint_ceeq_fwd.3} parent=11 // pred_fallthru
        _
    $region12: #{joint_ceeq_fwd.3} parent=5 // pred_fallthru
      _
    %p252 = scmp.lt.s32.totalorder %s14, 2
    // Predicated region
    $region25: #{joint_ceeq_fwd.3} parent=5 // pred_check
      %p253 = pneg %p252
    $region26: #{joint_ceeq_fwd.3} parent=5 // pred_check_branch
      %255 = sbr.rel (%p253) target = $region28
    $region27: #{joint_ceeq_fwd.3} parent=5 // pred_region
      // Predicated region
      $region29: #{joint_ceeq_fwd.3} parent=27 // pred_check
        %p256 = pneg %p97
      $region30: #{joint_ceeq_fwd.3} parent=27 // pred_check_branch
        %258 = sbr.rel (%p256) target = $region32
      $region31: #{joint_ceeq_fwd.3} parent=27 // pred_region
        %p259 = scmp.lt.s32.totalorder %s14, 1
        %s260 = scalar_select %p259, %s14, 1
        %s261 = smul.addr %s260, 4
        %s262 = smul.addr %s261, 4
        %s263 = scalar_lea.vmem %s3, %s262
      $region32: #{joint_ceeq_fwd.3} parent=27 // pred_fallthru
        _
      // Predicated region
      $region33: #{joint_ceeq_fwd.3} parent=27 // pred_check
        %p264 = pneg %p123
      $region34: #{joint_ceeq_fwd.3} parent=27 // pred_check_branch
        %266 = sbr.rel (%p264) target = $region36
      $region35: #{joint_ceeq_fwd.3} parent=27 // pred_region
        %p267 = scmp.lt.s32.totalorder %s14, 1
        %s268 = scalar_select %p267, %s14, 1
        %s269 = smul.addr %s268, 4
        %s270 = smul.addr %s269, 4
        %s271 = scalar_lea.vmem %s4, %s270
      $region36: #{joint_ceeq_fwd.3} parent=27 // pred_fallthru
        _
      // Predicated region
      $region37: #{joint_ceeq_fwd.3} parent=27 // pred_check
        %p272 = pneg %p149
      $region38: #{joint_ceeq_fwd.3} parent=27 // pred_check_branch
        %274 = sbr.rel (%p272) target = $region40
      $region39: #{joint_ceeq_fwd.3} parent=27 // pred_region
        %p275 = scmp.lt.s32.totalorder %s14, 1
        %s276 = scalar_select %p275, %s14, 1
        %s277 = smul.addr %s276, 4
        %s278 = smul.addr %s277, 4
        %s279 = scalar_lea.vmem %s5, %s278
      $region40: #{joint_ceeq_fwd.3} parent=27 // pred_fallthru
        _
      // Predicated region
      $region41: #{joint_ceeq_fwd.3} parent=27 // pred_check
        %p280 = pneg %p175
      $region42: #{joint_ceeq_fwd.3} parent=27 // pred_check_branch
        %282 = sbr.rel (%p280) target = $region44
      $region43: #{joint_ceeq_fwd.3} parent=27 // pred_region
        %p283 = scmp.lt.s32.totalorder %s14, 1
        %s284 = scalar_select %p283, %s14, 1
        %s285 = smul.addr %s284, 8
        %s286 = smul.addr %s285, 4
        %s287 = scalar_lea.vmem %s6, %s286
      $region44: #{joint_ceeq_fwd.3} parent=27 // pred_fallthru
        _
      // Predicated region
      $region45: #{joint_ceeq_fwd.3} parent=27 // pred_check
        %p288 = pneg %p201
      $region46: #{joint_ceeq_fwd.3} parent=27 // pred_check_branch
        %290 = sbr.rel (%p288) target = $region48
      $region47: #{joint_ceeq_fwd.3} parent=27 // pred_region
        %p291 = scmp.lt.s32.totalorder %s14, 1
        %s292 = scalar_select %p291, %s14, 1
        %s293 = smul.addr %s292, 8
        %s294 = scalar_lea.vmem %s7, %s293
      $region48: #{joint_ceeq_fwd.3} parent=27 // pred_fallthru
        _
    $region28: #{joint_ceeq_fwd.3} parent=5 // pred_fallthru
      _
    %p295 = scmp.le.s32.totalorder 1, %s14
    %p296 = scmp.lt.s32.totalorder %s14, 3
    %p297 = pnand %p295, %p296
    %p298 = pneg %p297
    // Predicated region
    $region49: #{joint_ceeq_fwd.3} parent=5 // pred_check
      _
    $region50: #{joint_ceeq_fwd.3} parent=5 // pred_check_branch
      %300 = sbr.rel (%p297) target = $region52
    $region51: #{joint_ceeq_fwd.3} parent=5 // pred_region
      %s301 = ssub.s32 %s14, 1
      %p302 = pneg %p35
      %p303 = pneg %p32
      %p304 = pneg %p56
      %p305 = pneg %p53
      %p306 = pneg %p77
      %p307 = pneg %p74
      %p308 = scmp.lt.s32.totalorder %s19, 1
      %s309 = scalar_select %p308, %s19, 1
      %s310 = smul.addr %s309, 4
      %s311 = smul.addr %s310, 4
      %s312 = scalar_lea.vmem %s3, %s311
      %p313 = pneg %p103
      %p314 = pneg %p100
      %p315 = scmp.lt.s32.totalorder %s19, 1
      %s316 = scalar_select %p315, %s19, 1
      %s317 = smul.addr %s316, 4
      %s318 = smul.addr %s317, 4
      %s319 = scalar_lea.vmem %s4, %s318
      %p320 = pneg %p129
      %p321 = pneg %p126
      %p322 = scmp.lt.s32.totalorder %s19, 1
      %s323 = scalar_select %p322, %s19, 1
      %s324 = smul.addr %s323, 4
      %s325 = smul.addr %s324, 4
      %s326 = scalar_lea.vmem %s5, %s325
      %p327 = pneg %p155
      %p328 = pneg %p152
      %p329 = scmp.lt.s32.totalorder %s19, 1
      %s330 = scalar_select %p329, %s19, 1
      %s331 = smul.addr %s330, 8
      %s332 = smul.addr %s331, 4
      %s333 = scalar_lea.vmem %s6, %s332
      %p334 = pneg %p181
      %p335 = pneg %p178
      %p336 = scmp.lt.s32.totalorder %s19, 1
      %s337 = scalar_select %p336, %s19, 1
      %s338 = smul.addr %s337, 8
      %s339 = scalar_lea.vmem %s7, %s338
      %p340 = pneg %p207
      %p341 = pneg %p204
      %p342 = pneg %p228
      %p343 = pneg %p225
      %p344 = scmp.lt.s32.totalorder %s19, 1
      %s345 = scalar_select %p344, %s19, 1
      %s346 = smul.addr %s345, 4
      %s347 = smul.addr %s346, 4
      %s348 = scalar_lea.vmem %s3, %s347
      %p349 = scmp.lt.s32.totalorder %s19, 1
      %s350 = scalar_select %p349, %s19, 1
      %s351 = smul.addr %s350, 4
      %s352 = smul.addr %s351, 4
      %s353 = scalar_lea.vmem %s4, %s352
      %p354 = scmp.lt.s32.totalorder %s19, 1
      %s355 = scalar_select %p354, %s19, 1
      %s356 = smul.addr %s355, 4
      %s357 = smul.addr %s356, 4
      %s358 = scalar_lea.vmem %s5, %s357
      %p359 = scmp.lt.s32.totalorder %s19, 1
      %s360 = scalar_select %p359, %s19, 1
      %s361 = smul.addr %s360, 8
      %s362 = smul.addr %s361, 4
      %s363 = scalar_lea.vmem %s6, %s362
      %p364 = scmp.lt.s32.totalorder %s19, 1
      %s365 = scalar_select %p364, %s19, 1
      %s366 = smul.addr %s365, 8
      %s367 = scalar_lea.vmem %s7, %s366
      %p369 = scmp.eq.s32.totalorder %s19, 0
      // Predicated region
      $region53: #{joint_ceeq_fwd.3} parent=51 // pred_check
        %p370 = pneg %p369
      $region54: #{joint_ceeq_fwd.3} parent=51 // pred_check_branch
        %372 = sbr.rel (%p370) target = $region56
      $region55: #{joint_ceeq_fwd.3} parent=51 // pred_region
        %v373 = vld [vmem:[%s0] sm:$0xff]
        %v374 = vld [vmem:[%s0 + $0x8] sm:$0xff]
        %v375 = vld [vmem:[%s1] sm:$0xf]
        %v376 = vpack.c.bf16 %v374, %v373
        %v377 = vld [vmem:[%s2] sm:$0xff]
        %v378 = vld [vmem:[%s2 + $0x8] sm:$0xff]
        %vm379 = vcmask 64512
        %v381 = vsel %vm379, %v376, 0
        %vm383 = vcmask 1043456
        %v385 = vsel %vm383, %v375, 0
        %387 = vmatprep.subr.bf16.mxu0 0
        %388 = vmatpush1.bf16.msra.mxu0 0
        %389 = vmatprep.subr.bf16.mxu0 0
        %390 = vmatpush1.bf16.msra.mxu0 0
        %391 = vmatprep.subr.bf16.mxu0 0
        %392 = vmatpush1.bf16.msra.mxu0 0
        %393 = vmatprep.subr.bf16.mxu0 0
        %394 = vmatpush1.bf16.msra.mxu0 0
        %395 = vmatprep.subr.bf16.mxu0 0
        %396 = vmatpush1.bf16.msra.mxu0 0
        %397 = vmatprep.subr.bf16.mxu0 0
        %398 = vmatpush1.bf16.msra.mxu0 0
        %399 = vmatprep.subr.bf16.mxu0 0
        %400 = vmatpush1.bf16.msra.mxu0 0
        %401 = vmatprep.subr.bf16.mxu0 0
        %402 = vmatpush1.bf16.msra.mxu0 %v385
        %403 = vmatprep.subr.bf16.mxu0 0
        %404 = vmatpush2.bf16.msra.mxu0 0
        %405 = vmatprep.subr.bf16.mxu0 0
        %406 = vmatpush2.bf16.msra.mxu0 0
        %407 = vmatprep.subr.bf16.mxu0 0
        %408 = vmatpush2.bf16.msra.mxu0 0
        %409 = vmatprep.subr.bf16.mxu0 0
        %410 = vmatpush2.bf16.msra.mxu0 0
        %411 = vmatprep.subr.bf16.mxu0 0
        %412 = vmatpush2.bf16.msra.mxu0 0
        %413 = vmatprep.subr.bf16.mxu0 0
        %414 = vmatpush2.bf16.msra.mxu0 0
        %415 = vmatprep.subr.bf16.mxu0 0
        %416 = vmatpush2.bf16.msra.mxu0 0
        %417 = vmatprep.subr.bf16.mxu0 0
        %418 = vmatpush2.bf16.msra.mxu0 0
        %419 = vmatprep.mubr.bf16.mxu0 0
        %420 = vmatmul.mubr.bf16.gmra.mxu0 %v381
        %v421 = vpop.f32.mrf.mxu0
        %v422 = vadd.f32 %v377, %v421
        %v423 = vpop.f32.mrf.mxu0
        %v424 = vpop.f32.mrf.mxu0
        %v425 = vadd.f32 %v378, %v424
        %v426 = vpop.f32.mrf.mxu0
        %427 = vdwg.mxu0
        %vm428 = vcmask 261120
        %429 = vst.msk [vmem:[#allocation2] sm:$0xff] %vm428, %v422
        %430 = vst.msk [vmem:[#allocation2 + $0x8] sm:$0xff] %vm428, %v425
      $region56: #{joint_ceeq_fwd.3} parent=51 // pred_fallthru
        _
      %v431 = vld [vmem:[#allocation2] sm:$0xff]
      %v432 = vld [vmem:[#allocation2 + $0x8] sm:$0xff]
      %v433 = vld [vmem:[%s367] sm:$0xff]
      %v434 = vld [vmem:[%s348] sm:$0xf]
      %v435 = vld [vmem:[%s348 + $0x4] sm:$0xf]
      %v436 = vld [vmem:[%s348 + $0x8] sm:$0xf]
      %v437 = vld [vmem:[%s348 + $0xc] sm:$0xf]
      %v438 = vpack.c.bf16 %v432, %v431
      %v439 = vlaneseq
      %v440 = vshrl.u32 %v439, 7
      %v441 = vsub.s32 0, %v440
      %v442 = vrot.slane %v433, %v441
      %v447 = vunpack.c.l.b16 %v434
      %v448 = vunpack.c.l.b16 %v435
      %v449 = vunpack.c.l.b16 %v436
      %v450 = vunpack.c.l.b16 %v437
      %v451 = vpack.c.b16 %v448, %v447
      %v452 = vpack.c.b16 %v450, %v449
      %vm455 = vcmask 261120
      %v457 = vsel %vm455, %v438, 0
      %459 = vmatprep.subr.bf16.mxu0 0
      %460 = vmatpush1.bf16.msra.mxu0 0
      %461 = vmatprep.subr.bf16.mxu0 0
      %462 = vmatpush1.bf16.msra.mxu0 0
      %463 = vmatprep.subr.bf16.mxu0 0
      %464 = vmatpush1.bf16.msra.mxu0 0
      %465 = vmatprep.subr.bf16.mxu0 0
      %466 = vmatpush1.bf16.msra.mxu0 0
      %467 = vmatprep.subr.bf16.mxu0 0
      %468 = vmatpush1.bf16.msra.mxu0 0
      %469 = vmatprep.subr.bf16.mxu0 0
      %470 = vmatpush1.bf16.msra.mxu0 0
      %471 = vmatprep.subr.bf16.mxu0 0
      %472 = vmatpush1.bf16.msra.mxu0 %v452
      %473 = vmatprep.subr.bf16.mxu0 0
      %474 = vmatpush1.bf16.msra.mxu0 %v451
      %475 = vmatprep.subr.bf16.mxu0 0
      %476 = vmatpush2.bf16.msra.mxu0 0
      %477 = vmatprep.subr.bf16.mxu0 0
      %478 = vmatpush2.bf16.msra.mxu0 0
      %479 = vmatprep.subr.bf16.mxu0 0
      %480 = vmatpush2.bf16.msra.mxu0 0
      %481 = vmatprep.subr.bf16.mxu0 0
      %482 = vmatpush2.bf16.msra.mxu0 0
      %483 = vmatprep.subr.bf16.mxu0 0
      %484 = vmatpush2.bf16.msra.mxu0 0
      %485 = vmatprep.subr.bf16.mxu0 0
      %486 = vmatpush2.bf16.msra.mxu0 0
      %487 = vmatprep.subr.bf16.mxu0 0
      %488 = vmatpush2.bf16.msra.mxu0 0
      %489 = vmatprep.subr.bf16.mxu0 0
      %490 = vmatpush2.bf16.msra.mxu0 0
      %491 = vmatprep.mubr.bf16.mxu0 0
      %492 = vmatmul.mubr.bf16.gmra.mxu0 %v457
      %v493 = vpop.f32.mrf.mxu0
      %v494 = vadd.f32 %v442, %v493
      %v495 = vpop.f32.mrf.mxu0
      %v496 = vpop.f32.mrf.mxu0
      %v497 = vadd.f32 %v442, %v496
      %v498 = vpop.f32.mrf.mxu0
      %499 = vdwg.mxu0
      %v500 = vpack.c.bf16 %v494, %v494
      %v501 = vpack.c.bf16 %v497, %v497
      %503 = vrot.lane.b32.xlu0 %v500, 96
      %v504 = vpop.permute.xlu0 %503
      %vm505 = vcmask 64512
      %v507 = vsel %vm505, %v500, 0
      %v510 = vsel %vm505, %v504, 0
      %512 = vmatprep.subr.bf16.mxu0 0
      %513 = vmatpush1.bf16.xpose.msra.mxu0 0
      %514 = vmatprep.subr.bf16.mxu0 0
      %515 = vmatpush1.bf16.xpose.msra.mxu0 0
      %516 = vmatprep.subr.bf16.mxu0 0
      %517 = vmatpush1.bf16.xpose.msra.mxu0 0
      %518 = vmatprep.subr.bf16.mxu0 0
      %519 = vmatpush1.bf16.xpose.msra.mxu0 0
      %520 = vmatprep.subr.bf16.mxu0 0
      %521 = vmatpush1.bf16.xpose.msra.mxu0 0
      %522 = vmatprep.subr.bf16.mxu0 0
      %523 = vmatpush1.bf16.xpose.msra.mxu0 0
      %524 = vmatprep.subr.bf16.mxu0 0
      %525 = vmatpush1.bf16.xpose.msra.mxu0 0
      %526 = vmatprep.subr.bf16.mxu0 0
      %527 = vmatpush1.bf16.xpose.msra.mxu0 %v510
      %528 = vmatprep.subr.bf16.mxu0 0
      %529 = vmatpush2.bf16.xpose.msra.mxu0 0
      %530 = vmatprep.subr.bf16.mxu0 0
      %531 = vmatpush2.bf16.xpose.msra.mxu0 0
      %532 = vmatprep.subr.bf16.mxu0 0
      %533 = vmatpush2.bf16.xpose.msra.mxu0 0
      %534 = vmatprep.subr.bf16.mxu0 0
      %535 = vmatpush2.bf16.xpose.msra.mxu0 0
      %536 = vmatprep.subr.bf16.mxu0 0
      %537 = vmatpush2.bf16.xpose.msra.mxu0 0
      %538 = vmatprep.subr.bf16.mxu0 0
      %539 = vmatpush2.bf16.xpose.msra.mxu0 0
      %540 = vmatprep.subr.bf16.mxu0 0
      %541 = vmatpush2.bf16.xpose.msra.mxu0 0
      %542 = vmatprep.subr.bf16.mxu0 0
      %543 = vmatpush2.bf16.xpose.msra.mxu0 0
      %544 = vmatprep.mubr.bf16.mxu0 0
      %545 = vmatmul.mubr.bf16.gmra.mxu0 %v507
      %v546 = vpop.f32.mrf.mxu0
      %v547 = vadd.f32 0.0, %v546
      %v548 = vpop.f32.mrf.mxu0
      %v549 = vpop.f32.mrf.mxu0
      %v550 = vpop.f32.mrf.mxu0
      %551 = vdwg.mxu0
      %553 = vrot.lane.b32.xlu0 %v501, 96
      %v554 = vpop.permute.xlu0 %553
      %v556 = vsel %vm505, %v501, 0
      %v559 = vsel %vm505, %v554, 0
      %561 = vmatprep.subr.bf16.mxu0 0
      %562 = vmatpush1.bf16.xpose.msra.mxu0 0
      %563 = vmatprep.subr.bf16.mxu0 0
      %564 = vmatpush1.bf16.xpose.msra.mxu0 0
      %565 = vmatprep.subr.bf16.mxu0 0
      %566 = vmatpush1.bf16.xpose.msra.mxu0 0
      %567 = vmatprep.subr.bf16.mxu0 0
      %568 = vmatpush1.bf16.xpose.msra.mxu0 0
      %569 = vmatprep.subr.bf16.mxu0 0
      %570 = vmatpush1.bf16.xpose.msra.mxu0 0
      %571 = vmatprep.subr.bf16.mxu0 0
      %572 = vmatpush1.bf16.xpose.msra.mxu0 0
      %573 = vmatprep.subr.bf16.mxu0 0
      %574 = vmatpush1.bf16.xpose.msra.mxu0 0
      %575 = vmatprep.subr.bf16.mxu0 0
      %576 = vmatpush1.bf16.xpose.msra.mxu0 %v559
      %577 = vmatprep.subr.bf16.mxu0 0
      %578 = vmatpush2.bf16.xpose.msra.mxu0 0
      %579 = vmatprep.subr.bf16.mxu0 0
      %580 = vmatpush2.bf16.xpose.msra.mxu0 0
      %581 = vmatprep.subr.bf16.mxu0 0
      %582 = vmatpush2.bf16.xpose.msra.mxu0 0
      %583 = vmatprep.subr.bf16.mxu0 0
      %584 = vmatpush2.bf16.xpose.msra.mxu0 0
      %585 = vmatprep.subr.bf16.mxu0 0
      %586 = vmatpush2.bf16.xpose.msra.mxu0 0
      %587 = vmatprep.subr.bf16.mxu0 0
      %588 = vmatpush2.bf16.xpose.msra.mxu0 0
      %589 = vmatprep.subr.bf16.mxu0 0
      %590 = vmatpush2.bf16.xpose.msra.mxu0 0
      %591 = vmatprep.subr.bf16.mxu0 0
      %592 = vmatpush2.bf16.xpose.msra.mxu0 0
      %593 = vmatprep.mubr.bf16.mxu0 0
      %594 = vmatmul.mubr.bf16.gmra.mxu0 %v556
      %v595 = vpop.f32.mrf.mxu0
      %v596 = vadd.f32 0.0, %v595
      %v597 = vpop.f32.mrf.mxu0
      %v598 = vpop.f32.mrf.mxu0
      %v599 = vpop.f32.mrf.mxu0
      %600 = vdwg.mxu0
      %v601 = vmul.f32 %v547, 0.35355338
      %v602 = vmul.f32 %v596, 0.35355338
      %v603 = vsel %vm505, %v601, -inf
      %604 = vmax.xlane.f32.xlu0 %v603
      %v605 = vpop.xlane.xlu0 %604
      %v606 = vsel %vm505, %v602, -inf
      %607 = vmax.xlane.f32.xlu0 %v606
      %v608 = vpop.xlane.xlu0 %607
      %v609 = vsub.f32 %v601, %v605
      %v610 = vsub.f32 %v602, %v608
      %v611 = vmul.f32 %v609, 1.442695
      %v612 = vpow.pop %v611
      %v613 = vmul.f32 %v610, 1.442695
      %v614 = vpow.pop %v613
      %v615 = vsel %vm505, %v612, 0.0
      %616 = vadd.xlane.f32.xlu0 %v615
      %v617 = vpop.xlane.xlu0 %616
      %v618 = vsel %vm505, %v614, 0.0
      %619 = vadd.xlane.f32.xlu0 %v618
      %v620 = vpop.xlane.xlu0 %619
      %v621 = vrcp.pop %v617
      %v622 = vrcp.pop %v620
      %v623 = vmul.f32 %v612, %v621
      %v624 = vmul.f32 %v614, %v622
      %v625 = vpack.c.bf16 %v623, %v623
      %v626 = vpack.c.bf16 %v624, %v624
      %627 = vrot.lane.b32.xlu0 %v500, 64
      %v628 = vpop.permute.xlu0 %627
      %v630 = vsel %vm505, %v625, 0
      %vm632 = vcmask 1043456
      %v634 = vsel %vm632, %v628, 0
      %636 = vmatprep.subr.bf16.mxu0 0
      %637 = vmatpush1.bf16.msra.mxu0 0
      %638 = vmatprep.subr.bf16.mxu0 0
      %639 = vmatpush1.bf16.msra.mxu0 0
      %640 = vmatprep.subr.bf16.mxu0 0
      %641 = vmatpush1.bf16.msra.mxu0 0
      %642 = vmatprep.subr.bf16.mxu0 0
      %643 = vmatpush1.bf16.msra.mxu0 0
      %644 = vmatprep.subr.bf16.mxu0 0
      %645 = vmatpush1.bf16.msra.mxu0 0
      %646 = vmatprep.subr.bf16.mxu0 0
      %647 = vmatpush1.bf16.msra.mxu0 0
      %648 = vmatprep.subr.bf16.mxu0 0
      %649 = vmatpush1.bf16.msra.mxu0 0
      %650 = vmatprep.subr.bf16.mxu0 0
      %651 = vmatpush1.bf16.msra.mxu0 %v634
      %652 = vmatprep.subr.bf16.mxu0 0
      %653 = vmatpush2.bf16.msra.mxu0 0
      %654 = vmatprep.subr.bf16.mxu0 0
      %655 = vmatpush2.bf16.msra.mxu0 0
      %656 = vmatprep.subr.bf16.mxu0 0
      %657 = vmatpush2.bf16.msra.mxu0 0
      %658 = vmatprep.subr.bf16.mxu0 0
      %659 = vmatpush2.bf16.msra.mxu0 0
      %660 = vmatprep.subr.bf16.mxu0 0
      %661 = vmatpush2.bf16.msra.mxu0 0
      %662 = vmatprep.subr.bf16.mxu0 0
      %663 = vmatpush2.bf16.msra.mxu0 0
      %664 = vmatprep.subr.bf16.mxu0 0
      %665 = vmatpush2.bf16.msra.mxu0 0
      %666 = vmatprep.subr.bf16.mxu0 0
      %667 = vmatpush2.bf16.msra.mxu0 0
      %668 = vmatprep.mubr.bf16.mxu0 0
      %669 = vmatmul.mubr.bf16.gmra.mxu0 %v630
      %v670 = vpop.f32.mrf.mxu0
      %v671 = vadd.f32 0.0, %v670
      %v672 = vpop.f32.mrf.mxu0
      %v673 = vpop.f32.mrf.mxu0
      %v674 = vpop.f32.mrf.mxu0
      %675 = vdwg.mxu0
      %676 = vrot.lane.b32.xlu0 %v501, 64
      %v677 = vpop.permute.xlu0 %676
      %v679 = vsel %vm505, %v626, 0
      %v682 = vsel %vm632, %v677, 0
      %684 = vmatprep.subr.bf16.mxu0 0
      %685 = vmatpush1.bf16.msra.mxu0 0
      %686 = vmatprep.subr.bf16.mxu0 0
      %687 = vmatpush1.bf16.msra.mxu0 0
      %688 = vmatprep.subr.bf16.mxu0 0
      %689 = vmatpush1.bf16.msra.mxu0 0
      %690 = vmatprep.subr.bf16.mxu0 0
      %691 = vmatpush1.bf16.msra.mxu0 0
      %692 = vmatprep.subr.bf16.mxu0 0
      %693 = vmatpush1.bf16.msra.mxu0 0
      %694 = vmatprep.subr.bf16.mxu0 0
      %695 = vmatpush1.bf16.msra.mxu0 0
      %696 = vmatprep.subr.bf16.mxu0 0
      %697 = vmatpush1.bf16.msra.mxu0 0
      %698 = vmatprep.subr.bf16.mxu0 0
      %699 = vmatpush1.bf16.msra.mxu0 %v682
      %700 = vmatprep.subr.bf16.mxu0 0
      %701 = vmatpush2.bf16.msra.mxu0 0
      %702 = vmatprep.subr.bf16.mxu0 0
      %703 = vmatpush2.bf16.msra.mxu0 0
      %704 = vmatprep.subr.bf16.mxu0 0
      %705 = vmatpush2.bf16.msra.mxu0 0
      %706 = vmatprep.subr.bf16.mxu0 0
      %707 = vmatpush2.bf16.msra.mxu0 0
      %708 = vmatprep.subr.bf16.mxu0 0
      %709 = vmatpush2.bf16.msra.mxu0 0
      %710 = vmatprep.subr.bf16.mxu0 0
      %711 = vmatpush2.bf16.msra.mxu0 0
      %712 = vmatprep.subr.bf16.mxu0 0
      %713 = vmatpush2.bf16.msra.mxu0 0
      %714 = vmatprep.subr.bf16.mxu0 0
      %715 = vmatpush2.bf16.msra.mxu0 0
      %716 = vmatprep.mubr.bf16.mxu0 0
      %717 = vmatmul.mubr.bf16.gmra.mxu0 %v679
      %v718 = vpop.f32.mrf.mxu0
      %v719 = vadd.f32 0.0, %v718
      %v720 = vpop.f32.mrf.mxu0
      %v721 = vpop.f32.mrf.mxu0
      %v722 = vpop.f32.mrf.mxu0
      %723 = vdwg.mxu0
      %v724 = vpack.c.bf16 %v719, %v671
      %v725 = vld [vmem:[%s353] sm:$0xf]
      %726 = vrot.lane.b32.xlu0 %v500, 120
      %v727 = vpop.permute.xlu0 %726
      %728 = vrot.lane.b32.xlu0 %v500, 88
      %v729 = vpop.permute.xlu0 %728
      %v731 = vsel %vm505, %v727, 0
      %v734 = vsel %vm505, %v729, 0
      %736 = vmatprep.subr.bf16.mxu0 0
      %737 = vmatpush1.bf16.xpose.msra.mxu0 0
      %738 = vmatprep.subr.bf16.mxu0 0
      %739 = vmatpush1.bf16.xpose.msra.mxu0 0
      %740 = vmatprep.subr.bf16.mxu0 0
      %741 = vmatpush1.bf16.xpose.msra.mxu0 0
      %742 = vmatprep.subr.bf16.mxu0 0
      %743 = vmatpush1.bf16.xpose.msra.mxu0 0
      %744 = vmatprep.subr.bf16.mxu0 0
      %745 = vmatpush1.bf16.xpose.msra.mxu0 0
      %746 = vmatprep.subr.bf16.mxu0 0
      %747 = vmatpush1.bf16.xpose.msra.mxu0 0
      %748 = vmatprep.subr.bf16.mxu0 0
      %749 = vmatpush1.bf16.xpose.msra.mxu0 0
      %750 = vmatprep.subr.bf16.mxu0 0
      %751 = vmatpush1.bf16.xpose.msra.mxu0 %v734
      %752 = vmatprep.subr.bf16.mxu0 0
      %753 = vmatpush2.bf16.xpose.msra.mxu0 0
      %754 = vmatprep.subr.bf16.mxu0 0
      %755 = vmatpush2.bf16.xpose.msra.mxu0 0
      %756 = vmatprep.subr.bf16.mxu0 0
      %757 = vmatpush2.bf16.xpose.msra.mxu0 0
      %758 = vmatprep.subr.bf16.mxu0 0
      %759 = vmatpush2.bf16.xpose.msra.mxu0 0
      %760 = vmatprep.subr.bf16.mxu0 0
      %761 = vmatpush2.bf16.xpose.msra.mxu0 0
      %762 = vmatprep.subr.bf16.mxu0 0
      %763 = vmatpush2.bf16.xpose.msra.mxu0 0
      %764 = vmatprep.subr.bf16.mxu0 0
      %765 = vmatpush2.bf16.xpose.msra.mxu0 0
      %766 = vmatprep.subr.bf16.mxu0 0
      %767 = vmatpush2.bf16.xpose.msra.mxu0 0
      %768 = vmatprep.mubr.bf16.mxu0 0
      %769 = vmatmul.mubr.bf16.gmra.mxu0 %v731
      %v770 = vpop.f32.mrf.mxu0
      %v771 = vadd.f32 0.0, %v770
      %v772 = vpop.f32.mrf.mxu0
      %v773 = vpop.f32.mrf.mxu0
      %v774 = vpop.f32.mrf.mxu0
      %775 = vdwg.mxu0
      %776 = vrot.lane.b32.xlu0 %v501, 120
      %v777 = vpop.permute.xlu0 %776
      %778 = vrot.lane.b32.xlu0 %v501, 88
      %v779 = vpop.permute.xlu0 %778
      %v781 = vsel %vm505, %v777, 0
      %v784 = vsel %vm505, %v779, 0
      %786 = vmatprep.subr.bf16.mxu0 0
      %787 = vmatpush1.bf16.xpose.msra.mxu0 0
      %788 = vmatprep.subr.bf16.mxu0 0
      %789 = vmatpush1.bf16.xpose.msra.mxu0 0
      %790 = vmatprep.subr.bf16.mxu0 0
      %791 = vmatpush1.bf16.xpose.msra.mxu0 0
      %792 = vmatprep.subr.bf16.mxu0 0
      %793 = vmatpush1.bf16.xpose.msra.mxu0 0
      %794 = vmatprep.subr.bf16.mxu0 0
      %795 = vmatpush1.bf16.xpose.msra.mxu0 0
      %796 = vmatprep.subr.bf16.mxu0 0
      %797 = vmatpush1.bf16.xpose.msra.mxu0 0
      %798 = vmatprep.subr.bf16.mxu0 0
      %799 = vmatpush1.bf16.xpose.msra.mxu0 0
      %800 = vmatprep.subr.bf16.mxu0 0
      %801 = vmatpush1.bf16.xpose.msra.mxu0 %v784
      %802 = vmatprep.subr.bf16.mxu0 0
      %803 = vmatpush2.bf16.xpose.msra.mxu0 0
      %804 = vmatprep.subr.bf16.mxu0 0
      %805 = vmatpush2.bf16.xpose.msra.mxu0 0
      %806 = vmatprep.subr.bf16.mxu0 0
      %807 = vmatpush2.bf16.xpose.msra.mxu0 0
      %808 = vmatprep.subr.bf16.mxu0 0
      %809 = vmatpush2.bf16.xpose.msra.mxu0 0
      %810 = vmatprep.subr.bf16.mxu0 0
      %811 = vmatpush2.bf16.xpose.msra.mxu0 0
      %812 = vmatprep.subr.bf16.mxu0 0
      %813 = vmatpush2.bf16.xpose.msra.mxu0 0
      %814 = vmatprep.subr.bf16.mxu0 0
      %815 = vmatpush2.bf16.xpose.msra.mxu0 0
      %816 = vmatprep.subr.bf16.mxu0 0
      %817 = vmatpush2.bf16.xpose.msra.mxu0 0
      %818 = vmatprep.mubr.bf16.mxu0 0
      %819 = vmatmul.mubr.bf16.gmra.mxu0 %v781
      %v820 = vpop.f32.mrf.mxu0
      %v821 = vadd.f32 0.0, %v820
      %v822 = vpop.f32.mrf.mxu0
      %v823 = vpop.f32.mrf.mxu0
      %v824 = vpop.f32.mrf.mxu0
      %825 = vdwg.mxu0
      %v826 = vmul.f32 %v771, 0.35355338
      %v827 = vmul.f32 %v821, 0.35355338
      %v828 = vsel %vm505, %v826, -inf
      %829 = vmax.xlane.f32.xlu0 %v828
      %v830 = vpop.xlane.xlu0 %829
      %v831 = vsel %vm505, %v827, -inf
      %832 = vmax.xlane.f32.xlu0 %v831
      %v833 = vpop.xlane.xlu0 %832
      %v834 = vsub.f32 %v826, %v830
      %v835 = vsub.f32 %v827, %v833
      %v836 = vmul.f32 %v834, 1.442695
      %v837 = vpow.pop %v836
      %v838 = vmul.f32 %v835, 1.442695
      %v839 = vpow.pop %v838
      %v840 = vsel %vm505, %v837, 0.0
      %841 = vadd.xlane.f32.xlu0 %v840
      %v842 = vpop.xlane.xlu0 %841
      %v843 = vsel %vm505, %v839, 0.0
      %844 = vadd.xlane.f32.xlu0 %v843
      %v845 = vpop.xlane.xlu0 %844
      %v846 = vrcp.pop %v842
      %v847 = vrcp.pop %v845
      %v848 = vmul.f32 %v837, %v846
      %v849 = vmul.f32 %v839, %v847
      %v850 = vpack.c.bf16 %v848, %v848
      %v851 = vpack.c.bf16 %v849, %v849
      %852 = vrot.lane.b32.xlu0 %v500, 56
      %v853 = vpop.permute.xlu0 %852
      %v855 = vsel %vm505, %v850, 0
      %v858 = vsel %vm632, %v853, 0
      %860 = vmatprep.subr.bf16.mxu0 0
      %861 = vmatpush1.bf16.msra.mxu0 0
      %862 = vmatprep.subr.bf16.mxu0 0
      %863 = vmatpush1.bf16.msra.mxu0 0
      %864 = vmatprep.subr.bf16.mxu0 0
      %865 = vmatpush1.bf16.msra.mxu0 0
      %866 = vmatprep.subr.bf16.mxu0 0
      %867 = vmatpush1.bf16.msra.mxu0 0
      %868 = vmatprep.subr.bf16.mxu0 0
      %869 = vmatpush1.bf16.msra.mxu0 0
      %870 = vmatprep.subr.bf16.mxu0 0
      %871 = vmatpush1.bf16.msra.mxu0 0
      %872 = vmatprep.subr.bf16.mxu0 0
      %873 = vmatpush1.bf16.msra.mxu0 0
      %874 = vmatprep.subr.bf16.mxu0 0
      %875 = vmatpush1.bf16.msra.mxu0 %v858
      %876 = vmatprep.subr.bf16.mxu0 0
      %877 = vmatpush2.bf16.msra.mxu0 0
      %878 = vmatprep.subr.bf16.mxu0 0
      %879 = vmatpush2.bf16.msra.mxu0 0
      %880 = vmatprep.subr.bf16.mxu0 0
      %881 = vmatpush2.bf16.msra.mxu0 0
      %882 = vmatprep.subr.bf16.mxu0 0
      %883 = vmatpush2.bf16.msra.mxu0 0
      %884 = vmatprep.subr.bf16.mxu0 0
      %885 = vmatpush2.bf16.msra.mxu0 0
      %886 = vmatprep.subr.bf16.mxu0 0
      %887 = vmatpush2.bf16.msra.mxu0 0
      %888 = vmatprep.subr.bf16.mxu0 0
      %889 = vmatpush2.bf16.msra.mxu0 0
      %890 = vmatprep.subr.bf16.mxu0 0
      %891 = vmatpush2.bf16.msra.mxu0 0
      %892 = vmatprep.mubr.bf16.mxu0 0
      %893 = vmatmul.mubr.bf16.gmra.mxu0 %v855
      %v894 = vpop.f32.mrf.mxu0
      %v895 = vadd.f32 0.0, %v894
      %v896 = vpop.f32.mrf.mxu0
      %v897 = vpop.f32.mrf.mxu0
      %v898 = vpop.f32.mrf.mxu0
      %899 = vdwg.mxu0
      %900 = vrot.lane.b32.xlu0 %v501, 56
      %v901 = vpop.permute.xlu0 %900
      %v903 = vsel %vm505, %v851, 0
      %v906 = vsel %vm632, %v901, 0
      %908 = vmatprep.subr.bf16.mxu0 0
      %909 = vmatpush1.bf16.msra.mxu0 0
      %910 = vmatprep.subr.bf16.mxu0 0
      %911 = vmatpush1.bf16.msra.mxu0 0
      %912 = vmatprep.subr.bf16.mxu0 0
      %913 = vmatpush1.bf16.msra.mxu0 0
      %914 = vmatprep.subr.bf16.mxu0 0
      %915 = vmatpush1.bf16.msra.mxu0 0
      %916 = vmatprep.subr.bf16.mxu0 0
      %917 = vmatpush1.bf16.msra.mxu0 0
      %918 = vmatprep.subr.bf16.mxu0 0
      %919 = vmatpush1.bf16.msra.mxu0 0
      %920 = vmatprep.subr.bf16.mxu0 0
      %921 = vmatpush1.bf16.msra.mxu0 0
      %922 = vmatprep.subr.bf16.mxu0 0
      %923 = vmatpush1.bf16.msra.mxu0 %v906
      %924 = vmatprep.subr.bf16.mxu0 0
      %925 = vmatpush2.bf16.msra.mxu0 0
      %926 = vmatprep.subr.bf16.mxu0 0
      %927 = vmatpush2.bf16.msra.mxu0 0
      %928 = vmatprep.subr.bf16.mxu0 0
      %929 = vmatpush2.bf16.msra.mxu0 0
      %930 = vmatprep.subr.bf16.mxu0 0
      %931 = vmatpush2.bf16.msra.mxu0 0
      %932 = vmatprep.subr.bf16.mxu0 0
      %933 = vmatpush2.bf16.msra.mxu0 0
      %934 = vmatprep.subr.bf16.mxu0 0
      %935 = vmatpush2.bf16.msra.mxu0 0
      %936 = vmatprep.subr.bf16.mxu0 0
      %937 = vmatpush2.bf16.msra.mxu0 0
      %938 = vmatprep.subr.bf16.mxu0 0
      %939 = vmatpush2.bf16.msra.mxu0 0
      %940 = vmatprep.mubr.bf16.mxu0 0
      %941 = vmatmul.mubr.bf16.gmra.mxu0 %v903
      %v942 = vpop.f32.mrf.mxu0
      %v943 = vadd.f32 0.0, %v942
      %v944 = vpop.f32.mrf.mxu0
      %v945 = vpop.f32.mrf.mxu0
      %v946 = vpop.f32.mrf.mxu0
      %947 = vdwg.mxu0
      %v948 = vpack.c.bf16 %v943, %v895
      %v949 = vld [vmem:[%s353 + $0x4] sm:$0xf]
      %v951 = vsel %vm505, %v948, 0
      %v954 = vsel %vm632, %v949, 0
      %956 = vmatprep.subr.bf16.mxu0 0
      %957 = vmatpush1.bf16.msra.mxu0 0
      %958 = vmatprep.subr.bf16.mxu0 0
      %959 = vmatpush1.bf16.msra.mxu0 0
      %960 = vmatprep.subr.bf16.mxu0 0
      %961 = vmatpush1.bf16.msra.mxu0 0
      %962 = vmatprep.subr.bf16.mxu0 0
      %963 = vmatpush1.bf16.msra.mxu0 0
      %964 = vmatprep.subr.bf16.mxu0 0
      %965 = vmatpush1.bf16.msra.mxu0 0
      %966 = vmatprep.subr.bf16.mxu0 0
      %967 = vmatpush1.bf16.msra.mxu0 0
      %968 = vmatprep.subr.bf16.mxu0 0
      %969 = vmatpush1.bf16.msra.mxu0 0
      %970 = vmatprep.subr.bf16.mxu0 0
      %971 = vmatpush1.bf16.msra.mxu0 %v954
      %972 = vmatprep.subr.bf16.mxu0 0
      %973 = vmatpush2.bf16.msra.mxu0 0
      %974 = vmatprep.subr.bf16.mxu0 0
      %975 = vmatpush2.bf16.msra.mxu0 0
      %976 = vmatprep.subr.bf16.mxu0 0
      %977 = vmatpush2.bf16.msra.mxu0 0
      %978 = vmatprep.subr.bf16.mxu0 0
      %979 = vmatpush2.bf16.msra.mxu0 0
      %980 = vmatprep.subr.bf16.mxu0 0
      %981 = vmatpush2.bf16.msra.mxu0 0
      %982 = vmatprep.subr.bf16.mxu0 0
      %983 = vmatpush2.bf16.msra.mxu0 0
      %984 = vmatprep.subr.bf16.mxu0 0
      %985 = vmatpush2.bf16.msra.mxu0 0
      %986 = vmatprep.subr.bf16.mxu0 0
      %987 = vmatpush2.bf16.msra.mxu0 0
      %988 = vmatprep.mubr.bf16.mxu0 0
      %989 = vmatmul.mubr.bf16.gmra.mxu0 %v951
      %v990 = vpop.f32.mrf.mxu0
      %v991 = vadd.f32 0.0, %v990
      %v992 = vpop.f32.mrf.mxu0
      %v993 = vpop.f32.mrf.mxu0
      %v994 = vadd.f32 0.0, %v993
      %v995 = vpop.f32.mrf.mxu0
      %996 = vdwg.mxu0
      %v998 = vsel %vm505, %v724, 0
      %v1001 = vsel %vm632, %v725, 0
      %1003 = vmatprep.subr.bf16.mxu0 0
      %1004 = vmatpush1.bf16.msra.mxu0 0
      %1005 = vmatprep.subr.bf16.mxu0 0
      %1006 = vmatpush1.bf16.msra.mxu0 0
      %1007 = vmatprep.subr.bf16.mxu0 0
      %1008 = vmatpush1.bf16.msra.mxu0 0
      %1009 = vmatprep.subr.bf16.mxu0 0
      %1010 = vmatpush1.bf16.msra.mxu0 0
      %1011 = vmatprep.subr.bf16.mxu0 0
      %1012 = vmatpush1.bf16.msra.mxu0 0
      %1013 = vmatprep.subr.bf16.mxu0 0
      %1014 = vmatpush1.bf16.msra.mxu0 0
      %1015 = vmatprep.subr.bf16.mxu0 0
      %1016 = vmatpush1.bf16.msra.mxu0 0
      %1017 = vmatprep.subr.bf16.mxu0 0
      %1018 = vmatpush1.bf16.msra.mxu0 %v1001
      %1019 = vmatprep.subr.bf16.mxu0 0
      %1020 = vmatpush2.bf16.msra.mxu0 0
      %1021 = vmatprep.subr.bf16.mxu0 0
      %1022 = vmatpush2.bf16.msra.mxu0 0
      %1023 = vmatprep.subr.bf16.mxu0 0
      %1024 = vmatpush2.bf16.msra.mxu0 0
      %1025 = vmatprep.subr.bf16.mxu0 0
      %1026 = vmatpush2.bf16.msra.mxu0 0
      %1027 = vmatprep.subr.bf16.mxu0 0
      %1028 = vmatpush2.bf16.msra.mxu0 0
      %1029 = vmatprep.subr.bf16.mxu0 0
      %1030 = vmatpush2.bf16.msra.mxu0 0
      %1031 = vmatprep.subr.bf16.mxu0 0
      %1032 = vmatpush2.bf16.msra.mxu0 0
      %1033 = vmatprep.subr.bf16.mxu0 0
      %1034 = vmatpush2.bf16.msra.mxu0 0
      %1035 = vmatprep.mubr.bf16.mxu0 0
      %1036 = vmatmul.mubr.bf16.gmra.mxu0 %v998
      %v1037 = vpop.f32.mrf.mxu0
      %v1038 = vadd.f32 %v991, %v1037
      %v1039 = vpop.f32.mrf.mxu0
      %v1040 = vpop.f32.mrf.mxu0
      %v1041 = vadd.f32 %v994, %v1040
      %v1042 = vpop.f32.mrf.mxu0
      %1043 = vdwg.mxu0
      %1044 = vrot.lane.b32.xlu0 %v500, 112
      %v1045 = vpop.permute.xlu0 %1044
      %1046 = vrot.lane.b32.xlu0 %v500, 80
      %v1047 = vpop.permute.xlu0 %1046
      %v1049 = vsel %vm505, %v1045, 0
      %v1052 = vsel %vm505, %v1047, 0
      %1054 = vmatprep.subr.bf16.mxu0 0
      %1055 = vmatpush1.bf16.xpose.msra.mxu0 0
      %1056 = vmatprep.subr.bf16.mxu0 0
      %1057 = vmatpush1.bf16.xpose.msra.mxu0 0
      %1058 = vmatprep.subr.bf16.mxu0 0
      %1059 = vmatpush1.bf16.xpose.msra.mxu0 0
      %1060 = vmatprep.subr.bf16.mxu0 0
      %1061 = vmatpush1.bf16.xpose.msra.mxu0 0
      %1062 = vmatprep.subr.bf16.mxu0 0
      %1063 = vmatpush1.bf16.xpose.msra.mxu0 0
      %1064 = vmatprep.subr.bf16.mxu0 0
      %1065 = vmatpush1.bf16.xpose.msra.mxu0 0
      %1066 = vmatprep.subr.bf16.mxu0 0
      %1067 = vmatpush1.bf16.xpose.msra.mxu0 0
      %1068 = vmatprep.subr.bf16.mxu0 0
      %1069 = vmatpush1.bf16.xpose.msra.mxu0 %v1052
      %1070 = vmatprep.subr.bf16.mxu0 0
      %1071 = vmatpush2.bf16.xpose.msra.mxu0 0
      %1072 = vmatprep.subr.bf16.mxu0 0
      %1073 = vmatpush2.bf16.xpose.msra.mxu0 0
      %1074 = vmatprep.subr.bf16.mxu0 0
      %1075 = vmatpush2.bf16.xpose.msra.mxu0 0
      %1076 = vmatprep.subr.bf16.mxu0 0
      %1077 = vmatpush2.bf16.xpose.msra.mxu0 0
      %1078 = vmatprep.subr.bf16.mxu0 0
      %1079 = vmatpush2.bf16.xpose.msra.mxu0 0
      %1080 = vmatprep.subr.bf16.mxu0 0
      %1081 = vmatpush2.bf16.xpose.msra.mxu0 0
      %1082 = vmatprep.subr.bf16.mxu0 0
      %1083 = vmatpush2.bf16.xpose.msra.mxu0 0
      %1084 = vmatprep.subr.bf16.mxu0 0
      %1085 = vmatpush2.bf16.xpose.msra.mxu0 0
      %1086 = vmatprep.mubr.bf16.mxu0 0
      %1087 = vmatmul.mubr.bf16.gmra.mxu0 %v1049
      %v1088 = vpop.f32.mrf.mxu0
      %v1089 = vadd.f32 0.0, %v1088
      %v1090 = vpop.f32.mrf.mxu0
      %v1091 = vpop.f32.mrf.mxu0
      %v1092 = vpop.f32.mrf.mxu0
      %1093 = vdwg.mxu0
      %1094 = vrot.lane.b32.xlu0 %v501, 112
      %v1095 = vpop.permute.xlu0 %1094
      %1096 = vrot.lane.b32.xlu0 %v501, 80
      %v1097 = vpop.permute.xlu0 %1096
      %v1099 = vsel %vm505, %v1095, 0
      %v1102 = vsel %vm505, %v1097, 0
      %1104 = vmatprep.subr.bf16.mxu0 0
      %1105 = vmatpush1.bf16.xpose.msra.mxu0 0
      %1106 = vmatprep.subr.bf16.mxu0 0
      %1107 = vmatpush1.bf16.xpose.msra.mxu0 0
      %1108 = vmatprep.subr.bf16.mxu0 0
      %1109 = vmatpush1.bf16.xpose.msra.mxu0 0
      %1110 = vmatprep.subr.bf16.mxu0 0
      %1111 = vmatpush1.bf16.xpose.msra.mxu0 0
      %1112 = vmatprep.subr.bf16.mxu0 0
      %1113 = vmatpush1.bf16.xpose.msra.mxu0 0
      %1114 = vmatprep.subr.bf16.mxu0 0
      %1115 = vmatpush1.bf16.xpose.msra.mxu0 0
      %1116 = vmatprep.subr.bf16.mxu0 0
      %1117 = vmatpush1.bf16.xpose.msra.mxu0 0
      %1118 = vmatprep.subr.bf16.mxu0 0
      %1119 = vmatpush1.bf16.xpose.msra.mxu0 %v1102
      %1120 = vmatprep.subr.bf16.mxu0 0
      %1121 = vmatpush2.bf16.xpose.msra.mxu0 0
      %1122 = vmatprep.subr.bf16.mxu0 0
      %1123 = vmatpush2.bf16.xpose.msra.mxu0 0
      %1124 = vmatprep.subr.bf16.mxu0 0
      %1125 = vmatpush2.bf16.xpose.msra.mxu0 0
      %1126 = vmatprep.subr.bf16.mxu0 0
      %1127 = vmatpush2.bf16.xpose.msra.mxu0 0
      %1128 = vmatprep.subr.bf16.mxu0 0
      %1129 = vmatpush2.bf16.xpose.msra.mxu0 0
      %1130 = vmatprep.subr.bf16.mxu0 0
      %1131 = vmatpush2.bf16.xpose.msra.mxu0 0
      %1132 = vmatprep.subr.bf16.mxu0 0
      %1133 = vmatpush2.bf16.xpose.msra.mxu0 0
      %1134 = vmatprep.subr.bf16.mxu0 0
      %1135 = vmatpush2.bf16.xpose.msra.mxu0 0
      %1136 = vmatprep.mubr.bf16.mxu0 0
      %1137 = vmatmul.mubr.bf16.gmra.mxu0 %v1099
      %v1138 = vpop.f32.mrf.mxu0
      %v1139 = vadd.f32 0.0, %v1138
      %v1140 = vpop.f32.mrf.mxu0
      %v1141 = vpop.f32.mrf.mxu0
      %v1142 = vpop.f32.mrf.mxu0
      %1143 = vdwg.mxu0
      %v1144 = vmul.f32 %v1089, 0.35355338
      %v1145 = vmul.f32 %v1139, 0.35355338
      %v1146 = vsel %vm505, %v1144, -inf
      %1147 = vmax.xlane.f32.xlu0 %v1146
      %v1148 = vpop.xlane.xlu0 %1147
      %v1149 = vsel %vm505, %v1145, -inf
      %1150 = vmax.xlane.f32.xlu0 %v1149
      %v1151 = vpop.xlane.xlu0 %1150
      %v1152 = vsub.f32 %v1144, %v1148
      %v1153 = vsub.f32 %v1145, %v1151
      %v1154 = vmul.f32 %v1152, 1.442695
      %v1155 = vpow.pop %v1154
      %v1156 = vmul.f32 %v1153, 1.442695
      %v1157 = vpow.pop %v1156
      %v1158 = vsel %vm505, %v1155, 0.0
      %1159 = vadd.xlane.f32.xlu0 %v1158
      %v1160 = vpop.xlane.xlu0 %1159
      %v1161 = vsel %vm505, %v1157, 0.0
      %1162 = vadd.xlane.f32.xlu0 %v1161
      %v1163 = vpop.xlane.xlu0 %1162
      %v1164 = vrcp.pop %v1160
      %v1165 = vrcp.pop %v1163
      %v1166 = vmul.f32 %v1155, %v1164
      %v1167 = vmul.f32 %v1157, %v1165
      %v1168 = vpack.c.bf16 %v1166, %v1166
      %v1169 = vpack.c.bf16 %v1167, %v1167
      %1170 = vrot.lane.b32.xlu0 %v500, 48
      %v1171 = vpop.permute.xlu0 %1170
      %v1173 = vsel %vm505, %v1168, 0
      %v1176 = vsel %vm632, %v1171, 0
      %1178 = vmatprep.subr.bf16.mxu0 0
      %1179 = vmatpush1.bf16.msra.mxu0 0
      %1180 = vmatprep.subr.bf16.mxu0 0
      %1181 = vmatpush1.bf16.msra.mxu0 0
      %1182 = vmatprep.subr.bf16.mxu0 0
      %1183 = vmatpush1.bf16.msra.mxu0 0
      %1184 = vmatprep.subr.bf16.mxu0 0
      %1185 = vmatpush1.bf16.msra.mxu0 0
      %1186 = vmatprep.subr.bf16.mxu0 0
      %1187 = vmatpush1.bf16.msra.mxu0 0
      %1188 = vmatprep.subr.bf16.mxu0 0
      %1189 = vmatpush1.bf16.msra.mxu0 0
      %1190 = vmatprep.subr.bf16.mxu0 0
      %1191 = vmatpush1.bf16.msra.mxu0 0
      %1192 = vmatprep.subr.bf16.mxu0 0
      %1193 = vmatpush1.bf16.msra.mxu0 %v1176
      %1194 = vmatprep.subr.bf16.mxu0 0
      %1195 = vmatpush2.bf16.msra.mxu0 0
      %1196 = vmatprep.subr.bf16.mxu0 0
      %1197 = vmatpush2.bf16.msra.mxu0 0
      %1198 = vmatprep.subr.bf16.mxu0 0
      %1199 = vmatpush2.bf16.msra.mxu0 0
      %1200 = vmatprep.subr.bf16.mxu0 0
      %1201 = vmatpush2.bf16.msra.mxu0 0
      %1202 = vmatprep.subr.bf16.mxu0 0
      %1203 = vmatpush2.bf16.msra.mxu0 0
      %1204 = vmatprep.subr.bf16.mxu0 0
      %1205 = vmatpush2.bf16.msra.mxu0 0
      %1206 = vmatprep.subr.bf16.mxu0 0
      %1207 = vmatpush2.bf16.msra.mxu0 0
      %1208 = vmatprep.subr.bf16.mxu0 0
      %1209 = vmatpush2.bf16.msra.mxu0 0
      %1210 = vmatprep.mubr.bf16.mxu0 0
      %1211 = vmatmul.mubr.bf16.gmra.mxu0 %v1173
      %v1212 = vpop.f32.mrf.mxu0
      %v1213 = vadd.f32 0.0, %v1212
      %v1214 = vpop.f32.mrf.mxu0
      %v1215 = vpop.f32.mrf.mxu0
      %v1216 = vpop.f32.mrf.mxu0
      %1217 = vdwg.mxu0
      %1218 = vrot.lane.b32.xlu0 %v501, 48
      %v1219 = vpop.permute.xlu0 %1218
      %v1221 = vsel %vm505, %v1169, 0
      %v1224 = vsel %vm632, %v1219, 0
      %1226 = vmatprep.subr.bf16.mxu0 0
      %1227 = vmatpush1.bf16.msra.mxu0 0
      %1228 = vmatprep.subr.bf16.mxu0 0
      %1229 = vmatpush1.bf16.msra.mxu0 0
      %1230 = vmatprep.subr.bf16.mxu0 0
      %1231 = vmatpush1.bf16.msra.mxu0 0
      %1232 = vmatprep.subr.bf16.mxu0 0
      %1233 = vmatpush1.bf16.msra.mxu0 0
      %1234 = vmatprep.subr.bf16.mxu0 0
      %1235 = vmatpush1.bf16.msra.mxu0 0
      %1236 = vmatprep.subr.bf16.mxu0 0
      %1237 = vmatpush1.bf16.msra.mxu0 0
      %1238 = vmatprep.subr.bf16.mxu0 0
      %1239 = vmatpush1.bf16.msra.mxu0 0
      %1240 = vmatprep.subr.bf16.mxu0 0
      %1241 = vmatpush1.bf16.msra.mxu0 %v1224
      %1242 = vmatprep.subr.bf16.mxu0 0
      %1243 = vmatpush2.bf16.msra.mxu0 0
      %1244 = vmatprep.subr.bf16.mxu0 0
      %1245 = vmatpush2.bf16.msra.mxu0 0
      %1246 = vmatprep.subr.bf16.mxu0 0
      %1247 = vmatpush2.bf16.msra.mxu0 0
      %1248 = vmatprep.subr.bf16.mxu0 0
      %1249 = vmatpush2.bf16.msra.mxu0 0
      %1250 = vmatprep.subr.bf16.mxu0 0
      %1251 = vmatpush2.bf16.msra.mxu0 0
      %1252 = vmatprep.subr.bf16.mxu0 0
      %1253 = vmatpush2.bf16.msra.mxu0 0
      %1254 = vmatprep.subr.bf16.mxu0 0
      %1255 = vmatpush2.bf16.msra.mxu0 0
      %1256 = vmatprep.subr.bf16.mxu0 0
      %1257 = vmatpush2.bf16.msra.mxu0 0
      %1258 = vmatprep.mubr.bf16.mxu0 0
      %1259 = vmatmul.mubr.bf16.gmra.mxu0 %v1221
      %v1260 = vpop.f32.mrf.mxu0
      %v1261 = vadd.f32 0.0, %v1260
      %v1262 = vpop.f32.mrf.mxu0
      %v1263 = vpop.f32.mrf.mxu0
      %v1264 = vpop.f32.mrf.mxu0
      %1265 = vdwg.mxu0
      %v1266 = vpack.c.bf16 %v1261, %v1213
      %v1267 = vld [vmem:[%s353 + $0x8] sm:$0xf]
      %v1269 = vsel %vm505, %v1266, 0
      %v1272 = vsel %vm632, %v1267, 0
      %1274 = vmatprep.subr.bf16.mxu0 0
      %1275 = vmatpush1.bf16.msra.mxu0 0
      %1276 = vmatprep.subr.bf16.mxu0 0
      %1277 = vmatpush1.bf16.msra.mxu0 0
      %1278 = vmatprep.subr.bf16.mxu0 0
      %1279 = vmatpush1.bf16.msra.mxu0 0
      %1280 = vmatprep.subr.bf16.mxu0 0
      %1281 = vmatpush1.bf16.msra.mxu0 0
      %1282 = vmatprep.subr.bf16.mxu0 0
      %1283 = vmatpush1.bf16.msra.mxu0 0
      %1284 = vmatprep.subr.bf16.mxu0 0
      %1285 = vmatpush1.bf16.msra.mxu0 0
      %1286 = vmatprep.subr.bf16.mxu0 0
      %1287 = vmatpush1.bf16.msra.mxu0 0
      %1288 = vmatprep.subr.bf16.mxu0 0
      %1289 = vmatpush1.bf16.msra.mxu0 %v1272
      %1290 = vmatprep.subr.bf16.mxu0 0
      %1291 = vmatpush2.bf16.msra.mxu0 0
      %1292 = vmatprep.subr.bf16.mxu0 0
      %1293 = vmatpush2.bf16.msra.mxu0 0
      %1294 = vmatprep.subr.bf16.mxu0 0
      %1295 = vmatpush2.bf16.msra.mxu0 0
      %1296 = vmatprep.subr.bf16.mxu0 0
      %1297 = vmatpush2.bf16.msra.mxu0 0
      %1298 = vmatprep.subr.bf16.mxu0 0
      %1299 = vmatpush2.bf16.msra.mxu0 0
      %1300 = vmatprep.subr.bf16.mxu0 0
      %1301 = vmatpush2.bf16.msra.mxu0 0
      %1302 = vmatprep.subr.bf16.mxu0 0
      %1303 = vmatpush2.bf16.msra.mxu0 0
      %1304 = vmatprep.subr.bf16.mxu0 0
      %1305 = vmatpush2.bf16.msra.mxu0 0
      %1306 = vmatprep.mubr.bf16.mxu0 0
      %1307 = vmatmul.mubr.bf16.gmra.mxu0 %v1269
      %v1308 = vpop.f32.mrf.mxu0
      %v1309 = vadd.f32 0.0, %v1308
      %v1310 = vpop.f32.mrf.mxu0
      %v1311 = vpop.f32.mrf.mxu0
      %v1312 = vadd.f32 0.0, %v1311
      %v1313 = vpop.f32.mrf.mxu0
      %1314 = vdwg.mxu0
      %v1315 = vadd.f32 %v1038, %v1309
      %v1316 = vadd.f32 %v1041, %v1312
      %1317 = vrot.lane.b32.xlu0 %v500, 104
      %v1318 = vpop.permute.xlu0 %1317
      %1319 = vrot.lane.b32.xlu0 %v500, 72
      %v1320 = vpop.permute.xlu0 %1319
      %v1322 = vsel %vm505, %v1318, 0
      %v1325 = vsel %vm505, %v1320, 0
      %1327 = vmatprep.subr.bf16.mxu0 0
      %1328 = vmatpush1.bf16.xpose.msra.mxu0 0
      %1329 = vmatprep.subr.bf16.mxu0 0
      %1330 = vmatpush1.bf16.xpose.msra.mxu0 0
      %1331 = vmatprep.subr.bf16.mxu0 0
      %1332 = vmatpush1.bf16.xpose.msra.mxu0 0
      %1333 = vmatprep.subr.bf16.mxu0 0
      %1334 = vmatpush1.bf16.xpose.msra.mxu0 0
      %1335 = vmatprep.subr.bf16.mxu0 0
      %1336 = vmatpush1.bf16.xpose.msra.mxu0 0
      %1337 = vmatprep.subr.bf16.mxu0 0
      %1338 = vmatpush1.bf16.xpose.msra.mxu0 0
      %1339 = vmatprep.subr.bf16.mxu0 0
      %1340 = vmatpush1.bf16.xpose.msra.mxu0 0
      %1341 = vmatprep.subr.bf16.mxu0 0
      %1342 = vmatpush1.bf16.xpose.msra.mxu0 %v1325
      %1343 = vmatprep.subr.bf16.mxu0 0
      %1344 = vmatpush2.bf16.xpose.msra.mxu0 0
      %1345 = vmatprep.subr.bf16.mxu0 0
      %1346 = vmatpush2.bf16.xpose.msra.mxu0 0
      %1347 = vmatprep.subr.bf16.mxu0 0
      %1348 = vmatpush2.bf16.xpose.msra.mxu0 0
      %1349 = vmatprep.subr.bf16.mxu0 0
      %1350 = vmatpush2.bf16.xpose.msra.mxu0 0
      %1351 = vmatprep.subr.bf16.mxu0 0
      %1352 = vmatpush2.bf16.xpose.msra.mxu0 0
      %1353 = vmatprep.subr.bf16.mxu0 0
      %1354 = vmatpush2.bf16.xpose.msra.mxu0 0
      %1355 = vmatprep.subr.bf16.mxu0 0
      %1356 = vmatpush2.bf16.xpose.msra.mxu0 0
      %1357 = vmatprep.subr.bf16.mxu0 0
      %1358 = vmatpush2.bf16.xpose.msra.mxu0 0
      %1359 = vmatprep.mubr.bf16.mxu0 0
      %1360 = vmatmul.mubr.bf16.gmra.mxu0 %v1322
      %v1361 = vpop.f32.mrf.mxu0
      %v1362 = vadd.f32 0.0, %v1361
      %v1363 = vpop.f32.mrf.mxu0
      %v1364 = vpop.f32.mrf.mxu0
      %v1365 = vpop.f32.mrf.mxu0
      %1366 = vdwg.mxu0
      %1367 = vrot.lane.b32.xlu0 %v501, 104
      %v1368 = vpop.permute.xlu0 %1367
      %1369 = vrot.lane.b32.xlu0 %v501, 72
      %v1370 = vpop.permute.xlu0 %1369
      %v1372 = vsel %vm505, %v1368, 0
      %v1375 = vsel %vm505, %v1370, 0
      %1377 = vmatprep.subr.bf16.mxu0 0
      %1378 = vmatpush1.bf16.xpose.msra.mxu0 0
      %1379 = vmatprep.subr.bf16.mxu0 0
      %1380 = vmatpush1.bf16.xpose.msra.mxu0 0
      %1381 = vmatprep.subr.bf16.mxu0 0
      %1382 = vmatpush1.bf16.xpose.msra.mxu0 0
      %1383 = vmatprep.subr.bf16.mxu0 0
      %1384 = vmatpush1.bf16.xpose.msra.mxu0 0
      %1385 = vmatprep.subr.bf16.mxu0 0
      %1386 = vmatpush1.bf16.xpose.msra.mxu0 0
      %1387 = vmatprep.subr.bf16.mxu0 0
      %1388 = vmatpush1.bf16.xpose.msra.mxu0 0
      %1389 = vmatprep.subr.bf16.mxu0 0
      %1390 = vmatpush1.bf16.xpose.msra.mxu0 0
      %1391 = vmatprep.subr.bf16.mxu0 0
      %1392 = vmatpush1.bf16.xpose.msra.mxu0 %v1375
      %1393 = vmatprep.subr.bf16.mxu0 0
      %1394 = vmatpush2.bf16.xpose.msra.mxu0 0
      %1395 = vmatprep.subr.bf16.mxu0 0
      %1396 = vmatpush2.bf16.xpose.msra.mxu0 0
      %1397 = vmatprep.subr.bf16.mxu0 0
      %1398 = vmatpush2.bf16.xpose.msra.mxu0 0
      %1399 = vmatprep.subr.bf16.mxu0 0
      %1400 = vmatpush2.bf16.xpose.msra.mxu0 0
      %1401 = vmatprep.subr.bf16.mxu0 0
      %1402 = vmatpush2.bf16.xpose.msra.mxu0 0
      %1403 = vmatprep.subr.bf16.mxu0 0
      %1404 = vmatpush2.bf16.xpose.msra.mxu0 0
      %1405 = vmatprep.subr.bf16.mxu0 0
      %1406 = vmatpush2.bf16.xpose.msra.mxu0 0
      %1407 = vmatprep.subr.bf16.mxu0 0
      %1408 = vmatpush2.bf16.xpose.msra.mxu0 0
      %1409 = vmatprep.mubr.bf16.mxu0 0
      %1410 = vmatmul.mubr.bf16.gmra.mxu0 %v1372
      %v1411 = vpop.f32.mrf.mxu0
      %v1412 = vadd.f32 0.0, %v1411
      %v1413 = vpop.f32.mrf.mxu0
      %v1414 = vpop.f32.mrf.mxu0
      %v1415 = vpop.f32.mrf.mxu0
      %1416 = vdwg.mxu0
      %v1417 = vmul.f32 %v1362, 0.35355338
      %v1418 = vmul.f32 %v1412, 0.35355338
      %v1419 = vsel %vm505, %v1417, -inf
      %1420 = vmax.xlane.f32.xlu0 %v1419
      %v1421 = vpop.xlane.xlu0 %1420
      %v1422 = vsel %vm505, %v1418, -inf
      %1423 = vmax.xlane.f32.xlu0 %v1422
      %v1424 = vpop.xlane.xlu0 %1423
      %v1425 = vsub.f32 %v1417, %v1421
      %v1426 = vsub.f32 %v1418, %v1424
      %v1427 = vmul.f32 %v1425, 1.442695
      %v1428 = vpow.pop %v1427
      %v1429 = vmul.f32 %v1426, 1.442695
      %v1430 = vpow.pop %v1429
      %v1431 = vsel %vm505, %v1428, 0.0
      %1432 = vadd.xlane.f32.xlu0 %v1431
      %v1433 = vpop.xlane.xlu0 %1432
      %v1434 = vsel %vm505, %v1430, 0.0
      %1435 = vadd.xlane.f32.xlu0 %v1434
      %v1436 = vpop.xlane.xlu0 %1435
      %v1437 = vrcp.pop %v1433
      %v1438 = vrcp.pop %v1436
      %v1439 = vmul.f32 %v1428, %v1437
      %v1440 = vmul.f32 %v1430, %v1438
      %v1441 = vpack.c.bf16 %v1439, %v1439
      %v1442 = vpack.c.bf16 %v1440, %v1440
      %1443 = vrot.lane.b32.xlu0 %v500, 40
      %v1444 = vpop.permute.xlu0 %1443
      %v1446 = vsel %vm505, %v1441, 0
      %v1449 = vsel %vm632, %v1444, 0
      %1451 = vmatprep.subr.bf16.mxu0 0
      %1452 = vmatpush1.bf16.msra.mxu0 0
      %1453 = vmatprep.subr.bf16.mxu0 0
      %1454 = vmatpush1.bf16.msra.mxu0 0
      %1455 = vmatprep.subr.bf16.mxu0 0
      %1456 = vmatpush1.bf16.msra.mxu0 0
      %1457 = vmatprep.subr.bf16.mxu0 0
      %1458 = vmatpush1.bf16.msra.mxu0 0
      %1459 = vmatprep.subr.bf16.mxu0 0
      %1460 = vmatpush1.bf16.msra.mxu0 0
      %1461 = vmatprep.subr.bf16.mxu0 0
      %1462 = vmatpush1.bf16.msra.mxu0 0
      %1463 = vmatprep.subr.bf16.mxu0 0
      %1464 = vmatpush1.bf16.msra.mxu0 0
      %1465 = vmatprep.subr.bf16.mxu0 0
      %1466 = vmatpush1.bf16.msra.mxu0 %v1449
      %1467 = vmatprep.subr.bf16.mxu0 0
      %1468 = vmatpush2.bf16.msra.mxu0 0
      %1469 = vmatprep.subr.bf16.mxu0 0
      %1470 = vmatpush2.bf16.msra.mxu0 0
      %1471 = vmatprep.subr.bf16.mxu0 0
      %1472 = vmatpush2.bf16.msra.mxu0 0
      %1473 = vmatprep.subr.bf16.mxu0 0
      %1474 = vmatpush2.bf16.msra.mxu0 0
      %1475 = vmatprep.subr.bf16.mxu0 0
      %1476 = vmatpush2.bf16.msra.mxu0 0
      %1477 = vmatprep.subr.bf16.mxu0 0
      %1478 = vmatpush2.bf16.msra.mxu0 0
      %1479 = vmatprep.subr.bf16.mxu0 0
      %1480 = vmatpush2.bf16.msra.mxu0 0
      %1481 = vmatprep.subr.bf16.mxu0 0
      %1482 = vmatpush2.bf16.msra.mxu0 0
      %1483 = vmatprep.mubr.bf16.mxu0 0
      %1484 = vmatmul.mubr.bf16.gmra.mxu0 %v1446
      %v1485 = vpop.f32.mrf.mxu0
      %v1486 = vadd.f32 0.0, %v1485
      %v1487 = vpop.f32.mrf.mxu0
      %v1488 = vpop.f32.mrf.mxu0
      %v1489 = vpop.f32.mrf.mxu0
      %1490 = vdwg.mxu0
      %1491 = vrot.lane.b32.xlu0 %v501, 40
      %v1492 = vpop.permute.xlu0 %1491
      %v1494 = vsel %vm505, %v1442, 0
      %v1497 = vsel %vm632, %v1492, 0
      %1499 = vmatprep.subr.bf16.mxu0 0
      %1500 = vmatpush1.bf16.msra.mxu0 0
      %1501 = vmatprep.subr.bf16.mxu0 0
      %1502 = vmatpush1.bf16.msra.mxu0 0
      %1503 = vmatprep.subr.bf16.mxu0 0
      %1504 = vmatpush1.bf16.msra.mxu0 0
      %1505 = vmatprep.subr.bf16.mxu0 0
      %1506 = vmatpush1.bf16.msra.mxu0 0
      %1507 = vmatprep.subr.bf16.mxu0 0
      %1508 = vmatpush1.bf16.msra.mxu0 0
      %1509 = vmatprep.subr.bf16.mxu0 0
      %1510 = vmatpush1.bf16.msra.mxu0 0
      %1511 = vmatprep.subr.bf16.mxu0 0
      %1512 = vmatpush1.bf16.msra.mxu0 0
      %1513 = vmatprep.subr.bf16.mxu0 0
      %1514 = vmatpush1.bf16.msra.mxu0 %v1497
      %1515 = vmatprep.subr.bf16.mxu0 0
      %1516 = vmatpush2.bf16.msra.mxu0 0
      %1517 = vmatprep.subr.bf16.mxu0 0
      %1518 = vmatpush2.bf16.msra.mxu0 0
      %1519 = vmatprep.subr.bf16.mxu0 0
      %1520 = vmatpush2.bf16.msra.mxu0 0
      %1521 = vmatprep.subr.bf16.mxu0 0
      %1522 = vmatpush2.bf16.msra.mxu0 0
      %1523 = vmatprep.subr.bf16.mxu0 0
      %1524 = vmatpush2.bf16.msra.mxu0 0
      %1525 = vmatprep.subr.bf16.mxu0 0
      %1526 = vmatpush2.bf16.msra.mxu0 0
      %1527 = vmatprep.subr.bf16.mxu0 0
      %1528 = vmatpush2.bf16.msra.mxu0 0
      %1529 = vmatprep.subr.bf16.mxu0 0
      %1530 = vmatpush2.bf16.msra.mxu0 0
      %1531 = vmatprep.mubr.bf16.mxu0 0
      %1532 = vmatmul.mubr.bf16.gmra.mxu0 %v1494
      %v1533 = vpop.f32.mrf.mxu0
      %v1534 = vadd.f32 0.0, %v1533
      %v1535 = vpop.f32.mrf.mxu0
      %v1536 = vpop.f32.mrf.mxu0
      %v1537 = vpop.f32.mrf.mxu0
      %1538 = vdwg.mxu0
      %v1539 = vpack.c.bf16 %v1534, %v1486
      %v1540 = vld [vmem:[%s353 + $0xc] sm:$0xf]
      %v1542 = vsel %vm505, %v1539, 0
      %v1545 = vsel %vm632, %v1540, 0
      %1547 = vmatprep.subr.bf16.mxu0 0
      %1548 = vmatpush1.bf16.msra.mxu0 0
      %1549 = vmatprep.subr.bf16.mxu0 0
      %1550 = vmatpush1.bf16.msra.mxu0 0
      %1551 = vmatprep.subr.bf16.mxu0 0
      %1552 = vmatpush1.bf16.msra.mxu0 0
      %1553 = vmatprep.subr.bf16.mxu0 0
      %1554 = vmatpush1.bf16.msra.mxu0 0
      %1555 = vmatprep.subr.bf16.mxu0 0
      %1556 = vmatpush1.bf16.msra.mxu0 0
      %1557 = vmatprep.subr.bf16.mxu0 0
      %1558 = vmatpush1.bf16.msra.mxu0 0
      %1559 = vmatprep.subr.bf16.mxu0 0
      %1560 = vmatpush1.bf16.msra.mxu0 0
      %1561 = vmatprep.subr.bf16.mxu0 0
      %1562 = vmatpush1.bf16.msra.mxu0 %v1545
      %1563 = vmatprep.subr.bf16.mxu0 0
      %1564 = vmatpush2.bf16.msra.mxu0 0
      %1565 = vmatprep.subr.bf16.mxu0 0
      %1566 = vmatpush2.bf16.msra.mxu0 0
      %1567 = vmatprep.subr.bf16.mxu0 0
      %1568 = vmatpush2.bf16.msra.mxu0 0
      %1569 = vmatprep.subr.bf16.mxu0 0
      %1570 = vmatpush2.bf16.msra.mxu0 0
      %1571 = vmatprep.subr.bf16.mxu0 0
      %1572 = vmatpush2.bf16.msra.mxu0 0
      %1573 = vmatprep.subr.bf16.mxu0 0
      %1574 = vmatpush2.bf16.msra.mxu0 0
      %1575 = vmatprep.subr.bf16.mxu0 0
      %1576 = vmatpush2.bf16.msra.mxu0 0
      %1577 = vmatprep.subr.bf16.mxu0 0
      %1578 = vmatpush2.bf16.msra.mxu0 0
      %1579 = vmatprep.mubr.bf16.mxu0 0
      %1580 = vmatmul.mubr.bf16.gmra.mxu0 %v1542
      %v1581 = vpop.f32.mrf.mxu0
      %v1582 = vadd.f32 0.0, %v1581
      %v1583 = vpop.f32.mrf.mxu0
      %v1584 = vpop.f32.mrf.mxu0
      %v1585 = vadd.f32 0.0, %v1584
      %v1586 = vpop.f32.mrf.mxu0
      %1587 = vdwg.mxu0
      %v1588 = vadd.f32 %v1315, %v1582
      %v1589 = vadd.f32 %v1316, %v1585
      %v1590 = vlaneseq
      %v1591 = vshrl.u32 %v1590, 7
      %v1592 = vsub.s32 1, %v1591
      %v1593 = vrot.slane %v433, %v1592
      %v1594 = vadd.f32 %v1588, %v1593
      %v1595 = vadd.f32 %v1589, %v1593
      %v1596 = vadd.f32 %v431, %v1594
      %v1597 = vadd.f32 %v432, %v1595
      %v1598 = vsel %vm455, %v1596, 0.0
      %1599 = vadd.xlane.f32.xlu0 %v1598
      %v1600 = vpop.xlane.xlu0 %1599
      %v1601 = vsel %vm455, %v1597, 0.0
      %1602 = vadd.xlane.f32.xlu0 %v1601
      %v1603 = vpop.xlane.xlu0 %1602
      %v1604 = vrcp.pop 32.0
      %v1605 = vmul.f32 %v1600, %v1604
      %v1606 = vmul.f32 %v1603, %v1604
      %v1607 = vmul.f32 %v1596, %v1596
      %v1608 = vmul.f32 %v1597, %v1597
      %v1609 = vsel %vm455, %v1607, 0.0
      %1610 = vadd.xlane.f32.xlu0 %v1609
      %v1611 = vpop.xlane.xlu0 %1610
      %v1612 = vsel %vm455, %v1608, 0.0
      %1613 = vadd.xlane.f32.xlu0 %v1612
      %v1614 = vpop.xlane.xlu0 %1613
      %v1615 = vmul.f32 %v1611, %v1604
      %v1616 = vmul.f32 %v1614, %v1604
      %v1617 = vmul.f32 %v1605, %v1605
      %v1618 = vmul.f32 %v1606, %v1606
      %v1619 = vsub.f32 %v1615, %v1617
      %v1620 = vsub.f32 %v1616, %v1618
      %v1621 = vsub.f32 %v1596, %v1605
      %v1622 = vsub.f32 %v1597, %v1606
      %v1623 = vadd.f32 %v1619, 1e-05
      %v1624 = vadd.f32 %v1620, 1e-05
      %v1625 = vrsqrt.pop %v1623
      %v1626 = vrsqrt.pop %v1624
      %v1627 = vmul.f32 %v1621, %v1625
      %v1628 = vmul.f32 %v1622, %v1626
      %v1629 = vlaneseq
      %v1630 = vshrl.u32 %v1629, 7
      %v1631 = vsub.s32 2, %v1630
      %v1632 = vrot.slane %v433, %v1631
      %v1633 = vmul.f32 %v1627, %v1632
      %v1634 = vmul.f32 %v1628, %v1632
      %v1635 = vlaneseq
      %v1636 = vshrl.u32 %v1635, 7
      %v1637 = vsub.s32 3, %v1636
      %v1638 = vrot.slane %v433, %v1637
      %v1639 = vadd.f32 %v1633, %v1638
      %v1640 = vadd.f32 %v1634, %v1638
      %v1641 = vld [vmem:[%s358] sm:$0xf]
      %v1642 = vld [vmem:[%s358 + $0x4] sm:$0xf]
      %v1643 = vld [vmem:[%s358 + $0x8] sm:$0xf]
      %v1644 = vld [vmem:[%s358 + $0xc] sm:$0xf]
      %v1645 = vpack.c.bf16 %v1640, %v1639
      %v1646 = vlaneseq
      %v1647 = vshrl.u32 %v1646, 7
      %v1648 = vsub.s32 4, %v1647
      %v1649 = vrot.slane %v433, %v1648
      %v1654 = vunpack.c.l.b16 %v1641
      %v1655 = vunpack.c.l.b16 %v1642
      %v1656 = vunpack.c.l.b16 %v1643
      %v1657 = vunpack.c.l.b16 %v1644
      %v1658 = vpack.c.b16 %v1655, %v1654
      %v1659 = vpack.c.b16 %v1657, %v1656
      %v1663 = vsel %vm455, %v1645, 0
      %1665 = vmatprep.subr.bf16.mxu0 0
      %1666 = vmatpush1.bf16.msra.mxu0 0
      %1667 = vmatprep.subr.bf16.mxu0 0
      %1668 = vmatpush1.bf16.msra.mxu0 0
      %1669 = vmatprep.subr.bf16.mxu0 0
      %1670 = vmatpush1.bf16.msra.mxu0 0
      %1671 = vmatprep.subr.bf16.mxu0 0
      %1672 = vmatpush1.bf16.msra.mxu0 0
      %1673 = vmatprep.subr.bf16.mxu0 0
      %1674 = vmatpush1.bf16.msra.mxu0 0
      %1675 = vmatprep.subr.bf16.mxu0 0
      %1676 = vmatpush1.bf16.msra.mxu0 0
      %1677 = vmatprep.subr.bf16.mxu0 0
      %1678 = vmatpush1.bf16.msra.mxu0 %v1659
      %1679 = vmatprep.subr.bf16.mxu0 0
      %1680 = vmatpush1.bf16.msra.mxu0 %v1658
      %1681 = vmatprep.subr.bf16.mxu0 0
      %1682 = vmatpush2.bf16.msra.mxu0 0
      %1683 = vmatprep.subr.bf16.mxu0 0
      %1684 = vmatpush2.bf16.msra.mxu0 0
      %1685 = vmatprep.subr.bf16.mxu0 0
      %1686 = vmatpush2.bf16.msra.mxu0 0
      %1687 = vmatprep.subr.bf16.mxu0 0
      %1688 = vmatpush2.bf16.msra.mxu0 0
      %1689 = vmatprep.subr.bf16.mxu0 0
      %1690 = vmatpush2.bf16.msra.mxu0 0
      %1691 = vmatprep.subr.bf16.mxu0 0
      %1692 = vmatpush2.bf16.msra.mxu0 0
      %1693 = vmatprep.subr.bf16.mxu0 0
      %1694 = vmatpush2.bf16.msra.mxu0 0
      %1695 = vmatprep.subr.bf16.mxu0 0
      %1696 = vmatpush2.bf16.msra.mxu0 0
      %1697 = vmatprep.mubr.bf16.mxu0 0
      %1698 = vmatmul.mubr.bf16.gmra.mxu0 %v1663
      %v1699 = vpop.f32.mrf.mxu0
      %v1700 = vadd.f32 %v1649, %v1699
      %v1701 = vpop.f32.mrf.mxu0
      %v1702 = vpop.f32.mrf.mxu0
      %v1703 = vadd.f32 %v1649, %v1702
      %v1704 = vpop.f32.mrf.mxu0
      %1705 = vdwg.mxu0
      %v1706 = vmax.f32 %v1700, 0.0
      %v1707 = vmax.f32 %v1703, 0.0
      %v1708 = vld [vmem:[%s363] sm:$0xf]
      %v1709 = vld [vmem:[%s363 + $0x4] sm:$0xf]
      %v1710 = vld [vmem:[%s363 + $0x8] sm:$0xf]
      %v1711 = vld [vmem:[%s363 + $0xc] sm:$0xf]
      %v1712 = vld [vmem:[%s363 + $0x10] sm:$0xf]
      %v1713 = vld [vmem:[%s363 + $0x14] sm:$0xf]
      %v1714 = vld [vmem:[%s363 + $0x18] sm:$0xf]
      %v1715 = vld [vmem:[%s363 + $0x1c] sm:$0xf]
      %v1716 = vpack.c.bf16 %v1707, %v1706
      %v1717 = vlaneseq
      %v1718 = vshrl.u32 %v1717, 7
      %v1719 = vsub.s32 5, %v1718
      %v1720 = vrot.slane %v433, %v1719
      %v1729 = vunpack.c.l.b16 %v1708
      %v1730 = vunpack.c.l.b16 %v1709
      %v1731 = vunpack.c.l.b16 %v1710
      %v1732 = vunpack.c.l.b16 %v1711
      %v1733 = vunpack.c.l.b16 %v1712
      %v1734 = vunpack.c.l.b16 %v1713
      %v1735 = vunpack.c.l.b16 %v1714
      %v1736 = vunpack.c.l.b16 %v1715
      %v1737 = vpack.c.b16 %v1730, %v1729
      %v1738 = vpack.c.b16 %v1732, %v1731
      %v1739 = vpack.c.b16 %v1734, %v1733
      %v1740 = vpack.c.b16 %v1736, %v1735
      %vm1745 = vcmask 523264
      %v1747 = vsel %vm1745, %v1716, 0
      %1749 = vmatprep.subr.bf16.mxu0 0
      %1750 = vmatpush1.bf16.msra.mxu0 0
      %1751 = vmatprep.subr.bf16.mxu0 0
      %1752 = vmatpush1.bf16.msra.mxu0 0
      %1753 = vmatprep.subr.bf16.mxu0 0
      %1754 = vmatpush1.bf16.msra.mxu0 0
      %1755 = vmatprep.subr.bf16.mxu0 0
      %1756 = vmatpush1.bf16.msra.mxu0 0
      %1757 = vmatprep.subr.bf16.mxu0 0
      %1758 = vmatpush1.bf16.msra.mxu0 %v1740
      %1759 = vmatprep.subr.bf16.mxu0 0
      %1760 = vmatpush1.bf16.msra.mxu0 %v1739
      %1761 = vmatprep.subr.bf16.mxu0 0
      %1762 = vmatpush1.bf16.msra.mxu0 %v1738
      %1763 = vmatprep.subr.bf16.mxu0 0
      %1764 = vmatpush1.bf16.msra.mxu0 %v1737
      %1765 = vmatprep.subr.bf16.mxu0 0
      %1766 = vmatpush2.bf16.msra.mxu0 0
      %1767 = vmatprep.subr.bf16.mxu0 0
      %1768 = vmatpush2.bf16.msra.mxu0 0
      %1769 = vmatprep.subr.bf16.mxu0 0
      %1770 = vmatpush2.bf16.msra.mxu0 0
      %1771 = vmatprep.subr.bf16.mxu0 0
      %1772 = vmatpush2.bf16.msra.mxu0 0
      %1773 = vmatprep.subr.bf16.mxu0 0
      %1774 = vmatpush2.bf16.msra.mxu0 0
      %1775 = vmatprep.subr.bf16.mxu0 0
      %1776 = vmatpush2.bf16.msra.mxu0 0
      %1777 = vmatprep.subr.bf16.mxu0 0
      %1778 = vmatpush2.bf16.msra.mxu0 0
      %1779 = vmatprep.subr.bf16.mxu0 0
      %1780 = vmatpush2.bf16.msra.mxu0 0
      %1781 = vmatprep.mubr.bf16.mxu0 0
      %1782 = vmatmul.mubr.bf16.gmra.mxu0 %v1747
      %v1783 = vpop.f32.mrf.mxu0
      %v1784 = vadd.f32 %v1720, %v1783
      %v1785 = vpop.f32.mrf.mxu0
      %v1786 = vpop.f32.mrf.mxu0
      %v1787 = vadd.f32 %v1720, %v1786
      %v1788 = vpop.f32.mrf.mxu0
      %1789 = vdwg.mxu0
      %v1790 = vadd.f32 %v1639, %v1784
      %v1791 = vadd.f32 %v1640, %v1787
      %v1792 = vsel %vm455, %v1790, 0.0
      %1793 = vadd.xlane.f32.xlu0 %v1792
      %v1794 = vpop.xlane.xlu0 %1793
      %v1795 = vsel %vm455, %v1791, 0.0
      %1796 = vadd.xlane.f32.xlu0 %v1795
      %v1797 = vpop.xlane.xlu0 %1796
      %v1798 = vmul.f32 %v1794, %v1604
      %v1799 = vmul.f32 %v1797, %v1604
      %v1800 = vmul.f32 %v1790, %v1790
      %v1801 = vmul.f32 %v1791, %v1791
      %v1802 = vsel %vm455, %v1800, 0.0
      %1803 = vadd.xlane.f32.xlu0 %v1802
      %v1804 = vpop.xlane.xlu0 %1803
      %v1805 = vsel %vm455, %v1801, 0.0
      %1806 = vadd.xlane.f32.xlu0 %v1805
      %v1807 = vpop.xlane.xlu0 %1806
      %v1808 = vmul.f32 %v1804, %v1604
      %v1809 = vmul.f32 %v1807, %v1604
      %v1810 = vmul.f32 %v1798, %v1798
      %v1811 = vmul.f32 %v1799, %v1799
      %v1812 = vsub.f32 %v1808, %v1810
      %v1813 = vsub.f32 %v1809, %v1811
      %v1814 = vsub.f32 %v1790, %v1798
      %v1815 = vsub.f32 %v1791, %v1799
      %v1816 = vadd.f32 %v1812, 1e-05
      %v1817 = vadd.f32 %v1813, 1e-05
      %v1818 = vrsqrt.pop %v1816
      %v1819 = vrsqrt.pop %v1817
      %v1820 = vmul.f32 %v1814, %v1818
      %v1821 = vmul.f32 %v1815, %v1819
      %v1822 = vlaneseq
      %v1823 = vshrl.u32 %v1822, 7
      %v1824 = vsub.s32 6, %v1823
      %v1825 = vrot.slane %v433, %v1824
      %v1826 = vmul.f32 %v1820, %v1825
      %v1827 = vmul.f32 %v1821, %v1825
      %v1828 = vlaneseq
      %v1829 = vshrl.u32 %v1828, 7
      %v1830 = vsub.s32 7, %v1829
      %v1831 = vrot.slane %v433, %v1830
      %v1832 = vadd.f32 %v1826, %v1831
      %v1833 = vadd.f32 %v1827, %v1831
      %1834 = vst.msk [vmem:[#allocation2] sm:$0xff] %vm455, %v1832
      %1835 = vst.msk [vmem:[#allocation2 + $0x8] sm:$0xff] %vm455, %v1833
      %p1836 = scmp.eq.s32.totalorder %s19, 1
      // Predicated region
      $region57: #{joint_ceeq_fwd.3} parent=51 // pred_check
        %p1837 = pneg %p1836
      $region58: #{joint_ceeq_fwd.3} parent=51 // pred_check_branch
        %1839 = sbr.rel (%p1837) target = $region60
      $region59: #{joint_ceeq_fwd.3} parent=51 // pred_region
        %1840 = vst.msk [vmem:[%s8] sm:$0xff] %vm455, %v1832
        %1841 = vst.msk [vmem:[%s8 + $0x8] sm:$0xff] %vm455, %v1833
      $region60: #{joint_ceeq_fwd.3} parent=51 // pred_fallthru
        _
      // Predicated region
      $region61: #{joint_ceeq_fwd.3} parent=51 // pred_check
        %p1842 = pneg %p225
      $region62: #{joint_ceeq_fwd.3} parent=51 // pred_check_branch
        %1844 = sbr.rel (%p1842) target = $region64
      $region63: #{joint_ceeq_fwd.3} parent=51 // pred_region
        _
      $region64: #{joint_ceeq_fwd.3} parent=51 // pred_fallthru
        _
      // Predicated region
      $region65: #{joint_ceeq_fwd.3} parent=51 // pred_check
        %p1845 = pneg %p225
      $region66: #{joint_ceeq_fwd.3} parent=51 // pred_check_branch
        %1847 = sbr.rel (%p1845) target = $region68
      $region67: #{joint_ceeq_fwd.3} parent=51 // pred_region
        _
      $region68: #{joint_ceeq_fwd.3} parent=51 // pred_fallthru
        _
    $region52: #{joint_ceeq_fwd.3} parent=5 // pred_fallthru
      _
    %p1848 = scmp.le.s32.totalorder 2, %s14
    // Predicated region
    $region69: #{joint_ceeq_fwd.3} parent=5 // pred_check
      %p1849 = pneg %p1848
    $region70: #{joint_ceeq_fwd.3} parent=5 // pred_check_branch
      %1851 = sbr.rel (%p1849) target = $region72
    $region71: #{joint_ceeq_fwd.3} parent=5 // pred_region
      %s1852 = ssub.s32 %s14, 2
    $region72: #{joint_ceeq_fwd.3} parent=5 // pred_fallthru
      _
  $region6: #{joint_ceeq_fwd.3} parent=0 // loop_footer
    %s18 = sadd.s32 1, %s14
  $region7: #{joint_ceeq_fwd.3} parent=0 // loop_footer_branch
    %13 = sbr.rel target = $region3
  $region8: #{joint_ceeq_fwd.3} parent=0 // loop_exit
    _

// kernel: joint_ceeq_fwd.4
$region0: #{joint_ceeq_fwd.4}
  #allocation0 [shape = 'u32[]', space=smem, size = 0x4, offset = 0x4, fixed_abs, tag = 'smem constant byte address 0x4 - core index']
  #allocation1 [shape = 'u32[144,128]{1,0:T(1,128)}', space=vmem, size = 0x12000, scoped, tag = 'internal scratch']
  #allocation2 [shape = 'f32[16,32]{1,0:T(8,128)}', space=vmem, size = 0x2000, scoped, tag = 'scratch operand']
  #allocation3 [shape = 'f32[32,32]{1,0:T(8,128)}', space=vmem, size = 0x4000, scoped, tag = 'scratch operand']
  %s0 = inlined_call_operand.vmem [shape: f32[16,32], index: 0, kind: input, shape index: {}]
  %s1 = inlined_call_operand.vmem [shape: f32[16,32], index: 1, kind: input, shape index: {}]
  %s2 = inlined_call_operand.vmem [shape: f32[32,8], index: 2, kind: input, shape index: {}]
  %s3 = inlined_call_operand.vmem [shape: bf16[8,32], index: 3, kind: input, shape index: {}]
  %s4 = inlined_call_operand.vmem [shape: f32[32,32], index: 4, kind: input, shape index: {}]
  %s5 = inlined_call_operand.vmem [shape: bf16[2,32,96], index: 5, kind: input, shape index: {}]
  %s6 = inlined_call_operand.vmem [shape: bf16[2,32,32], index: 6, kind: input, shape index: {}]
  %s7 = inlined_call_operand.vmem [shape: bf16[2,32,32], index: 7, kind: input, shape index: {}]
  %s8 = inlined_call_operand.vmem [shape: bf16[2,32,64], index: 8, kind: input, shape index: {}]
  %s9 = inlined_call_operand.vmem [shape: bf16[2,32,32], index: 9, kind: input, shape index: {}]
  %s10 = inlined_call_operand.vmem [shape: bf16[2,32,64], index: 10, kind: input, shape index: {}]
  %s11 = inlined_call_operand.vmem [shape: bf16[2,64,32], index: 11, kind: input, shape index: {}]
  %s12 = inlined_call_operand.vmem [shape: f32[2,16,128], index: 12, kind: input, shape index: {}]
  %s13 = inlined_call_operand.vmem [shape: bf16[32,128], index: 13, kind: input, shape index: {}]
  %s14 = inlined_call_operand.vmem [shape: f32[1,128], index: 14, kind: input, shape index: {}]
  %s15 = inlined_call_operand.vmem [shape: f32[16,128], index: 15, kind: output, shape index: {}]
  %s16 = sld [smem:[#allocation0]]
  $region101: #{joint_ceeq_fwd.4} parent=0
    _
  %s18 = ssub.s32 1, %s16
  %s19 = scalar_select 0, %s18, %s16
  loop: start=0, step=1, limit=4
  $region2: #{joint_ceeq_fwd.4} parent=0 // loop_pre_header
    _
  $region3: #{joint_ceeq_fwd.4} parent=0 // loop_header
    %s21 = sphi 0, %s25
    %p22 = scmp.ge.s32.totalorder %s21, 4
    %s29 = sphi 0, %s29
    %s31 = sphi 0, %s29
    %s32 = sphi 0, %s31
    %s46 = sphi 0, %s32
    %s50 = sphi 0, %s50
    %s52 = sphi 0, %s50
    %s53 = sphi 0, %s52
    %s67 = sphi 0, %s53
    %s71 = sphi 0, %s71
    %s73 = sphi 0, %s71
    %s74 = sphi 0, %s73
    %s88 = sphi 0, %s74
    %s92 = sphi 0, %s92
    %s94 = sphi 0, %s92
    %s95 = sphi 0, %s94
    %s109 = sphi 0, %s95
    %s113 = sphi 0, %s113
    %s115 = sphi 0, %s113
    %s116 = sphi 0, %s115
    %s130 = sphi 0, %s116
    %s136 = sphi 0, %s138
    %s139 = sphi 0, %s136
    %s140 = sphi 0, %s139
    %s156 = sphi 0, %s140
    %s162 = sphi 0, %s164
    %s165 = sphi 0, %s162
    %s166 = sphi 0, %s165
    %s182 = sphi 0, %s166
    %s188 = sphi 0, %s190
    %s191 = sphi 0, %s188
    %s192 = sphi 0, %s191
    %s208 = sphi 0, %s192
    %s214 = sphi 0, %s216
    %s217 = sphi 0, %s214
    %s218 = sphi 0, %s217
    %s234 = sphi 0, %s218
    %s240 = sphi 0, %s242
    %s243 = sphi 0, %s240
    %s244 = sphi 0, %s243
    %s260 = sphi 0, %s244
    %s266 = sphi 0, %s268
    %s269 = sphi 0, %s266
    %s270 = sphi 0, %s269
    %s286 = sphi 0, %s270
    %s292 = sphi 0, %s294
    %s295 = sphi 0, %s292
    %s296 = sphi 0, %s295
    %s312 = sphi 0, %s296
    %s318 = sphi 0, %s320
    %s321 = sphi 0, %s318
    %s322 = sphi 0, %s321
    %s338 = sphi 0, %s322
    %s342 = sphi 0, %s342
    %s344 = sphi 0, %s342
    %s345 = sphi 0, %s344
    %s359 = sphi 0, %s345
    %s363 = sphi 0, %s363
    %s365 = sphi 0, %s363
    %s366 = sphi 0, %s365
    %s380 = sphi 0, %s366
    %s384 = sphi 0, %s384
    %s386 = sphi 0, %s384
    %s387 = sphi 0, %s386
    %s401 = sphi 0, %s387
  $region4: #{joint_ceeq_fwd.4} parent=0 // loop_header_branch
    %24 = sbr.rel (%p22) target = $region8
  $region5: #{joint_ceeq_fwd.4} parent=0 // loop_body
    %s26 = ssub.s32 %s21, 1
    %s27 = ssub.s32 %s21, 2
    %s28 = sadd.s32 %s21, 1
    %s30 = sadd.s32 %s29, 1
    %p33 = scmp.eq.s32.totalorder %s21, 1
    %p34 = scmp.ne.s32.totalorder %s29, %s31
    %p35 = scmp.eq.s32.totalorder %s21, 0
    %p36 = por %p34, %p35
    %p37 = scmp.ne.s32.totalorder %s29, %s31
    %p38 = scmp.eq.s32.totalorder %s26, 1
    %p39 = por %p37, %p38
    %p40 = scmp.ne.s32.totalorder %s31, %s32
    %p41 = scmp.eq.s32.totalorder %s26, 0
    %p42 = por %p40, %p41
    %p43 = scmp.ne.s32.totalorder %s31, %s32
    %p44 = scmp.eq.s32.totalorder %s27, 1
    %p45 = por %p43, %p44
    %p47 = scmp.ne.s32.totalorder %s32, %s46
    %p48 = scmp.eq.s32.totalorder %s27, 0
    %p49 = por %p47, %p48
    %s51 = sadd.s32 %s50, 1
    %p54 = scmp.eq.s32.totalorder %s21, 1
    %p55 = scmp.ne.s32.totalorder %s50, %s52
    %p56 = scmp.eq.s32.totalorder %s21, 0
    %p57 = por %p55, %p56
    %p58 = scmp.ne.s32.totalorder %s50, %s52
    %p59 = scmp.eq.s32.totalorder %s26, 1
    %p60 = por %p58, %p59
    %p61 = scmp.ne.s32.totalorder %s52, %s53
    %p62 = scmp.eq.s32.totalorder %s26, 0
    %p63 = por %p61, %p62
    %p64 = scmp.ne.s32.totalorder %s52, %s53
    %p65 = scmp.eq.s32.totalorder %s27, 1
    %p66 = por %p64, %p65
    %p68 = scmp.ne.s32.totalorder %s53, %s67
    %p69 = scmp.eq.s32.totalorder %s27, 0
    %p70 = por %p68, %p69
    %s72 = sadd.s32 %s71, 1
    %p75 = scmp.eq.s32.totalorder %s21, 1
    %p76 = scmp.ne.s32.totalorder %s71, %s73
    %p77 = scmp.eq.s32.totalorder %s21, 0
    %p78 = por %p76, %p77
    %p79 = scmp.ne.s32.totalorder %s71, %s73
    %p80 = scmp.eq.s32.totalorder %s26, 1
    %p81 = por %p79, %p80
    %p82 = scmp.ne.s32.totalorder %s73, %s74
    %p83 = scmp.eq.s32.totalorder %s26, 0
    %p84 = por %p82, %p83
    %p85 = scmp.ne.s32.totalorder %s73, %s74
    %p86 = scmp.eq.s32.totalorder %s27, 1
    %p87 = por %p85, %p86
    %p89 = scmp.ne.s32.totalorder %s74, %s88
    %p90 = scmp.eq.s32.totalorder %s27, 0
    %p91 = por %p89, %p90
    %s93 = sadd.s32 %s92, 1
    %p96 = scmp.eq.s32.totalorder %s21, 1
    %p97 = scmp.ne.s32.totalorder %s92, %s94
    %p98 = scmp.eq.s32.totalorder %s21, 0
    %p99 = por %p97, %p98
    %p100 = scmp.ne.s32.totalorder %s92, %s94
    %p101 = scmp.eq.s32.totalorder %s26, 1
    %p102 = por %p100, %p101
    %p103 = scmp.ne.s32.totalorder %s94, %s95
    %p104 = scmp.eq.s32.totalorder %s26, 0
    %p105 = por %p103, %p104
    %p106 = scmp.ne.s32.totalorder %s94, %s95
    %p107 = scmp.eq.s32.totalorder %s27, 1
    %p108 = por %p106, %p107
    %p110 = scmp.ne.s32.totalorder %s95, %s109
    %p111 = scmp.eq.s32.totalorder %s27, 0
    %p112 = por %p110, %p111
    %s114 = sadd.s32 %s113, 1
    %p117 = scmp.eq.s32.totalorder %s21, 1
    %p118 = scmp.ne.s32.totalorder %s113, %s115
    %p119 = scmp.eq.s32.totalorder %s21, 0
    %p120 = por %p118, %p119
    %p121 = scmp.ne.s32.totalorder %s113, %s115
    %p122 = scmp.eq.s32.totalorder %s26, 1
    %p123 = por %p121, %p122
    %p124 = scmp.ne.s32.totalorder %s115, %s116
    %p125 = scmp.eq.s32.totalorder %s26, 0
    %p126 = por %p124, %p125
    %p127 = scmp.ne.s32.totalorder %s115, %s116
    %p128 = scmp.eq.s32.totalorder %s27, 1
    %p129 = por %p127, %p128
    %p131 = scmp.ne.s32.totalorder %s116, %s130
    %p132 = scmp.eq.s32.totalorder %s27, 0
    %p133 = por %p131, %p132
    %s134 = ssub.s32 %s21, %s28
    %p135 = scmp.eq.s32.totalorder %s134, 0
    %s137 = sadd.s32 %s136, 1
    %s138 = scalar_select %p135, %s136, %s137
    %p141 = pneg %p135
    %p142 = scmp.eq.s32.totalorder %s21, 1
    %p143 = por %p141, %p142
    %p144 = scmp.ne.s32.totalorder %s136, %s139
    %p145 = scmp.eq.s32.totalorder %s21, 0
    %p146 = por %p144, %p145
    %p147 = scmp.ne.s32.totalorder %s136, %s139
    %p148 = scmp.eq.s32.totalorder %s26, 1
    %p149 = por %p147, %p148
    %p150 = scmp.ne.s32.totalorder %s139, %s140
    %p151 = scmp.eq.s32.totalorder %s26, 0
    %p152 = por %p150, %p151
    %p153 = scmp.ne.s32.totalorder %s139, %s140
    %p154 = scmp.eq.s32.totalorder %s27, 1
    %p155 = por %p153, %p154
    %p157 = scmp.ne.s32.totalorder %s140, %s156
    %p158 = scmp.eq.s32.totalorder %s27, 0
    %p159 = por %p157, %p158
    %s160 = ssub.s32 %s21, %s28
    %p161 = scmp.eq.s32.totalorder %s160, 0
    %s163 = sadd.s32 %s162, 1
    %s164 = scalar_select %p161, %s162, %s163
    %p167 = pneg %p161
    %p168 = scmp.eq.s32.totalorder %s21, 1
    %p169 = por %p167, %p168
    %p170 = scmp.ne.s32.totalorder %s162, %s165
    %p171 = scmp.eq.s32.totalorder %s21, 0
    %p172 = por %p170, %p171
    %p173 = scmp.ne.s32.totalorder %s162, %s165
    %p174 = scmp.eq.s32.totalorder %s26, 1
    %p175 = por %p173, %p174
    %p176 = scmp.ne.s32.totalorder %s165, %s166
    %p177 = scmp.eq.s32.totalorder %s26, 0
    %p178 = por %p176, %p177
    %p179 = scmp.ne.s32.totalorder %s165, %s166
    %p180 = scmp.eq.s32.totalorder %s27, 1
    %p181 = por %p179, %p180
    %p183 = scmp.ne.s32.totalorder %s166, %s182
    %p184 = scmp.eq.s32.totalorder %s27, 0
    %p185 = por %p183, %p184
    %s186 = ssub.s32 %s21, %s28
    %p187 = scmp.eq.s32.totalorder %s186, 0
    %s189 = sadd.s32 %s188, 1
    %s190 = scalar_select %p187, %s188, %s189
    %p193 = pneg %p187
    %p194 = scmp.eq.s32.totalorder %s21, 1
    %p195 = por %p193, %p194
    %p196 = scmp.ne.s32.totalorder %s188, %s191
    %p197 = scmp.eq.s32.totalorder %s21, 0
    %p198 = por %p196, %p197
    %p199 = scmp.ne.s32.totalorder %s188, %s191
    %p200 = scmp.eq.s32.totalorder %s26, 1
    %p201 = por %p199, %p200
    %p202 = scmp.ne.s32.totalorder %s191, %s192
    %p203 = scmp.eq.s32.totalorder %s26, 0
    %p204 = por %p202, %p203
    %p205 = scmp.ne.s32.totalorder %s191, %s192
    %p206 = scmp.eq.s32.totalorder %s27, 1
    %p207 = por %p205, %p206
    %p209 = scmp.ne.s32.totalorder %s192, %s208
    %p210 = scmp.eq.s32.totalorder %s27, 0
    %p211 = por %p209, %p210
    %s212 = ssub.s32 %s21, %s28
    %p213 = scmp.eq.s32.totalorder %s212, 0
    %s215 = sadd.s32 %s214, 1
    %s216 = scalar_select %p213, %s214, %s215
    %p219 = pneg %p213
    %p220 = scmp.eq.s32.totalorder %s21, 1
    %p221 = por %p219, %p220
    %p222 = scmp.ne.s32.totalorder %s214, %s217
    %p223 = scmp.eq.s32.totalorder %s21, 0
    %p224 = por %p222, %p223
    %p225 = scmp.ne.s32.totalorder %s214, %s217
    %p226 = scmp.eq.s32.totalorder %s26, 1
    %p227 = por %p225, %p226
    %p228 = scmp.ne.s32.totalorder %s217, %s218
    %p229 = scmp.eq.s32.totalorder %s26, 0
    %p230 = por %p228, %p229
    %p231 = scmp.ne.s32.totalorder %s217, %s218
    %p232 = scmp.eq.s32.totalorder %s27, 1
    %p233 = por %p231, %p232
    %p235 = scmp.ne.s32.totalorder %s218, %s234
    %p236 = scmp.eq.s32.totalorder %s27, 0
    %p237 = por %p235, %p236
    %s238 = ssub.s32 %s21, %s28
    %p239 = scmp.eq.s32.totalorder %s238, 0
    %s241 = sadd.s32 %s240, 1
    %s242 = scalar_select %p239, %s240, %s241
    %p245 = pneg %p239
    %p246 = scmp.eq.s32.totalorder %s21, 1
    %p247 = por %p245, %p246
    %p248 = scmp.ne.s32.totalorder %s240, %s243
    %p249 = scmp.eq.s32.totalorder %s21, 0
    %p250 = por %p248, %p249
    %p251 = scmp.ne.s32.totalorder %s240, %s243
    %p252 = scmp.eq.s32.totalorder %s26, 1
    %p253 = por %p251, %p252
    %p254 = scmp.ne.s32.totalorder %s243, %s244
    %p255 = scmp.eq.s32.totalorder %s26, 0
    %p256 = por %p254, %p255
    %p257 = scmp.ne.s32.totalorder %s243, %s244
    %p258 = scmp.eq.s32.totalorder %s27, 1
    %p259 = por %p257, %p258
    %p261 = scmp.ne.s32.totalorder %s244, %s260
    %p262 = scmp.eq.s32.totalorder %s27, 0
    %p263 = por %p261, %p262
    %s264 = ssub.s32 %s21, %s28
    %p265 = scmp.eq.s32.totalorder %s264, 0
    %s267 = sadd.s32 %s266, 1
    %s268 = scalar_select %p265, %s266, %s267
    %p271 = pneg %p265
    %p272 = scmp.eq.s32.totalorder %s21, 1
    %p273 = por %p271, %p272
    %p274 = scmp.ne.s32.totalorder %s266, %s269
    %p275 = scmp.eq.s32.totalorder %s21, 0
    %p276 = por %p274, %p275
    %p277 = scmp.ne.s32.totalorder %s266, %s269
    %p278 = scmp.eq.s32.totalorder %s26, 1
    %p279 = por %p277, %p278
    %p280 = scmp.ne.s32.totalorder %s269, %s270
    %p281 = scmp.eq.s32.totalorder %s26, 0
    %p282 = por %p280, %p281
    %p283 = scmp.ne.s32.totalorder %s269, %s270
    %p284 = scmp.eq.s32.totalorder %s27, 1
    %p285 = por %p283, %p284
    %p287 = scmp.ne.s32.totalorder %s270, %s286
    %p288 = scmp.eq.s32.totalorder %s27, 0
    %p289 = por %p287, %p288
    %s290 = ssub.s32 %s21, %s28
    %p291 = scmp.eq.s32.totalorder %s290, 0
    %s293 = sadd.s32 %s292, 1
    %s294 = scalar_select %p291, %s292, %s293
    %p297 = pneg %p291
    %p298 = scmp.eq.s32.totalorder %s21, 1
    %p299 = por %p297, %p298
    %p300 = scmp.ne.s32.totalorder %s292, %s295
    %p301 = scmp.eq.s32.totalorder %s21, 0
    %p302 = por %p300, %p301
    %p303 = scmp.ne.s32.totalorder %s292, %s295
    %p304 = scmp.eq.s32.totalorder %s26, 1
    %p305 = por %p303, %p304
    %p306 = scmp.ne.s32.totalorder %s295, %s296
    %p307 = scmp.eq.s32.totalorder %s26, 0
    %p308 = por %p306, %p307
    %p309 = scmp.ne.s32.totalorder %s295, %s296
    %p310 = scmp.eq.s32.totalorder %s27, 1
    %p311 = por %p309, %p310
    %p313 = scmp.ne.s32.totalorder %s296, %s312
    %p314 = scmp.eq.s32.totalorder %s27, 0
    %p315 = por %p313, %p314
    %s316 = ssub.s32 %s21, %s28
    %p317 = scmp.eq.s32.totalorder %s316, 0
    %s319 = sadd.s32 %s318, 1
    %s320 = scalar_select %p317, %s318, %s319
    %p323 = pneg %p317
    %p324 = scmp.eq.s32.totalorder %s21, 1
    %p325 = por %p323, %p324
    %p326 = scmp.ne.s32.totalorder %s318, %s321
    %p327 = scmp.eq.s32.totalorder %s21, 0
    %p328 = por %p326, %p327
    %p329 = scmp.ne.s32.totalorder %s318, %s321
    %p330 = scmp.eq.s32.totalorder %s26, 1
    %p331 = por %p329, %p330
    %p332 = scmp.ne.s32.totalorder %s321, %s322
    %p333 = scmp.eq.s32.totalorder %s26, 0
    %p334 = por %p332, %p333
    %p335 = scmp.ne.s32.totalorder %s321, %s322
    %p336 = scmp.eq.s32.totalorder %s27, 1
    %p337 = por %p335, %p336
    %p339 = scmp.ne.s32.totalorder %s322, %s338
    %p340 = scmp.eq.s32.totalorder %s27, 0
    %p341 = por %p339, %p340
    %s343 = sadd.s32 %s342, 1
    %p346 = scmp.eq.s32.totalorder %s21, 1
    %p347 = scmp.ne.s32.totalorder %s342, %s344
    %p348 = scmp.eq.s32.totalorder %s21, 0
    %p349 = por %p347, %p348
    %p350 = scmp.ne.s32.totalorder %s342, %s344
    %p351 = scmp.eq.s32.totalorder %s26, 1
    %p352 = por %p350, %p351
    %p353 = scmp.ne.s32.totalorder %s344, %s345
    %p354 = scmp.eq.s32.totalorder %s26, 0
    %p355 = por %p353, %p354
    %p356 = scmp.ne.s32.totalorder %s344, %s345
    %p357 = scmp.eq.s32.totalorder %s27, 1
    %p358 = por %p356, %p357
    %p360 = scmp.ne.s32.totalorder %s345, %s359
    %p361 = scmp.eq.s32.totalorder %s27, 0
    %p362 = por %p360, %p361
    %s364 = sadd.s32 %s363, 1
    %p367 = scmp.eq.s32.totalorder %s21, 1
    %p368 = scmp.ne.s32.totalorder %s363, %s365
    %p369 = scmp.eq.s32.totalorder %s21, 0
    %p370 = por %p368, %p369
    %p371 = scmp.ne.s32.totalorder %s363, %s365
    %p372 = scmp.eq.s32.totalorder %s26, 1
    %p373 = por %p371, %p372
    %p374 = scmp.ne.s32.totalorder %s365, %s366
    %p375 = scmp.eq.s32.totalorder %s26, 0
    %p376 = por %p374, %p375
    %p377 = scmp.ne.s32.totalorder %s365, %s366
    %p378 = scmp.eq.s32.totalorder %s27, 1
    %p379 = por %p377, %p378
    %p381 = scmp.ne.s32.totalorder %s366, %s380
    %p382 = scmp.eq.s32.totalorder %s27, 0
    %p383 = por %p381, %p382
    %s385 = sadd.s32 %s384, 1
    %p388 = scmp.eq.s32.totalorder %s21, 1
    %p389 = scmp.ne.s32.totalorder %s384, %s386
    %p390 = scmp.eq.s32.totalorder %s21, 0
    %p391 = por %p389, %p390
    %p392 = scmp.ne.s32.totalorder %s384, %s386
    %p393 = scmp.eq.s32.totalorder %s26, 1
    %p394 = por %p392, %p393
    %p395 = scmp.ne.s32.totalorder %s386, %s387
    %p396 = scmp.eq.s32.totalorder %s26, 0
    %p397 = por %p395, %p396
    %p398 = scmp.ne.s32.totalorder %s386, %s387
    %p399 = scmp.eq.s32.totalorder %s27, 1
    %p400 = por %p398, %p399
    %p402 = scmp.ne.s32.totalorder %s387, %s401
    %p403 = scmp.eq.s32.totalorder %s27, 0
    %p404 = por %p402, %p403
    %p405 = scmp.le.s32.totalorder 1, %s21
    %p406 = scmp.lt.s32.totalorder %s21, 3
    %p407 = pnand %p405, %p406
    %p408 = pneg %p407
    // Predicated region
    $region9: #{joint_ceeq_fwd.4} parent=5 // pred_check
      _
    $region10: #{joint_ceeq_fwd.4} parent=5 // pred_check_branch
      %410 = sbr.rel (%p407) target = $region12
    $region11: #{joint_ceeq_fwd.4} parent=5 // pred_region
      %s411 = ssub.s32 %s21, 1
      // Predicated region
      $region13: #{joint_ceeq_fwd.4} parent=11 // pred_check
        %p412 = pneg %p42
      $region14: #{joint_ceeq_fwd.4} parent=11 // pred_check_branch
        %414 = sbr.rel (%p412) target = $region16
      $region15: #{joint_ceeq_fwd.4} parent=11 // pred_region
        _
      $region16: #{joint_ceeq_fwd.4} parent=11 // pred_fallthru
        _
      // Predicated region
      $region17: #{joint_ceeq_fwd.4} parent=11 // pred_check
        %p415 = pneg %p63
      $region18: #{joint_ceeq_fwd.4} parent=11 // pred_check_branch
        %417 = sbr.rel (%p415) target = $region20
      $region19: #{joint_ceeq_fwd.4} parent=11 // pred_region
        _
      $region20: #{joint_ceeq_fwd.4} parent=11 // pred_fallthru
        _
      // Predicated region
      $region21: #{joint_ceeq_fwd.4} parent=11 // pred_check
        %p418 = pneg %p84
      $region22: #{joint_ceeq_fwd.4} parent=11 // pred_check_branch
        %420 = sbr.rel (%p418) target = $region24
      $region23: #{joint_ceeq_fwd.4} parent=11 // pred_region
        _
      $region24: #{joint_ceeq_fwd.4} parent=11 // pred_fallthru
        _
      // Predicated region
      $region25: #{joint_ceeq_fwd.4} parent=11 // pred_check
        %p421 = pneg %p105
      $region26: #{joint_ceeq_fwd.4} parent=11 // pred_check_branch
        %423 = sbr.rel (%p421) target = $region28
      $region27: #{joint_ceeq_fwd.4} parent=11 // pred_region
        _
      $region28: #{joint_ceeq_fwd.4} parent=11 // pred_fallthru
        _
      // Predicated region
      $region29: #{joint_ceeq_fwd.4} parent=11 // pred_check
        %p424 = pneg %p126
      $region30: #{joint_ceeq_fwd.4} parent=11 // pred_check_branch
        %426 = sbr.rel (%p424) target = $region32
      $region31: #{joint_ceeq_fwd.4} parent=11 // pred_region
        _
      $region32: #{joint_ceeq_fwd.4} parent=11 // pred_fallthru
        _
      // Predicated region
      $region33: #{joint_ceeq_fwd.4} parent=11 // pred_check
        %p427 = pneg %p355
      $region34: #{joint_ceeq_fwd.4} parent=11 // pred_check_branch
        %429 = sbr.rel (%p427) target = $region36
      $region35: #{joint_ceeq_fwd.4} parent=11 // pred_region
        _
      $region36: #{joint_ceeq_fwd.4} parent=11 // pred_fallthru
        _
      // Predicated region
      $region37: #{joint_ceeq_fwd.4} parent=11 // pred_check
        %p430 = pneg %p376
      $region38: #{joint_ceeq_fwd.4} parent=11 // pred_check_branch
        %432 = sbr.rel (%p430) target = $region40
      $region39: #{joint_ceeq_fwd.4} parent=11 // pred_region
        _
      $region40: #{joint_ceeq_fwd.4} parent=11 // pred_fallthru
        _
    $region12: #{joint_ceeq_fwd.4} parent=5 // pred_fallthru
      _
    %p433 = scmp.lt.s32.totalorder %s21, 2
    // Predicated region
    $region41: #{joint_ceeq_fwd.4} parent=5 // pred_check
      %p434 = pneg %p433
    $region42: #{joint_ceeq_fwd.4} parent=5 // pred_check_branch
      %436 = sbr.rel (%p434) target = $region44
    $region43: #{joint_ceeq_fwd.4} parent=5 // pred_region
      // Predicated region
      $region45: #{joint_ceeq_fwd.4} parent=43 // pred_check
        %p437 = pneg %p146
      $region46: #{joint_ceeq_fwd.4} parent=43 // pred_check_branch
        %439 = sbr.rel (%p437) target = $region48
      $region47: #{joint_ceeq_fwd.4} parent=43 // pred_region
        %p440 = scmp.lt.s32.totalorder %s21, 1
        %s441 = scalar_select %p440, %s21, 1
        %s442 = smul.addr %s441, 4
        %s443 = smul.addr %s442, 4
        %s444 = scalar_lea.vmem %s5, %s443
      $region48: #{joint_ceeq_fwd.4} parent=43 // pred_fallthru
        _
      // Predicated region
      $region49: #{joint_ceeq_fwd.4} parent=43 // pred_check
        %p445 = pneg %p172
      $region50: #{joint_ceeq_fwd.4} parent=43 // pred_check_branch
        %447 = sbr.rel (%p445) target = $region52
      $region51: #{joint_ceeq_fwd.4} parent=43 // pred_region
        %p448 = scmp.lt.s32.totalorder %s21, 1
        %s449 = scalar_select %p448, %s21, 1
        %s450 = smul.addr %s449, 4
        %s451 = smul.addr %s450, 4
        %s452 = scalar_lea.vmem %s6, %s451
      $region52: #{joint_ceeq_fwd.4} parent=43 // pred_fallthru
        _
      // Predicated region
      $region53: #{joint_ceeq_fwd.4} parent=43 // pred_check
        %p453 = pneg %p198
      $region54: #{joint_ceeq_fwd.4} parent=43 // pred_check_branch
        %455 = sbr.rel (%p453) target = $region56
      $region55: #{joint_ceeq_fwd.4} parent=43 // pred_region
        %p456 = scmp.lt.s32.totalorder %s21, 1
        %s457 = scalar_select %p456, %s21, 1
        %s458 = smul.addr %s457, 4
        %s459 = smul.addr %s458, 4
        %s460 = scalar_lea.vmem %s7, %s459
      $region56: #{joint_ceeq_fwd.4} parent=43 // pred_fallthru
        _
      // Predicated region
      $region57: #{joint_ceeq_fwd.4} parent=43 // pred_check
        %p461 = pneg %p224
      $region58: #{joint_ceeq_fwd.4} parent=43 // pred_check_branch
        %463 = sbr.rel (%p461) target = $region60
      $region59: #{joint_ceeq_fwd.4} parent=43 // pred_region
        %p464 = scmp.lt.s32.totalorder %s21, 1
        %s465 = scalar_select %p464, %s21, 1
        %s466 = smul.addr %s465, 4
        %s467 = smul.addr %s466, 4
        %s468 = scalar_lea.vmem %s8, %s467
      $region60: #{joint_ceeq_fwd.4} parent=43 // pred_fallthru
        _
      // Predicated region
      $region61: #{joint_ceeq_fwd.4} parent=43 // pred_check
        %p469 = pneg %p250
      $region62: #{joint_ceeq_fwd.4} parent=43 // pred_check_branch
        %471 = sbr.rel (%p469) target = $region64
      $region63: #{joint_ceeq_fwd.4} parent=43 // pred_region
        %p472 = scmp.lt.s32.totalorder %s21, 1
        %s473 = scalar_select %p472, %s21, 1
        %s474 = smul.addr %s473, 4
        %s475 = smul.addr %s474, 4
        %s476 = scalar_lea.vmem %s9, %s475
      $region64: #{joint_ceeq_fwd.4} parent=43 // pred_fallthru
        _
      // Predicated region
      $region65: #{joint_ceeq_fwd.4} parent=43 // pred_check
        %p477 = pneg %p276
      $region66: #{joint_ceeq_fwd.4} parent=43 // pred_check_branch
        %479 = sbr.rel (%p477) target = $region68
      $region67: #{joint_ceeq_fwd.4} parent=43 // pred_region
        %p480 = scmp.lt.s32.totalorder %s21, 1
        %s481 = scalar_select %p480, %s21, 1
        %s482 = smul.addr %s481, 4
        %s483 = smul.addr %s482, 4
        %s484 = scalar_lea.vmem %s10, %s483
      $region68: #{joint_ceeq_fwd.4} parent=43 // pred_fallthru
        _
      // Predicated region
      $region69: #{joint_ceeq_fwd.4} parent=43 // pred_check
        %p485 = pneg %p302
      $region70: #{joint_ceeq_fwd.4} parent=43 // pred_check_branch
        %487 = sbr.rel (%p485) target = $region72
      $region71: #{joint_ceeq_fwd.4} parent=43 // pred_region
        %p488 = scmp.lt.s32.totalorder %s21, 1
        %s489 = scalar_select %p488, %s21, 1
        %s490 = smul.addr %s489, 8
        %s491 = smul.addr %s490, 4
        %s492 = scalar_lea.vmem %s11, %s491
      $region72: #{joint_ceeq_fwd.4} parent=43 // pred_fallthru
        _
      // Predicated region
      $region73: #{joint_ceeq_fwd.4} parent=43 // pred_check
        %p493 = pneg %p328
      $region74: #{joint_ceeq_fwd.4} parent=43 // pred_check_branch
        %495 = sbr.rel (%p493) target = $region76
      $region75: #{joint_ceeq_fwd.4} parent=43 // pred_region
        %p496 = scmp.lt.s32.totalorder %s21, 1
        %s497 = scalar_select %p496, %s21, 1
        %s498 = smul.addr %s497, 2
        %s499 = smul.addr %s498, 8
        %s500 = scalar_lea.vmem %s12, %s499
      $region76: #{joint_ceeq_fwd.4} parent=43 // pred_fallthru
        _
    $region44: #{joint_ceeq_fwd.4} parent=5 // pred_fallthru
      _
    %p501 = scmp.le.s32.totalorder 1, %s21
    %p502 = scmp.lt.s32.totalorder %s21, 3
    %p503 = pnand %p501, %p502
    %p504 = pneg %p503
    // Predicated region
    $region77: #{joint_ceeq_fwd.4} parent=5 // pred_check
      _
    $region78: #{joint_ceeq_fwd.4} parent=5 // pred_check_branch
      %506 = sbr.rel (%p503) target = $region80
    $region79: #{joint_ceeq_fwd.4} parent=5 // pred_region
      %s507 = ssub.s32 %s21, 1
      %p508 = pneg %p42
      %p509 = pneg %p39
      %p510 = pneg %p63
      %p511 = pneg %p60
      %p512 = pneg %p84
      %p513 = pneg %p81
      %p514 = pneg %p105
      %p515 = pneg %p102
      %p516 = pneg %p126
      %p517 = pneg %p123
      %p518 = scmp.lt.s32.totalorder %s26, 1
      %s519 = scalar_select %p518, %s26, 1
      %s520 = smul.addr %s519, 4
      %s521 = smul.addr %s520, 4
      %s522 = scalar_lea.vmem %s5, %s521
      %p523 = pneg %p152
      %p524 = pneg %p149
      %p525 = scmp.lt.s32.totalorder %s26, 1
      %s526 = scalar_select %p525, %s26, 1
      %s527 = smul.addr %s526, 4
      %s528 = smul.addr %s527, 4
      %s529 = scalar_lea.vmem %s6, %s528
      %p530 = pneg %p178
      %p531 = pneg %p175
      %p532 = scmp.lt.s32.totalorder %s26, 1
      %s533 = scalar_select %p532, %s26, 1
      %s534 = smul.addr %s533, 4
      %s535 = smul.addr %s534, 4
      %s536 = scalar_lea.vmem %s7, %s535
      %p537 = pneg %p204
      %p538 = pneg %p201
      %p539 = scmp.lt.s32.totalorder %s26, 1
      %s540 = scalar_select %p539, %s26, 1
      %s541 = smul.addr %s540, 4
      %s542 = smul.addr %s541, 4
      %s543 = scalar_lea.vmem %s8, %s542
      %p544 = pneg %p230
      %p545 = pneg %p227
      %p546 = scmp.lt.s32.totalorder %s26, 1
      %s547 = scalar_select %p546, %s26, 1
      %s548 = smul.addr %s547, 4
      %s549 = smul.addr %s548, 4
      %s550 = scalar_lea.vmem %s9, %s549
      %p551 = pneg %p256
      %p552 = pneg %p253
      %p553 = scmp.lt.s32.totalorder %s26, 1
      %s554 = scalar_select %p553, %s26, 1
      %s555 = smul.addr %s554, 4
      %s556 = smul.addr %s555, 4
      %s557 = scalar_lea.vmem %s10, %s556
      %p558 = pneg %p282
      %p559 = pneg %p279
      %p560 = scmp.lt.s32.totalorder %s26, 1
      %s561 = scalar_select %p560, %s26, 1
      %s562 = smul.addr %s561, 8
      %s563 = smul.addr %s562, 4
      %s564 = scalar_lea.vmem %s11, %s563
      %p565 = pneg %p308
      %p566 = pneg %p305
      %p567 = scmp.lt.s32.totalorder %s26, 1
      %s568 = scalar_select %p567, %s26, 1
      %s569 = smul.addr %s568, 2
      %s570 = smul.addr %s569, 8
      %s571 = scalar_lea.vmem %s12, %s570
      %p572 = pneg %p334
      %p573 = pneg %p331
      %p574 = pneg %p355
      %p575 = pneg %p352
      %p576 = pneg %p376
      %p577 = pneg %p373
      %p578 = pneg %p397
      %p579 = pneg %p394
      %p580 = scmp.lt.s32.totalorder %s26, 1
      %s581 = scalar_select %p580, %s26, 1
      %s582 = smul.addr %s581, 4
      %s583 = smul.addr %s582, 4
      %s584 = scalar_lea.vmem %s5, %s583
      %p585 = scmp.lt.s32.totalorder %s26, 1
      %s586 = scalar_select %p585, %s26, 1
      %s587 = smul.addr %s586, 4
      %s588 = smul.addr %s587, 4
      %s589 = scalar_lea.vmem %s6, %s588
      %p590 = scmp.lt.s32.totalorder %s26, 1
      %s591 = scalar_select %p590, %s26, 1
      %s592 = smul.addr %s591, 4
      %s593 = smul.addr %s592, 4
      %s594 = scalar_lea.vmem %s7, %s593
      %p595 = scmp.lt.s32.totalorder %s26, 1
      %s596 = scalar_select %p595, %s26, 1
      %s597 = smul.addr %s596, 4
      %s598 = smul.addr %s597, 4
      %s599 = scalar_lea.vmem %s8, %s598
      %p600 = scmp.lt.s32.totalorder %s26, 1
      %s601 = scalar_select %p600, %s26, 1
      %s602 = smul.addr %s601, 4
      %s603 = smul.addr %s602, 4
      %s604 = scalar_lea.vmem %s9, %s603
      %p605 = scmp.lt.s32.totalorder %s26, 1
      %s606 = scalar_select %p605, %s26, 1
      %s607 = smul.addr %s606, 4
      %s608 = smul.addr %s607, 4
      %s609 = scalar_lea.vmem %s10, %s608
      %p610 = scmp.lt.s32.totalorder %s26, 1
      %s611 = scalar_select %p610, %s26, 1
      %s612 = smul.addr %s611, 8
      %s613 = smul.addr %s612, 4
      %s614 = scalar_lea.vmem %s11, %s613
      %p615 = scmp.lt.s32.totalorder %s26, 1
      %s616 = scalar_select %p615, %s26, 1
      %s617 = smul.addr %s616, 2
      %s618 = smul.addr %s617, 8
      %s619 = scalar_lea.vmem %s12, %s618
      %p621 = scmp.eq.s32.totalorder %s26, 0
      // Predicated region
      $region81: #{joint_ceeq_fwd.4} parent=79 // pred_check
        %p622 = pneg %p621
      $region82: #{joint_ceeq_fwd.4} parent=79 // pred_check_branch
        %624 = sbr.rel (%p622) target = $region84
      $region83: #{joint_ceeq_fwd.4} parent=79 // pred_region
        %v625 = vld [vmem:[%s0] sm:$0xff]
        %v626 = vld [vmem:[%s0 + $0x8] sm:$0xff]
        %v627 = vld [vmem:[%s1] sm:$0xff]
        %v628 = vld [vmem:[%s1 + $0x8] sm:$0xff]
        %v629 = vadd.f32 %v625, %v627
        %v630 = vadd.f32 %v626, %v628
        %vm631 = vcmask 261120
        %632 = vst.msk [vmem:[#allocation2] sm:$0xff] %vm631, %v629
        %633 = vst.msk [vmem:[#allocation2 + $0x8] sm:$0xff] %vm631, %v630
        %v634 = vld [vmem:[%s2] sm:$0xff]
        %v635 = vld [vmem:[%s2 + $0x8] sm:$0xff]
        %v636 = vld [vmem:[%s2 + $0x10] sm:$0xff]
        %v637 = vld [vmem:[%s2 + $0x18] sm:$0xff]
        %v638 = vld [vmem:[%s3] sm:$0xf]
        %v639 = vpack.c.bf16 %v635, %v634
        %v640 = vpack.c.bf16 %v637, %v636
        %v641 = vld [vmem:[%s4] sm:$0xff]
        %v642 = vld [vmem:[%s4 + $0x8] sm:$0xff]
        %v643 = vld [vmem:[%s4 + $0x10] sm:$0xff]
        %v644 = vld [vmem:[%s4 + $0x18] sm:$0xff]
        %vm645 = vcmask 64512
        %v647 = vsel %vm645, %v639, 0
        %v650 = vsel %vm645, %v640, 0
        %vm652 = vcmask 1043456
        %v654 = vsel %vm652, %v638, 0
        %656 = vmatprep.subr.bf16.mxu0 0
        %657 = vmatpush1.bf16.msra.mxu0 0
        %658 = vmatprep.subr.bf16.mxu0 0
        %659 = vmatpush1.bf16.msra.mxu0 0
        %660 = vmatprep.subr.bf16.mxu0 0
        %661 = vmatpush1.bf16.msra.mxu0 0
        %662 = vmatprep.subr.bf16.mxu0 0
        %663 = vmatpush1.bf16.msra.mxu0 0
        %664 = vmatprep.subr.bf16.mxu0 0
        %665 = vmatpush1.bf16.msra.mxu0 0
        %666 = vmatprep.subr.bf16.mxu0 0
        %667 = vmatpush1.bf16.msra.mxu0 0
        %668 = vmatprep.subr.bf16.mxu0 0
        %669 = vmatpush1.bf16.msra.mxu0 0
        %670 = vmatprep.subr.bf16.mxu0 0
        %671 = vmatpush1.bf16.msra.mxu0 %v654
        %672 = vmatprep.subr.bf16.mxu0 0
        %673 = vmatpush2.bf16.msra.mxu0 0
        %674 = vmatprep.subr.bf16.mxu0 0
        %675 = vmatpush2.bf16.msra.mxu0 0
        %676 = vmatprep.subr.bf16.mxu0 0
        %677 = vmatpush2.bf16.msra.mxu0 0
        %678 = vmatprep.subr.bf16.mxu0 0
        %679 = vmatpush2.bf16.msra.mxu0 0
        %680 = vmatprep.subr.bf16.mxu0 0
        %681 = vmatpush2.bf16.msra.mxu0 0
        %682 = vmatprep.subr.bf16.mxu0 0
        %683 = vmatpush2.bf16.msra.mxu0 0
        %684 = vmatprep.subr.bf16.mxu0 0
        %685 = vmatpush2.bf16.msra.mxu0 0
        %686 = vmatprep.subr.bf16.mxu0 0
        %687 = vmatpush2.bf16.msra.mxu0 0
        %688 = vmatprep.mubr.bf16.mxu0 0
        %689 = vmatmul.mubr.bf16.gmra.mxu0 %v647
        %v690 = vpop.f32.mrf.mxu0
        %v691 = vadd.f32 %v641, %v690
        %v692 = vpop.f32.mrf.mxu0
        %v693 = vpop.f32.mrf.mxu0
        %v694 = vadd.f32 %v642, %v693
        %v695 = vpop.f32.mrf.mxu0
        %696 = vmatprep.mubr.bf16.mxu0 0
        %697 = vmatmul.mubr.bf16.gmra.mxu0 %v650
        %v698 = vpop.f32.mrf.mxu0
        %v699 = vadd.f32 %v643, %v698
        %v700 = vpop.f32.mrf.mxu0
        %v701 = vpop.f32.mrf.mxu0
        %v702 = vadd.f32 %v644, %v701
        %v703 = vpop.f32.mrf.mxu0
        %704 = vdwg.mxu0
        %705 = vst.msk [vmem:[#allocation3] sm:$0xff] %vm631, %v691
        %706 = vst.msk [vmem:[#allocation3 + $0x8] sm:$0xff] %vm631, %v694
        %707 = vst.msk [vmem:[#allocation3 + $0x10] sm:$0xff] %vm631, %v699
        %708 = vst.msk [vmem:[#allocation3 + $0x18] sm:$0xff] %vm631, %v702
      $region84: #{joint_ceeq_fwd.4} parent=79 // pred_fallthru
        _
      %v709 = vld [vmem:[#allocation2] sm:$0xff]
      %v710 = vld [vmem:[#allocation2 + $0x8] sm:$0xff]
      %v711 = vld [vmem:[#allocation3] sm:$0xff]
      %v712 = vld [vmem:[#allocation3 + $0x8] sm:$0xff]
      %v713 = vld [vmem:[#allocation3 + $0x10] sm:$0xff]
      %v714 = vld [vmem:[#allocation3 + $0x18] sm:$0xff]
      %v715 = vld [vmem:[%s619] sm:$0xff]
      %v716 = vld [vmem:[%s619 + $0x8] sm:$0xff]
      %v717 = vld [vmem:[%s584] sm:$0xf]
      %v718 = vld [vmem:[%s584 + $0x4] sm:$0xf]
      %v719 = vld [vmem:[%s584 + $0x8] sm:$0xf]
      %v720 = vld [vmem:[%s584 + $0xc] sm:$0xf]
      %v721 = vpack.c.bf16 %v710, %v709
      %v722 = vlaneseq
      %v723 = vshrl.u32 %v722, 7
      %v724 = vsub.s32 0, %v723
      %v725 = vrot.slane %v715, %v724
      %v730 = vunpack.c.l.b16 %v717
      %v731 = vunpack.c.l.b16 %v718
      %v732 = vunpack.c.l.b16 %v719
      %v733 = vunpack.c.l.b16 %v720
      %v734 = vpack.c.b16 %v731, %v730
      %v735 = vpack.c.b16 %v733, %v732
      %vm738 = vcmask 261120
      %v740 = vsel %vm738, %v721, 0
      %742 = vmatprep.subr.bf16.mxu0 0
      %743 = vmatpush1.bf16.msra.mxu0 0
      %744 = vmatprep.subr.bf16.mxu0 0
      %745 = vmatpush1.bf16.msra.mxu0 0
      %746 = vmatprep.subr.bf16.mxu0 0
      %747 = vmatpush1.bf16.msra.mxu0 0
      %748 = vmatprep.subr.bf16.mxu0 0
      %749 = vmatpush1.bf16.msra.mxu0 0
      %750 = vmatprep.subr.bf16.mxu0 0
      %751 = vmatpush1.bf16.msra.mxu0 0
      %752 = vmatprep.subr.bf16.mxu0 0
      %753 = vmatpush1.bf16.msra.mxu0 0
      %754 = vmatprep.subr.bf16.mxu0 0
      %755 = vmatpush1.bf16.msra.mxu0 %v735
      %756 = vmatprep.subr.bf16.mxu0 0
      %757 = vmatpush1.bf16.msra.mxu0 %v734
      %758 = vmatprep.subr.bf16.mxu0 0
      %759 = vmatpush2.bf16.msra.mxu0 0
      %760 = vmatprep.subr.bf16.mxu0 0
      %761 = vmatpush2.bf16.msra.mxu0 0
      %762 = vmatprep.subr.bf16.mxu0 0
      %763 = vmatpush2.bf16.msra.mxu0 0
      %764 = vmatprep.subr.bf16.mxu0 0
      %765 = vmatpush2.bf16.msra.mxu0 0
      %766 = vmatprep.subr.bf16.mxu0 0
      %767 = vmatpush2.bf16.msra.mxu0 0
      %768 = vmatprep.subr.bf16.mxu0 0
      %769 = vmatpush2.bf16.msra.mxu0 0
      %770 = vmatprep.subr.bf16.mxu0 0
      %771 = vmatpush2.bf16.msra.mxu0 0
      %772 = vmatprep.subr.bf16.mxu0 0
      %773 = vmatpush2.bf16.msra.mxu0 0
      %774 = vmatprep.mubr.bf16.mxu0 0
      %775 = vmatmul.mubr.bf16.gmra.mxu0 %v740
      %v776 = vpop.f32.mrf.mxu0
      %v777 = vadd.f32 %v725, %v776
      %v778 = vpop.f32.mrf.mxu0
      %v779 = vpop.f32.mrf.mxu0
      %v780 = vadd.f32 %v725, %v779
      %v781 = vpop.f32.mrf.mxu0
      %782 = vdwg.mxu0
      %v783 = vpack.c.bf16 %v777, %v777
      %v784 = vpack.c.bf16 %v780, %v780
      %786 = vrot.lane.b32.xlu0 %v783, 96
      %v787 = vpop.permute.xlu0 %786
      %vm788 = vcmask 64512
      %v790 = vsel %vm788, %v783, 0
      %v793 = vsel %vm788, %v787, 0
      %795 = vmatprep.subr.bf16.mxu0 0
      %796 = vmatpush1.bf16.xpose.msra.mxu0 0
      %797 = vmatprep.subr.bf16.mxu0 0
      %798 = vmatpush1.bf16.xpose.msra.mxu0 0
      %799 = vmatprep.subr.bf16.mxu0 0
      %800 = vmatpush1.bf16.xpose.msra.mxu0 0
      %801 = vmatprep.subr.bf16.mxu0 0
      %802 = vmatpush1.bf16.xpose.msra.mxu0 0
      %803 = vmatprep.subr.bf16.mxu0 0
      %804 = vmatpush1.bf16.xpose.msra.mxu0 0
      %805 = vmatprep.subr.bf16.mxu0 0
      %806 = vmatpush1.bf16.xpose.msra.mxu0 0
      %807 = vmatprep.subr.bf16.mxu0 0
      %808 = vmatpush1.bf16.xpose.msra.mxu0 0
      %809 = vmatprep.subr.bf16.mxu0 0
      %810 = vmatpush1.bf16.xpose.msra.mxu0 %v793
      %811 = vmatprep.subr.bf16.mxu0 0
      %812 = vmatpush2.bf16.xpose.msra.mxu0 0
      %813 = vmatprep.subr.bf16.mxu0 0
      %814 = vmatpush2.bf16.xpose.msra.mxu0 0
      %815 = vmatprep.subr.bf16.mxu0 0
      %816 = vmatpush2.bf16.xpose.msra.mxu0 0
      %817 = vmatprep.subr.bf16.mxu0 0
      %818 = vmatpush2.bf16.xpose.msra.mxu0 0
      %819 = vmatprep.subr.bf16.mxu0 0
      %820 = vmatpush2.bf16.xpose.msra.mxu0 0
      %821 = vmatprep.subr.bf16.mxu0 0
      %822 = vmatpush2.bf16.xpose.msra.mxu0 0
      %823 = vmatprep.subr.bf16.mxu0 0
      %824 = vmatpush2.bf16.xpose.msra.mxu0 0
      %825 = vmatprep.subr.bf16.mxu0 0
      %826 = vmatpush2.bf16.xpose.msra.mxu0 0
      %827 = vmatprep.mubr.bf16.mxu0 0
      %828 = vmatmul.mubr.bf16.gmra.mxu0 %v790
      %v829 = vpop.f32.mrf.mxu0
      %v830 = vadd.f32 0.0, %v829
      %v831 = vpop.f32.mrf.mxu0
      %v832 = vpop.f32.mrf.mxu0
      %v833 = vpop.f32.mrf.mxu0
      %834 = vdwg.mxu0
      %836 = vrot.lane.b32.xlu0 %v784, 96
      %v837 = vpop.permute.xlu0 %836
      %v839 = vsel %vm788, %v784, 0
      %v842 = vsel %vm788, %v837, 0
      %844 = vmatprep.subr.bf16.mxu0 0
      %845 = vmatpush1.bf16.xpose.msra.mxu0 0
      %846 = vmatprep.subr.bf16.mxu0 0
      %847 = vmatpush1.bf16.xpose.msra.mxu0 0
      %848 = vmatprep.subr.bf16.mxu0 0
      %849 = vmatpush1.bf16.xpose.msra.mxu0 0
      %850 = vmatprep.subr.bf16.mxu0 0
      %851 = vmatpush1.bf16.xpose.msra.mxu0 0
      %852 = vmatprep.subr.bf16.mxu0 0
      %853 = vmatpush1.bf16.xpose.msra.mxu0 0
      %854 = vmatprep.subr.bf16.mxu0 0
      %855 = vmatpush1.bf16.xpose.msra.mxu0 0
      %856 = vmatprep.subr.bf16.mxu0 0
      %857 = vmatpush1.bf16.xpose.msra.mxu0 0
      %858 = vmatprep.subr.bf16.mxu0 0
      %859 = vmatpush1.bf16.xpose.msra.mxu0 %v842
      %860 = vmatprep.subr.bf16.mxu0 0
      %861 = vmatpush2.bf16.xpose.msra.mxu0 0
      %862 = vmatprep.subr.bf16.mxu0 0
      %863 = vmatpush2.bf16.xpose.msra.mxu0 0
      %864 = vmatprep.subr.bf16.mxu0 0
      %865 = vmatpush2.bf16.xpose.msra.mxu0 0
      %866 = vmatprep.subr.bf16.mxu0 0
      %867 = vmatpush2.bf16.xpose.msra.mxu0 0
      %868 = vmatprep.subr.bf16.mxu0 0
      %869 = vmatpush2.bf16.xpose.msra.mxu0 0
      %870 = vmatprep.subr.bf16.mxu0 0
      %871 = vmatpush2.bf16.xpose.msra.mxu0 0
      %872 = vmatprep.subr.bf16.mxu0 0
      %873 = vmatpush2.bf16.xpose.msra.mxu0 0
      %874 = vmatprep.subr.bf16.mxu0 0
      %875 = vmatpush2.bf16.xpose.msra.mxu0 0
      %876 = vmatprep.mubr.bf16.mxu0 0
      %877 = vmatmul.mubr.bf16.gmra.mxu0 %v839
      %v878 = vpop.f32.mrf.mxu0
      %v879 = vadd.f32 0.0, %v878
      %v880 = vpop.f32.mrf.mxu0
      %v881 = vpop.f32.mrf.mxu0
      %v882 = vpop.f32.mrf.mxu0
      %883 = vdwg.mxu0
      %v884 = vmul.f32 %v830, 0.35355338
      %v885 = vmul.f32 %v879, 0.35355338
      %v886 = vsel %vm788, %v884, -inf
      %887 = vmax.xlane.f32.xlu0 %v886
      %v888 = vpop.xlane.xlu0 %887
      %v889 = vsel %vm788, %v885, -inf
      %890 = vmax.xlane.f32.xlu0 %v889
      %v891 = vpop.xlane.xlu0 %890
      %v892 = vsub.f32 %v884, %v888
      %v893 = vsub.f32 %v885, %v891
      %v894 = vmul.f32 %v892, 1.442695
      %v895 = vpow.pop %v894
      %v896 = vmul.f32 %v893, 1.442695
      %v897 = vpow.pop %v896
      %v898 = vsel %vm788, %v895, 0.0
      %899 = vadd.xlane.f32.xlu0 %v898
      %v900 = vpop.xlane.xlu0 %899
      %v901 = vsel %vm788, %v897, 0.0
      %902 = vadd.xlane.f32.xlu0 %v901
      %v903 = vpop.xlane.xlu0 %902
      %v904 = vrcp.pop %v900
      %v905 = vrcp.pop %v903
      %v906 = vmul.f32 %v895, %v904
      %v907 = vmul.f32 %v897, %v905
      %v908 = vpack.c.bf16 %v906, %v906
      %v909 = vpack.c.bf16 %v907, %v907
      %910 = vrot.lane.b32.xlu0 %v783, 64
      %v911 = vpop.permute.xlu0 %910
      %v913 = vsel %vm788, %v908, 0
      %vm915 = vcmask 1043456
      %v917 = vsel %vm915, %v911, 0
      %919 = vmatprep.subr.bf16.mxu0 0
      %920 = vmatpush1.bf16.msra.mxu0 0
      %921 = vmatprep.subr.bf16.mxu0 0
      %922 = vmatpush1.bf16.msra.mxu0 0
      %923 = vmatprep.subr.bf16.mxu0 0
      %924 = vmatpush1.bf16.msra.mxu0 0
      %925 = vmatprep.subr.bf16.mxu0 0
      %926 = vmatpush1.bf16.msra.mxu0 0
      %927 = vmatprep.subr.bf16.mxu0 0
      %928 = vmatpush1.bf16.msra.mxu0 0
      %929 = vmatprep.subr.bf16.mxu0 0
      %930 = vmatpush1.bf16.msra.mxu0 0
      %931 = vmatprep.subr.bf16.mxu0 0
      %932 = vmatpush1.bf16.msra.mxu0 0
      %933 = vmatprep.subr.bf16.mxu0 0
      %934 = vmatpush1.bf16.msra.mxu0 %v917
      %935 = vmatprep.subr.bf16.mxu0 0
      %936 = vmatpush2.bf16.msra.mxu0 0
      %937 = vmatprep.subr.bf16.mxu0 0
      %938 = vmatpush2.bf16.msra.mxu0 0
      %939 = vmatprep.subr.bf16.mxu0 0
      %940 = vmatpush2.bf16.msra.mxu0 0
      %941 = vmatprep.subr.bf16.mxu0 0
      %942 = vmatpush2.bf16.msra.mxu0 0
      %943 = vmatprep.subr.bf16.mxu0 0
      %944 = vmatpush2.bf16.msra.mxu0 0
      %945 = vmatprep.subr.bf16.mxu0 0
      %946 = vmatpush2.bf16.msra.mxu0 0
      %947 = vmatprep.subr.bf16.mxu0 0
      %948 = vmatpush2.bf16.msra.mxu0 0
      %949 = vmatprep.subr.bf16.mxu0 0
      %950 = vmatpush2.bf16.msra.mxu0 0
      %951 = vmatprep.mubr.bf16.mxu0 0
      %952 = vmatmul.mubr.bf16.gmra.mxu0 %v913
      %v953 = vpop.f32.mrf.mxu0
      %v954 = vadd.f32 0.0, %v953
      %v955 = vpop.f32.mrf.mxu0
      %v956 = vpop.f32.mrf.mxu0
      %v957 = vpop.f32.mrf.mxu0
      %958 = vdwg.mxu0
      %959 = vrot.lane.b32.xlu0 %v784, 64
      %v960 = vpop.permute.xlu0 %959
      %v962 = vsel %vm788, %v909, 0
      %v965 = vsel %vm915, %v960, 0
      %967 = vmatprep.subr.bf16.mxu0 0
      %968 = vmatpush1.bf16.msra.mxu0 0
      %969 = vmatprep.subr.bf16.mxu0 0
      %970 = vmatpush1.bf16.msra.mxu0 0
      %971 = vmatprep.subr.bf16.mxu0 0
      %972 = vmatpush1.bf16.msra.mxu0 0
      %973 = vmatprep.subr.bf16.mxu0 0
      %974 = vmatpush1.bf16.msra.mxu0 0
      %975 = vmatprep.subr.bf16.mxu0 0
      %976 = vmatpush1.bf16.msra.mxu0 0
      %977 = vmatprep.subr.bf16.mxu0 0
      %978 = vmatpush1.bf16.msra.mxu0 0
      %979 = vmatprep.subr.bf16.mxu0 0
      %980 = vmatpush1.bf16.msra.mxu0 0
      %981 = vmatprep.subr.bf16.mxu0 0
      %982 = vmatpush1.bf16.msra.mxu0 %v965
      %983 = vmatprep.subr.bf16.mxu0 0
      %984 = vmatpush2.bf16.msra.mxu0 0
      %985 = vmatprep.subr.bf16.mxu0 0
      %986 = vmatpush2.bf16.msra.mxu0 0
      %987 = vmatprep.subr.bf16.mxu0 0
      %988 = vmatpush2.bf16.msra.mxu0 0
      %989 = vmatprep.subr.bf16.mxu0 0
      %990 = vmatpush2.bf16.msra.mxu0 0
      %991 = vmatprep.subr.bf16.mxu0 0
      %992 = vmatpush2.bf16.msra.mxu0 0
      %993 = vmatprep.subr.bf16.mxu0 0
      %994 = vmatpush2.bf16.msra.mxu0 0
      %995 = vmatprep.subr.bf16.mxu0 0
      %996 = vmatpush2.bf16.msra.mxu0 0
      %997 = vmatprep.subr.bf16.mxu0 0
      %998 = vmatpush2.bf16.msra.mxu0 0
      %999 = vmatprep.mubr.bf16.mxu0 0
      %1000 = vmatmul.mubr.bf16.gmra.mxu0 %v962
      %v1001 = vpop.f32.mrf.mxu0
      %v1002 = vadd.f32 0.0, %v1001
      %v1003 = vpop.f32.mrf.mxu0
      %v1004 = vpop.f32.mrf.mxu0
      %v1005 = vpop.f32.mrf.mxu0
      %1006 = vdwg.mxu0
      %v1007 = vpack.c.bf16 %v1002, %v954
      %v1008 = vld [vmem:[%s589] sm:$0xf]
      %1009 = vrot.lane.b32.xlu0 %v783, 120
      %v1010 = vpop.permute.xlu0 %1009
      %1011 = vrot.lane.b32.xlu0 %v783, 88
      %v1012 = vpop.permute.xlu0 %1011
      %v1014 = vsel %vm788, %v1010, 0
      %v1017 = vsel %vm788, %v1012, 0
      %1019 = vmatprep.subr.bf16.mxu0 0
      %1020 = vmatpush1.bf16.xpose.msra.mxu0 0
      %1021 = vmatprep.subr.bf16.mxu0 0
      %1022 = vmatpush1.bf16.xpose.msra.mxu0 0
      %1023 = vmatprep.subr.bf16.mxu0 0
      %1024 = vmatpush1.bf16.xpose.msra.mxu0 0
      %1025 = vmatprep.subr.bf16.mxu0 0
      %1026 = vmatpush1.bf16.xpose.msra.mxu0 0
      %1027 = vmatprep.subr.bf16.mxu0 0
      %1028 = vmatpush1.bf16.xpose.msra.mxu0 0
      %1029 = vmatprep.subr.bf16.mxu0 0
      %1030 = vmatpush1.bf16.xpose.msra.mxu0 0
      %1031 = vmatprep.subr.bf16.mxu0 0
      %1032 = vmatpush1.bf16.xpose.msra.mxu0 0
      %1033 = vmatprep.subr.bf16.mxu0 0
      %1034 = vmatpush1.bf16.xpose.msra.mxu0 %v1017
      %1035 = vmatprep.subr.bf16.mxu0 0
      %1036 = vmatpush2.bf16.xpose.msra.mxu0 0
      %1037 = vmatprep.subr.bf16.mxu0 0
      %1038 = vmatpush2.bf16.xpose.msra.mxu0 0
      %1039 = vmatprep.subr.bf16.mxu0 0
      %1040 = vmatpush2.bf16.xpose.msra.mxu0 0
      %1041 = vmatprep.subr.bf16.mxu0 0
      %1042 = vmatpush2.bf16.xpose.msra.mxu0 0
      %1043 = vmatprep.subr.bf16.mxu0 0
      %1044 = vmatpush2.bf16.xpose.msra.mxu0 0
      %1045 = vmatprep.subr.bf16.mxu0 0
      %1046 = vmatpush2.bf16.xpose.msra.mxu0 0
      %1047 = vmatprep.subr.bf16.mxu0 0
      %1048 = vmatpush2.bf16.xpose.msra.mxu0 0
      %1049 = vmatprep.subr.bf16.mxu0 0
      %1050 = vmatpush2.bf16.xpose.msra.mxu0 0
      %1051 = vmatprep.mubr.bf16.mxu0 0
      %1052 = vmatmul.mubr.bf16.gmra.mxu0 %v1014
      %v1053 = vpop.f32.mrf.mxu0
      %v1054 = vadd.f32 0.0, %v1053
      %v1055 = vpop.f32.mrf.mxu0
      %v1056 = vpop.f32.mrf.mxu0
      %v1057 = vpop.f32.mrf.mxu0
      %1058 = vdwg.mxu0
      %1059 = vrot.lane.b32.xlu0 %v784, 120
      %v1060 = vpop.permute.xlu0 %1059
      %1061 = vrot.lane.b32.xlu0 %v784, 88
      %v1062 = vpop.permute.xlu0 %1061
      %v1064 = vsel %vm788, %v1060, 0
      %v1067 = vsel %vm788, %v1062, 0
      %1069 = vmatprep.subr.bf16.mxu0 0
      %1070 = vmatpush1.bf16.xpose.msra.mxu0 0
      %1071 = vmatprep.subr.bf16.mxu0 0
      %1072 = vmatpush1.bf16.xpose.msra.mxu0 0
      %1073 = vmatprep.subr.bf16.mxu0 0
      %1074 = vmatpush1.bf16.xpose.msra.mxu0 0
      %1075 = vmatprep.subr.bf16.mxu0 0
      %1076 = vmatpush1.bf16.xpose.msra.mxu0 0
      %1077 = vmatprep.subr.bf16.mxu0 0
      %1078 = vmatpush1.bf16.xpose.msra.mxu0 0
      %1079 = vmatprep.subr.bf16.mxu0 0
      %1080 = vmatpush1.bf16.xpose.msra.mxu0 0
      %1081 = vmatprep.subr.bf16.mxu0 0
      %1082 = vmatpush1.bf16.xpose.msra.mxu0 0
      %1083 = vmatprep.subr.bf16.mxu0 0
      %1084 = vmatpush1.bf16.xpose.msra.mxu0 %v1067
      %1085 = vmatprep.subr.bf16.mxu0 0
      %1086 = vmatpush2.bf16.xpose.msra.mxu0 0
      %1087 = vmatprep.subr.bf16.mxu0 0
      %1088 = vmatpush2.bf16.xpose.msra.mxu0 0
      %1089 = vmatprep.subr.bf16.mxu0 0
      %1090 = vmatpush2.bf16.xpose.msra.mxu0 0
      %1091 = vmatprep.subr.bf16.mxu0 0
      %1092 = vmatpush2.bf16.xpose.msra.mxu0 0
      %1093 = vmatprep.subr.bf16.mxu0 0
      %1094 = vmatpush2.bf16.xpose.msra.mxu0 0
      %1095 = vmatprep.subr.bf16.mxu0 0
      %1096 = vmatpush2.bf16.xpose.msra.mxu0 0
      %1097 = vmatprep.subr.bf16.mxu0 0
      %1098 = vmatpush2.bf16.xpose.msra.mxu0 0
      %1099 = vmatprep.subr.bf16.mxu0 0
      %1100 = vmatpush2.bf16.xpose.msra.mxu0 0
      %1101 = vmatprep.mubr.bf16.mxu0 0
      %1102 = vmatmul.mubr.bf16.gmra.mxu0 %v1064
      %v1103 = vpop.f32.mrf.mxu0
      %v1104 = vadd.f32 0.0, %v1103
      %v1105 = vpop.f32.mrf.mxu0
      %v1106 = vpop.f32.mrf.mxu0
      %v1107 = vpop.f32.mrf.mxu0
      %1108 = vdwg.mxu0
      %v1109 = vmul.f32 %v1054, 0.35355338
      %v1110 = vmul.f32 %v1104, 0.35355338
      %v1111 = vsel %vm788, %v1109, -inf
      %1112 = vmax.xlane.f32.xlu0 %v1111
      %v1113 = vpop.xlane.xlu0 %1112
      %v1114 = vsel %vm788, %v1110, -inf
      %1115 = vmax.xlane.f32.xlu0 %v1114
      %v1116 = vpop.xlane.xlu0 %1115
      %v1117 = vsub.f32 %v1109, %v1113
      %v1118 = vsub.f32 %v1110, %v1116
      %v1119 = vmul.f32 %v1117, 1.442695
      %v1120 = vpow.pop %v1119
      %v1121 = vmul.f32 %v1118, 1.442695
      %v1122 = vpow.pop %v1121
      %v1123 = vsel %vm788, %v1120, 0.0
      %1124 = vadd.xlane.f32.xlu0 %v1123
      %v1125 = vpop.xlane.xlu0 %1124
      %v1126 = vsel %vm788, %v1122, 0.0
      %1127 = vadd.xlane.f32.xlu0 %v1126
      %v1128 = vpop.xlane.xlu0 %1127
      %v1129 = vrcp.pop %v1125
      %v1130 = vrcp.pop %v1128
      %v1131 = vmul.f32 %v1120, %v1129
      %v1132 = vmul.f32 %v1122, %v1130
      %v1133 = vpack.c.bf16 %v1131, %v1131
      %v1134 = vpack.c.bf16 %v1132, %v1132
      %1135 = vrot.lane.b32.xlu0 %v783, 56
      %v1136 = vpop.permute.xlu0 %1135
      %v1138 = vsel %vm788, %v1133, 0
      %v1141 = vsel %vm915, %v1136, 0
      %1143 = vmatprep.subr.bf16.mxu0 0
      %1144 = vmatpush1.bf16.msra.mxu0 0
      %1145 = vmatprep.subr.bf16.mxu0 0
      %1146 = vmatpush1.bf16.msra.mxu0 0
      %1147 = vmatprep.subr.bf16.mxu0 0
      %1148 = vmatpush1.bf16.msra.mxu0 0
      %1149 = vmatprep.subr.bf16.mxu0 0
      %1150 = vmatpush1.bf16.msra.mxu0 0
      %1151 = vmatprep.subr.bf16.mxu0 0
      %1152 = vmatpush1.bf16.msra.mxu0 0
      %1153 = vmatprep.subr.bf16.mxu0 0
      %1154 = vmatpush1.bf16.msra.mxu0 0
      %1155 = vmatprep.subr.bf16.mxu0 0
      %1156 = vmatpush1.bf16.msra.mxu0 0
      %1157 = vmatprep.subr.bf16.mxu0 0
      %1158 = vmatpush1.bf16.msra.mxu0 %v1141
      %1159 = vmatprep.subr.bf16.mxu0 0
      %1160 = vmatpush2.bf16.msra.mxu0 0
      %1161 = vmatprep.subr.bf16.mxu0 0
      %1162 = vmatpush2.bf16.msra.mxu0 0
      %1163 = vmatprep.subr.bf16.mxu0 0
      %1164 = vmatpush2.bf16.msra.mxu0 0
      %1165 = vmatprep.subr.bf16.mxu0 0
      %1166 = vmatpush2.bf16.msra.mxu0 0
      %1167 = vmatprep.subr.bf16.mxu0 0
      %1168 = vmatpush2.bf16.msra.mxu0 0
      %1169 = vmatprep.subr.bf16.mxu0 0
      %1170 = vmatpush2.bf16.msra.mxu0 0
      %1171 = vmatprep.subr.bf16.mxu0 0
      %1172 = vmatpush2.bf16.msra.mxu0 0
      %1173 = vmatprep.subr.bf16.mxu0 0
      %1174 = vmatpush2.bf16.msra.mxu0 0
      %1175 = vmatprep.mubr.bf16.mxu0 0
      %1176 = vmatmul.mubr.bf16.gmra.mxu0 %v1138
      %v1177 = vpop.f32.mrf.mxu0
      %v1178 = vadd.f32 0.0, %v1177
      %v1179 = vpop.f32.mrf.mxu0
      %v1180 = vpop.f32.mrf.mxu0
      %v1181 = vpop.f32.mrf.mxu0
      %1182 = vdwg.mxu0
      %1183 = vrot.lane.b32.xlu0 %v784, 56
      %v1184 = vpop.permute.xlu0 %1183
      %v1186 = vsel %vm788, %v1134, 0
      %v1189 = vsel %vm915, %v1184, 0
      %1191 = vmatprep.subr.bf16.mxu0 0
      %1192 = vmatpush1.bf16.msra.mxu0 0
      %1193 = vmatprep.subr.bf16.mxu0 0
      %1194 = vmatpush1.bf16.msra.mxu0 0
      %1195 = vmatprep.subr.bf16.mxu0 0
      %1196 = vmatpush1.bf16.msra.mxu0 0
      %1197 = vmatprep.subr.bf16.mxu0 0
      %1198 = vmatpush1.bf16.msra.mxu0 0
      %1199 = vmatprep.subr.bf16.mxu0 0
      %1200 = vmatpush1.bf16.msra.mxu0 0
      %1201 = vmatprep.subr.bf16.mxu0 0
      %1202 = vmatpush1.bf16.msra.mxu0 0
      %1203 = vmatprep.subr.bf16.mxu0 0
      %1204 = vmatpush1.bf16.msra.mxu0 0
      %1205 = vmatprep.subr.bf16.mxu0 0
      %1206 = vmatpush1.bf16.msra.mxu0 %v1189
      %1207 = vmatprep.subr.bf16.mxu0 0
      %1208 = vmatpush2.bf16.msra.mxu0 0
      %1209 = vmatprep.subr.bf16.mxu0 0
      %1210 = vmatpush2.bf16.msra.mxu0 0
      %1211 = vmatprep.subr.bf16.mxu0 0
      %1212 = vmatpush2.bf16.msra.mxu0 0
      %1213 = vmatprep.subr.bf16.mxu0 0
      %1214 = vmatpush2.bf16.msra.mxu0 0
      %1215 = vmatprep.subr.bf16.mxu0 0
      %1216 = vmatpush2.bf16.msra.mxu0 0
      %1217 = vmatprep.subr.bf16.mxu0 0
      %1218 = vmatpush2.bf16.msra.mxu0 0
      %1219 = vmatprep.subr.bf16.mxu0 0
      %1220 = vmatpush2.bf16.msra.mxu0 0
      %1221 = vmatprep.subr.bf16.mxu0 0
      %1222 = vmatpush2.bf16.msra.mxu0 0
      %1223 = vmatprep.mubr.bf16.mxu0 0
      %1224 = vmatmul.mubr.bf16.gmra.mxu0 %v1186
      %v1225 = vpop.f32.mrf.mxu0
      %v1226 = vadd.f32 0.0, %v1225
      %v1227 = vpop.f32.mrf.mxu0
      %v1228 = vpop.f32.mrf.mxu0
      %v1229 = vpop.f32.mrf.mxu0
      %1230 = vdwg.mxu0
      %v1231 = vpack.c.bf16 %v1226, %v1178
      %v1232 = vld [vmem:[%s589 + $0x4] sm:$0xf]
      %v1234 = vsel %vm788, %v1231, 0
      %v1237 = vsel %vm915, %v1232, 0
      %1239 = vmatprep.subr.bf16.mxu0 0
      %1240 = vmatpush1.bf16.msra.mxu0 0
      %1241 = vmatprep.subr.bf16.mxu0 0
      %1242 = vmatpush1.bf16.msra.mxu0 0
      %1243 = vmatprep.subr.bf16.mxu0 0
      %1244 = vmatpush1.bf16.msra.mxu0 0
      %1245 = vmatprep.subr.bf16.mxu0 0
      %1246 = vmatpush1.bf16.msra.mxu0 0
      %1247 = vmatprep.subr.bf16.mxu0 0
      %1248 = vmatpush1.bf16.msra.mxu0 0
      %1249 = vmatprep.subr.bf16.mxu0 0
      %1250 = vmatpush1.bf16.msra.mxu0 0
      %1251 = vmatprep.subr.bf16.mxu0 0
      %1252 = vmatpush1.bf16.msra.mxu0 0
      %1253 = vmatprep.subr.bf16.mxu0 0
      %1254 = vmatpush1.bf16.msra.mxu0 %v1237
      %1255 = vmatprep.subr.bf16.mxu0 0
      %1256 = vmatpush2.bf16.msra.mxu0 0
      %1257 = vmatprep.subr.bf16.mxu0 0
      %1258 = vmatpush2.bf16.msra.mxu0 0
      %1259 = vmatprep.subr.bf16.mxu0 0
      %1260 = vmatpush2.bf16.msra.mxu0 0
      %1261 = vmatprep.subr.bf16.mxu0 0
      %1262 = vmatpush2.bf16.msra.mxu0 0
      %1263 = vmatprep.subr.bf16.mxu0 0
      %1264 = vmatpush2.bf16.msra.mxu0 0
      %1265 = vmatprep.subr.bf16.mxu0 0
      %1266 = vmatpush2.bf16.msra.mxu0 0
      %1267 = vmatprep.subr.bf16.mxu0 0
      %1268 = vmatpush2.bf16.msra.mxu0 0
      %1269 = vmatprep.subr.bf16.mxu0 0
      %1270 = vmatpush2.bf16.msra.mxu0 0
      %1271 = vmatprep.mubr.bf16.mxu0 0
      %1272 = vmatmul.mubr.bf16.gmra.mxu0 %v1234
      %v1273 = vpop.f32.mrf.mxu0
      %v1274 = vadd.f32 0.0, %v1273
      %v1275 = vpop.f32.mrf.mxu0
      %v1276 = vpop.f32.mrf.mxu0
      %v1277 = vadd.f32 0.0, %v1276
      %v1278 = vpop.f32.mrf.mxu0
      %1279 = vdwg.mxu0
      %v1281 = vsel %vm788, %v1007, 0
      %v1284 = vsel %vm915, %v1008, 0
      %1286 = vmatprep.subr.bf16.mxu0 0
      %1287 = vmatpush1.bf16.msra.mxu0 0
      %1288 = vmatprep.subr.bf16.mxu0 0
      %1289 = vmatpush1.bf16.msra.mxu0 0
      %1290 = vmatprep.subr.bf16.mxu0 0
      %1291 = vmatpush1.bf16.msra.mxu0 0
      %1292 = vmatprep.subr.bf16.mxu0 0
      %1293 = vmatpush1.bf16.msra.mxu0 0
      %1294 = vmatprep.subr.bf16.mxu0 0
      %1295 = vmatpush1.bf16.msra.mxu0 0
      %1296 = vmatprep.subr.bf16.mxu0 0
      %1297 = vmatpush1.bf16.msra.mxu0 0
      %1298 = vmatprep.subr.bf16.mxu0 0
      %1299 = vmatpush1.bf16.msra.mxu0 0
      %1300 = vmatprep.subr.bf16.mxu0 0
      %1301 = vmatpush1.bf16.msra.mxu0 %v1284
      %1302 = vmatprep.subr.bf16.mxu0 0
      %1303 = vmatpush2.bf16.msra.mxu0 0
      %1304 = vmatprep.subr.bf16.mxu0 0
      %1305 = vmatpush2.bf16.msra.mxu0 0
      %1306 = vmatprep.subr.bf16.mxu0 0
      %1307 = vmatpush2.bf16.msra.mxu0 0
      %1308 = vmatprep.subr.bf16.mxu0 0
      %1309 = vmatpush2.bf16.msra.mxu0 0
      %1310 = vmatprep.subr.bf16.mxu0 0
      %1311 = vmatpush2.bf16.msra.mxu0 0
      %1312 = vmatprep.subr.bf16.mxu0 0
      %1313 = vmatpush2.bf16.msra.mxu0 0
      %1314 = vmatprep.subr.bf16.mxu0 0
      %1315 = vmatpush2.bf16.msra.mxu0 0
      %1316 = vmatprep.subr.bf16.mxu0 0
      %1317 = vmatpush2.bf16.msra.mxu0 0
      %1318 = vmatprep.mubr.bf16.mxu0 0
      %1319 = vmatmul.mubr.bf16.gmra.mxu0 %v1281
      %v1320 = vpop.f32.mrf.mxu0
      %v1321 = vadd.f32 %v1274, %v1320
      %v1322 = vpop.f32.mrf.mxu0
      %v1323 = vpop.f32.mrf.mxu0
      %v1324 = vadd.f32 %v1277, %v1323
      %v1325 = vpop.f32.mrf.mxu0
      %1326 = vdwg.mxu0
      %1327 = vrot.lane.b32.xlu0 %v783, 112
      %v1328 = vpop.permute.xlu0 %1327
      %1329 = vrot.lane.b32.xlu0 %v783, 80
      %v1330 = vpop.permute.xlu0 %1329
      %v1332 = vsel %vm788, %v1328, 0
      %v1335 = vsel %vm788, %v1330, 0
      %1337 = vmatprep.subr.bf16.mxu0 0
      %1338 = vmatpush1.bf16.xpose.msra.mxu0 0
      %1339 = vmatprep.subr.bf16.mxu0 0
      %1340 = vmatpush1.bf16.xpose.msra.mxu0 0
      %1341 = vmatprep.subr.bf16.mxu0 0
      %1342 = vmatpush1.bf16.xpose.msra.mxu0 0
      %1343 = vmatprep.subr.bf16.mxu0 0
      %1344 = vmatpush1.bf16.xpose.msra.mxu0 0
      %1345 = vmatprep.subr.bf16.mxu0 0
      %1346 = vmatpush1.bf16.xpose.msra.mxu0 0
      %1347 = vmatprep.subr.bf16.mxu0 0
      %1348 = vmatpush1.bf16.xpose.msra.mxu0 0
      %1349 = vmatprep.subr.bf16.mxu0 0
      %1350 = vmatpush1.bf16.xpose.msra.mxu0 0
      %1351 = vmatprep.subr.bf16.mxu0 0
      %1352 = vmatpush1.bf16.xpose.msra.mxu0 %v1335
      %1353 = vmatprep.subr.bf16.mxu0 0
      %1354 = vmatpush2.bf16.xpose.msra.mxu0 0
      %1355 = vmatprep.subr.bf16.mxu0 0
      %1356 = vmatpush2.bf16.xpose.msra.mxu0 0
      %1357 = vmatprep.subr.bf16.mxu0 0
      %1358 = vmatpush2.bf16.xpose.msra.mxu0 0
      %1359 = vmatprep.subr.bf16.mxu0 0
      %1360 = vmatpush2.bf16.xpose.msra.mxu0 0
      %1361 = vmatprep.subr.bf16.mxu0 0
      %1362 = vmatpush2.bf16.xpose.msra.mxu0 0
      %1363 = vmatprep.subr.bf16.mxu0 0
      %1364 = vmatpush2.bf16.xpose.msra.mxu0 0
      %1365 = vmatprep.subr.bf16.mxu0 0
      %1366 = vmatpush2.bf16.xpose.msra.mxu0 0
      %1367 = vmatprep.subr.bf16.mxu0 0
      %1368 = vmatpush2.bf16.xpose.msra.mxu0 0
      %1369 = vmatprep.mubr.bf16.mxu0 0
      %1370 = vmatmul.mubr.bf16.gmra.mxu0 %v1332
      %v1371 = vpop.f32.mrf.mxu0
      %v1372 = vadd.f32 0.0, %v1371
      %v1373 = vpop.f32.mrf.mxu0
      %v1374 = vpop.f32.mrf.mxu0
      %v1375 = vpop.f32.mrf.mxu0
      %1376 = vdwg.mxu0
      %1377 = vrot.lane.b32.xlu0 %v784, 112
      %v1378 = vpop.permute.xlu0 %1377
      %1379 = vrot.lane.b32.xlu0 %v784, 80
      %v1380 = vpop.permute.xlu0 %1379
      %v1382 = vsel %vm788, %v1378, 0
      %v1385 = vsel %vm788, %v1380, 0
      %1387 = vmatprep.subr.bf16.mxu0 0
      %1388 = vmatpush1.bf16.xpose.msra.mxu0 0
      %1389 = vmatprep.subr.bf16.mxu0 0
      %1390 = vmatpush1.bf16.xpose.msra.mxu0 0
      %1391 = vmatprep.subr.bf16.mxu0 0
      %1392 = vmatpush1.bf16.xpose.msra.mxu0 0
      %1393 = vmatprep.subr.bf16.mxu0 0
      %1394 = vmatpush1.bf16.xpose.msra.mxu0 0
      %1395 = vmatprep.subr.bf16.mxu0 0
      %1396 = vmatpush1.bf16.xpose.msra.mxu0 0
      %1397 = vmatprep.subr.bf16.mxu0 0
      %1398 = vmatpush1.bf16.xpose.msra.mxu0 0
      %1399 = vmatprep.subr.bf16.mxu0 0
      %1400 = vmatpush1.bf16.xpose.msra.mxu0 0
      %1401 = vmatprep.subr.bf16.mxu0 0
      %1402 = vmatpush1.bf16.xpose.msra.mxu0 %v1385
      %1403 = vmatprep.subr.bf16.mxu0 0
      %1404 = vmatpush2.bf16.xpose.msra.mxu0 0
      %1405 = vmatprep.subr.bf16.mxu0 0
      %1406 = vmatpush2.bf16.xpose.msra.mxu0 0
      %1407 = vmatprep.subr.bf16.mxu0 0
      %1408 = vmatpush2.bf16.xpose.msra.mxu0 0
      %1409 = vmatprep.subr.bf16.mxu0 0
      %1410 = vmatpush2.bf16.xpose.msra.mxu0 0
      %1411 = vmatprep.subr.bf16.mxu0 0
      %1412 = vmatpush2.bf16.xpose.msra.mxu0 0
      %1413 = vmatprep.subr.bf16.mxu0 0
      %1414 = vmatpush2.bf16.xpose.msra.mxu0 0
      %1415 = vmatprep.subr.bf16.mxu0 0
      %1416 = vmatpush2.bf16.xpose.msra.mxu0 0
      %1417 = vmatprep.subr.bf16.mxu0 0
      %1418 = vmatpush2.bf16.xpose.msra.mxu0 0
      %1419 = vmatprep.mubr.bf16.mxu0 0
      %1420 = vmatmul.mubr.bf16.gmra.mxu0 %v1382
      %v1421 = vpop.f32.mrf.mxu0
      %v1422 = vadd.f32 0.0, %v1421
      %v1423 = vpop.f32.mrf.mxu0
      %v1424 = vpop.f32.mrf.mxu0
      %v1425 = vpop.f32.mrf.mxu0
      %1426 = vdwg.mxu0
      %v1427 = vmul.f32 %v1372, 0.35355338
      %v1428 = vmul.f32 %v1422, 0.35355338
      %v1429 = vsel %vm788, %v1427, -inf
      %1430 = vmax.xlane.f32.xlu0 %v1429
      %v1431 = vpop.xlane.xlu0 %1430
      %v1432 = vsel %vm788, %v1428, -inf
      %1433 = vmax.xlane.f32.xlu0 %v1432
      %v1434 = vpop.xlane.xlu0 %1433
      %v1435 = vsub.f32 %v1427, %v1431
      %v1436 = vsub.f32 %v1428, %v1434
      %v1437 = vmul.f32 %v1435, 1.442695
      %v1438 = vpow.pop %v1437
      %v1439 = vmul.f32 %v1436, 1.442695
      %v1440 = vpow.pop %v1439
      %v1441 = vsel %vm788, %v1438, 0.0
      %1442 = vadd.xlane.f32.xlu0 %v1441
      %v1443 = vpop.xlane.xlu0 %1442
      %v1444 = vsel %vm788, %v1440, 0.0
      %1445 = vadd.xlane.f32.xlu0 %v1444
      %v1446 = vpop.xlane.xlu0 %1445
      %v1447 = vrcp.pop %v1443
      %v1448 = vrcp.pop %v1446
      %v1449 = vmul.f32 %v1438, %v1447
      %v1450 = vmul.f32 %v1440, %v1448
      %v1451 = vpack.c.bf16 %v1449, %v1449
      %v1452 = vpack.c.bf16 %v1450, %v1450
      %1453 = vrot.lane.b32.xlu0 %v783, 48
      %v1454 = vpop.permute.xlu0 %1453
      %v1456 = vsel %vm788, %v1451, 0
      %v1459 = vsel %vm915, %v1454, 0
      %1461 = vmatprep.subr.bf16.mxu0 0
      %1462 = vmatpush1.bf16.msra.mxu0 0
      %1463 = vmatprep.subr.bf16.mxu0 0
      %1464 = vmatpush1.bf16.msra.mxu0 0
      %1465 = vmatprep.subr.bf16.mxu0 0
      %1466 = vmatpush1.bf16.msra.mxu0 0
      %1467 = vmatprep.subr.bf16.mxu0 0
      %1468 = vmatpush1.bf16.msra.mxu0 0
      %1469 = vmatprep.subr.bf16.mxu0 0
      %1470 = vmatpush1.bf16.msra.mxu0 0
      %1471 = vmatprep.subr.bf16.mxu0 0
      %1472 = vmatpush1.bf16.msra.mxu0 0
      %1473 = vmatprep.subr.bf16.mxu0 0
      %1474 = vmatpush1.bf16.msra.mxu0 0
      %1475 = vmatprep.subr.bf16.mxu0 0
      %1476 = vmatpush1.bf16.msra.mxu0 %v1459
      %1477 = vmatprep.subr.bf16.mxu0 0
      %1478 = vmatpush2.bf16.msra.mxu0 0
      %1479 = vmatprep.subr.bf16.mxu0 0
      %1480 = vmatpush2.bf16.msra.mxu0 0
      %1481 = vmatprep.subr.bf16.mxu0 0
      %1482 = vmatpush2.bf16.msra.mxu0 0
      %1483 = vmatprep.subr.bf16.mxu0 0
      %1484 = vmatpush2.bf16.msra.mxu0 0
      %1485 = vmatprep.subr.bf16.mxu0 0
      %1486 = vmatpush2.bf16.msra.mxu0 0
      %1487 = vmatprep.subr.bf16.mxu0 0
      %1488 = vmatpush2.bf16.msra.mxu0 0
      %1489 = vmatprep.subr.bf16.mxu0 0
      %1490 = vmatpush2.bf16.msra.mxu0 0
      %1491 = vmatprep.subr.bf16.mxu0 0
      %1492 = vmatpush2.bf16.msra.mxu0 0
      %1493 = vmatprep.mubr.bf16.mxu0 0
      %1494 = vmatmul.mubr.bf16.gmra.mxu0 %v1456
      %v1495 = vpop.f32.mrf.mxu0
      %v1496 = vadd.f32 0.0, %v1495
      %v1497 = vpop.f32.mrf.mxu0
      %v1498 = vpop.f32.mrf.mxu0
      %v1499 = vpop.f32.mrf.mxu0
      %1500 = vdwg.mxu0
      %1501 = vrot.lane.b32.xlu0 %v784, 48
      %v1502 = vpop.permute.xlu0 %1501
      %v1504 = vsel %vm788, %v1452, 0
      %v1507 = vsel %vm915, %v1502, 0
      %1509 = vmatprep.subr.bf16.mxu0 0
      %1510 = vmatpush1.bf16.msra.mxu0 0
      %1511 = vmatprep.subr.bf16.mxu0 0
      %1512 = vmatpush1.bf16.msra.mxu0 0
      %1513 = vmatprep.subr.bf16.mxu0 0
      %1514 = vmatpush1.bf16.msra.mxu0 0
      %1515 = vmatprep.subr.bf16.mxu0 0
      %1516 = vmatpush1.bf16.msra.mxu0 0
      %1517 = vmatprep.subr.bf16.mxu0 0
      %1518 = vmatpush1.bf16.msra.mxu0 0
      %1519 = vmatprep.subr.bf16.mxu0 0
      %1520 = vmatpush1.bf16.msra.mxu0 0
      %1521 = vmatprep.subr.bf16.mxu0 0
      %1522 = vmatpush1.bf16.msra.mxu0 0
      %1523 = vmatprep.subr.bf16.mxu0 0
      %1524 = vmatpush1.bf16.msra.mxu0 %v1507
      %1525 = vmatprep.subr.bf16.mxu0 0
      %1526 = vmatpush2.bf16.msra.mxu0 0
      %1527 = vmatprep.subr.bf16.mxu0 0
      %1528 = vmatpush2.bf16.msra.mxu0 0
      %1529 = vmatprep.subr.bf16.mxu0 0
      %1530 = vmatpush2.bf16.msra.mxu0 0
      %1531 = vmatprep.subr.bf16.mxu0 0
      %1532 = vmatpush2.bf16.msra.mxu0 0
      %1533 = vmatprep.subr.bf16.mxu0 0
      %1534 = vmatpush2.bf16.msra.mxu0 0
      %1535 = vmatprep.subr.bf16.mxu0 0
      %1536 = vmatpush2.bf16.msra.mxu0 0
      %1537 = vmatprep.subr.bf16.mxu0 0
      %1538 = vmatpush2.bf16.msra.mxu0 0
      %1539 = vmatprep.subr.bf16.mxu0 0
      %1540 = vmatpush2.bf16.msra.mxu0 0
      %1541 = vmatprep.mubr.bf16.mxu0 0
      %1542 = vmatmul.mubr.bf16.gmra.mxu0 %v1504
      %v1543 = vpop.f32.mrf.mxu0
      %v1544 = vadd.f32 0.0, %v1543
      %v1545 = vpop.f32.mrf.mxu0
      %v1546 = vpop.f32.mrf.mxu0
      %v1547 = vpop.f32.mrf.mxu0
      %1548 = vdwg.mxu0
      %v1549 = vpack.c.bf16 %v1544, %v1496
      %v1550 = vld [vmem:[%s589 + $0x8] sm:$0xf]
      %v1552 = vsel %vm788, %v1549, 0
      %v1555 = vsel %vm915, %v1550, 0
      %1557 = vmatprep.subr.bf16.mxu0 0
      %1558 = vmatpush1.bf16.msra.mxu0 0
      %1559 = vmatprep.subr.bf16.mxu0 0
      %1560 = vmatpush1.bf16.msra.mxu0 0
      %1561 = vmatprep.subr.bf16.mxu0 0
      %1562 = vmatpush1.bf16.msra.mxu0 0
      %1563 = vmatprep.subr.bf16.mxu0 0
      %1564 = vmatpush1.bf16.msra.mxu0 0
      %1565 = vmatprep.subr.bf16.mxu0 0
      %1566 = vmatpush1.bf16.msra.mxu0 0
      %1567 = vmatprep.subr.bf16.mxu0 0
      %1568 = vmatpush1.bf16.msra.mxu0 0
      %1569 = vmatprep.subr.bf16.mxu0 0
      %1570 = vmatpush1.bf16.msra.mxu0 0
      %1571 = vmatprep.subr.bf16.mxu0 0
      %1572 = vmatpush1.bf16.msra.mxu0 %v1555
      %1573 = vmatprep.subr.bf16.mxu0 0
      %1574 = vmatpush2.bf16.msra.mxu0 0
      %1575 = vmatprep.subr.bf16.mxu0 0
      %1576 = vmatpush2.bf16.msra.mxu0 0
      %1577 = vmatprep.subr.bf16.mxu0 0
      %1578 = vmatpush2.bf16.msra.mxu0 0
      %1579 = vmatprep.subr.bf16.mxu0 0
      %1580 = vmatpush2.bf16.msra.mxu0 0
      %1581 = vmatprep.subr.bf16.mxu0 0
      %1582 = vmatpush2.bf16.msra.mxu0 0
      %1583 = vmatprep.subr.bf16.mxu0 0
      %1584 = vmatpush2.bf16.msra.mxu0 0
      %1585 = vmatprep.subr.bf16.mxu0 0
      %1586 = vmatpush2.bf16.msra.mxu0 0
      %1587 = vmatprep.subr.bf16.mxu0 0
      %1588 = vmatpush2.bf16.msra.mxu0 0
      %1589 = vmatprep.mubr.bf16.mxu0 0
      %1590 = vmatmul.mubr.bf16.gmra.mxu0 %v1552
      %v1591 = vpop.f32.mrf.mxu0
      %v1592 = vadd.f32 0.0, %v1591
      %v1593 = vpop.f32.mrf.mxu0
      %v1594 = vpop.f32.mrf.mxu0
      %v1595 = vadd.f32 0.0, %v1594
      %v1596 = vpop.f32.mrf.mxu0
      %1597 = vdwg.mxu0
      %v1598 = vadd.f32 %v1321, %v1592
      %v1599 = vadd.f32 %v1324, %v1595
      %1600 = vrot.lane.b32.xlu0 %v783, 104
      %v1601 = vpop.permute.xlu0 %1600
      %1602 = vrot.lane.b32.xlu0 %v783, 72
      %v1603 = vpop.permute.xlu0 %1602
      %v1605 = vsel %vm788, %v1601, 0
      %v1608 = vsel %vm788, %v1603, 0
      %1610 = vmatprep.subr.bf16.mxu0 0
      %1611 = vmatpush1.bf16.xpose.msra.mxu0 0
      %1612 = vmatprep.subr.bf16.mxu0 0
      %1613 = vmatpush1.bf16.xpose.msra.mxu0 0
      %1614 = vmatprep.subr.bf16.mxu0 0
      %1615 = vmatpush1.bf16.xpose.msra.mxu0 0
      %1616 = vmatprep.subr.bf16.mxu0 0
      %1617 = vmatpush1.bf16.xpose.msra.mxu0 0
      %1618 = vmatprep.subr.bf16.mxu0 0
      %1619 = vmatpush1.bf16.xpose.msra.mxu0 0
      %1620 = vmatprep.subr.bf16.mxu0 0
      %1621 = vmatpush1.bf16.xpose.msra.mxu0 0
      %1622 = vmatprep.subr.bf16.mxu0 0
      %1623 = vmatpush1.bf16.xpose.msra.mxu0 0
      %1624 = vmatprep.subr.bf16.mxu0 0
      %1625 = vmatpush1.bf16.xpose.msra.mxu0 %v1608
      %1626 = vmatprep.subr.bf16.mxu0 0
      %1627 = vmatpush2.bf16.xpose.msra.mxu0 0
      %1628 = vmatprep.subr.bf16.mxu0 0
      %1629 = vmatpush2.bf16.xpose.msra.mxu0 0
      %1630 = vmatprep.subr.bf16.mxu0 0
      %1631 = vmatpush2.bf16.xpose.msra.mxu0 0
      %1632 = vmatprep.subr.bf16.mxu0 0
      %1633 = vmatpush2.bf16.xpose.msra.mxu0 0
      %1634 = vmatprep.subr.bf16.mxu0 0
      %1635 = vmatpush2.bf16.xpose.msra.mxu0 0
      %1636 = vmatprep.subr.bf16.mxu0 0
      %1637 = vmatpush2.bf16.xpose.msra.mxu0 0
      %1638 = vmatprep.subr.bf16.mxu0 0
      %1639 = vmatpush2.bf16.xpose.msra.mxu0 0
      %1640 = vmatprep.subr.bf16.mxu0 0
      %1641 = vmatpush2.bf16.xpose.msra.mxu0 0
      %1642 = vmatprep.mubr.bf16.mxu0 0
      %1643 = vmatmul.mubr.bf16.gmra.mxu0 %v1605
      %v1644 = vpop.f32.mrf.mxu0
      %v1645 = vadd.f32 0.0, %v1644
      %v1646 = vpop.f32.mrf.mxu0
      %v1647 = vpop.f32.mrf.mxu0
      %v1648 = vpop.f32.mrf.mxu0
      %1649 = vdwg.mxu0
      %1650 = vrot.lane.b32.xlu0 %v784, 104
      %v1651 = vpop.permute.xlu0 %1650
      %1652 = vrot.lane.b32.xlu0 %v784, 72
      %v1653 = vpop.permute.xlu0 %1652
      %v1655 = vsel %vm788, %v1651, 0
      %v1658 = vsel %vm788, %v1653, 0
      %1660 = vmatprep.subr.bf16.mxu0 0
      %1661 = vmatpush1.bf16.xpose.msra.mxu0 0
      %1662 = vmatprep.subr.bf16.mxu0 0
      %1663 = vmatpush1.bf16.xpose.msra.mxu0 0
      %1664 = vmatprep.subr.bf16.mxu0 0
      %1665 = vmatpush1.bf16.xpose.msra.mxu0 0
      %1666 = vmatprep.subr.bf16.mxu0 0
      %1667 = vmatpush1.bf16.xpose.msra.mxu0 0
      %1668 = vmatprep.subr.bf16.mxu0 0
      %1669 = vmatpush1.bf16.xpose.msra.mxu0 0
      %1670 = vmatprep.subr.bf16.mxu0 0
      %1671 = vmatpush1.bf16.xpose.msra.mxu0 0
      %1672 = vmatprep.subr.bf16.mxu0 0
      %1673 = vmatpush1.bf16.xpose.msra.mxu0 0
      %1674 = vmatprep.subr.bf16.mxu0 0
      %1675 = vmatpush1.bf16.xpose.msra.mxu0 %v1658
      %1676 = vmatprep.subr.bf16.mxu0 0
      %1677 = vmatpush2.bf16.xpose.msra.mxu0 0
      %1678 = vmatprep.subr.bf16.mxu0 0
      %1679 = vmatpush2.bf16.xpose.msra.mxu0 0
      %1680 = vmatprep.subr.bf16.mxu0 0
      %1681 = vmatpush2.bf16.xpose.msra.mxu0 0
      %1682 = vmatprep.subr.bf16.mxu0 0
      %1683 = vmatpush2.bf16.xpose.msra.mxu0 0
      %1684 = vmatprep.subr.bf16.mxu0 0
      %1685 = vmatpush2.bf16.xpose.msra.mxu0 0
      %1686 = vmatprep.subr.bf16.mxu0 0
      %1687 = vmatpush2.bf16.xpose.msra.mxu0 0
      %1688 = vmatprep.subr.bf16.mxu0 0
      %1689 = vmatpush2.bf16.xpose.msra.mxu0 0
      %1690 = vmatprep.subr.bf16.mxu0 0
      %1691 = vmatpush2.bf16.xpose.msra.mxu0 0
      %1692 = vmatprep.mubr.bf16.mxu0 0
      %1693 = vmatmul.mubr.bf16.gmra.mxu0 %v1655
      %v1694 = vpop.f32.mrf.mxu0
      %v1695 = vadd.f32 0.0, %v1694
      %v1696 = vpop.f32.mrf.mxu0
      %v1697 = vpop.f32.mrf.mxu0
      %v1698 = vpop.f32.mrf.mxu0
      %1699 = vdwg.mxu0
      %v1700 = vmul.f32 %v1645, 0.35355338
      %v1701 = vmul.f32 %v1695, 0.35355338
      %v1702 = vsel %vm788, %v1700, -inf
      %1703 = vmax.xlane.f32.xlu0 %v1702
      %v1704 = vpop.xlane.xlu0 %1703
      %v1705 = vsel %vm788, %v1701, -inf
      %1706 = vmax.xlane.f32.xlu0 %v1705
      %v1707 = vpop.xlane.xlu0 %1706
      %v1708 = vsub.f32 %v1700, %v1704
      %v1709 = vsub.f32 %v1701, %v1707
      %v1710 = vmul.f32 %v1708, 1.442695
      %v1711 = vpow.pop %v1710
      %v1712 = vmul.f32 %v1709, 1.442695
      %v1713 = vpow.pop %v1712
      %v1714 = vsel %vm788, %v1711, 0.0
      %1715 = vadd.xlane.f32.xlu0 %v1714
      %v1716 = vpop.xlane.xlu0 %1715
      %v1717 = vsel %vm788, %v1713, 0.0
      %1718 = vadd.xlane.f32.xlu0 %v1717
      %v1719 = vpop.xlane.xlu0 %1718
      %v1720 = vrcp.pop %v1716
      %v1721 = vrcp.pop %v1719
      %v1722 = vmul.f32 %v1711, %v1720
      %v1723 = vmul.f32 %v1713, %v1721
      %v1724 = vpack.c.bf16 %v1722, %v1722
      %v1725 = vpack.c.bf16 %v1723, %v1723
      %1726 = vrot.lane.b32.xlu0 %v783, 40
      %v1727 = vpop.permute.xlu0 %1726
      %v1729 = vsel %vm788, %v1724, 0
      %v1732 = vsel %vm915, %v1727, 0
      %1734 = vmatprep.subr.bf16.mxu0 0
      %1735 = vmatpush1.bf16.msra.mxu0 0
      %1736 = vmatprep.subr.bf16.mxu0 0
      %1737 = vmatpush1.bf16.msra.mxu0 0
      %1738 = vmatprep.subr.bf16.mxu0 0
      %1739 = vmatpush1.bf16.msra.mxu0 0
      %1740 = vmatprep.subr.bf16.mxu0 0
      %1741 = vmatpush1.bf16.msra.mxu0 0
      %1742 = vmatprep.subr.bf16.mxu0 0
      %1743 = vmatpush1.bf16.msra.mxu0 0
      %1744 = vmatprep.subr.bf16.mxu0 0
      %1745 = vmatpush1.bf16.msra.mxu0 0
      %1746 = vmatprep.subr.bf16.mxu0 0
      %1747 = vmatpush1.bf16.msra.mxu0 0
      %1748 = vmatprep.subr.bf16.mxu0 0
      %1749 = vmatpush1.bf16.msra.mxu0 %v1732
      %1750 = vmatprep.subr.bf16.mxu0 0
      %1751 = vmatpush2.bf16.msra.mxu0 0
      %1752 = vmatprep.subr.bf16.mxu0 0
      %1753 = vmatpush2.bf16.msra.mxu0 0
      %1754 = vmatprep.subr.bf16.mxu0 0
      %1755 = vmatpush2.bf16.msra.mxu0 0
      %1756 = vmatprep.subr.bf16.mxu0 0
      %1757 = vmatpush2.bf16.msra.mxu0 0
      %1758 = vmatprep.subr.bf16.mxu0 0
      %1759 = vmatpush2.bf16.msra.mxu0 0
      %1760 = vmatprep.subr.bf16.mxu0 0
      %1761 = vmatpush2.bf16.msra.mxu0 0
      %1762 = vmatprep.subr.bf16.mxu0 0
      %1763 = vmatpush2.bf16.msra.mxu0 0
      %1764 = vmatprep.subr.bf16.mxu0 0
      %1765 = vmatpush2.bf16.msra.mxu0 0
      %1766 = vmatprep.mubr.bf16.mxu0 0
      %1767 = vmatmul.mubr.bf16.gmra.mxu0 %v1729
      %v1768 = vpop.f32.mrf.mxu0
      %v1769 = vadd.f32 0.0, %v1768
      %v1770 = vpop.f32.mrf.mxu0
      %v1771 = vpop.f32.mrf.mxu0
      %v1772 = vpop.f32.mrf.mxu0
      %1773 = vdwg.mxu0
      %1774 = vrot.lane.b32.xlu0 %v784, 40
      %v1775 = vpop.permute.xlu0 %1774
      %v1777 = vsel %vm788, %v1725, 0
      %v1780 = vsel %vm915, %v1775, 0
      %1782 = vmatprep.subr.bf16.mxu0 0
      %1783 = vmatpush1.bf16.msra.mxu0 0
      %1784 = vmatprep.subr.bf16.mxu0 0
      %1785 = vmatpush1.bf16.msra.mxu0 0
      %1786 = vmatprep.subr.bf16.mxu0 0
      %1787 = vmatpush1.bf16.msra.mxu0 0
      %1788 = vmatprep.subr.bf16.mxu0 0
      %1789 = vmatpush1.bf16.msra.mxu0 0
      %1790 = vmatprep.subr.bf16.mxu0 0
      %1791 = vmatpush1.bf16.msra.mxu0 0
      %1792 = vmatprep.subr.bf16.mxu0 0
      %1793 = vmatpush1.bf16.msra.mxu0 0
      %1794 = vmatprep.subr.bf16.mxu0 0
      %1795 = vmatpush1.bf16.msra.mxu0 0
      %1796 = vmatprep.subr.bf16.mxu0 0
      %1797 = vmatpush1.bf16.msra.mxu0 %v1780
      %1798 = vmatprep.subr.bf16.mxu0 0
      %1799 = vmatpush2.bf16.msra.mxu0 0
      %1800 = vmatprep.subr.bf16.mxu0 0
      %1801 = vmatpush2.bf16.msra.mxu0 0
      %1802 = vmatprep.subr.bf16.mxu0 0
      %1803 = vmatpush2.bf16.msra.mxu0 0
      %1804 = vmatprep.subr.bf16.mxu0 0
      %1805 = vmatpush2.bf16.msra.mxu0 0
      %1806 = vmatprep.subr.bf16.mxu0 0
      %1807 = vmatpush2.bf16.msra.mxu0 0
      %1808 = vmatprep.subr.bf16.mxu0 0
      %1809 = vmatpush2.bf16.msra.mxu0 0
      %1810 = vmatprep.subr.bf16.mxu0 0
      %1811 = vmatpush2.bf16.msra.mxu0 0
      %1812 = vmatprep.subr.bf16.mxu0 0
      %1813 = vmatpush2.bf16.msra.mxu0 0
      %1814 = vmatprep.mubr.bf16.mxu0 0
      %1815 = vmatmul.mubr.bf16.gmra.mxu0 %v1777
      %v1816 = vpop.f32.mrf.mxu0
      %v1817 = vadd.f32 0.0, %v1816
      %v1818 = vpop.f32.mrf.mxu0
      %v1819 = vpop.f32.mrf.mxu0
      %v1820 = vpop.f32.mrf.mxu0
      %1821 = vdwg.mxu0
      %v1822 = vpack.c.bf16 %v1817, %v1769
      %v1823 = vld [vmem:[%s589 + $0xc] sm:$0xf]
      %v1825 = vsel %vm788, %v1822, 0
      %v1828 = vsel %vm915, %v1823, 0
      %1830 = vmatprep.subr.bf16.mxu0 0
      %1831 = vmatpush1.bf16.msra.mxu0 0
      %1832 = vmatprep.subr.bf16.mxu0 0
      %1833 = vmatpush1.bf16.msra.mxu0 0
      %1834 = vmatprep.subr.bf16.mxu0 0
      %1835 = vmatpush1.bf16.msra.mxu0 0
      %1836 = vmatprep.subr.bf16.mxu0 0
      %1837 = vmatpush1.bf16.msra.mxu0 0
      %1838 = vmatprep.subr.bf16.mxu0 0
      %1839 = vmatpush1.bf16.msra.mxu0 0
      %1840 = vmatprep.subr.bf16.mxu0 0
      %1841 = vmatpush1.bf16.msra.mxu0 0
      %1842 = vmatprep.subr.bf16.mxu0 0
      %1843 = vmatpush1.bf16.msra.mxu0 0
      %1844 = vmatprep.subr.bf16.mxu0 0
      %1845 = vmatpush1.bf16.msra.mxu0 %v1828
      %1846 = vmatprep.subr.bf16.mxu0 0
      %1847 = vmatpush2.bf16.msra.mxu0 0
      %1848 = vmatprep.subr.bf16.mxu0 0
      %1849 = vmatpush2.bf16.msra.mxu0 0
      %1850 = vmatprep.subr.bf16.mxu0 0
      %1851 = vmatpush2.bf16.msra.mxu0 0
      %1852 = vmatprep.subr.bf16.mxu0 0
      %1853 = vmatpush2.bf16.msra.mxu0 0
      %1854 = vmatprep.subr.bf16.mxu0 0
      %1855 = vmatpush2.bf16.msra.mxu0 0
      %1856 = vmatprep.subr.bf16.mxu0 0
      %1857 = vmatpush2.bf16.msra.mxu0 0
      %1858 = vmatprep.subr.bf16.mxu0 0
      %1859 = vmatpush2.bf16.msra.mxu0 0
      %1860 = vmatprep.subr.bf16.mxu0 0
      %1861 = vmatpush2.bf16.msra.mxu0 0
      %1862 = vmatprep.mubr.bf16.mxu0 0
      %1863 = vmatmul.mubr.bf16.gmra.mxu0 %v1825
      %v1864 = vpop.f32.mrf.mxu0
      %v1865 = vadd.f32 0.0, %v1864
      %v1866 = vpop.f32.mrf.mxu0
      %v1867 = vpop.f32.mrf.mxu0
      %v1868 = vadd.f32 0.0, %v1867
      %v1869 = vpop.f32.mrf.mxu0
      %1870 = vdwg.mxu0
      %v1871 = vadd.f32 %v1598, %v1865
      %v1872 = vadd.f32 %v1599, %v1868
      %v1873 = vlaneseq
      %v1874 = vshrl.u32 %v1873, 7
      %v1875 = vsub.s32 1, %v1874
      %v1876 = vrot.slane %v715, %v1875
      %v1877 = vadd.f32 %v1871, %v1876
      %v1878 = vadd.f32 %v1872, %v1876
      %v1879 = vadd.f32 %v709, %v1877
      %v1880 = vadd.f32 %v710, %v1878
      %v1881 = vsel %vm738, %v1879, 0.0
      %1882 = vadd.xlane.f32.xlu0 %v1881
      %v1883 = vpop.xlane.xlu0 %1882
      %v1884 = vsel %vm738, %v1880, 0.0
      %1885 = vadd.xlane.f32.xlu0 %v1884
      %v1886 = vpop.xlane.xlu0 %1885
      %v1887 = vrcp.pop 32.0
      %v1888 = vmul.f32 %v1883, %v1887
      %v1889 = vmul.f32 %v1886, %v1887
      %v1890 = vmul.f32 %v1879, %v1879
      %v1891 = vmul.f32 %v1880, %v1880
      %v1892 = vsel %vm738, %v1890, 0.0
      %1893 = vadd.xlane.f32.xlu0 %v1892
      %v1894 = vpop.xlane.xlu0 %1893
      %v1895 = vsel %vm738, %v1891, 0.0
      %1896 = vadd.xlane.f32.xlu0 %v1895
      %v1897 = vpop.xlane.xlu0 %1896
      %v1898 = vmul.f32 %v1894, %v1887
      %v1899 = vmul.f32 %v1897, %v1887
      %v1900 = vmul.f32 %v1888, %v1888
      %v1901 = vmul.f32 %v1889, %v1889
      %v1902 = vsub.f32 %v1898, %v1900
      %v1903 = vsub.f32 %v1899, %v1901
      %v1904 = vsub.f32 %v1879, %v1888
      %v1905 = vsub.f32 %v1880, %v1889
      %v1906 = vadd.f32 %v1902, 1e-05
      %v1907 = vadd.f32 %v1903, 1e-05
      %v1908 = vrsqrt.pop %v1906
      %v1909 = vrsqrt.pop %v1907
      %v1910 = vmul.f32 %v1904, %v1908
      %v1911 = vmul.f32 %v1905, %v1909
      %v1912 = vlaneseq
      %v1913 = vshrl.u32 %v1912, 7
      %v1914 = vsub.s32 2, %v1913
      %v1915 = vrot.slane %v715, %v1914
      %v1916 = vmul.f32 %v1910, %v1915
      %v1917 = vmul.f32 %v1911, %v1915
      %v1918 = vlaneseq
      %v1919 = vshrl.u32 %v1918, 7
      %v1920 = vsub.s32 3, %v1919
      %v1921 = vrot.slane %v715, %v1920
      %v1922 = vadd.f32 %v1916, %v1921
      %v1923 = vadd.f32 %v1917, %v1921
      %v1924 = vld [vmem:[%s594] sm:$0xf]
      %v1925 = vld [vmem:[%s594 + $0x4] sm:$0xf]
      %v1926 = vld [vmem:[%s594 + $0x8] sm:$0xf]
      %v1927 = vld [vmem:[%s594 + $0xc] sm:$0xf]
      %v1928 = vpack.c.bf16 %v1923, %v1922
      %v1929 = vlaneseq
      %v1930 = vshrl.u32 %v1929, 7
      %v1931 = vsub.s32 4, %v1930
      %v1932 = vrot.slane %v715, %v1931
      %v1937 = vunpack.c.l.b16 %v1924
      %v1938 = vunpack.c.l.b16 %v1925
      %v1939 = vunpack.c.l.b16 %v1926
      %v1940 = vunpack.c.l.b16 %v1927
      %v1941 = vpack.c.b16 %v1938, %v1937
      %v1942 = vpack.c.b16 %v1940, %v1939
      %v1946 = vsel %vm738, %v1928, 0
      %1948 = vmatprep.subr.bf16.mxu0 0
      %1949 = vmatpush1.bf16.msra.mxu0 0
      %1950 = vmatprep.subr.bf16.mxu0 0
      %1951 = vmatpush1.bf16.msra.mxu0 0
      %1952 = vmatprep.subr.bf16.mxu0 0
      %1953 = vmatpush1.bf16.msra.mxu0 0
      %1954 = vmatprep.subr.bf16.mxu0 0
      %1955 = vmatpush1.bf16.msra.mxu0 0
      %1956 = vmatprep.subr.bf16.mxu0 0
      %1957 = vmatpush1.bf16.msra.mxu0 0
      %1958 = vmatprep.subr.bf16.mxu0 0
      %1959 = vmatpush1.bf16.msra.mxu0 0
      %1960 = vmatprep.subr.bf16.mxu0 0
      %1961 = vmatpush1.bf16.msra.mxu0 %v1942
      %1962 = vmatprep.subr.bf16.mxu0 0
      %1963 = vmatpush1.bf16.msra.mxu0 %v1941
      %1964 = vmatprep.subr.bf16.mxu0 0
      %1965 = vmatpush2.bf16.msra.mxu0 0
      %1966 = vmatprep.subr.bf16.mxu0 0
      %1967 = vmatpush2.bf16.msra.mxu0 0
      %1968 = vmatprep.subr.bf16.mxu0 0
      %1969 = vmatpush2.bf16.msra.mxu0 0
      %1970 = vmatprep.subr.bf16.mxu0 0
      %1971 = vmatpush2.bf16.msra.mxu0 0
      %1972 = vmatprep.subr.bf16.mxu0 0
      %1973 = vmatpush2.bf16.msra.mxu0 0
      %1974 = vmatprep.subr.bf16.mxu0 0
      %1975 = vmatpush2.bf16.msra.mxu0 0
      %1976 = vmatprep.subr.bf16.mxu0 0
      %1977 = vmatpush2.bf16.msra.mxu0 0
      %1978 = vmatprep.subr.bf16.mxu0 0
      %1979 = vmatpush2.bf16.msra.mxu0 0
      %1980 = vmatprep.mubr.bf16.mxu0 0
      %1981 = vmatmul.mubr.bf16.gmra.mxu0 %v1946
      %v1982 = vpop.f32.mrf.mxu0
      %v1983 = vadd.f32 %v1932, %v1982
      %v1984 = vpop.f32.mrf.mxu0
      %v1985 = vpop.f32.mrf.mxu0
      %v1986 = vadd.f32 %v1932, %v1985
      %v1987 = vpop.f32.mrf.mxu0
      %1988 = vdwg.mxu0
      %v1989 = vld [vmem:[%s599] sm:$0xf]
      %v1990 = vld [vmem:[%s599 + $0x4] sm:$0xf]
      %v1991 = vld [vmem:[%s599 + $0x8] sm:$0xf]
      %v1992 = vld [vmem:[%s599 + $0xc] sm:$0xf]
      %v1993 = vpack.c.bf16 %v712, %v711
      %v1994 = vpack.c.bf16 %v714, %v713
      %v1995 = vlaneseq
      %v1996 = vshrl.u32 %v1995, 7
      %v1997 = vsub.s32 5, %v1996
      %v1998 = vrot.slane %v715, %v1997
      %v2003 = vunpack.c.l.b16 %v1989
      %v2004 = vunpack.c.l.b16 %v1990
      %v2005 = vunpack.c.l.b16 %v1991
      %v2006 = vunpack.c.l.b16 %v1992
      %v2007 = vpack.c.b16 %v2004, %v2003
      %v2008 = vpack.c.b16 %v2006, %v2005
      %v2012 = vsel %vm738, %v1993, 0
      %v2015 = vsel %vm738, %v1994, 0
      %2017 = vmatprep.subr.bf16.mxu0 0
      %2018 = vmatpush1.bf16.msra.mxu0 0
      %2019 = vmatprep.subr.bf16.mxu0 0
      %2020 = vmatpush1.bf16.msra.mxu0 0
      %2021 = vmatprep.subr.bf16.mxu0 0
      %2022 = vmatpush1.bf16.msra.mxu0 0
      %2023 = vmatprep.subr.bf16.mxu0 0
      %2024 = vmatpush1.bf16.msra.mxu0 0
      %2025 = vmatprep.subr.bf16.mxu0 0
      %2026 = vmatpush1.bf16.msra.mxu0 0
      %2027 = vmatprep.subr.bf16.mxu0 0
      %2028 = vmatpush1.bf16.msra.mxu0 0
      %2029 = vmatprep.subr.bf16.mxu0 0
      %2030 = vmatpush1.bf16.msra.mxu0 %v2008
      %2031 = vmatprep.subr.bf16.mxu0 0
      %2032 = vmatpush1.bf16.msra.mxu0 %v2007
      %2033 = vmatprep.subr.bf16.mxu0 0
      %2034 = vmatpush2.bf16.msra.mxu0 0
      %2035 = vmatprep.subr.bf16.mxu0 0
      %2036 = vmatpush2.bf16.msra.mxu0 0
      %2037 = vmatprep.subr.bf16.mxu0 0
      %2038 = vmatpush2.bf16.msra.mxu0 0
      %2039 = vmatprep.subr.bf16.mxu0 0
      %2040 = vmatpush2.bf16.msra.mxu0 0
      %2041 = vmatprep.subr.bf16.mxu0 0
      %2042 = vmatpush2.bf16.msra.mxu0 0
      %2043 = vmatprep.subr.bf16.mxu0 0
      %2044 = vmatpush2.bf16.msra.mxu0 0
      %2045 = vmatprep.subr.bf16.mxu0 0
      %2046 = vmatpush2.bf16.msra.mxu0 0
      %2047 = vmatprep.subr.bf16.mxu0 0
      %2048 = vmatpush2.bf16.msra.mxu0 0
      %2049 = vmatprep.mubr.bf16.mxu0 0
      %2050 = vmatmul.mubr.bf16.gmra.mxu0 %v2012
      %v2051 = vpop.f32.mrf.mxu0
      %v2052 = vadd.f32 %v1998, %v2051
      %v2053 = vpop.f32.mrf.mxu0
      %v2054 = vpop.f32.mrf.mxu0
      %v2055 = vadd.f32 %v1998, %v2054
      %v2056 = vpop.f32.mrf.mxu0
      %2057 = vmatprep.mubr.bf16.mxu0 0
      %2058 = vmatmul.mubr.bf16.gmra.mxu0 %v2015
      %v2059 = vpop.f32.mrf.mxu0
      %v2060 = vadd.f32 %v1998, %v2059
      %v2061 = vpop.f32.mrf.mxu0
      %v2062 = vpop.f32.mrf.mxu0
      %v2063 = vadd.f32 %v1998, %v2062
      %v2064 = vpop.f32.mrf.mxu0
      %2065 = vdwg.mxu0
      %v2066 = vpack.c.bf16 %v1983, %v1983
      %v2067 = vpack.c.bf16 %v1986, %v1986
      %v2068 = vpack.c.bf16 %v2055, %v2052
      %v2069 = vpack.c.bf16 %v2063, %v2060
      %v2071 = vsel %vm788, %v2066, 0
      %v2074 = vsel %vm788, %v2068, 0
      %2076 = vmatprep.subr.bf16.mxu0 0
      %2077 = vmatpush1.bf16.xpose.msra.mxu0 0
      %2078 = vmatprep.subr.bf16.mxu0 0
      %2079 = vmatpush1.bf16.xpose.msra.mxu0 0
      %2080 = vmatprep.subr.bf16.mxu0 0
      %2081 = vmatpush1.bf16.xpose.msra.mxu0 0
      %2082 = vmatprep.subr.bf16.mxu0 0
      %2083 = vmatpush1.bf16.xpose.msra.mxu0 0
      %2084 = vmatprep.subr.bf16.mxu0 0
      %2085 = vmatpush1.bf16.xpose.msra.mxu0 0
      %2086 = vmatprep.subr.bf16.mxu0 0
      %2087 = vmatpush1.bf16.xpose.msra.mxu0 0
      %2088 = vmatprep.subr.bf16.mxu0 0
      %2089 = vmatpush1.bf16.xpose.msra.mxu0 0
      %2090 = vmatprep.subr.bf16.mxu0 0
      %2091 = vmatpush1.bf16.xpose.msra.mxu0 %v2074
      %2092 = vmatprep.subr.bf16.mxu0 0
      %2093 = vmatpush2.bf16.xpose.msra.mxu0 0
      %2094 = vmatprep.subr.bf16.mxu0 0
      %2095 = vmatpush2.bf16.xpose.msra.mxu0 0
      %2096 = vmatprep.subr.bf16.mxu0 0
      %2097 = vmatpush2.bf16.xpose.msra.mxu0 0
      %2098 = vmatprep.subr.bf16.mxu0 0
      %2099 = vmatpush2.bf16.xpose.msra.mxu0 0
      %2100 = vmatprep.subr.bf16.mxu0 0
      %2101 = vmatpush2.bf16.xpose.msra.mxu0 0
      %2102 = vmatprep.subr.bf16.mxu0 0
      %2103 = vmatpush2.bf16.xpose.msra.mxu0 0
      %2104 = vmatprep.subr.bf16.mxu0 0
      %2105 = vmatpush2.bf16.xpose.msra.mxu0 0
      %2106 = vmatprep.subr.bf16.mxu0 0
      %2107 = vmatpush2.bf16.xpose.msra.mxu0 0
      %2108 = vmatprep.mubr.bf16.mxu0 0
      %2109 = vmatmul.mubr.bf16.gmra.mxu0 %v2071
      %v2110 = vpop.f32.mrf.mxu0
      %v2111 = vadd.f32 0.0, %v2110
      %v2112 = vpop.f32.mrf.mxu0
      %v2113 = vpop.f32.mrf.mxu0
      %v2114 = vpop.f32.mrf.mxu0
      %2115 = vdwg.mxu0
      %v2117 = vsel %vm788, %v2067, 0
      %v2120 = vsel %vm788, %v2069, 0
      %2122 = vmatprep.subr.bf16.mxu0 0
      %2123 = vmatpush1.bf16.xpose.msra.mxu0 0
      %2124 = vmatprep.subr.bf16.mxu0 0
      %2125 = vmatpush1.bf16.xpose.msra.mxu0 0
      %2126 = vmatprep.subr.bf16.mxu0 0
      %2127 = vmatpush1.bf16.xpose.msra.mxu0 0
      %2128 = vmatprep.subr.bf16.mxu0 0
      %2129 = vmatpush1.bf16.xpose.msra.mxu0 0
      %2130 = vmatprep.subr.bf16.mxu0 0
      %2131 = vmatpush1.bf16.xpose.msra.mxu0 0
      %2132 = vmatprep.subr.bf16.mxu0 0
      %2133 = vmatpush1.bf16.xpose.msra.mxu0 0
      %2134 = vmatprep.subr.bf16.mxu0 0
      %2135 = vmatpush1.bf16.xpose.msra.mxu0 0
      %2136 = vmatprep.subr.bf16.mxu0 0
      %2137 = vmatpush1.bf16.xpose.msra.mxu0 %v2120
      %2138 = vmatprep.subr.bf16.mxu0 0
      %2139 = vmatpush2.bf16.xpose.msra.mxu0 0
      %2140 = vmatprep.subr.bf16.mxu0 0
      %2141 = vmatpush2.bf16.xpose.msra.mxu0 0
      %2142 = vmatprep.subr.bf16.mxu0 0
      %2143 = vmatpush2.bf16.xpose.msra.mxu0 0
      %2144 = vmatprep.subr.bf16.mxu0 0
      %2145 = vmatpush2.bf16.xpose.msra.mxu0 0
      %2146 = vmatprep.subr.bf16.mxu0 0
      %2147 = vmatpush2.bf16.xpose.msra.mxu0 0
      %2148 = vmatprep.subr.bf16.mxu0 0
      %2149 = vmatpush2.bf16.xpose.msra.mxu0 0
      %2150 = vmatprep.subr.bf16.mxu0 0
      %2151 = vmatpush2.bf16.xpose.msra.mxu0 0
      %2152 = vmatprep.subr.bf16.mxu0 0
      %2153 = vmatpush2.bf16.xpose.msra.mxu0 0
      %2154 = vmatprep.mubr.bf16.mxu0 0
      %2155 = vmatmul.mubr.bf16.gmra.mxu0 %v2117
      %v2156 = vpop.f32.mrf.mxu0
      %v2157 = vadd.f32 0.0, %v2156
      %v2158 = vpop.f32.mrf.mxu0
      %v2159 = vpop.f32.mrf.mxu0
      %v2160 = vpop.f32.mrf.mxu0
      %2161 = vdwg.mxu0
      %v2162 = vmul.f32 %v2111, 0.35355338
      %v2163 = vmul.f32 %v2157, 0.35355338
      %vm2164 = vcmask 130048
      %v2165 = vsel %vm2164, %v2162, -inf
      %2166 = vmax.xlane.f32.xlu0 %v2165
      %v2167 = vpop.xlane.xlu0 %2166
      %v2168 = vsel %vm2164, %v2163, -inf
      %2169 = vmax.xlane.f32.xlu0 %v2168
      %v2170 = vpop.xlane.xlu0 %2169
      %v2171 = vsub.f32 %v2162, %v2167
      %v2172 = vsub.f32 %v2163, %v2170
      %v2173 = vmul.f32 %v2171, 1.442695
      %v2174 = vpow.pop %v2173
      %v2175 = vmul.f32 %v2172, 1.442695
      %v2176 = vpow.pop %v2175
      %v2177 = vsel %vm2164, %v2174, 0.0
      %2178 = vadd.xlane.f32.xlu0 %v2177
      %v2179 = vpop.xlane.xlu0 %2178
      %v2180 = vsel %vm2164, %v2176, 0.0
      %2181 = vadd.xlane.f32.xlu0 %v2180
      %v2182 = vpop.xlane.xlu0 %2181
      %v2183 = vrcp.pop %v2179
      %v2184 = vrcp.pop %v2182
      %v2185 = vmul.f32 %v2174, %v2183
      %v2186 = vmul.f32 %v2176, %v2184
      %v2187 = vpack.c.bf16 %v2185, %v2185
      %v2188 = vpack.c.bf16 %v2186, %v2186
      %2190 = vrot.lane.b32.xlu0 %v2068, 96
      %v2191 = vpop.permute.xlu0 %2190
      %v2194 = vsel %vm2164, %v2187, 0
      %2196 = vmatprep.subr.bf16.mxu0 0
      %2197 = vmatpush1.bf16.msra.mxu0 0
      %2198 = vmatprep.subr.bf16.mxu0 0
      %2199 = vmatpush1.bf16.msra.mxu0 0
      %2200 = vmatprep.subr.bf16.mxu0 0
      %2201 = vmatpush1.bf16.msra.mxu0 0
      %2202 = vmatprep.subr.bf16.mxu0 0
      %2203 = vmatpush1.bf16.msra.mxu0 0
      %2204 = vmatprep.subr.bf16.mxu0 0
      %2205 = vmatpush1.bf16.msra.mxu0 0
      %2206 = vmatprep.subr.bf16.mxu0 0
      %2207 = vmatpush1.bf16.msra.mxu0 0
      %2208 = vmatprep.subr.bf16.mxu0 0
      %2209 = vmatpush1.bf16.msra.mxu0 0
      %2210 = vmatprep.subr.bf16.mxu0 0
      %2211 = vmatpush1.bf16.msra.mxu0 %v2191
      %2212 = vmatprep.subr.bf16.mxu0 0
      %2213 = vmatpush2.bf16.msra.mxu0 0
      %2214 = vmatprep.subr.bf16.mxu0 0
      %2215 = vmatpush2.bf16.msra.mxu0 0
      %2216 = vmatprep.subr.bf16.mxu0 0
      %2217 = vmatpush2.bf16.msra.mxu0 0
      %2218 = vmatprep.subr.bf16.mxu0 0
      %2219 = vmatpush2.bf16.msra.mxu0 0
      %2220 = vmatprep.subr.bf16.mxu0 0
      %2221 = vmatpush2.bf16.msra.mxu0 0
      %2222 = vmatprep.subr.bf16.mxu0 0
      %2223 = vmatpush2.bf16.msra.mxu0 0
      %2224 = vmatprep.subr.bf16.mxu0 0
      %2225 = vmatpush2.bf16.msra.mxu0 0
      %2226 = vmatprep.subr.bf16.mxu0 0
      %2227 = vmatpush2.bf16.msra.mxu0 0
      %2228 = vmatprep.mubr.bf16.mxu0 0
      %2229 = vmatmul.mubr.bf16.gmra.mxu0 %v2194
      %v2230 = vpop.f32.mrf.mxu0
      %v2231 = vadd.f32 0.0, %v2230
      %v2232 = vpop.f32.mrf.mxu0
      %v2233 = vpop.f32.mrf.mxu0
      %v2234 = vpop.f32.mrf.mxu0
      %2235 = vdwg.mxu0
      %2237 = vrot.lane.b32.xlu0 %v2069, 96
      %v2238 = vpop.permute.xlu0 %2237
      %v2241 = vsel %vm2164, %v2188, 0
      %2243 = vmatprep.subr.bf16.mxu0 0
      %2244 = vmatpush1.bf16.msra.mxu0 0
      %2245 = vmatprep.subr.bf16.mxu0 0
      %2246 = vmatpush1.bf16.msra.mxu0 0
      %2247 = vmatprep.subr.bf16.mxu0 0
      %2248 = vmatpush1.bf16.msra.mxu0 0
      %2249 = vmatprep.subr.bf16.mxu0 0
      %2250 = vmatpush1.bf16.msra.mxu0 0
      %2251 = vmatprep.subr.bf16.mxu0 0
      %2252 = vmatpush1.bf16.msra.mxu0 0
      %2253 = vmatprep.subr.bf16.mxu0 0
      %2254 = vmatpush1.bf16.msra.mxu0 0
      %2255 = vmatprep.subr.bf16.mxu0 0
      %2256 = vmatpush1.bf16.msra.mxu0 0
      %2257 = vmatprep.subr.bf16.mxu0 0
      %2258 = vmatpush1.bf16.msra.mxu0 %v2238
      %2259 = vmatprep.subr.bf16.mxu0 0
      %2260 = vmatpush2.bf16.msra.mxu0 0
      %2261 = vmatprep.subr.bf16.mxu0 0
      %2262 = vmatpush2.bf16.msra.mxu0 0
      %2263 = vmatprep.subr.bf16.mxu0 0
      %2264 = vmatpush2.bf16.msra.mxu0 0
      %2265 = vmatprep.subr.bf16.mxu0 0
      %2266 = vmatpush2.bf16.msra.mxu0 0
      %2267 = vmatprep.subr.bf16.mxu0 0
      %2268 = vmatpush2.bf16.msra.mxu0 0
      %2269 = vmatprep.subr.bf16.mxu0 0
      %2270 = vmatpush2.bf16.msra.mxu0 0
      %2271 = vmatprep.subr.bf16.mxu0 0
      %2272 = vmatpush2.bf16.msra.mxu0 0
      %2273 = vmatprep.subr.bf16.mxu0 0
      %2274 = vmatpush2.bf16.msra.mxu0 0
      %2275 = vmatprep.mubr.bf16.mxu0 0
      %2276 = vmatmul.mubr.bf16.gmra.mxu0 %v2241
      %v2277 = vpop.f32.mrf.mxu0
      %v2278 = vadd.f32 0.0, %v2277
      %v2279 = vpop.f32.mrf.mxu0
      %v2280 = vpop.f32.mrf.mxu0
      %v2281 = vpop.f32.mrf.mxu0
      %2282 = vdwg.mxu0
      %v2283 = vpack.c.bf16 %v2278, %v2231
      %v2284 = vld [vmem:[%s604] sm:$0xf]
      %2286 = vrot.lane.b32.xlu0 %v2066, 120
      %v2287 = vpop.permute.xlu0 %2286
      %2288 = vrot.lane.b32.xlu0 %v2068, 120
      %v2289 = vpop.permute.xlu0 %2288
      %v2291 = vsel %vm788, %v2287, 0
      %v2294 = vsel %vm788, %v2289, 0
      %2296 = vmatprep.subr.bf16.mxu0 0
      %2297 = vmatpush1.bf16.xpose.msra.mxu0 0
      %2298 = vmatprep.subr.bf16.mxu0 0
      %2299 = vmatpush1.bf16.xpose.msra.mxu0 0
      %2300 = vmatprep.subr.bf16.mxu0 0
      %2301 = vmatpush1.bf16.xpose.msra.mxu0 0
      %2302 = vmatprep.subr.bf16.mxu0 0
      %2303 = vmatpush1.bf16.xpose.msra.mxu0 0
      %2304 = vmatprep.subr.bf16.mxu0 0
      %2305 = vmatpush1.bf16.xpose.msra.mxu0 0
      %2306 = vmatprep.subr.bf16.mxu0 0
      %2307 = vmatpush1.bf16.xpose.msra.mxu0 0
      %2308 = vmatprep.subr.bf16.mxu0 0
      %2309 = vmatpush1.bf16.xpose.msra.mxu0 0
      %2310 = vmatprep.subr.bf16.mxu0 0
      %2311 = vmatpush1.bf16.xpose.msra.mxu0 %v2294
      %2312 = vmatprep.subr.bf16.mxu0 0
      %2313 = vmatpush2.bf16.xpose.msra.mxu0 0
      %2314 = vmatprep.subr.bf16.mxu0 0
      %2315 = vmatpush2.bf16.xpose.msra.mxu0 0
      %2316 = vmatprep.subr.bf16.mxu0 0
      %2317 = vmatpush2.bf16.xpose.msra.mxu0 0
      %2318 = vmatprep.subr.bf16.mxu0 0
      %2319 = vmatpush2.bf16.xpose.msra.mxu0 0
      %2320 = vmatprep.subr.bf16.mxu0 0
      %2321 = vmatpush2.bf16.xpose.msra.mxu0 0
      %2322 = vmatprep.subr.bf16.mxu0 0
      %2323 = vmatpush2.bf16.xpose.msra.mxu0 0
      %2324 = vmatprep.subr.bf16.mxu0 0
      %2325 = vmatpush2.bf16.xpose.msra.mxu0 0
      %2326 = vmatprep.subr.bf16.mxu0 0
      %2327 = vmatpush2.bf16.xpose.msra.mxu0 0
      %2328 = vmatprep.mubr.bf16.mxu0 0
      %2329 = vmatmul.mubr.bf16.gmra.mxu0 %v2291
      %v2330 = vpop.f32.mrf.mxu0
      %v2331 = vadd.f32 0.0, %v2330
      %v2332 = vpop.f32.mrf.mxu0
      %v2333 = vpop.f32.mrf.mxu0
      %v2334 = vpop.f32.mrf.mxu0
      %2335 = vdwg.mxu0
      %2337 = vrot.lane.b32.xlu0 %v2067, 120
      %v2338 = vpop.permute.xlu0 %2337
      %2339 = vrot.lane.b32.xlu0 %v2069, 120
      %v2340 = vpop.permute.xlu0 %2339
      %v2342 = vsel %vm788, %v2338, 0
      %v2345 = vsel %vm788, %v2340, 0
      %2347 = vmatprep.subr.bf16.mxu0 0
      %2348 = vmatpush1.bf16.xpose.msra.mxu0 0
      %2349 = vmatprep.subr.bf16.mxu0 0
      %2350 = vmatpush1.bf16.xpose.msra.mxu0 0
      %2351 = vmatprep.subr.bf16.mxu0 0
      %2352 = vmatpush1.bf16.xpose.msra.mxu0 0
      %2353 = vmatprep.subr.bf16.mxu0 0
      %2354 = vmatpush1.bf16.xpose.msra.mxu0 0
      %2355 = vmatprep.subr.bf16.mxu0 0
      %2356 = vmatpush1.bf16.xpose.msra.mxu0 0
      %2357 = vmatprep.subr.bf16.mxu0 0
      %2358 = vmatpush1.bf16.xpose.msra.mxu0 0
      %2359 = vmatprep.subr.bf16.mxu0 0
      %2360 = vmatpush1.bf16.xpose.msra.mxu0 0
      %2361 = vmatprep.subr.bf16.mxu0 0
      %2362 = vmatpush1.bf16.xpose.msra.mxu0 %v2345
      %2363 = vmatprep.subr.bf16.mxu0 0
      %2364 = vmatpush2.bf16.xpose.msra.mxu0 0
      %2365 = vmatprep.subr.bf16.mxu0 0
      %2366 = vmatpush2.bf16.xpose.msra.mxu0 0
      %2367 = vmatprep.subr.bf16.mxu0 0
      %2368 = vmatpush2.bf16.xpose.msra.mxu0 0
      %2369 = vmatprep.subr.bf16.mxu0 0
      %2370 = vmatpush2.bf16.xpose.msra.mxu0 0
      %2371 = vmatprep.subr.bf16.mxu0 0
      %2372 = vmatpush2.bf16.xpose.msra.mxu0 0
      %2373 = vmatprep.subr.bf16.mxu0 0
      %2374 = vmatpush2.bf16.xpose.msra.mxu0 0
      %2375 = vmatprep.subr.bf16.mxu0 0
      %2376 = vmatpush2.bf16.xpose.msra.mxu0 0
      %2377 = vmatprep.subr.bf16.mxu0 0
      %2378 = vmatpush2.bf16.xpose.msra.mxu0 0
      %2379 = vmatprep.mubr.bf16.mxu0 0
      %2380 = vmatmul.mubr.bf16.gmra.mxu0 %v2342
      %v2381 = vpop.f32.mrf.mxu0
      %v2382 = vadd.f32 0.0, %v2381
      %v2383 = vpop.f32.mrf.mxu0
      %v2384 = vpop.f32.mrf.mxu0
      %v2385 = vpop.f32.mrf.mxu0
      %2386 = vdwg.mxu0
      %v2387 = vmul.f32 %v2331, 0.35355338
      %v2388 = vmul.f32 %v2382, 0.35355338
      %v2389 = vsel %vm2164, %v2387, -inf
      %2390 = vmax.xlane.f32.xlu0 %v2389
      %v2391 = vpop.xlane.xlu0 %2390
      %v2392 = vsel %vm2164, %v2388, -inf
      %2393 = vmax.xlane.f32.xlu0 %v2392
      %v2394 = vpop.xlane.xlu0 %2393
      %v2395 = vsub.f32 %v2387, %v2391
      %v2396 = vsub.f32 %v2388, %v2394
      %v2397 = vmul.f32 %v2395, 1.442695
      %v2398 = vpow.pop %v2397
      %v2399 = vmul.f32 %v2396, 1.442695
      %v2400 = vpow.pop %v2399
      %v2401 = vsel %vm2164, %v2398, 0.0
      %2402 = vadd.xlane.f32.xlu0 %v2401
      %v2403 = vpop.xlane.xlu0 %2402
      %v2404 = vsel %vm2164, %v2400, 0.0
      %2405 = vadd.xlane.f32.xlu0 %v2404
      %v2406 = vpop.xlane.xlu0 %2405
      %v2407 = vrcp.pop %v2403
      %v2408 = vrcp.pop %v2406
      %v2409 = vmul.f32 %v2398, %v2407
      %v2410 = vmul.f32 %v2400, %v2408
      %v2411 = vpack.c.bf16 %v2409, %v2409
      %v2412 = vpack.c.bf16 %v2410, %v2410
      %2413 = vrot.lane.b32.xlu0 %v2068, 88
      %v2414 = vpop.permute.xlu0 %2413
      %v2417 = vsel %vm2164, %v2411, 0
      %2419 = vmatprep.subr.bf16.mxu0 0
      %2420 = vmatpush1.bf16.msra.mxu0 0
      %2421 = vmatprep.subr.bf16.mxu0 0
      %2422 = vmatpush1.bf16.msra.mxu0 0
      %2423 = vmatprep.subr.bf16.mxu0 0
      %2424 = vmatpush1.bf16.msra.mxu0 0
      %2425 = vmatprep.subr.bf16.mxu0 0
      %2426 = vmatpush1.bf16.msra.mxu0 0
      %2427 = vmatprep.subr.bf16.mxu0 0
      %2428 = vmatpush1.bf16.msra.mxu0 0
      %2429 = vmatprep.subr.bf16.mxu0 0
      %2430 = vmatpush1.bf16.msra.mxu0 0
      %2431 = vmatprep.subr.bf16.mxu0 0
      %2432 = vmatpush1.bf16.msra.mxu0 0
      %2433 = vmatprep.subr.bf16.mxu0 0
      %2434 = vmatpush1.bf16.msra.mxu0 %v2414
      %2435 = vmatprep.subr.bf16.mxu0 0
      %2436 = vmatpush2.bf16.msra.mxu0 0
      %2437 = vmatprep.subr.bf16.mxu0 0
      %2438 = vmatpush2.bf16.msra.mxu0 0
      %2439 = vmatprep.subr.bf16.mxu0 0
      %2440 = vmatpush2.bf16.msra.mxu0 0
      %2441 = vmatprep.subr.bf16.mxu0 0
      %2442 = vmatpush2.bf16.msra.mxu0 0
      %2443 = vmatprep.subr.bf16.mxu0 0
      %2444 = vmatpush2.bf16.msra.mxu0 0
      %2445 = vmatprep.subr.bf16.mxu0 0
      %2446 = vmatpush2.bf16.msra.mxu0 0
      %2447 = vmatprep.subr.bf16.mxu0 0
      %2448 = vmatpush2.bf16.msra.mxu0 0
      %2449 = vmatprep.subr.bf16.mxu0 0
      %2450 = vmatpush2.bf16.msra.mxu0 0
      %2451 = vmatprep.mubr.bf16.mxu0 0
      %2452 = vmatmul.mubr.bf16.gmra.mxu0 %v2417
      %v2453 = vpop.f32.mrf.mxu0
      %v2454 = vadd.f32 0.0, %v2453
      %v2455 = vpop.f32.mrf.mxu0
      %v2456 = vpop.f32.mrf.mxu0
      %v2457 = vpop.f32.mrf.mxu0
      %2458 = vdwg.mxu0
      %2459 = vrot.lane.b32.xlu0 %v2069, 88
      %v2460 = vpop.permute.xlu0 %2459
      %v2463 = vsel %vm2164, %v2412, 0
      %2465 = vmatprep.subr.bf16.mxu0 0
      %2466 = vmatpush1.bf16.msra.mxu0 0
      %2467 = vmatprep.subr.bf16.mxu0 0
      %2468 = vmatpush1.bf16.msra.mxu0 0
      %2469 = vmatprep.subr.bf16.mxu0 0
      %2470 = vmatpush1.bf16.msra.mxu0 0
      %2471 = vmatprep.subr.bf16.mxu0 0
      %2472 = vmatpush1.bf16.msra.mxu0 0
      %2473 = vmatprep.subr.bf16.mxu0 0
      %2474 = vmatpush1.bf16.msra.mxu0 0
      %2475 = vmatprep.subr.bf16.mxu0 0
      %2476 = vmatpush1.bf16.msra.mxu0 0
      %2477 = vmatprep.subr.bf16.mxu0 0
      %2478 = vmatpush1.bf16.msra.mxu0 0
      %2479 = vmatprep.subr.bf16.mxu0 0
      %2480 = vmatpush1.bf16.msra.mxu0 %v2460
      %2481 = vmatprep.subr.bf16.mxu0 0
      %2482 = vmatpush2.bf16.msra.mxu0 0
      %2483 = vmatprep.subr.bf16.mxu0 0
      %2484 = vmatpush2.bf16.msra.mxu0 0
      %2485 = vmatprep.subr.bf16.mxu0 0
      %2486 = vmatpush2.bf16.msra.mxu0 0
      %2487 = vmatprep.subr.bf16.mxu0 0
      %2488 = vmatpush2.bf16.msra.mxu0 0
      %2489 = vmatprep.subr.bf16.mxu0 0
      %2490 = vmatpush2.bf16.msra.mxu0 0
      %2491 = vmatprep.subr.bf16.mxu0 0
      %2492 = vmatpush2.bf16.msra.mxu0 0
      %2493 = vmatprep.subr.bf16.mxu0 0
      %2494 = vmatpush2.bf16.msra.mxu0 0
      %2495 = vmatprep.subr.bf16.mxu0 0
      %2496 = vmatpush2.bf16.msra.mxu0 0
      %2497 = vmatprep.mubr.bf16.mxu0 0
      %2498 = vmatmul.mubr.bf16.gmra.mxu0 %v2463
      %v2499 = vpop.f32.mrf.mxu0
      %v2500 = vadd.f32 0.0, %v2499
      %v2501 = vpop.f32.mrf.mxu0
      %v2502 = vpop.f32.mrf.mxu0
      %v2503 = vpop.f32.mrf.mxu0
      %2504 = vdwg.mxu0
      %v2505 = vpack.c.bf16 %v2500, %v2454
      %v2506 = vld [vmem:[%s604 + $0x4] sm:$0xf]
      %v2508 = vsel %vm788, %v2505, 0
      %v2511 = vsel %vm915, %v2506, 0
      %2513 = vmatprep.subr.bf16.mxu0 0
      %2514 = vmatpush1.bf16.msra.mxu0 0
      %2515 = vmatprep.subr.bf16.mxu0 0
      %2516 = vmatpush1.bf16.msra.mxu0 0
      %2517 = vmatprep.subr.bf16.mxu0 0
      %2518 = vmatpush1.bf16.msra.mxu0 0
      %2519 = vmatprep.subr.bf16.mxu0 0
      %2520 = vmatpush1.bf16.msra.mxu0 0
      %2521 = vmatprep.subr.bf16.mxu0 0
      %2522 = vmatpush1.bf16.msra.mxu0 0
      %2523 = vmatprep.subr.bf16.mxu0 0
      %2524 = vmatpush1.bf16.msra.mxu0 0
      %2525 = vmatprep.subr.bf16.mxu0 0
      %2526 = vmatpush1.bf16.msra.mxu0 0
      %2527 = vmatprep.subr.bf16.mxu0 0
      %2528 = vmatpush1.bf16.msra.mxu0 %v2511
      %2529 = vmatprep.subr.bf16.mxu0 0
      %2530 = vmatpush2.bf16.msra.mxu0 0
      %2531 = vmatprep.subr.bf16.mxu0 0
      %2532 = vmatpush2.bf16.msra.mxu0 0
      %2533 = vmatprep.subr.bf16.mxu0 0
      %2534 = vmatpush2.bf16.msra.mxu0 0
      %2535 = vmatprep.subr.bf16.mxu0 0
      %2536 = vmatpush2.bf16.msra.mxu0 0
      %2537 = vmatprep.subr.bf16.mxu0 0
      %2538 = vmatpush2.bf16.msra.mxu0 0
      %2539 = vmatprep.subr.bf16.mxu0 0
      %2540 = vmatpush2.bf16.msra.mxu0 0
      %2541 = vmatprep.subr.bf16.mxu0 0
      %2542 = vmatpush2.bf16.msra.mxu0 0
      %2543 = vmatprep.subr.bf16.mxu0 0
      %2544 = vmatpush2.bf16.msra.mxu0 0
      %2545 = vmatprep.mubr.bf16.mxu0 0
      %2546 = vmatmul.mubr.bf16.gmra.mxu0 %v2508
      %v2547 = vpop.f32.mrf.mxu0
      %v2548 = vadd.f32 0.0, %v2547
      %v2549 = vpop.f32.mrf.mxu0
      %v2550 = vpop.f32.mrf.mxu0
      %v2551 = vadd.f32 0.0, %v2550
      %v2552 = vpop.f32.mrf.mxu0
      %2553 = vdwg.mxu0
      %v2555 = vsel %vm788, %v2283, 0
      %v2558 = vsel %vm915, %v2284, 0
      %2560 = vmatprep.subr.bf16.mxu0 0
      %2561 = vmatpush1.bf16.msra.mxu0 0
      %2562 = vmatprep.subr.bf16.mxu0 0
      %2563 = vmatpush1.bf16.msra.mxu0 0
      %2564 = vmatprep.subr.bf16.mxu0 0
      %2565 = vmatpush1.bf16.msra.mxu0 0
      %2566 = vmatprep.subr.bf16.mxu0 0
      %2567 = vmatpush1.bf16.msra.mxu0 0
      %2568 = vmatprep.subr.bf16.mxu0 0
      %2569 = vmatpush1.bf16.msra.mxu0 0
      %2570 = vmatprep.subr.bf16.mxu0 0
      %2571 = vmatpush1.bf16.msra.mxu0 0
      %2572 = vmatprep.subr.bf16.mxu0 0
      %2573 = vmatpush1.bf16.msra.mxu0 0
      %2574 = vmatprep.subr.bf16.mxu0 0
      %2575 = vmatpush1.bf16.msra.mxu0 %v2558
      %2576 = vmatprep.subr.bf16.mxu0 0
      %2577 = vmatpush2.bf16.msra.mxu0 0
      %2578 = vmatprep.subr.bf16.mxu0 0
      %2579 = vmatpush2.bf16.msra.mxu0 0
      %2580 = vmatprep.subr.bf16.mxu0 0
      %2581 = vmatpush2.bf16.msra.mxu0 0
      %2582 = vmatprep.subr.bf16.mxu0 0
      %2583 = vmatpush2.bf16.msra.mxu0 0
      %2584 = vmatprep.subr.bf16.mxu0 0
      %2585 = vmatpush2.bf16.msra.mxu0 0
      %2586 = vmatprep.subr.bf16.mxu0 0
      %2587 = vmatpush2.bf16.msra.mxu0 0
      %2588 = vmatprep.subr.bf16.mxu0 0
      %2589 = vmatpush2.bf16.msra.mxu0 0
      %2590 = vmatprep.subr.bf16.mxu0 0
      %2591 = vmatpush2.bf16.msra.mxu0 0
      %2592 = vmatprep.mubr.bf16.mxu0 0
      %2593 = vmatmul.mubr.bf16.gmra.mxu0 %v2555
      %v2594 = vpop.f32.mrf.mxu0
      %v2595 = vadd.f32 %v2548, %v2594
      %v2596 = vpop.f32.mrf.mxu0
      %v2597 = vpop.f32.mrf.mxu0
      %v2598 = vadd.f32 %v2551, %v2597
      %v2599 = vpop.f32.mrf.mxu0
      %2600 = vdwg.mxu0
      %2601 = vrot.lane.b32.xlu0 %v2066, 112
      %v2602 = vpop.permute.xlu0 %2601
      %2603 = vrot.lane.b32.xlu0 %v2068, 112
      %v2604 = vpop.permute.xlu0 %2603
      %v2606 = vsel %vm788, %v2602, 0
      %v2609 = vsel %vm788, %v2604, 0
      %2611 = vmatprep.subr.bf16.mxu0 0
      %2612 = vmatpush1.bf16.xpose.msra.mxu0 0
      %2613 = vmatprep.subr.bf16.mxu0 0
      %2614 = vmatpush1.bf16.xpose.msra.mxu0 0
      %2615 = vmatprep.subr.bf16.mxu0 0
      %2616 = vmatpush1.bf16.xpose.msra.mxu0 0
      %2617 = vmatprep.subr.bf16.mxu0 0
      %2618 = vmatpush1.bf16.xpose.msra.mxu0 0
      %2619 = vmatprep.subr.bf16.mxu0 0
      %2620 = vmatpush1.bf16.xpose.msra.mxu0 0
      %2621 = vmatprep.subr.bf16.mxu0 0
      %2622 = vmatpush1.bf16.xpose.msra.mxu0 0
      %2623 = vmatprep.subr.bf16.mxu0 0
      %2624 = vmatpush1.bf16.xpose.msra.mxu0 0
      %2625 = vmatprep.subr.bf16.mxu0 0
      %2626 = vmatpush1.bf16.xpose.msra.mxu0 %v2609
      %2627 = vmatprep.subr.bf16.mxu0 0
      %2628 = vmatpush2.bf16.xpose.msra.mxu0 0
      %2629 = vmatprep.subr.bf16.mxu0 0
      %2630 = vmatpush2.bf16.xpose.msra.mxu0 0
      %2631 = vmatprep.subr.bf16.mxu0 0
      %2632 = vmatpush2.bf16.xpose.msra.mxu0 0
      %2633 = vmatprep.subr.bf16.mxu0 0
      %2634 = vmatpush2.bf16.xpose.msra.mxu0 0
      %2635 = vmatprep.subr.bf16.mxu0 0
      %2636 = vmatpush2.bf16.xpose.msra.mxu0 0
      %2637 = vmatprep.subr.bf16.mxu0 0
      %2638 = vmatpush2.bf16.xpose.msra.mxu0 0
      %2639 = vmatprep.subr.bf16.mxu0 0
      %2640 = vmatpush2.bf16.xpose.msra.mxu0 0
      %2641 = vmatprep.subr.bf16.mxu0 0
      %2642 = vmatpush2.bf16.xpose.msra.mxu0 0
      %2643 = vmatprep.mubr.bf16.mxu0 0
      %2644 = vmatmul.mubr.bf16.gmra.mxu0 %v2606
      %v2645 = vpop.f32.mrf.mxu0
      %v2646 = vadd.f32 0.0, %v2645
      %v2647 = vpop.f32.mrf.mxu0
      %v2648 = vpop.f32.mrf.mxu0
      %v2649 = vpop.f32.mrf.mxu0
      %2650 = vdwg.mxu0
      %2651 = vrot.lane.b32.xlu0 %v2067, 112
      %v2652 = vpop.permute.xlu0 %2651
      %2653 = vrot.lane.b32.xlu0 %v2069, 112
      %v2654 = vpop.permute.xlu0 %2653
      %v2656 = vsel %vm788, %v2652, 0
      %v2659 = vsel %vm788, %v2654, 0
      %2661 = vmatprep.subr.bf16.mxu0 0
      %2662 = vmatpush1.bf16.xpose.msra.mxu0 0
      %2663 = vmatprep.subr.bf16.mxu0 0
      %2664 = vmatpush1.bf16.xpose.msra.mxu0 0
      %2665 = vmatprep.subr.bf16.mxu0 0
      %2666 = vmatpush1.bf16.xpose.msra.mxu0 0
      %2667 = vmatprep.subr.bf16.mxu0 0
      %2668 = vmatpush1.bf16.xpose.msra.mxu0 0
      %2669 = vmatprep.subr.bf16.mxu0 0
      %2670 = vmatpush1.bf16.xpose.msra.mxu0 0
      %2671 = vmatprep.subr.bf16.mxu0 0
      %2672 = vmatpush1.bf16.xpose.msra.mxu0 0
      %2673 = vmatprep.subr.bf16.mxu0 0
      %2674 = vmatpush1.bf16.xpose.msra.mxu0 0
      %2675 = vmatprep.subr.bf16.mxu0 0
      %2676 = vmatpush1.bf16.xpose.msra.mxu0 %v2659
      %2677 = vmatprep.subr.bf16.mxu0 0
      %2678 = vmatpush2.bf16.xpose.msra.mxu0 0
      %2679 = vmatprep.subr.bf16.mxu0 0
      %2680 = vmatpush2.bf16.xpose.msra.mxu0 0
      %2681 = vmatprep.subr.bf16.mxu0 0
      %2682 = vmatpush2.bf16.xpose.msra.mxu0 0
      %2683 = vmatprep.subr.bf16.mxu0 0
      %2684 = vmatpush2.bf16.xpose.msra.mxu0 0
      %2685 = vmatprep.subr.bf16.mxu0 0
      %2686 = vmatpush2.bf16.xpose.msra.mxu0 0
      %2687 = vmatprep.subr.bf16.mxu0 0
      %2688 = vmatpush2.bf16.xpose.msra.mxu0 0
      %2689 = vmatprep.subr.bf16.mxu0 0
      %2690 = vmatpush2.bf16.xpose.msra.mxu0 0
      %2691 = vmatprep.subr.bf16.mxu0 0
      %2692 = vmatpush2.bf16.xpose.msra.mxu0 0
      %2693 = vmatprep.mubr.bf16.mxu0 0
      %2694 = vmatmul.mubr.bf16.gmra.mxu0 %v2656
      %v2695 = vpop.f32.mrf.mxu0
      %v2696 = vadd.f32 0.0, %v2695
      %v2697 = vpop.f32.mrf.mxu0
      %v2698 = vpop.f32.mrf.mxu0
      %v2699 = vpop.f32.mrf.mxu0
      %2700 = vdwg.mxu0
      %v2701 = vmul.f32 %v2646, 0.35355338
      %v2702 = vmul.f32 %v2696, 0.35355338
      %v2703 = vsel %vm2164, %v2701, -inf
      %2704 = vmax.xlane.f32.xlu0 %v2703
      %v2705 = vpop.xlane.xlu0 %2704
      %v2706 = vsel %vm2164, %v2702, -inf
      %2707 = vmax.xlane.f32.xlu0 %v2706
      %v2708 = vpop.xlane.xlu0 %2707
      %v2709 = vsub.f32 %v2701, %v2705
      %v2710 = vsub.f32 %v2702, %v2708
      %v2711 = vmul.f32 %v2709, 1.442695
      %v2712 = vpow.pop %v2711
      %v2713 = vmul.f32 %v2710, 1.442695
      %v2714 = vpow.pop %v2713
      %v2715 = vsel %vm2164, %v2712, 0.0
      %2716 = vadd.xlane.f32.xlu0 %v2715
      %v2717 = vpop.xlane.xlu0 %2716
      %v2718 = vsel %vm2164, %v2714, 0.0
      %2719 = vadd.xlane.f32.xlu0 %v2718
      %v2720 = vpop.xlane.xlu0 %2719
      %v2721 = vrcp.pop %v2717
      %v2722 = vrcp.pop %v2720
      %v2723 = vmul.f32 %v2712, %v2721
      %v2724 = vmul.f32 %v2714, %v2722
      %v2725 = vpack.c.bf16 %v2723, %v2723
      %v2726 = vpack.c.bf16 %v2724, %v2724
      %2727 = vrot.lane.b32.xlu0 %v2068, 80
      %v2728 = vpop.permute.xlu0 %2727
      %v2731 = vsel %vm2164, %v2725, 0
      %2733 = vmatprep.subr.bf16.mxu0 0
      %2734 = vmatpush1.bf16.msra.mxu0 0
      %2735 = vmatprep.subr.bf16.mxu0 0
      %2736 = vmatpush1.bf16.msra.mxu0 0
      %2737 = vmatprep.subr.bf16.mxu0 0
      %2738 = vmatpush1.bf16.msra.mxu0 0
      %2739 = vmatprep.subr.bf16.mxu0 0
      %2740 = vmatpush1.bf16.msra.mxu0 0
      %2741 = vmatprep.subr.bf16.mxu0 0
      %2742 = vmatpush1.bf16.msra.mxu0 0
      %2743 = vmatprep.subr.bf16.mxu0 0
      %2744 = vmatpush1.bf16.msra.mxu0 0
      %2745 = vmatprep.subr.bf16.mxu0 0
      %2746 = vmatpush1.bf16.msra.mxu0 0
      %2747 = vmatprep.subr.bf16.mxu0 0
      %2748 = vmatpush1.bf16.msra.mxu0 %v2728
      %2749 = vmatprep.subr.bf16.mxu0 0
      %2750 = vmatpush2.bf16.msra.mxu0 0
      %2751 = vmatprep.subr.bf16.mxu0 0
      %2752 = vmatpush2.bf16.msra.mxu0 0
      %2753 = vmatprep.subr.bf16.mxu0 0
      %2754 = vmatpush2.bf16.msra.mxu0 0
      %2755 = vmatprep.subr.bf16.mxu0 0
      %2756 = vmatpush2.bf16.msra.mxu0 0
      %2757 = vmatprep.subr.bf16.mxu0 0
      %2758 = vmatpush2.bf16.msra.mxu0 0
      %2759 = vmatprep.subr.bf16.mxu0 0
      %2760 = vmatpush2.bf16.msra.mxu0 0
      %2761 = vmatprep.subr.bf16.mxu0 0
      %2762 = vmatpush2.bf16.msra.mxu0 0
      %2763 = vmatprep.subr.bf16.mxu0 0
      %2764 = vmatpush2.bf16.msra.mxu0 0
      %2765 = vmatprep.mubr.bf16.mxu0 0
      %2766 = vmatmul.mubr.bf16.gmra.mxu0 %v2731
      %v2767 = vpop.f32.mrf.mxu0
      %v2768 = vadd.f32 0.0, %v2767
      %v2769 = vpop.f32.mrf.mxu0
      %v2770 = vpop.f32.mrf.mxu0
      %v2771 = vpop.f32.mrf.mxu0
      %2772 = vdwg.mxu0
      %2773 = vrot.lane.b32.xlu0 %v2069, 80
      %v2774 = vpop.permute.xlu0 %2773
      %v2777 = vsel %vm2164, %v2726, 0
      %2779 = vmatprep.subr.bf16.mxu0 0
      %2780 = vmatpush1.bf16.msra.mxu0 0
      %2781 = vmatprep.subr.bf16.mxu0 0
      %2782 = vmatpush1.bf16.msra.mxu0 0
      %2783 = vmatprep.subr.bf16.mxu0 0
      %2784 = vmatpush1.bf16.msra.mxu0 0
      %2785 = vmatprep.subr.bf16.mxu0 0
      %2786 = vmatpush1.bf16.msra.mxu0 0
      %2787 = vmatprep.subr.bf16.mxu0 0
      %2788 = vmatpush1.bf16.msra.mxu0 0
      %2789 = vmatprep.subr.bf16.mxu0 0
      %2790 = vmatpush1.bf16.msra.mxu0 0
      %2791 = vmatprep.subr.bf16.mxu0 0
      %2792 = vmatpush1.bf16.msra.mxu0 0
      %2793 = vmatprep.subr.bf16.mxu0 0
      %2794 = vmatpush1.bf16.msra.mxu0 %v2774
      %2795 = vmatprep.subr.bf16.mxu0 0
      %2796 = vmatpush2.bf16.msra.mxu0 0
      %2797 = vmatprep.subr.bf16.mxu0 0
      %2798 = vmatpush2.bf16.msra.mxu0 0
      %2799 = vmatprep.subr.bf16.mxu0 0
      %2800 = vmatpush2.bf16.msra.mxu0 0
      %2801 = vmatprep.subr.bf16.mxu0 0
      %2802 = vmatpush2.bf16.msra.mxu0 0
      %2803 = vmatprep.subr.bf16.mxu0 0
      %2804 = vmatpush2.bf16.msra.mxu0 0
      %2805 = vmatprep.subr.bf16.mxu0 0
      %2806 = vmatpush2.bf16.msra.mxu0 0
      %2807 = vmatprep.subr.bf16.mxu0 0
      %2808 = vmatpush2.bf16.msra.mxu0 0
      %2809 = vmatprep.subr.bf16.mxu0 0
      %2810 = vmatpush2.bf16.msra.mxu0 0
      %2811 = vmatprep.mubr.bf16.mxu0 0
      %2812 = vmatmul.mubr.bf16.gmra.mxu0 %v2777
      %v2813 = vpop.f32.mrf.mxu0
      %v2814 = vadd.f32 0.0, %v2813
      %v2815 = vpop.f32.mrf.mxu0
      %v2816 = vpop.f32.mrf.mxu0
      %v2817 = vpop.f32.mrf.mxu0
      %2818 = vdwg.mxu0
      %v2819 = vpack.c.bf16 %v2814, %v2768
      %v2820 = vld [vmem:[%s604 + $0x8] sm:$0xf]
      %v2822 = vsel %vm788, %v2819, 0
      %v2825 = vsel %vm915, %v2820, 0
      %2827 = vmatprep.subr.bf16.mxu0 0
      %2828 = vmatpush1.bf16.msra.mxu0 0
      %2829 = vmatprep.subr.bf16.mxu0 0
      %2830 = vmatpush1.bf16.msra.mxu0 0
      %2831 = vmatprep.subr.bf16.mxu0 0
      %2832 = vmatpush1.bf16.msra.mxu0 0
      %2833 = vmatprep.subr.bf16.mxu0 0
      %2834 = vmatpush1.bf16.msra.mxu0 0
      %2835 = vmatprep.subr.bf16.mxu0 0
      %2836 = vmatpush1.bf16.msra.mxu0 0
      %2837 = vmatprep.subr.bf16.mxu0 0
      %2838 = vmatpush1.bf16.msra.mxu0 0
      %2839 = vmatprep.subr.bf16.mxu0 0
      %2840 = vmatpush1.bf16.msra.mxu0 0
      %2841 = vmatprep.subr.bf16.mxu0 0
      %2842 = vmatpush1.bf16.msra.mxu0 %v2825
      %2843 = vmatprep.subr.bf16.mxu0 0
      %2844 = vmatpush2.bf16.msra.mxu0 0
      %2845 = vmatprep.subr.bf16.mxu0 0
      %2846 = vmatpush2.bf16.msra.mxu0 0
      %2847 = vmatprep.subr.bf16.mxu0 0
      %2848 = vmatpush2.bf16.msra.mxu0 0
      %2849 = vmatprep.subr.bf16.mxu0 0
      %2850 = vmatpush2.bf16.msra.mxu0 0
      %2851 = vmatprep.subr.bf16.mxu0 0
      %2852 = vmatpush2.bf16.msra.mxu0 0
      %2853 = vmatprep.subr.bf16.mxu0 0
      %2854 = vmatpush2.bf16.msra.mxu0 0
      %2855 = vmatprep.subr.bf16.mxu0 0
      %2856 = vmatpush2.bf16.msra.mxu0 0
      %2857 = vmatprep.subr.bf16.mxu0 0
      %2858 = vmatpush2.bf16.msra.mxu0 0
      %2859 = vmatprep.mubr.bf16.mxu0 0
      %2860 = vmatmul.mubr.bf16.gmra.mxu0 %v2822
      %v2861 = vpop.f32.mrf.mxu0
      %v2862 = vadd.f32 0.0, %v2861
      %v2863 = vpop.f32.mrf.mxu0
      %v2864 = vpop.f32.mrf.mxu0
      %v2865 = vadd.f32 0.0, %v2864
      %v2866 = vpop.f32.mrf.mxu0
      %2867 = vdwg.mxu0
      %v2868 = vadd.f32 %v2595, %v2862
      %v2869 = vadd.f32 %v2598, %v2865
      %2870 = vrot.lane.b32.xlu0 %v2066, 104
      %v2871 = vpop.permute.xlu0 %2870
      %2872 = vrot.lane.b32.xlu0 %v2068, 104
      %v2873 = vpop.permute.xlu0 %2872
      %v2875 = vsel %vm788, %v2871, 0
      %v2878 = vsel %vm788, %v2873, 0
      %2880 = vmatprep.subr.bf16.mxu0 0
      %2881 = vmatpush1.bf16.xpose.msra.mxu0 0
      %2882 = vmatprep.subr.bf16.mxu0 0
      %2883 = vmatpush1.bf16.xpose.msra.mxu0 0
      %2884 = vmatprep.subr.bf16.mxu0 0
      %2885 = vmatpush1.bf16.xpose.msra.mxu0 0
      %2886 = vmatprep.subr.bf16.mxu0 0
      %2887 = vmatpush1.bf16.xpose.msra.mxu0 0
      %2888 = vmatprep.subr.bf16.mxu0 0
      %2889 = vmatpush1.bf16.xpose.msra.mxu0 0
      %2890 = vmatprep.subr.bf16.mxu0 0
      %2891 = vmatpush1.bf16.xpose.msra.mxu0 0
      %2892 = vmatprep.subr.bf16.mxu0 0
      %2893 = vmatpush1.bf16.xpose.msra.mxu0 0
      %2894 = vmatprep.subr.bf16.mxu0 0
      %2895 = vmatpush1.bf16.xpose.msra.mxu0 %v2878
      %2896 = vmatprep.subr.bf16.mxu0 0
      %2897 = vmatpush2.bf16.xpose.msra.mxu0 0
      %2898 = vmatprep.subr.bf16.mxu0 0
      %2899 = vmatpush2.bf16.xpose.msra.mxu0 0
      %2900 = vmatprep.subr.bf16.mxu0 0
      %2901 = vmatpush2.bf16.xpose.msra.mxu0 0
      %2902 = vmatprep.subr.bf16.mxu0 0
      %2903 = vmatpush2.bf16.xpose.msra.mxu0 0
      %2904 = vmatprep.subr.bf16.mxu0 0
      %2905 = vmatpush2.bf16.xpose.msra.mxu0 0
      %2906 = vmatprep.subr.bf16.mxu0 0
      %2907 = vmatpush2.bf16.xpose.msra.mxu0 0
      %2908 = vmatprep.subr.bf16.mxu0 0
      %2909 = vmatpush2.bf16.xpose.msra.mxu0 0
      %2910 = vmatprep.subr.bf16.mxu0 0
      %2911 = vmatpush2.bf16.xpose.msra.mxu0 0
      %2912 = vmatprep.mubr.bf16.mxu0 0
      %2913 = vmatmul.mubr.bf16.gmra.mxu0 %v2875
      %v2914 = vpop.f32.mrf.mxu0
      %v2915 = vadd.f32 0.0, %v2914
      %v2916 = vpop.f32.mrf.mxu0
      %v2917 = vpop.f32.mrf.mxu0
      %v2918 = vpop.f32.mrf.mxu0
      %2919 = vdwg.mxu0
      %2920 = vrot.lane.b32.xlu0 %v2067, 104
      %v2921 = vpop.permute.xlu0 %2920
      %2922 = vrot.lane.b32.xlu0 %v2069, 104
      %v2923 = vpop.permute.xlu0 %2922
      %v2925 = vsel %vm788, %v2921, 0
      %v2928 = vsel %vm788, %v2923, 0
      %2930 = vmatprep.subr.bf16.mxu0 0
      %2931 = vmatpush1.bf16.xpose.msra.mxu0 0
      %2932 = vmatprep.subr.bf16.mxu0 0
      %2933 = vmatpush1.bf16.xpose.msra.mxu0 0
      %2934 = vmatprep.subr.bf16.mxu0 0
      %2935 = vmatpush1.bf16.xpose.msra.mxu0 0
      %2936 = vmatprep.subr.bf16.mxu0 0
      %2937 = vmatpush1.bf16.xpose.msra.mxu0 0
      %2938 = vmatprep.subr.bf16.mxu0 0
      %2939 = vmatpush1.bf16.xpose.msra.mxu0 0
      %2940 = vmatprep.subr.bf16.mxu0 0
      %2941 = vmatpush1.bf16.xpose.msra.mxu0 0
      %2942 = vmatprep.subr.bf16.mxu0 0
      %2943 = vmatpush1.bf16.xpose.msra.mxu0 0
      %2944 = vmatprep.subr.bf16.mxu0 0
      %2945 = vmatpush1.bf16.xpose.msra.mxu0 %v2928
      %2946 = vmatprep.subr.bf16.mxu0 0
      %2947 = vmatpush2.bf16.xpose.msra.mxu0 0
      %2948 = vmatprep.subr.bf16.mxu0 0
      %2949 = vmatpush2.bf16.xpose.msra.mxu0 0
      %2950 = vmatprep.subr.bf16.mxu0 0
      %2951 = vmatpush2.bf16.xpose.msra.mxu0 0
      %2952 = vmatprep.subr.bf16.mxu0 0
      %2953 = vmatpush2.bf16.xpose.msra.mxu0 0
      %2954 = vmatprep.subr.bf16.mxu0 0
      %2955 = vmatpush2.bf16.xpose.msra.mxu0 0
      %2956 = vmatprep.subr.bf16.mxu0 0
      %2957 = vmatpush2.bf16.xpose.msra.mxu0 0
      %2958 = vmatprep.subr.bf16.mxu0 0
      %2959 = vmatpush2.bf16.xpose.msra.mxu0 0
      %2960 = vmatprep.subr.bf16.mxu0 0
      %2961 = vmatpush2.bf16.xpose.msra.mxu0 0
      %2962 = vmatprep.mubr.bf16.mxu0 0
      %2963 = vmatmul.mubr.bf16.gmra.mxu0 %v2925
      %v2964 = vpop.f32.mrf.mxu0
      %v2965 = vadd.f32 0.0, %v2964
      %v2966 = vpop.f32.mrf.mxu0
      %v2967 = vpop.f32.mrf.mxu0
      %v2968 = vpop.f32.mrf.mxu0
      %2969 = vdwg.mxu0
      %v2970 = vmul.f32 %v2915, 0.35355338
      %v2971 = vmul.f32 %v2965, 0.35355338
      %v2972 = vsel %vm2164, %v2970, -inf
      %2973 = vmax.xlane.f32.xlu0 %v2972
      %v2974 = vpop.xlane.xlu0 %2973
      %v2975 = vsel %vm2164, %v2971, -inf
      %2976 = vmax.xlane.f32.xlu0 %v2975
      %v2977 = vpop.xlane.xlu0 %2976
      %v2978 = vsub.f32 %v2970, %v2974
      %v2979 = vsub.f32 %v2971, %v2977
      %v2980 = vmul.f32 %v2978, 1.442695
      %v2981 = vpow.pop %v2980
      %v2982 = vmul.f32 %v2979, 1.442695
      %v2983 = vpow.pop %v2982
      %v2984 = vsel %vm2164, %v2981, 0.0
      %2985 = vadd.xlane.f32.xlu0 %v2984
      %v2986 = vpop.xlane.xlu0 %2985
      %v2987 = vsel %vm2164, %v2983, 0.0
      %2988 = vadd.xlane.f32.xlu0 %v2987
      %v2989 = vpop.xlane.xlu0 %2988
      %v2990 = vrcp.pop %v2986
      %v2991 = vrcp.pop %v2989
      %v2992 = vmul.f32 %v2981, %v2990
      %v2993 = vmul.f32 %v2983, %v2991
      %v2994 = vpack.c.bf16 %v2992, %v2992
      %v2995 = vpack.c.bf16 %v2993, %v2993
      %2996 = vrot.lane.b32.xlu0 %v2068, 72
      %v2997 = vpop.permute.xlu0 %2996
      %v3000 = vsel %vm2164, %v2994, 0
      %3002 = vmatprep.subr.bf16.mxu0 0
      %3003 = vmatpush1.bf16.msra.mxu0 0
      %3004 = vmatprep.subr.bf16.mxu0 0
      %3005 = vmatpush1.bf16.msra.mxu0 0
      %3006 = vmatprep.subr.bf16.mxu0 0
      %3007 = vmatpush1.bf16.msra.mxu0 0
      %3008 = vmatprep.subr.bf16.mxu0 0
      %3009 = vmatpush1.bf16.msra.mxu0 0
      %3010 = vmatprep.subr.bf16.mxu0 0
      %3011 = vmatpush1.bf16.msra.mxu0 0
      %3012 = vmatprep.subr.bf16.mxu0 0
      %3013 = vmatpush1.bf16.msra.mxu0 0
      %3014 = vmatprep.subr.bf16.mxu0 0
      %3015 = vmatpush1.bf16.msra.mxu0 0
      %3016 = vmatprep.subr.bf16.mxu0 0
      %3017 = vmatpush1.bf16.msra.mxu0 %v2997
      %3018 = vmatprep.subr.bf16.mxu0 0
      %3019 = vmatpush2.bf16.msra.mxu0 0
      %3020 = vmatprep.subr.bf16.mxu0 0
      %3021 = vmatpush2.bf16.msra.mxu0 0
      %3022 = vmatprep.subr.bf16.mxu0 0
      %3023 = vmatpush2.bf16.msra.mxu0 0
      %3024 = vmatprep.subr.bf16.mxu0 0
      %3025 = vmatpush2.bf16.msra.mxu0 0
      %3026 = vmatprep.subr.bf16.mxu0 0
      %3027 = vmatpush2.bf16.msra.mxu0 0
      %3028 = vmatprep.subr.bf16.mxu0 0
      %3029 = vmatpush2.bf16.msra.mxu0 0
      %3030 = vmatprep.subr.bf16.mxu0 0
      %3031 = vmatpush2.bf16.msra.mxu0 0
      %3032 = vmatprep.subr.bf16.mxu0 0
      %3033 = vmatpush2.bf16.msra.mxu0 0
      %3034 = vmatprep.mubr.bf16.mxu0 0
      %3035 = vmatmul.mubr.bf16.gmra.mxu0 %v3000
      %v3036 = vpop.f32.mrf.mxu0
      %v3037 = vadd.f32 0.0, %v3036
      %v3038 = vpop.f32.mrf.mxu0
      %v3039 = vpop.f32.mrf.mxu0
      %v3040 = vpop.f32.mrf.mxu0
      %3041 = vdwg.mxu0
      %3042 = vrot.lane.b32.xlu0 %v2069, 72
      %v3043 = vpop.permute.xlu0 %3042
      %v3046 = vsel %vm2164, %v2995, 0
      %3048 = vmatprep.subr.bf16.mxu0 0
      %3049 = vmatpush1.bf16.msra.mxu0 0
      %3050 = vmatprep.subr.bf16.mxu0 0
      %3051 = vmatpush1.bf16.msra.mxu0 0
      %3052 = vmatprep.subr.bf16.mxu0 0
      %3053 = vmatpush1.bf16.msra.mxu0 0
      %3054 = vmatprep.subr.bf16.mxu0 0
      %3055 = vmatpush1.bf16.msra.mxu0 0
      %3056 = vmatprep.subr.bf16.mxu0 0
      %3057 = vmatpush1.bf16.msra.mxu0 0
      %3058 = vmatprep.subr.bf16.mxu0 0
      %3059 = vmatpush1.bf16.msra.mxu0 0
      %3060 = vmatprep.subr.bf16.mxu0 0
      %3061 = vmatpush1.bf16.msra.mxu0 0
      %3062 = vmatprep.subr.bf16.mxu0 0
      %3063 = vmatpush1.bf16.msra.mxu0 %v3043
      %3064 = vmatprep.subr.bf16.mxu0 0
      %3065 = vmatpush2.bf16.msra.mxu0 0
      %3066 = vmatprep.subr.bf16.mxu0 0
      %3067 = vmatpush2.bf16.msra.mxu0 0
      %3068 = vmatprep.subr.bf16.mxu0 0
      %3069 = vmatpush2.bf16.msra.mxu0 0
      %3070 = vmatprep.subr.bf16.mxu0 0
      %3071 = vmatpush2.bf16.msra.mxu0 0
      %3072 = vmatprep.subr.bf16.mxu0 0
      %3073 = vmatpush2.bf16.msra.mxu0 0
      %3074 = vmatprep.subr.bf16.mxu0 0
      %3075 = vmatpush2.bf16.msra.mxu0 0
      %3076 = vmatprep.subr.bf16.mxu0 0
      %3077 = vmatpush2.bf16.msra.mxu0 0
      %3078 = vmatprep.subr.bf16.mxu0 0
      %3079 = vmatpush2.bf16.msra.mxu0 0
      %3080 = vmatprep.mubr.bf16.mxu0 0
      %3081 = vmatmul.mubr.bf16.gmra.mxu0 %v3046
      %v3082 = vpop.f32.mrf.mxu0
      %v3083 = vadd.f32 0.0, %v3082
      %v3084 = vpop.f32.mrf.mxu0
      %v3085 = vpop.f32.mrf.mxu0
      %v3086 = vpop.f32.mrf.mxu0
      %3087 = vdwg.mxu0
      %v3088 = vpack.c.bf16 %v3083, %v3037
      %v3089 = vld [vmem:[%s604 + $0xc] sm:$0xf]
      %v3091 = vsel %vm788, %v3088, 0
      %v3094 = vsel %vm915, %v3089, 0
      %3096 = vmatprep.subr.bf16.mxu0 0
      %3097 = vmatpush1.bf16.msra.mxu0 0
      %3098 = vmatprep.subr.bf16.mxu0 0
      %3099 = vmatpush1.bf16.msra.mxu0 0
      %3100 = vmatprep.subr.bf16.mxu0 0
      %3101 = vmatpush1.bf16.msra.mxu0 0
      %3102 = vmatprep.subr.bf16.mxu0 0
      %3103 = vmatpush1.bf16.msra.mxu0 0
      %3104 = vmatprep.subr.bf16.mxu0 0
      %3105 = vmatpush1.bf16.msra.mxu0 0
      %3106 = vmatprep.subr.bf16.mxu0 0
      %3107 = vmatpush1.bf16.msra.mxu0 0
      %3108 = vmatprep.subr.bf16.mxu0 0
      %3109 = vmatpush1.bf16.msra.mxu0 0
      %3110 = vmatprep.subr.bf16.mxu0 0
      %3111 = vmatpush1.bf16.msra.mxu0 %v3094
      %3112 = vmatprep.subr.bf16.mxu0 0
      %3113 = vmatpush2.bf16.msra.mxu0 0
      %3114 = vmatprep.subr.bf16.mxu0 0
      %3115 = vmatpush2.bf16.msra.mxu0 0
      %3116 = vmatprep.subr.bf16.mxu0 0
      %3117 = vmatpush2.bf16.msra.mxu0 0
      %3118 = vmatprep.subr.bf16.mxu0 0
      %3119 = vmatpush2.bf16.msra.mxu0 0
      %3120 = vmatprep.subr.bf16.mxu0 0
      %3121 = vmatpush2.bf16.msra.mxu0 0
      %3122 = vmatprep.subr.bf16.mxu0 0
      %3123 = vmatpush2.bf16.msra.mxu0 0
      %3124 = vmatprep.subr.bf16.mxu0 0
      %3125 = vmatpush2.bf16.msra.mxu0 0
      %3126 = vmatprep.subr.bf16.mxu0 0
      %3127 = vmatpush2.bf16.msra.mxu0 0
      %3128 = vmatprep.mubr.bf16.mxu0 0
      %3129 = vmatmul.mubr.bf16.gmra.mxu0 %v3091
      %v3130 = vpop.f32.mrf.mxu0
      %v3131 = vadd.f32 0.0, %v3130
      %v3132 = vpop.f32.mrf.mxu0
      %v3133 = vpop.f32.mrf.mxu0
      %v3134 = vadd.f32 0.0, %v3133
      %v3135 = vpop.f32.mrf.mxu0
      %3136 = vdwg.mxu0
      %v3137 = vadd.f32 %v2868, %v3131
      %v3138 = vadd.f32 %v2869, %v3134
      %v3139 = vlaneseq
      %v3140 = vshrl.u32 %v3139, 7
      %v3141 = vsub.s32 6, %v3140
      %v3142 = vrot.slane %v715, %v3141
      %v3143 = vadd.f32 %v3137, %v3142
      %v3144 = vadd.f32 %v3138, %v3142
      %v3145 = vadd.f32 %v1922, %v3143
      %v3146 = vadd.f32 %v1923, %v3144
      %v3147 = vsel %vm738, %v3145, 0.0
      %3148 = vadd.xlane.f32.xlu0 %v3147
      %v3149 = vpop.xlane.xlu0 %3148
      %v3150 = vsel %vm738, %v3146, 0.0
      %3151 = vadd.xlane.f32.xlu0 %v3150
      %v3152 = vpop.xlane.xlu0 %3151
      %v3153 = vmul.f32 %v3149, %v1887
      %v3154 = vmul.f32 %v3152, %v1887
      %v3155 = vmul.f32 %v3145, %v3145
      %v3156 = vmul.f32 %v3146, %v3146
      %v3157 = vsel %vm738, %v3155, 0.0
      %3158 = vadd.xlane.f32.xlu0 %v3157
      %v3159 = vpop.xlane.xlu0 %3158
      %v3160 = vsel %vm738, %v3156, 0.0
      %3161 = vadd.xlane.f32.xlu0 %v3160
      %v3162 = vpop.xlane.xlu0 %3161
      %v3163 = vmul.f32 %v3159, %v1887
      %v3164 = vmul.f32 %v3162, %v1887
      %v3165 = vmul.f32 %v3153, %v3153
      %v3166 = vmul.f32 %v3154, %v3154
      %v3167 = vsub.f32 %v3163, %v3165
      %v3168 = vsub.f32 %v3164, %v3166
      %v3169 = vsub.f32 %v3145, %v3153
      %v3170 = vsub.f32 %v3146, %v3154
      %v3171 = vadd.f32 %v3167, 1e-05
      %v3172 = vadd.f32 %v3168, 1e-05
      %v3173 = vrsqrt.pop %v3171
      %v3174 = vrsqrt.pop %v3172
      %v3175 = vmul.f32 %v3169, %v3173
      %v3176 = vmul.f32 %v3170, %v3174
      %v3177 = vlaneseq
      %v3178 = vshrl.u32 %v3177, 7
      %v3179 = vsub.s32 7, %v3178
      %v3180 = vrot.slane %v715, %v3179
      %v3181 = vmul.f32 %v3175, %v3180
      %v3182 = vmul.f32 %v3176, %v3180
      %v3183 = vlaneseq
      %v3184 = vshrl.u32 %v3183, 7
      %v3185 = vsub.s32 0, %v3184
      %v3186 = vrot.slane %v716, %v3185
      %v3187 = vadd.f32 %v3181, %v3186
      %v3188 = vadd.f32 %v3182, %v3186
      %v3189 = vld [vmem:[%s609] sm:$0xf]
      %v3190 = vld [vmem:[%s609 + $0x4] sm:$0xf]
      %v3191 = vld [vmem:[%s609 + $0x8] sm:$0xf]
      %v3192 = vld [vmem:[%s609 + $0xc] sm:$0xf]
      %v3193 = vpack.c.bf16 %v3188, %v3187
      %v3194 = vlaneseq
      %v3195 = vshrl.u32 %v3194, 7
      %v3196 = vsub.s32 1, %v3195
      %v3197 = vrot.slane %v716, %v3196
      %v3202 = vunpack.c.l.b16 %v3189
      %v3203 = vunpack.c.l.b16 %v3190
      %v3204 = vunpack.c.l.b16 %v3191
      %v3205 = vunpack.c.l.b16 %v3192
      %v3206 = vpack.c.b16 %v3203, %v3202
      %v3207 = vpack.c.b16 %v3205, %v3204
      %v3211 = vsel %vm738, %v3193, 0
      %3213 = vmatprep.subr.bf16.mxu0 0
      %3214 = vmatpush1.bf16.msra.mxu0 0
      %3215 = vmatprep.subr.bf16.mxu0 0
      %3216 = vmatpush1.bf16.msra.mxu0 0
      %3217 = vmatprep.subr.bf16.mxu0 0
      %3218 = vmatpush1.bf16.msra.mxu0 0
      %3219 = vmatprep.subr.bf16.mxu0 0
      %3220 = vmatpush1.bf16.msra.mxu0 0
      %3221 = vmatprep.subr.bf16.mxu0 0
      %3222 = vmatpush1.bf16.msra.mxu0 0
      %3223 = vmatprep.subr.bf16.mxu0 0
      %3224 = vmatpush1.bf16.msra.mxu0 0
      %3225 = vmatprep.subr.bf16.mxu0 0
      %3226 = vmatpush1.bf16.msra.mxu0 %v3207
      %3227 = vmatprep.subr.bf16.mxu0 0
      %3228 = vmatpush1.bf16.msra.mxu0 %v3206
      %3229 = vmatprep.subr.bf16.mxu0 0
      %3230 = vmatpush2.bf16.msra.mxu0 0
      %3231 = vmatprep.subr.bf16.mxu0 0
      %3232 = vmatpush2.bf16.msra.mxu0 0
      %3233 = vmatprep.subr.bf16.mxu0 0
      %3234 = vmatpush2.bf16.msra.mxu0 0
      %3235 = vmatprep.subr.bf16.mxu0 0
      %3236 = vmatpush2.bf16.msra.mxu0 0
      %3237 = vmatprep.subr.bf16.mxu0 0
      %3238 = vmatpush2.bf16.msra.mxu0 0
      %3239 = vmatprep.subr.bf16.mxu0 0
      %3240 = vmatpush2.bf16.msra.mxu0 0
      %3241 = vmatprep.subr.bf16.mxu0 0
      %3242 = vmatpush2.bf16.msra.mxu0 0
      %3243 = vmatprep.subr.bf16.mxu0 0
      %3244 = vmatpush2.bf16.msra.mxu0 0
      %3245 = vmatprep.mubr.bf16.mxu0 0
      %3246 = vmatmul.mubr.bf16.gmra.mxu0 %v3211
      %v3247 = vpop.f32.mrf.mxu0
      %v3248 = vadd.f32 %v3197, %v3247
      %v3249 = vpop.f32.mrf.mxu0
      %v3250 = vpop.f32.mrf.mxu0
      %v3251 = vadd.f32 %v3197, %v3250
      %v3252 = vpop.f32.mrf.mxu0
      %3253 = vdwg.mxu0
      %v3254 = vmax.f32 %v3248, 0.0
      %v3255 = vmax.f32 %v3251, 0.0
      %v3256 = vld [vmem:[%s614] sm:$0xf]
      %v3257 = vld [vmem:[%s614 + $0x4] sm:$0xf]
      %v3258 = vld [vmem:[%s614 + $0x8] sm:$0xf]
      %v3259 = vld [vmem:[%s614 + $0xc] sm:$0xf]
      %v3260 = vld [vmem:[%s614 + $0x10] sm:$0xf]
      %v3261 = vld [vmem:[%s614 + $0x14] sm:$0xf]
      %v3262 = vld [vmem:[%s614 + $0x18] sm:$0xf]
      %v3263 = vld [vmem:[%s614 + $0x1c] sm:$0xf]
      %v3264 = vpack.c.bf16 %v3255, %v3254
      %v3265 = vlaneseq
      %v3266 = vshrl.u32 %v3265, 7
      %v3267 = vsub.s32 2, %v3266
      %v3268 = vrot.slane %v716, %v3267
      %v3277 = vunpack.c.l.b16 %v3256
      %v3278 = vunpack.c.l.b16 %v3257
      %v3279 = vunpack.c.l.b16 %v3258
      %v3280 = vunpack.c.l.b16 %v3259
      %v3281 = vunpack.c.l.b16 %v3260
      %v3282 = vunpack.c.l.b16 %v3261
      %v3283 = vunpack.c.l.b16 %v3262
      %v3284 = vunpack.c.l.b16 %v3263
      %v3285 = vpack.c.b16 %v3278, %v3277
      %v3286 = vpack.c.b16 %v3280, %v3279
      %v3287 = vpack.c.b16 %v3282, %v3281
      %v3288 = vpack.c.b16 %v3284, %v3283
      %vm3293 = vcmask 523264
      %v3295 = vsel %vm3293, %v3264, 0
      %3297 = vmatprep.subr.bf16.mxu0 0
      %3298 = vmatpush1.bf16.msra.mxu0 0
      %3299 = vmatprep.subr.bf16.mxu0 0
      %3300 = vmatpush1.bf16.msra.mxu0 0
      %3301 = vmatprep.subr.bf16.mxu0 0
      %3302 = vmatpush1.bf16.msra.mxu0 0
      %3303 = vmatprep.subr.bf16.mxu0 0
      %3304 = vmatpush1.bf16.msra.mxu0 0
      %3305 = vmatprep.subr.bf16.mxu0 0
      %3306 = vmatpush1.bf16.msra.mxu0 %v3288
      %3307 = vmatprep.subr.bf16.mxu0 0
      %3308 = vmatpush1.bf16.msra.mxu0 %v3287
      %3309 = vmatprep.subr.bf16.mxu0 0
      %3310 = vmatpush1.bf16.msra.mxu0 %v3286
      %3311 = vmatprep.subr.bf16.mxu0 0
      %3312 = vmatpush1.bf16.msra.mxu0 %v3285
      %3313 = vmatprep.subr.bf16.mxu0 0
      %3314 = vmatpush2.bf16.msra.mxu0 0
      %3315 = vmatprep.subr.bf16.mxu0 0
      %3316 = vmatpush2.bf16.msra.mxu0 0
      %3317 = vmatprep.subr.bf16.mxu0 0
      %3318 = vmatpush2.bf16.msra.mxu0 0
      %3319 = vmatprep.subr.bf16.mxu0 0
      %3320 = vmatpush2.bf16.msra.mxu0 0
      %3321 = vmatprep.subr.bf16.mxu0 0
      %3322 = vmatpush2.bf16.msra.mxu0 0
      %3323 = vmatprep.subr.bf16.mxu0 0
      %3324 = vmatpush2.bf16.msra.mxu0 0
      %3325 = vmatprep.subr.bf16.mxu0 0
      %3326 = vmatpush2.bf16.msra.mxu0 0
      %3327 = vmatprep.subr.bf16.mxu0 0
      %3328 = vmatpush2.bf16.msra.mxu0 0
      %3329 = vmatprep.mubr.bf16.mxu0 0
      %3330 = vmatmul.mubr.bf16.gmra.mxu0 %v3295
      %v3331 = vpop.f32.mrf.mxu0
      %v3332 = vadd.f32 %v3268, %v3331
      %v3333 = vpop.f32.mrf.mxu0
      %v3334 = vpop.f32.mrf.mxu0
      %v3335 = vadd.f32 %v3268, %v3334
      %v3336 = vpop.f32.mrf.mxu0
      %3337 = vdwg.mxu0
      %v3338 = vadd.f32 %v3187, %v3332
      %v3339 = vadd.f32 %v3188, %v3335
      %v3340 = vsel %vm738, %v3338, 0.0
      %3341 = vadd.xlane.f32.xlu0 %v3340
      %v3342 = vpop.xlane.xlu0 %3341
      %v3343 = vsel %vm738, %v3339, 0.0
      %3344 = vadd.xlane.f32.xlu0 %v3343
      %v3345 = vpop.xlane.xlu0 %3344
      %v3346 = vmul.f32 %v3342, %v1887
      %v3347 = vmul.f32 %v3345, %v1887
      %v3348 = vmul.f32 %v3338, %v3338
      %v3349 = vmul.f32 %v3339, %v3339
      %v3350 = vsel %vm738, %v3348, 0.0
      %3351 = vadd.xlane.f32.xlu0 %v3350
      %v3352 = vpop.xlane.xlu0 %3351
      %v3353 = vsel %vm738, %v3349, 0.0
      %3354 = vadd.xlane.f32.xlu0 %v3353
      %v3355 = vpop.xlane.xlu0 %3354
      %v3356 = vmul.f32 %v3352, %v1887
      %v3357 = vmul.f32 %v3355, %v1887
      %v3358 = vmul.f32 %v3346, %v3346
      %v3359 = vmul.f32 %v3347, %v3347
      %v3360 = vsub.f32 %v3356, %v3358
      %v3361 = vsub.f32 %v3357, %v3359
      %v3362 = vsub.f32 %v3338, %v3346
      %v3363 = vsub.f32 %v3339, %v3347
      %v3364 = vadd.f32 %v3360, 1e-05
      %v3365 = vadd.f32 %v3361, 1e-05
      %v3366 = vrsqrt.pop %v3364
      %v3367 = vrsqrt.pop %v3365
      %v3368 = vmul.f32 %v3362, %v3366
      %v3369 = vmul.f32 %v3363, %v3367
      %v3370 = vlaneseq
      %v3371 = vshrl.u32 %v3370, 7
      %v3372 = vsub.s32 3, %v3371
      %v3373 = vrot.slane %v716, %v3372
      %v3374 = vmul.f32 %v3368, %v3373
      %v3375 = vmul.f32 %v3369, %v3373
      %v3376 = vlaneseq
      %v3377 = vshrl.u32 %v3376, 7
      %v3378 = vsub.s32 4, %v3377
      %v3379 = vrot.slane %v716, %v3378
      %v3380 = vadd.f32 %v3374, %v3379
      %v3381 = vadd.f32 %v3375, %v3379
      %3382 = vst.msk [vmem:[#allocation2] sm:$0xff] %vm738, %v3380
      %3383 = vst.msk [vmem:[#allocation2 + $0x8] sm:$0xff] %vm738, %v3381
      %p3384 = scmp.eq.s32.totalorder %s26, 1
      // Predicated region
      $region85: #{joint_ceeq_fwd.4} parent=79 // pred_check
        %p3385 = pneg %p3384
      $region86: #{joint_ceeq_fwd.4} parent=79 // pred_check_branch
        %3387 = sbr.rel (%p3385) target = $region88
      $region87: #{joint_ceeq_fwd.4} parent=79 // pred_region
        %v3388 = vld [vmem:[%s13] sm:$0xf]
        %v3389 = vld [vmem:[%s13 + $0x4] sm:$0xf]
        %v3390 = vld [vmem:[%s13 + $0x8] sm:$0xf]
        %v3391 = vld [vmem:[%s13 + $0xc] sm:$0xf]
        %v3392 = vpack.c.bf16 %v3381, %v3380
        %v3393 = vld [vmem:[%s14] sm:$0x1]
        %v3395 = vlaneseq
        %v3396 = vshrl.u32 %v3395, 7
        %v3397 = vsub.s32 0, %v3396
        %v3398 = vrot.slane %v3393, %v3397
        %v3404 = vunpack.c.l.b16 %v3388
        %v3405 = vunpack.c.l.b16 %v3389
        %v3406 = vunpack.c.l.b16 %v3390
        %v3407 = vunpack.c.l.b16 %v3391
        %v3408 = vpack.c.b16 %v3405, %v3404
        %v3409 = vpack.c.b16 %v3407, %v3406
        %v3413 = vsel %vm738, %v3392, 0
        %3415 = vmatprep.subr.bf16.mxu0 0
        %3416 = vmatpush1.bf16.msra.mxu0 0
        %3417 = vmatprep.subr.bf16.mxu0 0
        %3418 = vmatpush1.bf16.msra.mxu0 0
        %3419 = vmatprep.subr.bf16.mxu0 0
        %3420 = vmatpush1.bf16.msra.mxu0 0
        %3421 = vmatprep.subr.bf16.mxu0 0
        %3422 = vmatpush1.bf16.msra.mxu0 0
        %3423 = vmatprep.subr.bf16.mxu0 0
        %3424 = vmatpush1.bf16.msra.mxu0 0
        %3425 = vmatprep.subr.bf16.mxu0 0
        %3426 = vmatpush1.bf16.msra.mxu0 0
        %3427 = vmatprep.subr.bf16.mxu0 0
        %3428 = vmatpush1.bf16.msra.mxu0 %v3409
        %3429 = vmatprep.subr.bf16.mxu0 0
        %3430 = vmatpush1.bf16.msra.mxu0 %v3408
        %3431 = vmatprep.subr.bf16.mxu0 0
        %3432 = vmatpush2.bf16.msra.mxu0 0
        %3433 = vmatprep.subr.bf16.mxu0 0
        %3434 = vmatpush2.bf16.msra.mxu0 0
        %3435 = vmatprep.subr.bf16.mxu0 0
        %3436 = vmatpush2.bf16.msra.mxu0 0
        %3437 = vmatprep.subr.bf16.mxu0 0
        %3438 = vmatpush2.bf16.msra.mxu0 0
        %3439 = vmatprep.subr.bf16.mxu0 0
        %3440 = vmatpush2.bf16.msra.mxu0 0
        %3441 = vmatprep.subr.bf16.mxu0 0
        %3442 = vmatpush2.bf16.msra.mxu0 0
        %3443 = vmatprep.subr.bf16.mxu0 0
        %3444 = vmatpush2.bf16.msra.mxu0 0
        %3445 = vmatprep.subr.bf16.mxu0 0
        %3446 = vmatpush2.bf16.msra.mxu0 0
        %3447 = vmatprep.mubr.bf16.mxu0 0
        %3448 = vmatmul.mubr.bf16.gmra.mxu0 %v3413
        %v3449 = vpop.f32.mrf.mxu0
        %v3450 = vadd.f32 %v3398, %v3449
        %v3451 = vpop.f32.mrf.mxu0
        %v3452 = vpop.f32.mrf.mxu0
        %v3453 = vadd.f32 %v3398, %v3452
        %v3454 = vpop.f32.mrf.mxu0
        %3455 = vdwg.mxu0
        %3456 = vst [vmem:[%s15] sm:$0xff] %v3450
        %3457 = vst [vmem:[%s15 + $0x8] sm:$0xff] %v3453
      $region88: #{joint_ceeq_fwd.4} parent=79 // pred_fallthru
        _
      // Predicated region
      $region89: #{joint_ceeq_fwd.4} parent=79 // pred_check
        %p3458 = pneg %p394
      $region90: #{joint_ceeq_fwd.4} parent=79 // pred_check_branch
        %3460 = sbr.rel (%p3458) target = $region92
      $region91: #{joint_ceeq_fwd.4} parent=79 // pred_region
        _
      $region92: #{joint_ceeq_fwd.4} parent=79 // pred_fallthru
        _
      // Predicated region
      $region93: #{joint_ceeq_fwd.4} parent=79 // pred_check
        %p3461 = pneg %p394
      $region94: #{joint_ceeq_fwd.4} parent=79 // pred_check_branch
        %3463 = sbr.rel (%p3461) target = $region96
      $region95: #{joint_ceeq_fwd.4} parent=79 // pred_region
        _
      $region96: #{joint_ceeq_fwd.4} parent=79 // pred_fallthru
        _
    $region80: #{joint_ceeq_fwd.4} parent=5 // pred_fallthru
      _
    %p3464 = scmp.le.s32.totalorder 2, %s21
    // Predicated region
    $region97: #{joint_ceeq_fwd.4} parent=5 // pred_check
      %p3465 = pneg %p3464
    $region98: #{joint_ceeq_fwd.4} parent=5 // pred_check_branch
      %3467 = sbr.rel (%p3465) target = $region100
    $region99: #{joint_ceeq_fwd.4} parent=5 // pred_region
      %s3468 = ssub.s32 %s21, 2
    $region100: #{joint_ceeq_fwd.4} parent=5 // pred_fallthru
      _
  $region6: #{joint_ceeq_fwd.4} parent=0 // loop_footer
    %s25 = sadd.s32 1, %s21
  $region7: #{joint_ceeq_fwd.4} parent=0 // loop_footer_branch
    %20 = sbr.rel target = $region3
  $region8: #{joint_ceeq_fwd.4} parent=0 // loop_exit
    _

</llo_original>
